<compile_context>
chip_gen: v5e
topology: v5e:2x2
jax: 0.10.0
libtpu: 0.0.40
codegen_flags: <defaults>
</compile_context>

<pallas_src>
import functools
import math

import jax
import jax.numpy as jnp
from jax import lax
from jax.experimental import pallas as pl


# ----------------------------------------------------------------------------
# In-kernel helpers (operate on VMEM values inside the fused kernel).
# ----------------------------------------------------------------------------

def _softmax_rows(s):
    s = s - jnp.max(s, axis=-1, keepdims=True)
    p = jnp.exp(s)
    # divide on the EUP slot instead of the VALU path
    return p * pl.reciprocal(jnp.sum(p, axis=-1, keepdims=True), approx=True)


def _mab(Q2, K2, Wq, bq, Wkv, bkv, Wo, bo, *, B, nq, nk, H, V, scale):
    """Set-Transformer MAB (ln=False) on flattened (B*n, dim) operands.

    fc_k / fc_v fused into one (dK, 2V) matmul; head split/merge done with
    static lane slices in-register; scale = sqrt(dim_V) (matches reference).
    """
    Qp = jnp.dot(Q2, Wq, preferred_element_type=jnp.float32) + bq      # (B*nq, V)
    KV = jnp.dot(K2, Wkv, preferred_element_type=jnp.float32) + bkv    # (B*nk, 2V)
    Kp = KV[:, :V]
    Vp = KV[:, V:]
    d = V // H
    inv_scale = 1.0 / scale
    rows = []
    for b in range(B):                      # B, H static & tiny -> fully unrolled
        qb = Qp[b * nq:(b + 1) * nq, :]
        kb = Kp[b * nk:(b + 1) * nk, :]
        vb = Vp[b * nk:(b + 1) * nk, :]
        heads = []
        for h in range(H):
            q = qb[:, h * d:(h + 1) * d]
            k = kb[:, h * d:(h + 1) * d]
            v = vb[:, h * d:(h + 1) * d]
            s = jnp.dot(q, k.T, preferred_element_type=jnp.float32) * inv_scale
            p = _softmax_rows(s)
            heads.append(q + jnp.dot(p, v, preferred_element_type=jnp.float32))
        rows.append(jnp.concatenate(heads, axis=-1))
    O = jnp.concatenate(rows, axis=0) if B > 1 else rows[0]            # (B*nq, V)
    # ln=False:  O = O + relu(fc_o(O))
    return O + jnp.maximum(jnp.dot(O, Wo, preferred_element_type=jnp.float32) + bo,
                           0.0)


# ----------------------------------------------------------------------------
# The single fused kernel: GNN -> encoder (ISAB*depth) -> decoder (PMA, SAB*,
# Linear) -> prototype concat.  Gridless; every operand is a full-array VMEM
# block (total footprint ~100 KB).
# ----------------------------------------------------------------------------

def _fused_forward_kernel(
        # --- GNN part ---
        emb_ref, linW_ref, linb_ref, edge_ref, nid_ref,
        gW_ref, gatt_ref, gb_ref,
        # --- encoder (stacked over depth) ---
        I_ref,
        e0wq_ref, e0bq_ref, e0wkv_ref, e0bkv_ref, e0wo_ref, e0bo_ref,
        e1wq_ref, e1bq_ref, e1wkv_ref, e1bkv_ref, e1wo_ref, e1bo_ref,
        # --- decoder ---
        S_ref,
        pwq_ref, pbq_ref, pwkv_ref, pbkv_ref, pwo_ref, pbo_ref,
        swq_ref, sbq_ref, skv_ref, sbkv_ref, swo_ref, sbo_ref,
        wout_ref, bout_ref, prot_ref,
        # --- output ---
        o_ref,
        *, num_nodes, gnn_layers, B, ns, ni, nseed, H, V,
        enc_depth, sab_depth, scale):
    N = num_nodes

    # ---------------- GNN: embedding slice + Linear + GAT layers -------------
    x = jnp.dot(emb_ref[0:N, :], linW_ref[...],
                preferred_element_type=jnp.float32) + linb_ref[...]      # (N, G)

    # dense adjacency (target-row, source-col) built from edge_idx in-kernel
    e = edge_ref[...]                                                    # (2, E) i32
    src = e[0:1, :]                                                      # (1, E)
    dst = e[1:2, :]
    E = e.shape[1]
    row = lax.broadcasted_iota(jnp.int32, (N, E), 0)
    dst_m = (row == dst).astype(jnp.float32)                             # (N, E)
    src_m = (row == src).astype(jnp.float32)
    adj = jnp.dot(dst_m, src_m.T, preferred_element_type=jnp.float32)    # (N, N)
    eye = (lax.broadcasted_iota(jnp.int32, (N, N), 0)
           == lax.broadcasted_iota(jnp.int32, (N, N), 1)).astype(jnp.float32)
    adj = adj + eye                                                      # self loops

    for l in range(gnn_layers):
        h = jnp.dot(x, gW_ref[l], preferred_element_type=jnp.float32)    # (N, G)
        a = jnp.dot(h, gatt_ref[l], preferred_element_type=jnp.float32)  # (N, 2)
        sc = a[:, 1:2] + a[:, 0:1].T                                     # (N, N)
        sc = jnp.where(sc > 0, sc, 0.2 * sc)                             # LeakyReLU(0.2)
        sc = jnp.where(adj > 0, sc, -1e9)
        p = _softmax_rows(sc)
        x = jnp.dot(p, h, preferred_element_type=jnp.float32) + gb_ref[l]

    # row gather x[node_ids] via one-hot matmul (MXU-friendly, no dynamic gather)
    nid = nid_ref[...]                                                   # (B*S, 1) i32
    col = lax.broadcasted_iota(jnp.int32, (nid.shape[0], N), 1)
    onehot = (nid == col).astype(jnp.float32)                            # (B*S, N)
    X = jnp.dot(onehot, x, preferred_element_type=jnp.float32)           # (B*S, G)

    # ---------------- Encoder: ISAB * enc_depth ------------------------------
    for l in range(enc_depth):
        Iv = I_ref[l]                                                    # (ni, D)
        I2 = jnp.concatenate([Iv] * B, axis=0) if B > 1 else Iv          # (B*ni, D)
        Hm = _mab(I2, X, e0wq_ref[l], e0bq_ref[l], e0wkv_ref[l], e0bkv_ref[l],
                  e0wo_ref[l], e0bo_ref[l],
                  B=B, nq=ni, nk=ns, H=H, V=V, scale=scale)
        X = _mab(X, Hm, e1wq_ref[l], e1bq_ref[l], e1wkv_ref[l], e1bkv_ref[l],
                 e1wo_ref[l], e1bo_ref[l],
                 B=B, nq=ns, nk=ni, H=H, V=V, scale=scale)

    # ---------------- Decoder: PMA -> SAB*depth -> Linear --------------------
    Sv = S_ref[...]                                                      # (nseed, D)
    S2 = jnp.concatenate([Sv] * B, axis=0) if B > 1 else Sv              # (B*nseed, D)
    X = _mab(S2, X, pwq_ref[...], pbq_ref[...], pwkv_ref[...], pbkv_ref[...],
             pwo_ref[...], pbo_ref[...],
             B=B, nq=nseed, nk=ns, H=H, V=V, scale=scale)
    for l in range(sab_depth):
        X = _mab(X, X, swq_ref[l], sbq_ref[l], skv_ref[l], sbkv_ref[l],
                 swo_ref[l], sbo_ref[l],
                 B=B, nq=nseed, nk=nseed, H=H, V=V, scale=scale)
    Y = jnp.dot(X, wout_ref[...],
                preferred_element_type=jnp.float32) + bout_ref[...]      # (B*nseed, Dout)

    # concat with prototypes along the set axis, interleaved per batch row
    prot = prot_ref[...]                                                 # (P, Dout)
    rows = []
    for b in range(B):
        rows.append(Y[b * nseed:(b + 1) * nseed, :])
        rows.append(prot)
    o_ref[...] = jnp.concatenate(rows, axis=0)                           # (B*(nseed+P), Dout)


# ----------------------------------------------------------------------------
# Parameter init (weights already fused/stacked for the kernel)
# ----------------------------------------------------------------------------

def _init_linear(key, din, dout, scale=0.1):
    k1, k2 = jax.random.split(key)
    return (jax.random.normal(k1, (din, dout), jnp.float32) * scale,
            jax.random.normal(k2, (1, dout), jnp.float32) * scale)


def _init_mab(key, dim_Q, dim_K, dim_V):
    ks = jax.random.split(key, 4)
    Wq, bq = _init_linear(ks[0], dim_Q, dim_V)
    Wk, bk = _init_linear(ks[1], dim_K, dim_V)
    Wv, bv = _init_linear(ks[2], dim_K, dim_V)
    Wo, bo = _init_linear(ks[3], dim_V, dim_V)
    return {"Wq": Wq, "bq": bq,
            "Wkv": jnp.concatenate([Wk, Wv], axis=1),    # fused fc_k|fc_v
            "bkv": jnp.concatenate([bk, bv], axis=1),
            "Wo": Wo, "bo": bo}


def _stack_mabs(mabs):
    return {k: jnp.stack([m[k] for m in mabs], axis=0) for k in mabs[0]}


def init_our_model(key, cfg):
    ks = jax.random.split(key, 6)
    N, E, G = cfg["num_nodes"], cfg["embed_dim"], cfg["gnn_hidden_dim"]
    D = cfg["set_trans_hidden_dim"]

    node_embed = jax.random.normal(ks[0], (N + 1, E), jnp.float32)
    node_embed = node_embed.at[0].set(0.0)                    # padding_idx=0
    linW, linb = _init_linear(ks[1], E, G)

    L = cfg["gnn_layer"]
    gW, gatt, gb = [], [], []
    for gk in jax.random.split(ks[2], L):
        g1, g2, g3, g4 = jax.random.split(gk, 4)
        gW.append(jax.random.normal(g1, (G, G), jnp.float32) * 0.1)
        gatt.append(jnp.concatenate(                          # [att_src | att_dst]
            [jax.random.normal(g2, (G, 1), jnp.float32) * 0.1,
             jax.random.normal(g3, (G, 1), jnp.float32) * 0.1], axis=1))
        gb.append(jax.random.normal(g4, (1, G), jnp.float32) * 0.1)
    gnn = {"W": jnp.stack(gW, 0), "att": jnp.stack(gatt, 0), "b": jnp.stack(gb, 0)}

    # Set transformer.  NOTE: the reference builds every encoder ISAB with
    # dim_input (not dim_hidden); this only typechecks because G == D here.
    enc_depth = cfg["time_encoder_depth"]
    dec_depth = cfg["set_decoder_depth"]
    ni, nseed = cfg["num_inds"], cfg["set_trans_out_num"]
    out_dim = cfg["set_trans_out_dim"]

    I_all, mab0s, mab1s = [], [], []
    for ek in jax.random.split(ks[3], enc_depth):
        e1, e2, e3 = jax.random.split(ek, 3)
        I_all.append(jax.random.normal(e1, (ni, D), jnp.float32) * 0.1)
        mab0s.append(_init_mab(e2, D, G, D))                  # MAB(dim_out, dim_in, dim_out)
        mab1s.append(_init_mab(e3, G, D, D))                  # MAB(dim_in, dim_out, dim_out)
    encoder = {"I": jnp.stack(I_all, 0),
               "mab0": _stack_mabs(mab0s), "mab1": _stack_mabs(mab1s)}

    dkeys = jax.random.split(ks[4], dec_depth + 3)
    S = jax.random.normal(dkeys[0], (nseed, D), jnp.float32) * 0.1
    pma = _init_mab(dkeys[1], D, D, D)
    sab = _stack_mabs([_init_mab(dkeys[2 + i], D, D, D) for i in range(dec_depth)])
    Wout, bout = _init_linear(dkeys[-1], D, out_dim)
    decoder = {"S": S, "pma": pma, "sab": sab, "Wout": Wout, "bout": bout}

    prototypes = jax.random.normal(ks[5], (cfg["prototype_num"], out_dim), jnp.float32)
    # TODO(synk): self.head (Linear(time_trans_out_dim, out_dim)) is never used in forward -> omitted.
    return {"node_embed": node_embed, "linW": linW, "linb": linb, "gnn": gnn,
            "encoder": encoder, "decoder": decoder, "prototypes": prototypes}


# ----------------------------------------------------------------------------
# Forward: ONE pallas_call for the whole model
# ----------------------------------------------------------------------------

def our_model_forward(params, node_ids, edge_idx, edge_attr, cfg):
    del edge_attr  # TODO(synk): GATConv built with edge_dim=None ignores edge_attr.
    N = cfg["num_nodes"]
    D, H = cfg["set_trans_hidden_dim"], cfg["set_num_heads"]
    ni, nseed = cfg["num_inds"], cfg["set_trans_out_num"]
    out_dim, P = cfg["set_trans_out_dim"], cfg["prototype_num"]
    B, Sset = node_ids.shape
    scale = math.sqrt(D)   # sqrt(dim_V), intentional (matches Set Transformer ref)

    nid2 = node_ids.reshape(B * Sset, 1).astype(jnp.int32)
    edge_idx = edge_idx.astype(jnp.int32)

    gnn, enc, dec = params["gnn"], params["encoder"], params["decoder"]
    kern = functools.partial(
        _fused_forward_kernel,
        num_nodes=N, gnn_layers=cfg["gnn_layer"],
        B=B, ns=Sset, ni=ni, nseed=nseed, H=H, V=D,
        enc_depth=cfg["time_encoder_depth"], sab_depth=cfg["set_decoder_depth"],
        scale=scale)

    out = pl.pallas_call(
        kern,
        out_shape=jax.ShapeDtypeStruct((B * (nseed + P), out_dim), jnp.float32),
    )(params["node_embed"], params["linW"], params["linb"], edge_idx, nid2,
      gnn["W"], gnn["att"], gnn["b"],
      enc["I"],
      enc["mab0"]["Wq"], enc["mab0"]["bq"], enc["mab0"]["Wkv"], enc["mab0"]["bkv"],
      enc["mab0"]["Wo"], enc["mab0"]["bo"],
      enc["mab1"]["Wq"], enc["mab1"]["bq"], enc["mab1"]["Wkv"], enc["mab1"]["bkv"],
      enc["mab1"]["Wo"], enc["mab1"]["bo"],
      dec["S"],
      dec["pma"]["Wq"], dec["pma"]["bq"], dec["pma"]["Wkv"], dec["pma"]["bkv"],
      dec["pma"]["Wo"], dec["pma"]["bo"],
      dec["sab"]["Wq"], dec["sab"]["bq"], dec["sab"]["Wkv"], dec["sab"]["bkv"],
      dec["sab"]["Wo"], dec["sab"]["bo"],
      dec["Wout"], dec["bout"], params["prototypes"])

    # TODO(synk): reference forward has no return statement; returning the concat.
    return out.reshape(B, nseed + P, out_dim)


# ----------------------------------------------------------------------------
# main
# ----------------------------------------------------------------------------

if __name__ == "__main__":
    cfg = dict(num_nodes=16, num_edges=20, embed_dim=8,
               gnn_hidden_dim=32, set_trans_hidden_dim=32, set_trans_out_dim=16,
               prototype_num=5, set_num_heads=4,
               set_decoder_depth=2, set_trans_out_num=1,
               time_encoder_depth=2, gnn_layer=1, num_inds=1)

    root = jax.random.PRNGKey(0)
    pkey, dkey = jax.random.split(root)
    params = init_our_model(pkey, cfg)

    k1, k2, k3 = jax.random.split(dkey, 3)
    node_ids = jax.random.randint(k1, (2, 8), 0, cfg["num_nodes"])       # (batch=2, set=8)
    edge_idx = jax.random.randint(k2, (2, 24), 0, cfg["num_nodes"])      # (2, E)
    edge_attr = jax.random.randint(k3, (24,), 1, cfg["num_edges"] + 1)   # unused

    fwd = jax.jit(functools.partial(our_model_forward, cfg=cfg))
    out = fwd(params, node_ids, edge_idx, edge_attr)
    jax.block_until_ready(out)
    assert out.shape == (2, 1 + cfg["prototype_num"], cfg["set_trans_out_dim"])
    assert bool(jnp.all(jnp.isfinite(out)))
    print("KERNEL_OK")
</pallas_src>

<mosaic_0001>
module attributes {stable_mosaic.version = 11 : i64} {
  func.func @_fused_forward_kernel(%arg0: memref<17x8xf32, #tpu.memory_space<vmem>>, %arg1: memref<8x32xf32, #tpu.memory_space<vmem>>, %arg2: memref<1x32xf32, #tpu.memory_space<vmem>>, %arg3: memref<2x24xi32, #tpu.memory_space<vmem>>, %arg4: memref<16x1xi32, #tpu.memory_space<vmem>>, %arg5: memref<1x32x32xf32, #tpu.memory_space<vmem>>, %arg6: memref<1x32x2xf32, #tpu.memory_space<vmem>>, %arg7: memref<1x1x32xf32, #tpu.memory_space<vmem>>, %arg8: memref<2x1x32xf32, #tpu.memory_space<vmem>>, %arg9: memref<2x32x32xf32, #tpu.memory_space<vmem>>, %arg10: memref<2x1x32xf32, #tpu.memory_space<vmem>>, %arg11: memref<2x32x64xf32, #tpu.memory_space<vmem>>, %arg12: memref<2x1x64xf32, #tpu.memory_space<vmem>>, %arg13: memref<2x32x32xf32, #tpu.memory_space<vmem>>, %arg14: memref<2x1x32xf32, #tpu.memory_space<vmem>>, %arg15: memref<2x32x32xf32, #tpu.memory_space<vmem>>, %arg16: memref<2x1x32xf32, #tpu.memory_space<vmem>>, %arg17: memref<2x32x64xf32, #tpu.memory_space<vmem>>, %arg18: memref<2x1x64xf32, #tpu.memory_space<vmem>>, %arg19: memref<2x32x32xf32, #tpu.memory_space<vmem>>, %arg20: memref<2x1x32xf32, #tpu.memory_space<vmem>>, %arg21: memref<1x32xf32, #tpu.memory_space<vmem>>, %arg22: memref<32x32xf32, #tpu.memory_space<vmem>>, %arg23: memref<1x32xf32, #tpu.memory_space<vmem>>, %arg24: memref<32x64xf32, #tpu.memory_space<vmem>>, %arg25: memref<1x64xf32, #tpu.memory_space<vmem>>, %arg26: memref<32x32xf32, #tpu.memory_space<vmem>>, %arg27: memref<1x32xf32, #tpu.memory_space<vmem>>, %arg28: memref<2x32x32xf32, #tpu.memory_space<vmem>>, %arg29: memref<2x1x32xf32, #tpu.memory_space<vmem>>, %arg30: memref<2x32x64xf32, #tpu.memory_space<vmem>>, %arg31: memref<2x1x64xf32, #tpu.memory_space<vmem>>, %arg32: memref<2x32x32xf32, #tpu.memory_space<vmem>>, %arg33: memref<2x1x32xf32, #tpu.memory_space<vmem>>, %arg34: memref<32x16xf32, #tpu.memory_space<vmem>>, %arg35: memref<1x16xf32, #tpu.memory_space<vmem>>, %arg36: memref<5x16xf32, #tpu.memory_space<vmem>>, %arg37: memref<12x16xf32, #tpu.memory_space<vmem>>) attributes {dimension_semantics = [], scalar_prefetch = 0 : i64, scratch_operands = 0 : i64, tpu.core_type = #tpu.core_type<tc>} {
    %c0 = arith.constant 0 : index
    %c0_0 = arith.constant 0 : index
    %0 = vector.load %arg0[%c0, %c0_0] : memref<17x8xf32, #tpu.memory_space<vmem>>, vector<16x8xf32>
    %c0_1 = arith.constant 0 : index
    %c0_2 = arith.constant 0 : index
    %1 = vector.load %arg1[%c0_1, %c0_2] : memref<8x32xf32, #tpu.memory_space<vmem>>, vector<8x32xf32>
    %cst = arith.constant dense<0.000000e+00> : vector<16x32xf32>
    %2 = tpu.matmul %0, %1, %cst {dimension_numbers = #tpu.dot_dimension_numbers<[1], [0], [0], [1], [0, 0, 1, 1], [], []>} : vector<16x8xf32>, vector<8x32xf32>, vector<16x32xf32> -> vector<16x32xf32>
    %c0_3 = arith.constant 0 : index
    %c0_4 = arith.constant 0 : index
    %3 = vector.load %arg2[%c0_3, %c0_4] : memref<1x32xf32, #tpu.memory_space<vmem>>, vector<1x32xf32>
    %4 = vector.broadcast %3 : vector<1x32xf32> to vector<16x32xf32>
    %5 = arith.addf %2, %4 : vector<16x32xf32>
    %c0_5 = arith.constant 0 : index
    %c0_6 = arith.constant 0 : index
    %6 = vector.load %arg3[%c0_5, %c0_6] : memref<2x24xi32, #tpu.memory_space<vmem>>, vector<2x24xi32>
    %7 = vector.extract_strided_slice %6 {offsets = [0, 0], sizes = [1, 24], strides = [1, 1]} : vector<2x24xi32> to vector<1x24xi32>
    %8 = vector.extract_strided_slice %6 {offsets = [1, 0], sizes = [1, 24], strides = [1, 1]} : vector<2x24xi32> to vector<1x24xi32>
    %9 = tpu.iota {dimensions = array<i32: 0>} : vector<16x24xi32>
    %10 = vector.broadcast %8 : vector<1x24xi32> to vector<16x24xi32>
    %11 = arith.cmpi eq, %9, %10 : vector<16x24xi32>
    %12 = arith.extui %11 : vector<16x24xi1> to vector<16x24xi32>
    %13 = arith.sitofp %12 : vector<16x24xi32> to vector<16x24xf32>
    %14 = vector.broadcast %7 : vector<1x24xi32> to vector<16x24xi32>
    %15 = arith.cmpi eq, %9, %14 : vector<16x24xi32>
    %16 = arith.extui %15 : vector<16x24xi1> to vector<16x24xi32>
    %17 = arith.sitofp %16 : vector<16x24xi32> to vector<16x24xf32>
    %18 = tpu.transpose %17, [1, 0] : vector<16x24xf32> -> vector<24x16xf32>
    %cst_7 = arith.constant dense<0.000000e+00> : vector<16x16xf32>
    %19 = tpu.matmul %13, %18, %cst_7 {dimension_numbers = #tpu.dot_dimension_numbers<[1], [0], [0], [1], [0, 0, 1, 1], [], []>} : vector<16x24xf32>, vector<24x16xf32>, vector<16x16xf32> -> vector<16x16xf32>
    %20 = tpu.iota {dimensions = array<i32: 0>} : vector<16x16xi32>
    %21 = tpu.iota {dimensions = array<i32: 1>} : vector<16x16xi32>
    %22 = arith.cmpi eq, %20, %21 : vector<16x16xi32>
    %23 = arith.extui %22 : vector<16x16xi1> to vector<16x16xi32>
    %24 = arith.sitofp %23 : vector<16x16xi32> to vector<16x16xf32>
    %25 = arith.addf %19, %24 : vector<16x16xf32>
    %c0_8 = arith.constant 0 : index
    %c0_9 = arith.constant 0 : index
    %c0_10 = arith.constant 0 : index
    %26 = vector.load %arg5[%c0_8, %c0_9, %c0_10] : memref<1x32x32xf32, #tpu.memory_space<vmem>>, vector<1x32x32xf32>
    %27 = vector.shape_cast %26 : vector<1x32x32xf32> to vector<32x32xf32>
    %cst_11 = arith.constant dense<0.000000e+00> : vector<16x32xf32>
    %28 = tpu.matmul %5, %27, %cst_11 {dimension_numbers = #tpu.dot_dimension_numbers<[1], [0], [0], [1], [0, 0, 1, 1], [], []>} : vector<16x32xf32>, vector<32x32xf32>, vector<16x32xf32> -> vector<16x32xf32>
    %c0_12 = arith.constant 0 : index
    %c0_13 = arith.constant 0 : index
    %c0_14 = arith.constant 0 : index
    %29 = vector.load %arg6[%c0_12, %c0_13, %c0_14] : memref<1x32x2xf32, #tpu.memory_space<vmem>>, vector<1x32x2xf32>
    %30 = vector.shape_cast %29 : vector<1x32x2xf32> to vector<32x2xf32>
    %cst_15 = arith.constant dense<0.000000e+00> : vector<16x2xf32>
    %31 = tpu.matmul %28, %30, %cst_15 {dimension_numbers = #tpu.dot_dimension_numbers<[1], [0], [0], [1], [0, 0, 1, 1], [], []>} : vector<16x32xf32>, vector<32x2xf32>, vector<16x2xf32> -> vector<16x2xf32>
    %32 = vector.extract_strided_slice %31 {offsets = [0, 1], sizes = [16, 1], strides = [1, 1]} : vector<16x2xf32> to vector<16x1xf32>
    %33 = vector.extract_strided_slice %31 {offsets = [0, 0], sizes = [16, 1], strides = [1, 1]} : vector<16x2xf32> to vector<16x1xf32>
    %34 = tpu.transpose %33, [1, 0] : vector<16x1xf32> -> vector<1x16xf32>
    %35 = vector.broadcast %32 : vector<16x1xf32> to vector<16x16xf32>
    %36 = vector.broadcast %34 : vector<1x16xf32> to vector<16x16xf32>
    %37 = arith.addf %35, %36 : vector<16x16xf32>
    %cst_16 = arith.constant 0.000000e+00 : f32
    %38 = vector.broadcast %cst_16 : f32 to vector<16x16xf32>
    %39 = arith.cmpf ogt, %37, %38 : vector<16x16xf32>
    %cst_17 = arith.constant 2.000000e-01 : f32
    %40 = vector.broadcast %cst_17 : f32 to vector<16x16xf32>
    %41 = arith.mulf %40, %37 : vector<16x16xf32>
    %42 = arith.select %39, %37, %41 : vector<16x16xi1>, vector<16x16xf32>
    %cst_18 = arith.constant 0.000000e+00 : f32
    %43 = vector.broadcast %cst_18 : f32 to vector<16x16xf32>
    %44 = arith.cmpf ogt, %25, %43 : vector<16x16xf32>
    %cst_19 = arith.constant -1.000000e+09 : f32
    %45 = vector.broadcast %cst_19 : f32 to vector<16x16xf32>
    %46 = arith.select %44, %42, %45 : vector<16x16xi1>, vector<16x16xf32>
    %cst_20 = arith.constant dense<0xFF800000> : vector<16xf32>
    %47 = vector.multi_reduction <maximumf>, %46, %cst_20 [1] : vector<16x16xf32> to vector<16xf32>
    %48 = vector.shape_cast %47 : vector<16xf32> to vector<16x1xf32>
    %49 = vector.broadcast %48 : vector<16x1xf32> to vector<16x16xf32>
    %50 = arith.subf %46, %49 : vector<16x16xf32>
    %51 = math.exp %50 : vector<16x16xf32>
    %cst_21 = arith.constant dense<0.000000e+00> : vector<16xf32>
    %52 = vector.multi_reduction <add>, %51, %cst_21 [1] : vector<16x16xf32> to vector<16xf32>
    %53 = vector.shape_cast %52 : vector<16xf32> to vector<16x1xf32>
    %54 = tpu.reciprocal %53 {approx = true} : vector<16x1xf32> -> vector<16x1xf32>
    %55 = vector.broadcast %54 : vector<16x1xf32> to vector<16x16xf32>
    %56 = arith.mulf %51, %55 : vector<16x16xf32>
    %cst_22 = arith.constant dense<0.000000e+00> : vector<16x32xf32>
    %57 = tpu.matmul %56, %28, %cst_22 {dimension_numbers = #tpu.dot_dimension_numbers<[1], [0], [0], [1], [0, 0, 1, 1], [], []>} : vector<16x16xf32>, vector<16x32xf32>, vector<16x32xf32> -> vector<16x32xf32>
    %c0_23 = arith.constant 0 : index
    %c0_24 = arith.constant 0 : index
    %c0_25 = arith.constant 0 : index
    %58 = vector.load %arg7[%c0_23, %c0_24, %c0_25] : memref<1x1x32xf32, #tpu.memory_space<vmem>>, vector<1x1x32xf32>
    %59 = vector.shape_cast %58 : vector<1x1x32xf32> to vector<1x32xf32>
    %60 = vector.broadcast %59 : vector<1x32xf32> to vector<16x32xf32>
    %61 = arith.addf %57, %60 : vector<16x32xf32>
    %c0_26 = arith.constant 0 : index
    %c0_27 = arith.constant 0 : index
    %62 = vector.load %arg4[%c0_26, %c0_27] : memref<16x1xi32, #tpu.memory_space<vmem>>, vector<16x1xi32>
    %63 = tpu.iota {dimensions = array<i32: 1>} : vector<16x16xi32>
    %64 = vector.broadcast %62 : vector<16x1xi32> to vector<16x16xi32>
    %65 = arith.cmpi eq, %64, %63 : vector<16x16xi32>
    %66 = arith.extui %65 : vector<16x16xi1> to vector<16x16xi32>
    %67 = arith.sitofp %66 : vector<16x16xi32> to vector<16x16xf32>
    %cst_28 = arith.constant dense<0.000000e+00> : vector<16x32xf32>
    %68 = tpu.matmul %67, %61, %cst_28 {dimension_numbers = #tpu.dot_dimension_numbers<[1], [0], [0], [1], [0, 0, 1, 1], [], []>} : vector<16x16xf32>, vector<16x32xf32>, vector<16x32xf32> -> vector<16x32xf32>
    %c0_29 = arith.constant 0 : index
    %c0_30 = arith.constant 0 : index
    %c0_31 = arith.constant 0 : index
    %69 = vector.load %arg8[%c0_29, %c0_30, %c0_31] : memref<2x1x32xf32, #tpu.memory_space<vmem>>, vector<1x1x32xf32>
    %70 = vector.shape_cast %69 : vector<1x1x32xf32> to vector<1x32xf32>
    %71 = tpu.concatenate %70, %70 in 0 : vector<1x32xf32>, vector<1x32xf32> -> vector<2x32xf32>
    %c0_32 = arith.constant 0 : index
    %c0_33 = arith.constant 0 : index
    %c0_34 = arith.constant 0 : index
    %72 = vector.load %arg9[%c0_32, %c0_33, %c0_34] : memref<2x32x32xf32, #tpu.memory_space<vmem>>, vector<1x32x32xf32>
    %73 = vector.shape_cast %72 : vector<1x32x32xf32> to vector<32x32xf32>
    %c0_35 = arith.constant 0 : index
    %c0_36 = arith.constant 0 : index
    %c0_37 = arith.constant 0 : index
    %74 = vector.load %arg10[%c0_35, %c0_36, %c0_37] : memref<2x1x32xf32, #tpu.memory_space<vmem>>, vector<1x1x32xf32>
    %75 = vector.shape_cast %74 : vector<1x1x32xf32> to vector<1x32xf32>
    %c0_38 = arith.constant 0 : index
    %c0_39 = arith.constant 0 : index
    %c0_40 = arith.constant 0 : index
    %76 = vector.load %arg11[%c0_38, %c0_39, %c0_40] : memref<2x32x64xf32, #tpu.memory_space<vmem>>, vector<1x32x64xf32>
    %77 = vector.shape_cast %76 : vector<1x32x64xf32> to vector<32x64xf32>
    %c0_41 = arith.constant 0 : index
    %c0_42 = arith.constant 0 : index
    %c0_43 = arith.constant 0 : index
    %78 = vector.load %arg12[%c0_41, %c0_42, %c0_43] : memref<2x1x64xf32, #tpu.memory_space<vmem>>, vector<1x1x64xf32>
    %79 = vector.shape_cast %78 : vector<1x1x64xf32> to vector<1x64xf32>
    %c0_44 = arith.constant 0 : index
    %c0_45 = arith.constant 0 : index
    %c0_46 = arith.constant 0 : index
    %80 = vector.load %arg13[%c0_44, %c0_45, %c0_46] : memref<2x32x32xf32, #tpu.memory_space<vmem>>, vector<1x32x32xf32>
    %81 = vector.shape_cast %80 : vector<1x32x32xf32> to vector<32x32xf32>
    %c0_47 = arith.constant 0 : index
    %c0_48 = arith.constant 0 : index
    %c0_49 = arith.constant 0 : index
    %82 = vector.load %arg14[%c0_47, %c0_48, %c0_49] : memref<2x1x32xf32, #tpu.memory_space<vmem>>, vector<1x1x32xf32>
    %83 = vector.shape_cast %82 : vector<1x1x32xf32> to vector<1x32xf32>
    %cst_50 = arith.constant dense<0.000000e+00> : vector<2x32xf32>
    %84 = tpu.matmul %71, %73, %cst_50 {dimension_numbers = #tpu.dot_dimension_numbers<[1], [0], [0], [1], [0, 0, 1, 1], [], []>} : vector<2x32xf32>, vector<32x32xf32>, vector<2x32xf32> -> vector<2x32xf32>
    %85 = vector.broadcast %75 : vector<1x32xf32> to vector<2x32xf32>
    %86 = arith.addf %84, %85 : vector<2x32xf32>
    %cst_51 = arith.constant dense<0.000000e+00> : vector<16x64xf32>
    %87 = tpu.matmul %68, %77, %cst_51 {dimension_numbers = #tpu.dot_dimension_numbers<[1], [0], [0], [1], [0, 0, 1, 1], [], []>} : vector<16x32xf32>, vector<32x64xf32>, vector<16x64xf32> -> vector<16x64xf32>
    %88 = vector.broadcast %79 : vector<1x64xf32> to vector<16x64xf32>
    %89 = arith.addf %87, %88 : vector<16x64xf32>
    %90 = vector.extract_strided_slice %89 {offsets = [0, 0], sizes = [16, 32], strides = [1, 1]} : vector<16x64xf32> to vector<16x32xf32>
    %91 = vector.extract_strided_slice %89 {offsets = [0, 32], sizes = [16, 32], strides = [1, 1]} : vector<16x64xf32> to vector<16x32xf32>
    %92 = vector.extract_strided_slice %86 {offsets = [0, 0], sizes = [1, 32], strides = [1, 1]} : vector<2x32xf32> to vector<1x32xf32>
    %93 = vector.extract_strided_slice %90 {offsets = [0, 0], sizes = [8, 32], strides = [1, 1]} : vector<16x32xf32> to vector<8x32xf32>
    %94 = vector.extract_strided_slice %91 {offsets = [0, 0], sizes = [8, 32], strides = [1, 1]} : vector<16x32xf32> to vector<8x32xf32>
    %95 = vector.extract_strided_slice %92 {offsets = [0, 0], sizes = [1, 8], strides = [1, 1]} : vector<1x32xf32> to vector<1x8xf32>
    %96 = vector.extract_strided_slice %93 {offsets = [0, 0], sizes = [8, 8], strides = [1, 1]} : vector<8x32xf32> to vector<8x8xf32>
    %97 = vector.extract_strided_slice %94 {offsets = [0, 0], sizes = [8, 8], strides = [1, 1]} : vector<8x32xf32> to vector<8x8xf32>
    %98 = tpu.transpose %96, [1, 0] : vector<8x8xf32> -> vector<8x8xf32>
    %cst_52 = arith.constant dense<0.000000e+00> : vector<1x8xf32>
    %99 = tpu.matmul %95, %98, %cst_52 {dimension_numbers = #tpu.dot_dimension_numbers<[1], [0], [0], [1], [0, 0, 1, 1], [], []>} : vector<1x8xf32>, vector<8x8xf32>, vector<1x8xf32> -> vector<1x8xf32>
    %cst_53 = arith.constant 0.176776692 : f32
    %100 = vector.broadcast %cst_53 : f32 to vector<1x8xf32>
    %101 = arith.mulf %99, %100 : vector<1x8xf32>
    %cst_54 = arith.constant dense<0xFF800000> : vector<1xf32>
    %102 = vector.multi_reduction <maximumf>, %101, %cst_54 [1] : vector<1x8xf32> to vector<1xf32>
    %103 = vector.shape_cast %102 : vector<1xf32> to vector<1x1xf32>
    %104 = vector.broadcast %103 : vector<1x1xf32> to vector<1x8xf32>
    %105 = arith.subf %101, %104 : vector<1x8xf32>
    %106 = math.exp %105 : vector<1x8xf32>
    %cst_55 = arith.constant dense<0.000000e+00> : vector<1xf32>
    %107 = vector.multi_reduction <add>, %106, %cst_55 [1] : vector<1x8xf32> to vector<1xf32>
    %108 = vector.shape_cast %107 : vector<1xf32> to vector<1x1xf32>
    %109 = tpu.reciprocal %108 {approx = true} : vector<1x1xf32> -> vector<1x1xf32>
    %110 = vector.broadcast %109 : vector<1x1xf32> to vector<1x8xf32>
    %111 = arith.mulf %106, %110 : vector<1x8xf32>
    %cst_56 = arith.constant dense<0.000000e+00> : vector<1x8xf32>
    %112 = tpu.matmul %111, %97, %cst_56 {dimension_numbers = #tpu.dot_dimension_numbers<[1], [0], [0], [1], [0, 0, 1, 1], [], []>} : vector<1x8xf32>, vector<8x8xf32>, vector<1x8xf32> -> vector<1x8xf32>
    %113 = arith.addf %95, %112 : vector<1x8xf32>
    %114 = vector.extract_strided_slice %92 {offsets = [0, 8], sizes = [1, 8], strides = [1, 1]} : vector<1x32xf32> to vector<1x8xf32>
    %115 = vector.extract_strided_slice %93 {offsets = [0, 8], sizes = [8, 8], strides = [1, 1]} : vector<8x32xf32> to vector<8x8xf32>
    %116 = vector.extract_strided_slice %94 {offsets = [0, 8], sizes = [8, 8], strides = [1, 1]} : vector<8x32xf32> to vector<8x8xf32>
    %117 = tpu.transpose %115, [1, 0] : vector<8x8xf32> -> vector<8x8xf32>
    %cst_57 = arith.constant dense<0.000000e+00> : vector<1x8xf32>
    %118 = tpu.matmul %114, %117, %cst_57 {dimension_numbers = #tpu.dot_dimension_numbers<[1], [0], [0], [1], [0, 0, 1, 1], [], []>} : vector<1x8xf32>, vector<8x8xf32>, vector<1x8xf32> -> vector<1x8xf32>
    %cst_58 = arith.constant 0.176776692 : f32
    %119 = vector.broadcast %cst_58 : f32 to vector<1x8xf32>
    %120 = arith.mulf %118, %119 : vector<1x8xf32>
    %cst_59 = arith.constant dense<0xFF800000> : vector<1xf32>
    %121 = vector.multi_reduction <maximumf>, %120, %cst_59 [1] : vector<1x8xf32> to vector<1xf32>
    %122 = vector.shape_cast %121 : vector<1xf32> to vector<1x1xf32>
    %123 = vector.broadcast %122 : vector<1x1xf32> to vector<1x8xf32>
    %124 = arith.subf %120, %123 : vector<1x8xf32>
    %125 = math.exp %124 : vector<1x8xf32>
    %cst_60 = arith.constant dense<0.000000e+00> : vector<1xf32>
    %126 = vector.multi_reduction <add>, %125, %cst_60 [1] : vector<1x8xf32> to vector<1xf32>
    %127 = vector.shape_cast %126 : vector<1xf32> to vector<1x1xf32>
    %128 = tpu.reciprocal %127 {approx = true} : vector<1x1xf32> -> vector<1x1xf32>
    %129 = vector.broadcast %128 : vector<1x1xf32> to vector<1x8xf32>
    %130 = arith.mulf %125, %129 : vector<1x8xf32>
    %cst_61 = arith.constant dense<0.000000e+00> : vector<1x8xf32>
    %131 = tpu.matmul %130, %116, %cst_61 {dimension_numbers = #tpu.dot_dimension_numbers<[1], [0], [0], [1], [0, 0, 1, 1], [], []>} : vector<1x8xf32>, vector<8x8xf32>, vector<1x8xf32> -> vector<1x8xf32>
    %132 = arith.addf %114, %131 : vector<1x8xf32>
    %133 = vector.extract_strided_slice %92 {offsets = [0, 16], sizes = [1, 8], strides = [1, 1]} : vector<1x32xf32> to vector<1x8xf32>
    %134 = vector.extract_strided_slice %93 {offsets = [0, 16], sizes = [8, 8], strides = [1, 1]} : vector<8x32xf32> to vector<8x8xf32>
    %135 = vector.extract_strided_slice %94 {offsets = [0, 16], sizes = [8, 8], strides = [1, 1]} : vector<8x32xf32> to vector<8x8xf32>
    %136 = tpu.transpose %134, [1, 0] : vector<8x8xf32> -> vector<8x8xf32>
    %cst_62 = arith.constant dense<0.000000e+00> : vector<1x8xf32>
    %137 = tpu.matmul %133, %136, %cst_62 {dimension_numbers = #tpu.dot_dimension_numbers<[1], [0], [0], [1], [0, 0, 1, 1], [], []>} : vector<1x8xf32>, vector<8x8xf32>, vector<1x8xf32> -> vector<1x8xf32>
    %cst_63 = arith.constant 0.176776692 : f32
    %138 = vector.broadcast %cst_63 : f32 to vector<1x8xf32>
    %139 = arith.mulf %137, %138 : vector<1x8xf32>
    %cst_64 = arith.constant dense<0xFF800000> : vector<1xf32>
    %140 = vector.multi_reduction <maximumf>, %139, %cst_64 [1] : vector<1x8xf32> to vector<1xf32>
    %141 = vector.shape_cast %140 : vector<1xf32> to vector<1x1xf32>
    %142 = vector.broadcast %141 : vector<1x1xf32> to vector<1x8xf32>
    %143 = arith.subf %139, %142 : vector<1x8xf32>
    %144 = math.exp %143 : vector<1x8xf32>
    %cst_65 = arith.constant dense<0.000000e+00> : vector<1xf32>
    %145 = vector.multi_reduction <add>, %144, %cst_65 [1] : vector<1x8xf32> to vector<1xf32>
    %146 = vector.shape_cast %145 : vector<1xf32> to vector<1x1xf32>
    %147 = tpu.reciprocal %146 {approx = true} : vector<1x1xf32> -> vector<1x1xf32>
    %148 = vector.broadcast %147 : vector<1x1xf32> to vector<1x8xf32>
    %149 = arith.mulf %144, %148 : vector<1x8xf32>
    %cst_66 = arith.constant dense<0.000000e+00> : vector<1x8xf32>
    %150 = tpu.matmul %149, %135, %cst_66 {dimension_numbers = #tpu.dot_dimension_numbers<[1], [0], [0], [1], [0, 0, 1, 1], [], []>} : vector<1x8xf32>, vector<8x8xf32>, vector<1x8xf32> -> vector<1x8xf32>
    %151 = arith.addf %133, %150 : vector<1x8xf32>
    %152 = vector.extract_strided_slice %92 {offsets = [0, 24], sizes = [1, 8], strides = [1, 1]} : vector<1x32xf32> to vector<1x8xf32>
    %153 = vector.extract_strided_slice %93 {offsets = [0, 24], sizes = [8, 8], strides = [1, 1]} : vector<8x32xf32> to vector<8x8xf32>
    %154 = vector.extract_strided_slice %94 {offsets = [0, 24], sizes = [8, 8], strides = [1, 1]} : vector<8x32xf32> to vector<8x8xf32>
    %155 = tpu.transpose %153, [1, 0] : vector<8x8xf32> -> vector<8x8xf32>
    %cst_67 = arith.constant dense<0.000000e+00> : vector<1x8xf32>
    %156 = tpu.matmul %152, %155, %cst_67 {dimension_numbers = #tpu.dot_dimension_numbers<[1], [0], [0], [1], [0, 0, 1, 1], [], []>} : vector<1x8xf32>, vector<8x8xf32>, vector<1x8xf32> -> vector<1x8xf32>
    %cst_68 = arith.constant 0.176776692 : f32
    %157 = vector.broadcast %cst_68 : f32 to vector<1x8xf32>
    %158 = arith.mulf %156, %157 : vector<1x8xf32>
    %cst_69 = arith.constant dense<0xFF800000> : vector<1xf32>
    %159 = vector.multi_reduction <maximumf>, %158, %cst_69 [1] : vector<1x8xf32> to vector<1xf32>
    %160 = vector.shape_cast %159 : vector<1xf32> to vector<1x1xf32>
    %161 = vector.broadcast %160 : vector<1x1xf32> to vector<1x8xf32>
    %162 = arith.subf %158, %161 : vector<1x8xf32>
    %163 = math.exp %162 : vector<1x8xf32>
    %cst_70 = arith.constant dense<0.000000e+00> : vector<1xf32>
    %164 = vector.multi_reduction <add>, %163, %cst_70 [1] : vector<1x8xf32> to vector<1xf32>
    %165 = vector.shape_cast %164 : vector<1xf32> to vector<1x1xf32>
    %166 = tpu.reciprocal %165 {approx = true} : vector<1x1xf32> -> vector<1x1xf32>
    %167 = vector.broadcast %166 : vector<1x1xf32> to vector<1x8xf32>
    %168 = arith.mulf %163, %167 : vector<1x8xf32>
    %cst_71 = arith.constant dense<0.000000e+00> : vector<1x8xf32>
    %169 = tpu.matmul %168, %154, %cst_71 {dimension_numbers = #tpu.dot_dimension_numbers<[1], [0], [0], [1], [0, 0, 1, 1], [], []>} : vector<1x8xf32>, vector<8x8xf32>, vector<1x8xf32> -> vector<1x8xf32>
    %170 = arith.addf %152, %169 : vector<1x8xf32>
    %171 = tpu.concatenate %113, %132, %151, %170 in 1 : vector<1x8xf32>, vector<1x8xf32>, vector<1x8xf32>, vector<1x8xf32> -> vector<1x32xf32>
    %172 = vector.extract_strided_slice %86 {offsets = [1, 0], sizes = [1, 32], strides = [1, 1]} : vector<2x32xf32> to vector<1x32xf32>
    %173 = vector.extract_strided_slice %90 {offsets = [8, 0], sizes = [8, 32], strides = [1, 1]} : vector<16x32xf32> to vector<8x32xf32>
    %174 = vector.extract_strided_slice %91 {offsets = [8, 0], sizes = [8, 32], strides = [1, 1]} : vector<16x32xf32> to vector<8x32xf32>
    %175 = vector.extract_strided_slice %172 {offsets = [0, 0], sizes = [1, 8], strides = [1, 1]} : vector<1x32xf32> to vector<1x8xf32>
    %176 = vector.extract_strided_slice %173 {offsets = [0, 0], sizes = [8, 8], strides = [1, 1]} : vector<8x32xf32> to vector<8x8xf32>
    %177 = vector.extract_strided_slice %174 {offsets = [0, 0], sizes = [8, 8], strides = [1, 1]} : vector<8x32xf32> to vector<8x8xf32>
    %178 = tpu.transpose %176, [1, 0] : vector<8x8xf32> -> vector<8x8xf32>
    %cst_72 = arith.constant dense<0.000000e+00> : vector<1x8xf32>
    %179 = tpu.matmul %175, %178, %cst_72 {dimension_numbers = #tpu.dot_dimension_numbers<[1], [0], [0], [1], [0, 0, 1, 1], [], []>} : vector<1x8xf32>, vector<8x8xf32>, vector<1x8xf32> -> vector<1x8xf32>
    %cst_73 = arith.constant 0.176776692 : f32
    %180 = vector.broadcast %cst_73 : f32 to vector<1x8xf32>
    %181 = arith.mulf %179, %180 : vector<1x8xf32>
    %cst_74 = arith.constant dense<0xFF800000> : vector<1xf32>
    %182 = vector.multi_reduction <maximumf>, %181, %cst_74 [1] : vector<1x8xf32> to vector<1xf32>
    %183 = vector.shape_cast %182 : vector<1xf32> to vector<1x1xf32>
    %184 = vector.broadcast %183 : vector<1x1xf32> to vector<1x8xf32>
    %185 = arith.subf %181, %184 : vector<1x8xf32>
    %186 = math.exp %185 : vector<1x8xf32>
    %cst_75 = arith.constant dense<0.000000e+00> : vector<1xf32>
    %187 = vector.multi_reduction <add>, %186, %cst_75 [1] : vector<1x8xf32> to vector<1xf32>
    %188 = vector.shape_cast %187 : vector<1xf32> to vector<1x1xf32>
    %189 = tpu.reciprocal %188 {approx = true} : vector<1x1xf32> -> vector<1x1xf32>
    %190 = vector.broadcast %189 : vector<1x1xf32> to vector<1x8xf32>
    %191 = arith.mulf %186, %190 : vector<1x8xf32>
    %cst_76 = arith.constant dense<0.000000e+00> : vector<1x8xf32>
    %192 = tpu.matmul %191, %177, %cst_76 {dimension_numbers = #tpu.dot_dimension_numbers<[1], [0], [0], [1], [0, 0, 1, 1], [], []>} : vector<1x8xf32>, vector<8x8xf32>, vector<1x8xf32> -> vector<1x8xf32>
    %193 = arith.addf %175, %192 : vector<1x8xf32>
    %194 = vector.extract_strided_slice %172 {offsets = [0, 8], sizes = [1, 8], strides = [1, 1]} : vector<1x32xf32> to vector<1x8xf32>
    %195 = vector.extract_strided_slice %173 {offsets = [0, 8], sizes = [8, 8], strides = [1, 1]} : vector<8x32xf32> to vector<8x8xf32>
    %196 = vector.extract_strided_slice %174 {offsets = [0, 8], sizes = [8, 8], strides = [1, 1]} : vector<8x32xf32> to vector<8x8xf32>
    %197 = tpu.transpose %195, [1, 0] : vector<8x8xf32> -> vector<8x8xf32>
    %cst_77 = arith.constant dense<0.000000e+00> : vector<1x8xf32>
    %198 = tpu.matmul %194, %197, %cst_77 {dimension_numbers = #tpu.dot_dimension_numbers<[1], [0], [0], [1], [0, 0, 1, 1], [], []>} : vector<1x8xf32>, vector<8x8xf32>, vector<1x8xf32> -> vector<1x8xf32>
    %cst_78 = arith.constant 0.176776692 : f32
    %199 = vector.broadcast %cst_78 : f32 to vector<1x8xf32>
    %200 = arith.mulf %198, %199 : vector<1x8xf32>
    %cst_79 = arith.constant dense<0xFF800000> : vector<1xf32>
    %201 = vector.multi_reduction <maximumf>, %200, %cst_79 [1] : vector<1x8xf32> to vector<1xf32>
    %202 = vector.shape_cast %201 : vector<1xf32> to vector<1x1xf32>
    %203 = vector.broadcast %202 : vector<1x1xf32> to vector<1x8xf32>
    %204 = arith.subf %200, %203 : vector<1x8xf32>
    %205 = math.exp %204 : vector<1x8xf32>
    %cst_80 = arith.constant dense<0.000000e+00> : vector<1xf32>
    %206 = vector.multi_reduction <add>, %205, %cst_80 [1] : vector<1x8xf32> to vector<1xf32>
    %207 = vector.shape_cast %206 : vector<1xf32> to vector<1x1xf32>
    %208 = tpu.reciprocal %207 {approx = true} : vector<1x1xf32> -> vector<1x1xf32>
    %209 = vector.broadcast %208 : vector<1x1xf32> to vector<1x8xf32>
    %210 = arith.mulf %205, %209 : vector<1x8xf32>
    %cst_81 = arith.constant dense<0.000000e+00> : vector<1x8xf32>
    %211 = tpu.matmul %210, %196, %cst_81 {dimension_numbers = #tpu.dot_dimension_numbers<[1], [0], [0], [1], [0, 0, 1, 1], [], []>} : vector<1x8xf32>, vector<8x8xf32>, vector<1x8xf32> -> vector<1x8xf32>
    %212 = arith.addf %194, %211 : vector<1x8xf32>
    %213 = vector.extract_strided_slice %172 {offsets = [0, 16], sizes = [1, 8], strides = [1, 1]} : vector<1x32xf32> to vector<1x8xf32>
    %214 = vector.extract_strided_slice %173 {offsets = [0, 16], sizes = [8, 8], strides = [1, 1]} : vector<8x32xf32> to vector<8x8xf32>
    %215 = vector.extract_strided_slice %174 {offsets = [0, 16], sizes = [8, 8], strides = [1, 1]} : vector<8x32xf32> to vector<8x8xf32>
    %216 = tpu.transpose %214, [1, 0] : vector<8x8xf32> -> vector<8x8xf32>
    %cst_82 = arith.constant dense<0.000000e+00> : vector<1x8xf32>
    %217 = tpu.matmul %213, %216, %cst_82 {dimension_numbers = #tpu.dot_dimension_numbers<[1], [0], [0], [1], [0, 0, 1, 1], [], []>} : vector<1x8xf32>, vector<8x8xf32>, vector<1x8xf32> -> vector<1x8xf32>
    %cst_83 = arith.constant 0.176776692 : f32
    %218 = vector.broadcast %cst_83 : f32 to vector<1x8xf32>
    %219 = arith.mulf %217, %218 : vector<1x8xf32>
    %cst_84 = arith.constant dense<0xFF800000> : vector<1xf32>
    %220 = vector.multi_reduction <maximumf>, %219, %cst_84 [1] : vector<1x8xf32> to vector<1xf32>
    %221 = vector.shape_cast %220 : vector<1xf32> to vector<1x1xf32>
    %222 = vector.broadcast %221 : vector<1x1xf32> to vector<1x8xf32>
    %223 = arith.subf %219, %222 : vector<1x8xf32>
    %224 = math.exp %223 : vector<1x8xf32>
    %cst_85 = arith.constant dense<0.000000e+00> : vector<1xf32>
    %225 = vector.multi_reduction <add>, %224, %cst_85 [1] : vector<1x8xf32> to vector<1xf32>
    %226 = vector.shape_cast %225 : vector<1xf32> to vector<1x1xf32>
    %227 = tpu.reciprocal %226 {approx = true} : vector<1x1xf32> -> vector<1x1xf32>
    %228 = vector.broadcast %227 : vector<1x1xf32> to vector<1x8xf32>
    %229 = arith.mulf %224, %228 : vector<1x8xf32>
    %cst_86 = arith.constant dense<0.000000e+00> : vector<1x8xf32>
    %230 = tpu.matmul %229, %215, %cst_86 {dimension_numbers = #tpu.dot_dimension_numbers<[1], [0], [0], [1], [0, 0, 1, 1], [], []>} : vector<1x8xf32>, vector<8x8xf32>, vector<1x8xf32> -> vector<1x8xf32>
    %231 = arith.addf %213, %230 : vector<1x8xf32>
    %232 = vector.extract_strided_slice %172 {offsets = [0, 24], sizes = [1, 8], strides = [1, 1]} : vector<1x32xf32> to vector<1x8xf32>
    %233 = vector.extract_strided_slice %173 {offsets = [0, 24], sizes = [8, 8], strides = [1, 1]} : vector<8x32xf32> to vector<8x8xf32>
    %234 = vector.extract_strided_slice %174 {offsets = [0, 24], sizes = [8, 8], strides = [1, 1]} : vector<8x32xf32> to vector<8x8xf32>
    %235 = tpu.transpose %233, [1, 0] : vector<8x8xf32> -> vector<8x8xf32>
    %cst_87 = arith.constant dense<0.000000e+00> : vector<1x8xf32>
    %236 = tpu.matmul %232, %235, %cst_87 {dimension_numbers = #tpu.dot_dimension_numbers<[1], [0], [0], [1], [0, 0, 1, 1], [], []>} : vector<1x8xf32>, vector<8x8xf32>, vector<1x8xf32> -> vector<1x8xf32>
    %cst_88 = arith.constant 0.176776692 : f32
    %237 = vector.broadcast %cst_88 : f32 to vector<1x8xf32>
    %238 = arith.mulf %236, %237 : vector<1x8xf32>
    %cst_89 = arith.constant dense<0xFF800000> : vector<1xf32>
    %239 = vector.multi_reduction <maximumf>, %238, %cst_89 [1] : vector<1x8xf32> to vector<1xf32>
    %240 = vector.shape_cast %239 : vector<1xf32> to vector<1x1xf32>
    %241 = vector.broadcast %240 : vector<1x1xf32> to vector<1x8xf32>
    %242 = arith.subf %238, %241 : vector<1x8xf32>
    %243 = math.exp %242 : vector<1x8xf32>
    %cst_90 = arith.constant dense<0.000000e+00> : vector<1xf32>
    %244 = vector.multi_reduction <add>, %243, %cst_90 [1] : vector<1x8xf32> to vector<1xf32>
    %245 = vector.shape_cast %244 : vector<1xf32> to vector<1x1xf32>
    %246 = tpu.reciprocal %245 {approx = true} : vector<1x1xf32> -> vector<1x1xf32>
    %247 = vector.broadcast %246 : vector<1x1xf32> to vector<1x8xf32>
    %248 = arith.mulf %243, %247 : vector<1x8xf32>
    %cst_91 = arith.constant dense<0.000000e+00> : vector<1x8xf32>
    %249 = tpu.matmul %248, %234, %cst_91 {dimension_numbers = #tpu.dot_dimension_numbers<[1], [0], [0], [1], [0, 0, 1, 1], [], []>} : vector<1x8xf32>, vector<8x8xf32>, vector<1x8xf32> -> vector<1x8xf32>
    %250 = arith.addf %232, %249 : vector<1x8xf32>
    %251 = tpu.concatenate %193, %212, %231, %250 in 1 : vector<1x8xf32>, vector<1x8xf32>, vector<1x8xf32>, vector<1x8xf32> -> vector<1x32xf32>
    %252 = tpu.concatenate %171, %251 in 0 : vector<1x32xf32>, vector<1x32xf32> -> vector<2x32xf32>
    %cst_92 = arith.constant dense<0.000000e+00> : vector<2x32xf32>
    %253 = tpu.matmul %252, %81, %cst_92 {dimension_numbers = #tpu.dot_dimension_numbers<[1], [0], [0], [1], [0, 0, 1, 1], [], []>} : vector<2x32xf32>, vector<32x32xf32>, vector<2x32xf32> -> vector<2x32xf32>
    %254 = vector.broadcast %83 : vector<1x32xf32> to vector<2x32xf32>
    %255 = arith.addf %253, %254 : vector<2x32xf32>
    %cst_93 = arith.constant 0.000000e+00 : f32
    %256 = vector.broadcast %cst_93 : f32 to vector<2x32xf32>
    %257 = arith.maximumf %255, %256 : vector<2x32xf32>
    %258 = arith.addf %252, %257 : vector<2x32xf32>
    %c0_94 = arith.constant 0 : index
    %c0_95 = arith.constant 0 : index
    %c0_96 = arith.constant 0 : index
    %259 = vector.load %arg15[%c0_94, %c0_95, %c0_96] : memref<2x32x32xf32, #tpu.memory_space<vmem>>, vector<1x32x32xf32>
    %260 = vector.shape_cast %259 : vector<1x32x32xf32> to vector<32x32xf32>
    %c0_97 = arith.constant 0 : index
    %c0_98 = arith.constant 0 : index
    %c0_99 = arith.constant 0 : index
    %261 = vector.load %arg16[%c0_97, %c0_98, %c0_99] : memref<2x1x32xf32, #tpu.memory_space<vmem>>, vector<1x1x32xf32>
    %262 = vector.shape_cast %261 : vector<1x1x32xf32> to vector<1x32xf32>
    %c0_100 = arith.constant 0 : index
    %c0_101 = arith.constant 0 : index
    %c0_102 = arith.constant 0 : index
    %263 = vector.load %arg17[%c0_100, %c0_101, %c0_102] : memref<2x32x64xf32, #tpu.memory_space<vmem>>, vector<1x32x64xf32>
    %264 = vector.shape_cast %263 : vector<1x32x64xf32> to vector<32x64xf32>
    %c0_103 = arith.constant 0 : index
    %c0_104 = arith.constant 0 : index
    %c0_105 = arith.constant 0 : index
    %265 = vector.load %arg18[%c0_103, %c0_104, %c0_105] : memref<2x1x64xf32, #tpu.memory_space<vmem>>, vector<1x1x64xf32>
    %266 = vector.shape_cast %265 : vector<1x1x64xf32> to vector<1x64xf32>
    %c0_106 = arith.constant 0 : index
    %c0_107 = arith.constant 0 : index
    %c0_108 = arith.constant 0 : index
    %267 = vector.load %arg19[%c0_106, %c0_107, %c0_108] : memref<2x32x32xf32, #tpu.memory_space<vmem>>, vector<1x32x32xf32>
    %268 = vector.shape_cast %267 : vector<1x32x32xf32> to vector<32x32xf32>
    %c0_109 = arith.constant 0 : index
    %c0_110 = arith.constant 0 : index
    %c0_111 = arith.constant 0 : index
    %269 = vector.load %arg20[%c0_109, %c0_110, %c0_111] : memref<2x1x32xf32, #tpu.memory_space<vmem>>, vector<1x1x32xf32>
    %270 = vector.shape_cast %269 : vector<1x1x32xf32> to vector<1x32xf32>
    %cst_112 = arith.constant dense<0.000000e+00> : vector<16x32xf32>
    %271 = tpu.matmul %68, %260, %cst_112 {dimension_numbers = #tpu.dot_dimension_numbers<[1], [0], [0], [1], [0, 0, 1, 1], [], []>} : vector<16x32xf32>, vector<32x32xf32>, vector<16x32xf32> -> vector<16x32xf32>
    %272 = vector.broadcast %262 : vector<1x32xf32> to vector<16x32xf32>
    %273 = arith.addf %271, %272 : vector<16x32xf32>
    %cst_113 = arith.constant dense<0.000000e+00> : vector<2x64xf32>
    %274 = tpu.matmul %258, %264, %cst_113 {dimension_numbers = #tpu.dot_dimension_numbers<[1], [0], [0], [1], [0, 0, 1, 1], [], []>} : vector<2x32xf32>, vector<32x64xf32>, vector<2x64xf32> -> vector<2x64xf32>
    %275 = vector.broadcast %266 : vector<1x64xf32> to vector<2x64xf32>
    %276 = arith.addf %274, %275 : vector<2x64xf32>
    %277 = vector.extract_strided_slice %276 {offsets = [0, 0], sizes = [2, 32], strides = [1, 1]} : vector<2x64xf32> to vector<2x32xf32>
    %278 = vector.extract_strided_slice %276 {offsets = [0, 32], sizes = [2, 32], strides = [1, 1]} : vector<2x64xf32> to vector<2x32xf32>
    %279 = vector.extract_strided_slice %273 {offsets = [0, 0], sizes = [8, 32], strides = [1, 1]} : vector<16x32xf32> to vector<8x32xf32>
    %280 = vector.extract_strided_slice %277 {offsets = [0, 0], sizes = [1, 32], strides = [1, 1]} : vector<2x32xf32> to vector<1x32xf32>
    %281 = vector.extract_strided_slice %278 {offsets = [0, 0], sizes = [1, 32], strides = [1, 1]} : vector<2x32xf32> to vector<1x32xf32>
    %282 = vector.extract_strided_slice %279 {offsets = [0, 0], sizes = [8, 8], strides = [1, 1]} : vector<8x32xf32> to vector<8x8xf32>
    %283 = vector.extract_strided_slice %280 {offsets = [0, 0], sizes = [1, 8], strides = [1, 1]} : vector<1x32xf32> to vector<1x8xf32>
    %284 = vector.extract_strided_slice %281 {offsets = [0, 0], sizes = [1, 8], strides = [1, 1]} : vector<1x32xf32> to vector<1x8xf32>
    %285 = tpu.transpose %283, [1, 0] : vector<1x8xf32> -> vector<8x1xf32>
    %cst_114 = arith.constant dense<0.000000e+00> : vector<8x1xf32>
    %286 = tpu.matmul %282, %285, %cst_114 {dimension_numbers = #tpu.dot_dimension_numbers<[1], [0], [0], [1], [0, 0, 1, 1], [], []>} : vector<8x8xf32>, vector<8x1xf32>, vector<8x1xf32> -> vector<8x1xf32>
    %cst_115 = arith.constant 0.176776692 : f32
    %287 = vector.broadcast %cst_115 : f32 to vector<8x1xf32>
    %288 = arith.mulf %286, %287 : vector<8x1xf32>
    %cst_116 = arith.constant dense<0xFF800000> : vector<8xf32>
    %289 = vector.multi_reduction <maximumf>, %288, %cst_116 [1] : vector<8x1xf32> to vector<8xf32>
    %290 = vector.shape_cast %289 : vector<8xf32> to vector<8x1xf32>
    %291 = arith.subf %288, %290 : vector<8x1xf32>
    %292 = math.exp %291 : vector<8x1xf32>
    %cst_117 = arith.constant dense<0.000000e+00> : vector<8xf32>
    %293 = vector.multi_reduction <add>, %292, %cst_117 [1] : vector<8x1xf32> to vector<8xf32>
    %294 = vector.shape_cast %293 : vector<8xf32> to vector<8x1xf32>
    %295 = tpu.reciprocal %294 {approx = true} : vector<8x1xf32> -> vector<8x1xf32>
    %296 = arith.mulf %292, %295 : vector<8x1xf32>
    %cst_118 = arith.constant dense<0.000000e+00> : vector<8x8xf32>
    %297 = tpu.matmul %296, %284, %cst_118 {dimension_numbers = #tpu.dot_dimension_numbers<[1], [0], [0], [1], [0, 0, 1, 1], [], []>} : vector<8x1xf32>, vector<1x8xf32>, vector<8x8xf32> -> vector<8x8xf32>
    %298 = arith.addf %282, %297 : vector<8x8xf32>
    %299 = vector.extract_strided_slice %279 {offsets = [0, 8], sizes = [8, 8], strides = [1, 1]} : vector<8x32xf32> to vector<8x8xf32>
    %300 = vector.extract_strided_slice %280 {offsets = [0, 8], sizes = [1, 8], strides = [1, 1]} : vector<1x32xf32> to vector<1x8xf32>
    %301 = vector.extract_strided_slice %281 {offsets = [0, 8], sizes = [1, 8], strides = [1, 1]} : vector<1x32xf32> to vector<1x8xf32>
    %302 = tpu.transpose %300, [1, 0] : vector<1x8xf32> -> vector<8x1xf32>
    %cst_119 = arith.constant dense<0.000000e+00> : vector<8x1xf32>
    %303 = tpu.matmul %299, %302, %cst_119 {dimension_numbers = #tpu.dot_dimension_numbers<[1], [0], [0], [1], [0, 0, 1, 1], [], []>} : vector<8x8xf32>, vector<8x1xf32>, vector<8x1xf32> -> vector<8x1xf32>
    %cst_120 = arith.constant 0.176776692 : f32
    %304 = vector.broadcast %cst_120 : f32 to vector<8x1xf32>
    %305 = arith.mulf %303, %304 : vector<8x1xf32>
    %cst_121 = arith.constant dense<0xFF800000> : vector<8xf32>
    %306 = vector.multi_reduction <maximumf>, %305, %cst_121 [1] : vector<8x1xf32> to vector<8xf32>
    %307 = vector.shape_cast %306 : vector<8xf32> to vector<8x1xf32>
    %308 = arith.subf %305, %307 : vector<8x1xf32>
    %309 = math.exp %308 : vector<8x1xf32>
    %cst_122 = arith.constant dense<0.000000e+00> : vector<8xf32>
    %310 = vector.multi_reduction <add>, %309, %cst_122 [1] : vector<8x1xf32> to vector<8xf32>
    %311 = vector.shape_cast %310 : vector<8xf32> to vector<8x1xf32>
    %312 = tpu.reciprocal %311 {approx = true} : vector<8x1xf32> -> vector<8x1xf32>
    %313 = arith.mulf %309, %312 : vector<8x1xf32>
    %cst_123 = arith.constant dense<0.000000e+00> : vector<8x8xf32>
    %314 = tpu.matmul %313, %301, %cst_123 {dimension_numbers = #tpu.dot_dimension_numbers<[1], [0], [0], [1], [0, 0, 1, 1], [], []>} : vector<8x1xf32>, vector<1x8xf32>, vector<8x8xf32> -> vector<8x8xf32>
    %315 = arith.addf %299, %314 : vector<8x8xf32>
    %316 = vector.extract_strided_slice %279 {offsets = [0, 16], sizes = [8, 8], strides = [1, 1]} : vector<8x32xf32> to vector<8x8xf32>
    %317 = vector.extract_strided_slice %280 {offsets = [0, 16], sizes = [1, 8], strides = [1, 1]} : vector<1x32xf32> to vector<1x8xf32>
    %318 = vector.extract_strided_slice %281 {offsets = [0, 16], sizes = [1, 8], strides = [1, 1]} : vector<1x32xf32> to vector<1x8xf32>
    %319 = tpu.transpose %317, [1, 0] : vector<1x8xf32> -> vector<8x1xf32>
    %cst_124 = arith.constant dense<0.000000e+00> : vector<8x1xf32>
    %320 = tpu.matmul %316, %319, %cst_124 {dimension_numbers = #tpu.dot_dimension_numbers<[1], [0], [0], [1], [0, 0, 1, 1], [], []>} : vector<8x8xf32>, vector<8x1xf32>, vector<8x1xf32> -> vector<8x1xf32>
    %cst_125 = arith.constant 0.176776692 : f32
    %321 = vector.broadcast %cst_125 : f32 to vector<8x1xf32>
    %322 = arith.mulf %320, %321 : vector<8x1xf32>
    %cst_126 = arith.constant dense<0xFF800000> : vector<8xf32>
    %323 = vector.multi_reduction <maximumf>, %322, %cst_126 [1] : vector<8x1xf32> to vector<8xf32>
    %324 = vector.shape_cast %323 : vector<8xf32> to vector<8x1xf32>
    %325 = arith.subf %322, %324 : vector<8x1xf32>
    %326 = math.exp %325 : vector<8x1xf32>
    %cst_127 = arith.constant dense<0.000000e+00> : vector<8xf32>
    %327 = vector.multi_reduction <add>, %326, %cst_127 [1] : vector<8x1xf32> to vector<8xf32>
    %328 = vector.shape_cast %327 : vector<8xf32> to vector<8x1xf32>
    %329 = tpu.reciprocal %328 {approx = true} : vector<8x1xf32> -> vector<8x1xf32>
    %330 = arith.mulf %326, %329 : vector<8x1xf32>
    %cst_128 = arith.constant dense<0.000000e+00> : vector<8x8xf32>
    %331 = tpu.matmul %330, %318, %cst_128 {dimension_numbers = #tpu.dot_dimension_numbers<[1], [0], [0], [1], [0, 0, 1, 1], [], []>} : vector<8x1xf32>, vector<1x8xf32>, vector<8x8xf32> -> vector<8x8xf32>
    %332 = arith.addf %316, %331 : vector<8x8xf32>
    %333 = vector.extract_strided_slice %279 {offsets = [0, 24], sizes = [8, 8], strides = [1, 1]} : vector<8x32xf32> to vector<8x8xf32>
    %334 = vector.extract_strided_slice %280 {offsets = [0, 24], sizes = [1, 8], strides = [1, 1]} : vector<1x32xf32> to vector<1x8xf32>
    %335 = vector.extract_strided_slice %281 {offsets = [0, 24], sizes = [1, 8], strides = [1, 1]} : vector<1x32xf32> to vector<1x8xf32>
    %336 = tpu.transpose %334, [1, 0] : vector<1x8xf32> -> vector<8x1xf32>
    %cst_129 = arith.constant dense<0.000000e+00> : vector<8x1xf32>
    %337 = tpu.matmul %333, %336, %cst_129 {dimension_numbers = #tpu.dot_dimension_numbers<[1], [0], [0], [1], [0, 0, 1, 1], [], []>} : vector<8x8xf32>, vector<8x1xf32>, vector<8x1xf32> -> vector<8x1xf32>
    %cst_130 = arith.constant 0.176776692 : f32
    %338 = vector.broadcast %cst_130 : f32 to vector<8x1xf32>
    %339 = arith.mulf %337, %338 : vector<8x1xf32>
    %cst_131 = arith.constant dense<0xFF800000> : vector<8xf32>
    %340 = vector.multi_reduction <maximumf>, %339, %cst_131 [1] : vector<8x1xf32> to vector<8xf32>
    %341 = vector.shape_cast %340 : vector<8xf32> to vector<8x1xf32>
    %342 = arith.subf %339, %341 : vector<8x1xf32>
    %343 = math.exp %342 : vector<8x1xf32>
    %cst_132 = arith.constant dense<0.000000e+00> : vector<8xf32>
    %344 = vector.multi_reduction <add>, %343, %cst_132 [1] : vector<8x1xf32> to vector<8xf32>
    %345 = vector.shape_cast %344 : vector<8xf32> to vector<8x1xf32>
    %346 = tpu.reciprocal %345 {approx = true} : vector<8x1xf32> -> vector<8x1xf32>
    %347 = arith.mulf %343, %346 : vector<8x1xf32>
    %cst_133 = arith.constant dense<0.000000e+00> : vector<8x8xf32>
    %348 = tpu.matmul %347, %335, %cst_133 {dimension_numbers = #tpu.dot_dimension_numbers<[1], [0], [0], [1], [0, 0, 1, 1], [], []>} : vector<8x1xf32>, vector<1x8xf32>, vector<8x8xf32> -> vector<8x8xf32>
    %349 = arith.addf %333, %348 : vector<8x8xf32>
    %350 = tpu.concatenate %298, %315, %332, %349 in 1 : vector<8x8xf32>, vector<8x8xf32>, vector<8x8xf32>, vector<8x8xf32> -> vector<8x32xf32>
    %351 = vector.extract_strided_slice %273 {offsets = [8, 0], sizes = [8, 32], strides = [1, 1]} : vector<16x32xf32> to vector<8x32xf32>
    %352 = vector.extract_strided_slice %277 {offsets = [1, 0], sizes = [1, 32], strides = [1, 1]} : vector<2x32xf32> to vector<1x32xf32>
    %353 = vector.extract_strided_slice %278 {offsets = [1, 0], sizes = [1, 32], strides = [1, 1]} : vector<2x32xf32> to vector<1x32xf32>
    %354 = vector.extract_strided_slice %351 {offsets = [0, 0], sizes = [8, 8], strides = [1, 1]} : vector<8x32xf32> to vector<8x8xf32>
    %355 = vector.extract_strided_slice %352 {offsets = [0, 0], sizes = [1, 8], strides = [1, 1]} : vector<1x32xf32> to vector<1x8xf32>
    %356 = vector.extract_strided_slice %353 {offsets = [0, 0], sizes = [1, 8], strides = [1, 1]} : vector<1x32xf32> to vector<1x8xf32>
    %357 = tpu.transpose %355, [1, 0] : vector<1x8xf32> -> vector<8x1xf32>
    %cst_134 = arith.constant dense<0.000000e+00> : vector<8x1xf32>
    %358 = tpu.matmul %354, %357, %cst_134 {dimension_numbers = #tpu.dot_dimension_numbers<[1], [0], [0], [1], [0, 0, 1, 1], [], []>} : vector<8x8xf32>, vector<8x1xf32>, vector<8x1xf32> -> vector<8x1xf32>
    %cst_135 = arith.constant 0.176776692 : f32
    %359 = vector.broadcast %cst_135 : f32 to vector<8x1xf32>
    %360 = arith.mulf %358, %359 : vector<8x1xf32>
    %cst_136 = arith.constant dense<0xFF800000> : vector<8xf32>
    %361 = vector.multi_reduction <maximumf>, %360, %cst_136 [1] : vector<8x1xf32> to vector<8xf32>
    %362 = vector.shape_cast %361 : vector<8xf32> to vector<8x1xf32>
    %363 = arith.subf %360, %362 : vector<8x1xf32>
    %364 = math.exp %363 : vector<8x1xf32>
    %cst_137 = arith.constant dense<0.000000e+00> : vector<8xf32>
    %365 = vector.multi_reduction <add>, %364, %cst_137 [1] : vector<8x1xf32> to vector<8xf32>
    %366 = vector.shape_cast %365 : vector<8xf32> to vector<8x1xf32>
    %367 = tpu.reciprocal %366 {approx = true} : vector<8x1xf32> -> vector<8x1xf32>
    %368 = arith.mulf %364, %367 : vector<8x1xf32>
    %cst_138 = arith.constant dense<0.000000e+00> : vector<8x8xf32>
    %369 = tpu.matmul %368, %356, %cst_138 {dimension_numbers = #tpu.dot_dimension_numbers<[1], [0], [0], [1], [0, 0, 1, 1], [], []>} : vector<8x1xf32>, vector<1x8xf32>, vector<8x8xf32> -> vector<8x8xf32>
    %370 = arith.addf %354, %369 : vector<8x8xf32>
    %371 = vector.extract_strided_slice %351 {offsets = [0, 8], sizes = [8, 8], strides = [1, 1]} : vector<8x32xf32> to vector<8x8xf32>
    %372 = vector.extract_strided_slice %352 {offsets = [0, 8], sizes = [1, 8], strides = [1, 1]} : vector<1x32xf32> to vector<1x8xf32>
    %373 = vector.extract_strided_slice %353 {offsets = [0, 8], sizes = [1, 8], strides = [1, 1]} : vector<1x32xf32> to vector<1x8xf32>
    %374 = tpu.transpose %372, [1, 0] : vector<1x8xf32> -> vector<8x1xf32>
    %cst_139 = arith.constant dense<0.000000e+00> : vector<8x1xf32>
    %375 = tpu.matmul %371, %374, %cst_139 {dimension_numbers = #tpu.dot_dimension_numbers<[1], [0], [0], [1], [0, 0, 1, 1], [], []>} : vector<8x8xf32>, vector<8x1xf32>, vector<8x1xf32> -> vector<8x1xf32>
    %cst_140 = arith.constant 0.176776692 : f32
    %376 = vector.broadcast %cst_140 : f32 to vector<8x1xf32>
    %377 = arith.mulf %375, %376 : vector<8x1xf32>
    %cst_141 = arith.constant dense<0xFF800000> : vector<8xf32>
    %378 = vector.multi_reduction <maximumf>, %377, %cst_141 [1] : vector<8x1xf32> to vector<8xf32>
    %379 = vector.shape_cast %378 : vector<8xf32> to vector<8x1xf32>
    %380 = arith.subf %377, %379 : vector<8x1xf32>
    %381 = math.exp %380 : vector<8x1xf32>
    %cst_142 = arith.constant dense<0.000000e+00> : vector<8xf32>
    %382 = vector.multi_reduction <add>, %381, %cst_142 [1] : vector<8x1xf32> to vector<8xf32>
    %383 = vector.shape_cast %382 : vector<8xf32> to vector<8x1xf32>
    %384 = tpu.reciprocal %383 {approx = true} : vector<8x1xf32> -> vector<8x1xf32>
    %385 = arith.mulf %381, %384 : vector<8x1xf32>
    %cst_143 = arith.constant dense<0.000000e+00> : vector<8x8xf32>
    %386 = tpu.matmul %385, %373, %cst_143 {dimension_numbers = #tpu.dot_dimension_numbers<[1], [0], [0], [1], [0, 0, 1, 1], [], []>} : vector<8x1xf32>, vector<1x8xf32>, vector<8x8xf32> -> vector<8x8xf32>
    %387 = arith.addf %371, %386 : vector<8x8xf32>
    %388 = vector.extract_strided_slice %351 {offsets = [0, 16], sizes = [8, 8], strides = [1, 1]} : vector<8x32xf32> to vector<8x8xf32>
    %389 = vector.extract_strided_slice %352 {offsets = [0, 16], sizes = [1, 8], strides = [1, 1]} : vector<1x32xf32> to vector<1x8xf32>
    %390 = vector.extract_strided_slice %353 {offsets = [0, 16], sizes = [1, 8], strides = [1, 1]} : vector<1x32xf32> to vector<1x8xf32>
    %391 = tpu.transpose %389, [1, 0] : vector<1x8xf32> -> vector<8x1xf32>
    %cst_144 = arith.constant dense<0.000000e+00> : vector<8x1xf32>
    %392 = tpu.matmul %388, %391, %cst_144 {dimension_numbers = #tpu.dot_dimension_numbers<[1], [0], [0], [1], [0, 0, 1, 1], [], []>} : vector<8x8xf32>, vector<8x1xf32>, vector<8x1xf32> -> vector<8x1xf32>
    %cst_145 = arith.constant 0.176776692 : f32
    %393 = vector.broadcast %cst_145 : f32 to vector<8x1xf32>
    %394 = arith.mulf %392, %393 : vector<8x1xf32>
    %cst_146 = arith.constant dense<0xFF800000> : vector<8xf32>
    %395 = vector.multi_reduction <maximumf>, %394, %cst_146 [1] : vector<8x1xf32> to vector<8xf32>
    %396 = vector.shape_cast %395 : vector<8xf32> to vector<8x1xf32>
    %397 = arith.subf %394, %396 : vector<8x1xf32>
    %398 = math.exp %397 : vector<8x1xf32>
    %cst_147 = arith.constant dense<0.000000e+00> : vector<8xf32>
    %399 = vector.multi_reduction <add>, %398, %cst_147 [1] : vector<8x1xf32> to vector<8xf32>
    %400 = vector.shape_cast %399 : vector<8xf32> to vector<8x1xf32>
    %401 = tpu.reciprocal %400 {approx = true} : vector<8x1xf32> -> vector<8x1xf32>
    %402 = arith.mulf %398, %401 : vector<8x1xf32>
    %cst_148 = arith.constant dense<0.000000e+00> : vector<8x8xf32>
    %403 = tpu.matmul %402, %390, %cst_148 {dimension_numbers = #tpu.dot_dimension_numbers<[1], [0], [0], [1], [0, 0, 1, 1], [], []>} : vector<8x1xf32>, vector<1x8xf32>, vector<8x8xf32> -> vector<8x8xf32>
    %404 = arith.addf %388, %403 : vector<8x8xf32>
    %405 = vector.extract_strided_slice %351 {offsets = [0, 24], sizes = [8, 8], strides = [1, 1]} : vector<8x32xf32> to vector<8x8xf32>
    %406 = vector.extract_strided_slice %352 {offsets = [0, 24], sizes = [1, 8], strides = [1, 1]} : vector<1x32xf32> to vector<1x8xf32>
    %407 = vector.extract_strided_slice %353 {offsets = [0, 24], sizes = [1, 8], strides = [1, 1]} : vector<1x32xf32> to vector<1x8xf32>
    %408 = tpu.transpose %406, [1, 0] : vector<1x8xf32> -> vector<8x1xf32>
    %cst_149 = arith.constant dense<0.000000e+00> : vector<8x1xf32>
    %409 = tpu.matmul %405, %408, %cst_149 {dimension_numbers = #tpu.dot_dimension_numbers<[1], [0], [0], [1], [0, 0, 1, 1], [], []>} : vector<8x8xf32>, vector<8x1xf32>, vector<8x1xf32> -> vector<8x1xf32>
    %cst_150 = arith.constant 0.176776692 : f32
    %410 = vector.broadcast %cst_150 : f32 to vector<8x1xf32>
    %411 = arith.mulf %409, %410 : vector<8x1xf32>
    %cst_151 = arith.constant dense<0xFF800000> : vector<8xf32>
    %412 = vector.multi_reduction <maximumf>, %411, %cst_151 [1] : vector<8x1xf32> to vector<8xf32>
    %413 = vector.shape_cast %412 : vector<8xf32> to vector<8x1xf32>
    %414 = arith.subf %411, %413 : vector<8x1xf32>
    %415 = math.exp %414 : vector<8x1xf32>
    %cst_152 = arith.constant dense<0.000000e+00> : vector<8xf32>
    %416 = vector.multi_reduction <add>, %415, %cst_152 [1] : vector<8x1xf32> to vector<8xf32>
    %417 = vector.shape_cast %416 : vector<8xf32> to vector<8x1xf32>
    %418 = tpu.reciprocal %417 {approx = true} : vector<8x1xf32> -> vector<8x1xf32>
    %419 = arith.mulf %415, %418 : vector<8x1xf32>
    %cst_153 = arith.constant dense<0.000000e+00> : vector<8x8xf32>
    %420 = tpu.matmul %419, %407, %cst_153 {dimension_numbers = #tpu.dot_dimension_numbers<[1], [0], [0], [1], [0, 0, 1, 1], [], []>} : vector<8x1xf32>, vector<1x8xf32>, vector<8x8xf32> -> vector<8x8xf32>
    %421 = arith.addf %405, %420 : vector<8x8xf32>
    %422 = tpu.concatenate %370, %387, %404, %421 in 1 : vector<8x8xf32>, vector<8x8xf32>, vector<8x8xf32>, vector<8x8xf32> -> vector<8x32xf32>
    %423 = tpu.concatenate %350, %422 in 0 : vector<8x32xf32>, vector<8x32xf32> -> vector<16x32xf32>
    %cst_154 = arith.constant dense<0.000000e+00> : vector<16x32xf32>
    %424 = tpu.matmul %423, %268, %cst_154 {dimension_numbers = #tpu.dot_dimension_numbers<[1], [0], [0], [1], [0, 0, 1, 1], [], []>} : vector<16x32xf32>, vector<32x32xf32>, vector<16x32xf32> -> vector<16x32xf32>
    %425 = vector.broadcast %270 : vector<1x32xf32> to vector<16x32xf32>
    %426 = arith.addf %424, %425 : vector<16x32xf32>
    %cst_155 = arith.constant 0.000000e+00 : f32
    %427 = vector.broadcast %cst_155 : f32 to vector<16x32xf32>
    %428 = arith.maximumf %426, %427 : vector<16x32xf32>
    %429 = arith.addf %423, %428 : vector<16x32xf32>
    %c1 = arith.constant 1 : index
    %c0_156 = arith.constant 0 : index
    %c0_157 = arith.constant 0 : index
    %430 = vector.load %arg8[%c1, %c0_156, %c0_157] : memref<2x1x32xf32, #tpu.memory_space<vmem>>, vector<1x1x32xf32>
    %431 = vector.shape_cast %430 : vector<1x1x32xf32> to vector<1x32xf32>
    %432 = tpu.concatenate %431, %431 in 0 : vector<1x32xf32>, vector<1x32xf32> -> vector<2x32xf32>
    %c1_158 = arith.constant 1 : index
    %c0_159 = arith.constant 0 : index
    %c0_160 = arith.constant 0 : index
    %433 = vector.load %arg9[%c1_158, %c0_159, %c0_160] : memref<2x32x32xf32, #tpu.memory_space<vmem>>, vector<1x32x32xf32>
    %434 = vector.shape_cast %433 : vector<1x32x32xf32> to vector<32x32xf32>
    %c1_161 = arith.constant 1 : index
    %c0_162 = arith.constant 0 : index
    %c0_163 = arith.constant 0 : index
    %435 = vector.load %arg10[%c1_161, %c0_162, %c0_163] : memref<2x1x32xf32, #tpu.memory_space<vmem>>, vector<1x1x32xf32>
    %436 = vector.shape_cast %435 : vector<1x1x32xf32> to vector<1x32xf32>
    %c1_164 = arith.constant 1 : index
    %c0_165 = arith.constant 0 : index
    %c0_166 = arith.constant 0 : index
    %437 = vector.load %arg11[%c1_164, %c0_165, %c0_166] : memref<2x32x64xf32, #tpu.memory_space<vmem>>, vector<1x32x64xf32>
    %438 = vector.shape_cast %437 : vector<1x32x64xf32> to vector<32x64xf32>
    %c1_167 = arith.constant 1 : index
    %c0_168 = arith.constant 0 : index
    %c0_169 = arith.constant 0 : index
    %439 = vector.load %arg12[%c1_167, %c0_168, %c0_169] : memref<2x1x64xf32, #tpu.memory_space<vmem>>, vector<1x1x64xf32>
    %440 = vector.shape_cast %439 : vector<1x1x64xf32> to vector<1x64xf32>
    %c1_170 = arith.constant 1 : index
    %c0_171 = arith.constant 0 : index
    %c0_172 = arith.constant 0 : index
    %441 = vector.load %arg13[%c1_170, %c0_171, %c0_172] : memref<2x32x32xf32, #tpu.memory_space<vmem>>, vector<1x32x32xf32>
    %442 = vector.shape_cast %441 : vector<1x32x32xf32> to vector<32x32xf32>
    %c1_173 = arith.constant 1 : index
    %c0_174 = arith.constant 0 : index
    %c0_175 = arith.constant 0 : index
    %443 = vector.load %arg14[%c1_173, %c0_174, %c0_175] : memref<2x1x32xf32, #tpu.memory_space<vmem>>, vector<1x1x32xf32>
    %444 = vector.shape_cast %443 : vector<1x1x32xf32> to vector<1x32xf32>
    %cst_176 = arith.constant dense<0.000000e+00> : vector<2x32xf32>
    %445 = tpu.matmul %432, %434, %cst_176 {dimension_numbers = #tpu.dot_dimension_numbers<[1], [0], [0], [1], [0, 0, 1, 1], [], []>} : vector<2x32xf32>, vector<32x32xf32>, vector<2x32xf32> -> vector<2x32xf32>
    %446 = vector.broadcast %436 : vector<1x32xf32> to vector<2x32xf32>
    %447 = arith.addf %445, %446 : vector<2x32xf32>
    %cst_177 = arith.constant dense<0.000000e+00> : vector<16x64xf32>
    %448 = tpu.matmul %429, %438, %cst_177 {dimension_numbers = #tpu.dot_dimension_numbers<[1], [0], [0], [1], [0, 0, 1, 1], [], []>} : vector<16x32xf32>, vector<32x64xf32>, vector<16x64xf32> -> vector<16x64xf32>
    %449 = vector.broadcast %440 : vector<1x64xf32> to vector<16x64xf32>
    %450 = arith.addf %448, %449 : vector<16x64xf32>
    %451 = vector.extract_strided_slice %450 {offsets = [0, 0], sizes = [16, 32], strides = [1, 1]} : vector<16x64xf32> to vector<16x32xf32>
    %452 = vector.extract_strided_slice %450 {offsets = [0, 32], sizes = [16, 32], strides = [1, 1]} : vector<16x64xf32> to vector<16x32xf32>
    %453 = vector.extract_strided_slice %447 {offsets = [0, 0], sizes = [1, 32], strides = [1, 1]} : vector<2x32xf32> to vector<1x32xf32>
    %454 = vector.extract_strided_slice %451 {offsets = [0, 0], sizes = [8, 32], strides = [1, 1]} : vector<16x32xf32> to vector<8x32xf32>
    %455 = vector.extract_strided_slice %452 {offsets = [0, 0], sizes = [8, 32], strides = [1, 1]} : vector<16x32xf32> to vector<8x32xf32>
    %456 = vector.extract_strided_slice %453 {offsets = [0, 0], sizes = [1, 8], strides = [1, 1]} : vector<1x32xf32> to vector<1x8xf32>
    %457 = vector.extract_strided_slice %454 {offsets = [0, 0], sizes = [8, 8], strides = [1, 1]} : vector<8x32xf32> to vector<8x8xf32>
    %458 = vector.extract_strided_slice %455 {offsets = [0, 0], sizes = [8, 8], strides = [1, 1]} : vector<8x32xf32> to vector<8x8xf32>
    %459 = tpu.transpose %457, [1, 0] : vector<8x8xf32> -> vector<8x8xf32>
    %cst_178 = arith.constant dense<0.000000e+00> : vector<1x8xf32>
    %460 = tpu.matmul %456, %459, %cst_178 {dimension_numbers = #tpu.dot_dimension_numbers<[1], [0], [0], [1], [0, 0, 1, 1], [], []>} : vector<1x8xf32>, vector<8x8xf32>, vector<1x8xf32> -> vector<1x8xf32>
    %cst_179 = arith.constant 0.176776692 : f32
    %461 = vector.broadcast %cst_179 : f32 to vector<1x8xf32>
    %462 = arith.mulf %460, %461 : vector<1x8xf32>
    %cst_180 = arith.constant dense<0xFF800000> : vector<1xf32>
    %463 = vector.multi_reduction <maximumf>, %462, %cst_180 [1] : vector<1x8xf32> to vector<1xf32>
    %464 = vector.shape_cast %463 : vector<1xf32> to vector<1x1xf32>
    %465 = vector.broadcast %464 : vector<1x1xf32> to vector<1x8xf32>
    %466 = arith.subf %462, %465 : vector<1x8xf32>
    %467 = math.exp %466 : vector<1x8xf32>
    %cst_181 = arith.constant dense<0.000000e+00> : vector<1xf32>
    %468 = vector.multi_reduction <add>, %467, %cst_181 [1] : vector<1x8xf32> to vector<1xf32>
    %469 = vector.shape_cast %468 : vector<1xf32> to vector<1x1xf32>
    %470 = tpu.reciprocal %469 {approx = true} : vector<1x1xf32> -> vector<1x1xf32>
    %471 = vector.broadcast %470 : vector<1x1xf32> to vector<1x8xf32>
    %472 = arith.mulf %467, %471 : vector<1x8xf32>
    %cst_182 = arith.constant dense<0.000000e+00> : vector<1x8xf32>
    %473 = tpu.matmul %472, %458, %cst_182 {dimension_numbers = #tpu.dot_dimension_numbers<[1], [0], [0], [1], [0, 0, 1, 1], [], []>} : vector<1x8xf32>, vector<8x8xf32>, vector<1x8xf32> -> vector<1x8xf32>
    %474 = arith.addf %456, %473 : vector<1x8xf32>
    %475 = vector.extract_strided_slice %453 {offsets = [0, 8], sizes = [1, 8], strides = [1, 1]} : vector<1x32xf32> to vector<1x8xf32>
    %476 = vector.extract_strided_slice %454 {offsets = [0, 8], sizes = [8, 8], strides = [1, 1]} : vector<8x32xf32> to vector<8x8xf32>
    %477 = vector.extract_strided_slice %455 {offsets = [0, 8], sizes = [8, 8], strides = [1, 1]} : vector<8x32xf32> to vector<8x8xf32>
    %478 = tpu.transpose %476, [1, 0] : vector<8x8xf32> -> vector<8x8xf32>
    %cst_183 = arith.constant dense<0.000000e+00> : vector<1x8xf32>
    %479 = tpu.matmul %475, %478, %cst_183 {dimension_numbers = #tpu.dot_dimension_numbers<[1], [0], [0], [1], [0, 0, 1, 1], [], []>} : vector<1x8xf32>, vector<8x8xf32>, vector<1x8xf32> -> vector<1x8xf32>
    %cst_184 = arith.constant 0.176776692 : f32
    %480 = vector.broadcast %cst_184 : f32 to vector<1x8xf32>
    %481 = arith.mulf %479, %480 : vector<1x8xf32>
    %cst_185 = arith.constant dense<0xFF800000> : vector<1xf32>
    %482 = vector.multi_reduction <maximumf>, %481, %cst_185 [1] : vector<1x8xf32> to vector<1xf32>
    %483 = vector.shape_cast %482 : vector<1xf32> to vector<1x1xf32>
    %484 = vector.broadcast %483 : vector<1x1xf32> to vector<1x8xf32>
    %485 = arith.subf %481, %484 : vector<1x8xf32>
    %486 = math.exp %485 : vector<1x8xf32>
    %cst_186 = arith.constant dense<0.000000e+00> : vector<1xf32>
    %487 = vector.multi_reduction <add>, %486, %cst_186 [1] : vector<1x8xf32> to vector<1xf32>
    %488 = vector.shape_cast %487 : vector<1xf32> to vector<1x1xf32>
    %489 = tpu.reciprocal %488 {approx = true} : vector<1x1xf32> -> vector<1x1xf32>
    %490 = vector.broadcast %489 : vector<1x1xf32> to vector<1x8xf32>
    %491 = arith.mulf %486, %490 : vector<1x8xf32>
    %cst_187 = arith.constant dense<0.000000e+00> : vector<1x8xf32>
    %492 = tpu.matmul %491, %477, %cst_187 {dimension_numbers = #tpu.dot_dimension_numbers<[1], [0], [0], [1], [0, 0, 1, 1], [], []>} : vector<1x8xf32>, vector<8x8xf32>, vector<1x8xf32> -> vector<1x8xf32>
    %493 = arith.addf %475, %492 : vector<1x8xf32>
    %494 = vector.extract_strided_slice %453 {offsets = [0, 16], sizes = [1, 8], strides = [1, 1]} : vector<1x32xf32> to vector<1x8xf32>
    %495 = vector.extract_strided_slice %454 {offsets = [0, 16], sizes = [8, 8], strides = [1, 1]} : vector<8x32xf32> to vector<8x8xf32>
    %496 = vector.extract_strided_slice %455 {offsets = [0, 16], sizes = [8, 8], strides = [1, 1]} : vector<8x32xf32> to vector<8x8xf32>
    %497 = tpu.transpose %495, [1, 0] : vector<8x8xf32> -> vector<8x8xf32>
    %cst_188 = arith.constant dense<0.000000e+00> : vector<1x8xf32>
    %498 = tpu.matmul %494, %497, %cst_188 {dimension_numbers = #tpu.dot_dimension_numbers<[1], [0], [0], [1], [0, 0, 1, 1], [], []>} : vector<1x8xf32>, vector<8x8xf32>, vector<1x8xf32> -> vector<1x8xf32>
    %cst_189 = arith.constant 0.176776692 : f32
    %499 = vector.broadcast %cst_189 : f32 to vector<1x8xf32>
    %500 = arith.mulf %498, %499 : vector<1x8xf32>
    %cst_190 = arith.constant dense<0xFF800000> : vector<1xf32>
    %501 = vector.multi_reduction <maximumf>, %500, %cst_190 [1] : vector<1x8xf32> to vector<1xf32>
    %502 = vector.shape_cast %501 : vector<1xf32> to vector<1x1xf32>
    %503 = vector.broadcast %502 : vector<1x1xf32> to vector<1x8xf32>
    %504 = arith.subf %500, %503 : vector<1x8xf32>
    %505 = math.exp %504 : vector<1x8xf32>
    %cst_191 = arith.constant dense<0.000000e+00> : vector<1xf32>
    %506 = vector.multi_reduction <add>, %505, %cst_191 [1] : vector<1x8xf32> to vector<1xf32>
    %507 = vector.shape_cast %506 : vector<1xf32> to vector<1x1xf32>
    %508 = tpu.reciprocal %507 {approx = true} : vector<1x1xf32> -> vector<1x1xf32>
    %509 = vector.broadcast %508 : vector<1x1xf32> to vector<1x8xf32>
    %510 = arith.mulf %505, %509 : vector<1x8xf32>
    %cst_192 = arith.constant dense<0.000000e+00> : vector<1x8xf32>
    %511 = tpu.matmul %510, %496, %cst_192 {dimension_numbers = #tpu.dot_dimension_numbers<[1], [0], [0], [1], [0, 0, 1, 1], [], []>} : vector<1x8xf32>, vector<8x8xf32>, vector<1x8xf32> -> vector<1x8xf32>
    %512 = arith.addf %494, %511 : vector<1x8xf32>
    %513 = vector.extract_strided_slice %453 {offsets = [0, 24], sizes = [1, 8], strides = [1, 1]} : vector<1x32xf32> to vector<1x8xf32>
    %514 = vector.extract_strided_slice %454 {offsets = [0, 24], sizes = [8, 8], strides = [1, 1]} : vector<8x32xf32> to vector<8x8xf32>
    %515 = vector.extract_strided_slice %455 {offsets = [0, 24], sizes = [8, 8], strides = [1, 1]} : vector<8x32xf32> to vector<8x8xf32>
    %516 = tpu.transpose %514, [1, 0] : vector<8x8xf32> -> vector<8x8xf32>
    %cst_193 = arith.constant dense<0.000000e+00> : vector<1x8xf32>
    %517 = tpu.matmul %513, %516, %cst_193 {dimension_numbers = #tpu.dot_dimension_numbers<[1], [0], [0], [1], [0, 0, 1, 1], [], []>} : vector<1x8xf32>, vector<8x8xf32>, vector<1x8xf32> -> vector<1x8xf32>
    %cst_194 = arith.constant 0.176776692 : f32
    %518 = vector.broadcast %cst_194 : f32 to vector<1x8xf32>
    %519 = arith.mulf %517, %518 : vector<1x8xf32>
    %cst_195 = arith.constant dense<0xFF800000> : vector<1xf32>
    %520 = vector.multi_reduction <maximumf>, %519, %cst_195 [1] : vector<1x8xf32> to vector<1xf32>
    %521 = vector.shape_cast %520 : vector<1xf32> to vector<1x1xf32>
    %522 = vector.broadcast %521 : vector<1x1xf32> to vector<1x8xf32>
    %523 = arith.subf %519, %522 : vector<1x8xf32>
    %524 = math.exp %523 : vector<1x8xf32>
    %cst_196 = arith.constant dense<0.000000e+00> : vector<1xf32>
    %525 = vector.multi_reduction <add>, %524, %cst_196 [1] : vector<1x8xf32> to vector<1xf32>
    %526 = vector.shape_cast %525 : vector<1xf32> to vector<1x1xf32>
    %527 = tpu.reciprocal %526 {approx = true} : vector<1x1xf32> -> vector<1x1xf32>
    %528 = vector.broadcast %527 : vector<1x1xf32> to vector<1x8xf32>
    %529 = arith.mulf %524, %528 : vector<1x8xf32>
    %cst_197 = arith.constant dense<0.000000e+00> : vector<1x8xf32>
    %530 = tpu.matmul %529, %515, %cst_197 {dimension_numbers = #tpu.dot_dimension_numbers<[1], [0], [0], [1], [0, 0, 1, 1], [], []>} : vector<1x8xf32>, vector<8x8xf32>, vector<1x8xf32> -> vector<1x8xf32>
    %531 = arith.addf %513, %530 : vector<1x8xf32>
    %532 = tpu.concatenate %474, %493, %512, %531 in 1 : vector<1x8xf32>, vector<1x8xf32>, vector<1x8xf32>, vector<1x8xf32> -> vector<1x32xf32>
    %533 = vector.extract_strided_slice %447 {offsets = [1, 0], sizes = [1, 32], strides = [1, 1]} : vector<2x32xf32> to vector<1x32xf32>
    %534 = vector.extract_strided_slice %451 {offsets = [8, 0], sizes = [8, 32], strides = [1, 1]} : vector<16x32xf32> to vector<8x32xf32>
    %535 = vector.extract_strided_slice %452 {offsets = [8, 0], sizes = [8, 32], strides = [1, 1]} : vector<16x32xf32> to vector<8x32xf32>
    %536 = vector.extract_strided_slice %533 {offsets = [0, 0], sizes = [1, 8], strides = [1, 1]} : vector<1x32xf32> to vector<1x8xf32>
    %537 = vector.extract_strided_slice %534 {offsets = [0, 0], sizes = [8, 8], strides = [1, 1]} : vector<8x32xf32> to vector<8x8xf32>
    %538 = vector.extract_strided_slice %535 {offsets = [0, 0], sizes = [8, 8], strides = [1, 1]} : vector<8x32xf32> to vector<8x8xf32>
    %539 = tpu.transpose %537, [1, 0] : vector<8x8xf32> -> vector<8x8xf32>
    %cst_198 = arith.constant dense<0.000000e+00> : vector<1x8xf32>
    %540 = tpu.matmul %536, %539, %cst_198 {dimension_numbers = #tpu.dot_dimension_numbers<[1], [0], [0], [1], [0, 0, 1, 1], [], []>} : vector<1x8xf32>, vector<8x8xf32>, vector<1x8xf32> -> vector<1x8xf32>
    %cst_199 = arith.constant 0.176776692 : f32
    %541 = vector.broadcast %cst_199 : f32 to vector<1x8xf32>
    %542 = arith.mulf %540, %541 : vector<1x8xf32>
    %cst_200 = arith.constant dense<0xFF800000> : vector<1xf32>
    %543 = vector.multi_reduction <maximumf>, %542, %cst_200 [1] : vector<1x8xf32> to vector<1xf32>
    %544 = vector.shape_cast %543 : vector<1xf32> to vector<1x1xf32>
    %545 = vector.broadcast %544 : vector<1x1xf32> to vector<1x8xf32>
    %546 = arith.subf %542, %545 : vector<1x8xf32>
    %547 = math.exp %546 : vector<1x8xf32>
    %cst_201 = arith.constant dense<0.000000e+00> : vector<1xf32>
    %548 = vector.multi_reduction <add>, %547, %cst_201 [1] : vector<1x8xf32> to vector<1xf32>
    %549 = vector.shape_cast %548 : vector<1xf32> to vector<1x1xf32>
    %550 = tpu.reciprocal %549 {approx = true} : vector<1x1xf32> -> vector<1x1xf32>
    %551 = vector.broadcast %550 : vector<1x1xf32> to vector<1x8xf32>
    %552 = arith.mulf %547, %551 : vector<1x8xf32>
    %cst_202 = arith.constant dense<0.000000e+00> : vector<1x8xf32>
    %553 = tpu.matmul %552, %538, %cst_202 {dimension_numbers = #tpu.dot_dimension_numbers<[1], [0], [0], [1], [0, 0, 1, 1], [], []>} : vector<1x8xf32>, vector<8x8xf32>, vector<1x8xf32> -> vector<1x8xf32>
    %554 = arith.addf %536, %553 : vector<1x8xf32>
    %555 = vector.extract_strided_slice %533 {offsets = [0, 8], sizes = [1, 8], strides = [1, 1]} : vector<1x32xf32> to vector<1x8xf32>
    %556 = vector.extract_strided_slice %534 {offsets = [0, 8], sizes = [8, 8], strides = [1, 1]} : vector<8x32xf32> to vector<8x8xf32>
    %557 = vector.extract_strided_slice %535 {offsets = [0, 8], sizes = [8, 8], strides = [1, 1]} : vector<8x32xf32> to vector<8x8xf32>
    %558 = tpu.transpose %556, [1, 0] : vector<8x8xf32> -> vector<8x8xf32>
    %cst_203 = arith.constant dense<0.000000e+00> : vector<1x8xf32>
    %559 = tpu.matmul %555, %558, %cst_203 {dimension_numbers = #tpu.dot_dimension_numbers<[1], [0], [0], [1], [0, 0, 1, 1], [], []>} : vector<1x8xf32>, vector<8x8xf32>, vector<1x8xf32> -> vector<1x8xf32>
    %cst_204 = arith.constant 0.176776692 : f32
    %560 = vector.broadcast %cst_204 : f32 to vector<1x8xf32>
    %561 = arith.mulf %559, %560 : vector<1x8xf32>
    %cst_205 = arith.constant dense<0xFF800000> : vector<1xf32>
    %562 = vector.multi_reduction <maximumf>, %561, %cst_205 [1] : vector<1x8xf32> to vector<1xf32>
    %563 = vector.shape_cast %562 : vector<1xf32> to vector<1x1xf32>
    %564 = vector.broadcast %563 : vector<1x1xf32> to vector<1x8xf32>
    %565 = arith.subf %561, %564 : vector<1x8xf32>
    %566 = math.exp %565 : vector<1x8xf32>
    %cst_206 = arith.constant dense<0.000000e+00> : vector<1xf32>
    %567 = vector.multi_reduction <add>, %566, %cst_206 [1] : vector<1x8xf32> to vector<1xf32>
    %568 = vector.shape_cast %567 : vector<1xf32> to vector<1x1xf32>
    %569 = tpu.reciprocal %568 {approx = true} : vector<1x1xf32> -> vector<1x1xf32>
    %570 = vector.broadcast %569 : vector<1x1xf32> to vector<1x8xf32>
    %571 = arith.mulf %566, %570 : vector<1x8xf32>
    %cst_207 = arith.constant dense<0.000000e+00> : vector<1x8xf32>
    %572 = tpu.matmul %571, %557, %cst_207 {dimension_numbers = #tpu.dot_dimension_numbers<[1], [0], [0], [1], [0, 0, 1, 1], [], []>} : vector<1x8xf32>, vector<8x8xf32>, vector<1x8xf32> -> vector<1x8xf32>
    %573 = arith.addf %555, %572 : vector<1x8xf32>
    %574 = vector.extract_strided_slice %533 {offsets = [0, 16], sizes = [1, 8], strides = [1, 1]} : vector<1x32xf32> to vector<1x8xf32>
    %575 = vector.extract_strided_slice %534 {offsets = [0, 16], sizes = [8, 8], strides = [1, 1]} : vector<8x32xf32> to vector<8x8xf32>
    %576 = vector.extract_strided_slice %535 {offsets = [0, 16], sizes = [8, 8], strides = [1, 1]} : vector<8x32xf32> to vector<8x8xf32>
    %577 = tpu.transpose %575, [1, 0] : vector<8x8xf32> -> vector<8x8xf32>
    %cst_208 = arith.constant dense<0.000000e+00> : vector<1x8xf32>
    %578 = tpu.matmul %574, %577, %cst_208 {dimension_numbers = #tpu.dot_dimension_numbers<[1], [0], [0], [1], [0, 0, 1, 1], [], []>} : vector<1x8xf32>, vector<8x8xf32>, vector<1x8xf32> -> vector<1x8xf32>
    %cst_209 = arith.constant 0.176776692 : f32
    %579 = vector.broadcast %cst_209 : f32 to vector<1x8xf32>
    %580 = arith.mulf %578, %579 : vector<1x8xf32>
    %cst_210 = arith.constant dense<0xFF800000> : vector<1xf32>
    %581 = vector.multi_reduction <maximumf>, %580, %cst_210 [1] : vector<1x8xf32> to vector<1xf32>
    %582 = vector.shape_cast %581 : vector<1xf32> to vector<1x1xf32>
    %583 = vector.broadcast %582 : vector<1x1xf32> to vector<1x8xf32>
    %584 = arith.subf %580, %583 : vector<1x8xf32>
    %585 = math.exp %584 : vector<1x8xf32>
    %cst_211 = arith.constant dense<0.000000e+00> : vector<1xf32>
    %586 = vector.multi_reduction <add>, %585, %cst_211 [1] : vector<1x8xf32> to vector<1xf32>
    %587 = vector.shape_cast %586 : vector<1xf32> to vector<1x1xf32>
    %588 = tpu.reciprocal %587 {approx = true} : vector<1x1xf32> -> vector<1x1xf32>
    %589 = vector.broadcast %588 : vector<1x1xf32> to vector<1x8xf32>
    %590 = arith.mulf %585, %589 : vector<1x8xf32>
    %cst_212 = arith.constant dense<0.000000e+00> : vector<1x8xf32>
    %591 = tpu.matmul %590, %576, %cst_212 {dimension_numbers = #tpu.dot_dimension_numbers<[1], [0], [0], [1], [0, 0, 1, 1], [], []>} : vector<1x8xf32>, vector<8x8xf32>, vector<1x8xf32> -> vector<1x8xf32>
    %592 = arith.addf %574, %591 : vector<1x8xf32>
    %593 = vector.extract_strided_slice %533 {offsets = [0, 24], sizes = [1, 8], strides = [1, 1]} : vector<1x32xf32> to vector<1x8xf32>
    %594 = vector.extract_strided_slice %534 {offsets = [0, 24], sizes = [8, 8], strides = [1, 1]} : vector<8x32xf32> to vector<8x8xf32>
    %595 = vector.extract_strided_slice %535 {offsets = [0, 24], sizes = [8, 8], strides = [1, 1]} : vector<8x32xf32> to vector<8x8xf32>
    %596 = tpu.transpose %594, [1, 0] : vector<8x8xf32> -> vector<8x8xf32>
    %cst_213 = arith.constant dense<0.000000e+00> : vector<1x8xf32>
    %597 = tpu.matmul %593, %596, %cst_213 {dimension_numbers = #tpu.dot_dimension_numbers<[1], [0], [0], [1], [0, 0, 1, 1], [], []>} : vector<1x8xf32>, vector<8x8xf32>, vector<1x8xf32> -> vector<1x8xf32>
    %cst_214 = arith.constant 0.176776692 : f32
    %598 = vector.broadcast %cst_214 : f32 to vector<1x8xf32>
    %599 = arith.mulf %597, %598 : vector<1x8xf32>
    %cst_215 = arith.constant dense<0xFF800000> : vector<1xf32>
    %600 = vector.multi_reduction <maximumf>, %599, %cst_215 [1] : vector<1x8xf32> to vector<1xf32>
    %601 = vector.shape_cast %600 : vector<1xf32> to vector<1x1xf32>
    %602 = vector.broadcast %601 : vector<1x1xf32> to vector<1x8xf32>
    %603 = arith.subf %599, %602 : vector<1x8xf32>
    %604 = math.exp %603 : vector<1x8xf32>
    %cst_216 = arith.constant dense<0.000000e+00> : vector<1xf32>
    %605 = vector.multi_reduction <add>, %604, %cst_216 [1] : vector<1x8xf32> to vector<1xf32>
    %606 = vector.shape_cast %605 : vector<1xf32> to vector<1x1xf32>
    %607 = tpu.reciprocal %606 {approx = true} : vector<1x1xf32> -> vector<1x1xf32>
    %608 = vector.broadcast %607 : vector<1x1xf32> to vector<1x8xf32>
    %609 = arith.mulf %604, %608 : vector<1x8xf32>
    %cst_217 = arith.constant dense<0.000000e+00> : vector<1x8xf32>
    %610 = tpu.matmul %609, %595, %cst_217 {dimension_numbers = #tpu.dot_dimension_numbers<[1], [0], [0], [1], [0, 0, 1, 1], [], []>} : vector<1x8xf32>, vector<8x8xf32>, vector<1x8xf32> -> vector<1x8xf32>
    %611 = arith.addf %593, %610 : vector<1x8xf32>
    %612 = tpu.concatenate %554, %573, %592, %611 in 1 : vector<1x8xf32>, vector<1x8xf32>, vector<1x8xf32>, vector<1x8xf32> -> vector<1x32xf32>
    %613 = tpu.concatenate %532, %612 in 0 : vector<1x32xf32>, vector<1x32xf32> -> vector<2x32xf32>
    %cst_218 = arith.constant dense<0.000000e+00> : vector<2x32xf32>
    %614 = tpu.matmul %613, %442, %cst_218 {dimension_numbers = #tpu.dot_dimension_numbers<[1], [0], [0], [1], [0, 0, 1, 1], [], []>} : vector<2x32xf32>, vector<32x32xf32>, vector<2x32xf32> -> vector<2x32xf32>
    %615 = vector.broadcast %444 : vector<1x32xf32> to vector<2x32xf32>
    %616 = arith.addf %614, %615 : vector<2x32xf32>
    %cst_219 = arith.constant 0.000000e+00 : f32
    %617 = vector.broadcast %cst_219 : f32 to vector<2x32xf32>
    %618 = arith.maximumf %616, %617 : vector<2x32xf32>
    %619 = arith.addf %613, %618 : vector<2x32xf32>
    %c1_220 = arith.constant 1 : index
    %c0_221 = arith.constant 0 : index
    %c0_222 = arith.constant 0 : index
    %620 = vector.load %arg15[%c1_220, %c0_221, %c0_222] : memref<2x32x32xf32, #tpu.memory_space<vmem>>, vector<1x32x32xf32>
    %621 = vector.shape_cast %620 : vector<1x32x32xf32> to vector<32x32xf32>
    %c1_223 = arith.constant 1 : index
    %c0_224 = arith.constant 0 : index
    %c0_225 = arith.constant 0 : index
    %622 = vector.load %arg16[%c1_223, %c0_224, %c0_225] : memref<2x1x32xf32, #tpu.memory_space<vmem>>, vector<1x1x32xf32>
    %623 = vector.shape_cast %622 : vector<1x1x32xf32> to vector<1x32xf32>
    %c1_226 = arith.constant 1 : index
    %c0_227 = arith.constant 0 : index
    %c0_228 = arith.constant 0 : index
    %624 = vector.load %arg17[%c1_226, %c0_227, %c0_228] : memref<2x32x64xf32, #tpu.memory_space<vmem>>, vector<1x32x64xf32>
    %625 = vector.shape_cast %624 : vector<1x32x64xf32> to vector<32x64xf32>
    %c1_229 = arith.constant 1 : index
    %c0_230 = arith.constant 0 : index
    %c0_231 = arith.constant 0 : index
    %626 = vector.load %arg18[%c1_229, %c0_230, %c0_231] : memref<2x1x64xf32, #tpu.memory_space<vmem>>, vector<1x1x64xf32>
    %627 = vector.shape_cast %626 : vector<1x1x64xf32> to vector<1x64xf32>
    %c1_232 = arith.constant 1 : index
    %c0_233 = arith.constant 0 : index
    %c0_234 = arith.constant 0 : index
    %628 = vector.load %arg19[%c1_232, %c0_233, %c0_234] : memref<2x32x32xf32, #tpu.memory_space<vmem>>, vector<1x32x32xf32>
    %629 = vector.shape_cast %628 : vector<1x32x32xf32> to vector<32x32xf32>
    %c1_235 = arith.constant 1 : index
    %c0_236 = arith.constant 0 : index
    %c0_237 = arith.constant 0 : index
    %630 = vector.load %arg20[%c1_235, %c0_236, %c0_237] : memref<2x1x32xf32, #tpu.memory_space<vmem>>, vector<1x1x32xf32>
    %631 = vector.shape_cast %630 : vector<1x1x32xf32> to vector<1x32xf32>
    %cst_238 = arith.constant dense<0.000000e+00> : vector<16x32xf32>
    %632 = tpu.matmul %429, %621, %cst_238 {dimension_numbers = #tpu.dot_dimension_numbers<[1], [0], [0], [1], [0, 0, 1, 1], [], []>} : vector<16x32xf32>, vector<32x32xf32>, vector<16x32xf32> -> vector<16x32xf32>
    %633 = vector.broadcast %623 : vector<1x32xf32> to vector<16x32xf32>
    %634 = arith.addf %632, %633 : vector<16x32xf32>
    %cst_239 = arith.constant dense<0.000000e+00> : vector<2x64xf32>
    %635 = tpu.matmul %619, %625, %cst_239 {dimension_numbers = #tpu.dot_dimension_numbers<[1], [0], [0], [1], [0, 0, 1, 1], [], []>} : vector<2x32xf32>, vector<32x64xf32>, vector<2x64xf32> -> vector<2x64xf32>
    %636 = vector.broadcast %627 : vector<1x64xf32> to vector<2x64xf32>
    %637 = arith.addf %635, %636 : vector<2x64xf32>
    %638 = vector.extract_strided_slice %637 {offsets = [0, 0], sizes = [2, 32], strides = [1, 1]} : vector<2x64xf32> to vector<2x32xf32>
    %639 = vector.extract_strided_slice %637 {offsets = [0, 32], sizes = [2, 32], strides = [1, 1]} : vector<2x64xf32> to vector<2x32xf32>
    %640 = vector.extract_strided_slice %634 {offsets = [0, 0], sizes = [8, 32], strides = [1, 1]} : vector<16x32xf32> to vector<8x32xf32>
    %641 = vector.extract_strided_slice %638 {offsets = [0, 0], sizes = [1, 32], strides = [1, 1]} : vector<2x32xf32> to vector<1x32xf32>
    %642 = vector.extract_strided_slice %639 {offsets = [0, 0], sizes = [1, 32], strides = [1, 1]} : vector<2x32xf32> to vector<1x32xf32>
    %643 = vector.extract_strided_slice %640 {offsets = [0, 0], sizes = [8, 8], strides = [1, 1]} : vector<8x32xf32> to vector<8x8xf32>
    %644 = vector.extract_strided_slice %641 {offsets = [0, 0], sizes = [1, 8], strides = [1, 1]} : vector<1x32xf32> to vector<1x8xf32>
    %645 = vector.extract_strided_slice %642 {offsets = [0, 0], sizes = [1, 8], strides = [1, 1]} : vector<1x32xf32> to vector<1x8xf32>
    %646 = tpu.transpose %644, [1, 0] : vector<1x8xf32> -> vector<8x1xf32>
    %cst_240 = arith.constant dense<0.000000e+00> : vector<8x1xf32>
    %647 = tpu.matmul %643, %646, %cst_240 {dimension_numbers = #tpu.dot_dimension_numbers<[1], [0], [0], [1], [0, 0, 1, 1], [], []>} : vector<8x8xf32>, vector<8x1xf32>, vector<8x1xf32> -> vector<8x1xf32>
    %cst_241 = arith.constant 0.176776692 : f32
    %648 = vector.broadcast %cst_241 : f32 to vector<8x1xf32>
    %649 = arith.mulf %647, %648 : vector<8x1xf32>
    %cst_242 = arith.constant dense<0xFF800000> : vector<8xf32>
    %650 = vector.multi_reduction <maximumf>, %649, %cst_242 [1] : vector<8x1xf32> to vector<8xf32>
    %651 = vector.shape_cast %650 : vector<8xf32> to vector<8x1xf32>
    %652 = arith.subf %649, %651 : vector<8x1xf32>
    %653 = math.exp %652 : vector<8x1xf32>
    %cst_243 = arith.constant dense<0.000000e+00> : vector<8xf32>
    %654 = vector.multi_reduction <add>, %653, %cst_243 [1] : vector<8x1xf32> to vector<8xf32>
    %655 = vector.shape_cast %654 : vector<8xf32> to vector<8x1xf32>
    %656 = tpu.reciprocal %655 {approx = true} : vector<8x1xf32> -> vector<8x1xf32>
    %657 = arith.mulf %653, %656 : vector<8x1xf32>
    %cst_244 = arith.constant dense<0.000000e+00> : vector<8x8xf32>
    %658 = tpu.matmul %657, %645, %cst_244 {dimension_numbers = #tpu.dot_dimension_numbers<[1], [0], [0], [1], [0, 0, 1, 1], [], []>} : vector<8x1xf32>, vector<1x8xf32>, vector<8x8xf32> -> vector<8x8xf32>
    %659 = arith.addf %643, %658 : vector<8x8xf32>
    %660 = vector.extract_strided_slice %640 {offsets = [0, 8], sizes = [8, 8], strides = [1, 1]} : vector<8x32xf32> to vector<8x8xf32>
    %661 = vector.extract_strided_slice %641 {offsets = [0, 8], sizes = [1, 8], strides = [1, 1]} : vector<1x32xf32> to vector<1x8xf32>
    %662 = vector.extract_strided_slice %642 {offsets = [0, 8], sizes = [1, 8], strides = [1, 1]} : vector<1x32xf32> to vector<1x8xf32>
    %663 = tpu.transpose %661, [1, 0] : vector<1x8xf32> -> vector<8x1xf32>
    %cst_245 = arith.constant dense<0.000000e+00> : vector<8x1xf32>
    %664 = tpu.matmul %660, %663, %cst_245 {dimension_numbers = #tpu.dot_dimension_numbers<[1], [0], [0], [1], [0, 0, 1, 1], [], []>} : vector<8x8xf32>, vector<8x1xf32>, vector<8x1xf32> -> vector<8x1xf32>
    %cst_246 = arith.constant 0.176776692 : f32
    %665 = vector.broadcast %cst_246 : f32 to vector<8x1xf32>
    %666 = arith.mulf %664, %665 : vector<8x1xf32>
    %cst_247 = arith.constant dense<0xFF800000> : vector<8xf32>
    %667 = vector.multi_reduction <maximumf>, %666, %cst_247 [1] : vector<8x1xf32> to vector<8xf32>
    %668 = vector.shape_cast %667 : vector<8xf32> to vector<8x1xf32>
    %669 = arith.subf %666, %668 : vector<8x1xf32>
    %670 = math.exp %669 : vector<8x1xf32>
    %cst_248 = arith.constant dense<0.000000e+00> : vector<8xf32>
    %671 = vector.multi_reduction <add>, %670, %cst_248 [1] : vector<8x1xf32> to vector<8xf32>
    %672 = vector.shape_cast %671 : vector<8xf32> to vector<8x1xf32>
    %673 = tpu.reciprocal %672 {approx = true} : vector<8x1xf32> -> vector<8x1xf32>
    %674 = arith.mulf %670, %673 : vector<8x1xf32>
    %cst_249 = arith.constant dense<0.000000e+00> : vector<8x8xf32>
    %675 = tpu.matmul %674, %662, %cst_249 {dimension_numbers = #tpu.dot_dimension_numbers<[1], [0], [0], [1], [0, 0, 1, 1], [], []>} : vector<8x1xf32>, vector<1x8xf32>, vector<8x8xf32> -> vector<8x8xf32>
    %676 = arith.addf %660, %675 : vector<8x8xf32>
    %677 = vector.extract_strided_slice %640 {offsets = [0, 16], sizes = [8, 8], strides = [1, 1]} : vector<8x32xf32> to vector<8x8xf32>
    %678 = vector.extract_strided_slice %641 {offsets = [0, 16], sizes = [1, 8], strides = [1, 1]} : vector<1x32xf32> to vector<1x8xf32>
    %679 = vector.extract_strided_slice %642 {offsets = [0, 16], sizes = [1, 8], strides = [1, 1]} : vector<1x32xf32> to vector<1x8xf32>
    %680 = tpu.transpose %678, [1, 0] : vector<1x8xf32> -> vector<8x1xf32>
    %cst_250 = arith.constant dense<0.000000e+00> : vector<8x1xf32>
    %681 = tpu.matmul %677, %680, %cst_250 {dimension_numbers = #tpu.dot_dimension_numbers<[1], [0], [0], [1], [0, 0, 1, 1], [], []>} : vector<8x8xf32>, vector<8x1xf32>, vector<8x1xf32> -> vector<8x1xf32>
    %cst_251 = arith.constant 0.176776692 : f32
    %682 = vector.broadcast %cst_251 : f32 to vector<8x1xf32>
    %683 = arith.mulf %681, %682 : vector<8x1xf32>
    %cst_252 = arith.constant dense<0xFF800000> : vector<8xf32>
    %684 = vector.multi_reduction <maximumf>, %683, %cst_252 [1] : vector<8x1xf32> to vector<8xf32>
    %685 = vector.shape_cast %684 : vector<8xf32> to vector<8x1xf32>
    %686 = arith.subf %683, %685 : vector<8x1xf32>
    %687 = math.exp %686 : vector<8x1xf32>
    %cst_253 = arith.constant dense<0.000000e+00> : vector<8xf32>
    %688 = vector.multi_reduction <add>, %687, %cst_253 [1] : vector<8x1xf32> to vector<8xf32>
    %689 = vector.shape_cast %688 : vector<8xf32> to vector<8x1xf32>
    %690 = tpu.reciprocal %689 {approx = true} : vector<8x1xf32> -> vector<8x1xf32>
    %691 = arith.mulf %687, %690 : vector<8x1xf32>
    %cst_254 = arith.constant dense<0.000000e+00> : vector<8x8xf32>
    %692 = tpu.matmul %691, %679, %cst_254 {dimension_numbers = #tpu.dot_dimension_numbers<[1], [0], [0], [1], [0, 0, 1, 1], [], []>} : vector<8x1xf32>, vector<1x8xf32>, vector<8x8xf32> -> vector<8x8xf32>
    %693 = arith.addf %677, %692 : vector<8x8xf32>
    %694 = vector.extract_strided_slice %640 {offsets = [0, 24], sizes = [8, 8], strides = [1, 1]} : vector<8x32xf32> to vector<8x8xf32>
    %695 = vector.extract_strided_slice %641 {offsets = [0, 24], sizes = [1, 8], strides = [1, 1]} : vector<1x32xf32> to vector<1x8xf32>
    %696 = vector.extract_strided_slice %642 {offsets = [0, 24], sizes = [1, 8], strides = [1, 1]} : vector<1x32xf32> to vector<1x8xf32>
    %697 = tpu.transpose %695, [1, 0] : vector<1x8xf32> -> vector<8x1xf32>
    %cst_255 = arith.constant dense<0.000000e+00> : vector<8x1xf32>
    %698 = tpu.matmul %694, %697, %cst_255 {dimension_numbers = #tpu.dot_dimension_numbers<[1], [0], [0], [1], [0, 0, 1, 1], [], []>} : vector<8x8xf32>, vector<8x1xf32>, vector<8x1xf32> -> vector<8x1xf32>
    %cst_256 = arith.constant 0.176776692 : f32
    %699 = vector.broadcast %cst_256 : f32 to vector<8x1xf32>
    %700 = arith.mulf %698, %699 : vector<8x1xf32>
    %cst_257 = arith.constant dense<0xFF800000> : vector<8xf32>
    %701 = vector.multi_reduction <maximumf>, %700, %cst_257 [1] : vector<8x1xf32> to vector<8xf32>
    %702 = vector.shape_cast %701 : vector<8xf32> to vector<8x1xf32>
    %703 = arith.subf %700, %702 : vector<8x1xf32>
    %704 = math.exp %703 : vector<8x1xf32>
    %cst_258 = arith.constant dense<0.000000e+00> : vector<8xf32>
    %705 = vector.multi_reduction <add>, %704, %cst_258 [1] : vector<8x1xf32> to vector<8xf32>
    %706 = vector.shape_cast %705 : vector<8xf32> to vector<8x1xf32>
    %707 = tpu.reciprocal %706 {approx = true} : vector<8x1xf32> -> vector<8x1xf32>
    %708 = arith.mulf %704, %707 : vector<8x1xf32>
    %cst_259 = arith.constant dense<0.000000e+00> : vector<8x8xf32>
    %709 = tpu.matmul %708, %696, %cst_259 {dimension_numbers = #tpu.dot_dimension_numbers<[1], [0], [0], [1], [0, 0, 1, 1], [], []>} : vector<8x1xf32>, vector<1x8xf32>, vector<8x8xf32> -> vector<8x8xf32>
    %710 = arith.addf %694, %709 : vector<8x8xf32>
    %711 = tpu.concatenate %659, %676, %693, %710 in 1 : vector<8x8xf32>, vector<8x8xf32>, vector<8x8xf32>, vector<8x8xf32> -> vector<8x32xf32>
    %712 = vector.extract_strided_slice %634 {offsets = [8, 0], sizes = [8, 32], strides = [1, 1]} : vector<16x32xf32> to vector<8x32xf32>
    %713 = vector.extract_strided_slice %638 {offsets = [1, 0], sizes = [1, 32], strides = [1, 1]} : vector<2x32xf32> to vector<1x32xf32>
    %714 = vector.extract_strided_slice %639 {offsets = [1, 0], sizes = [1, 32], strides = [1, 1]} : vector<2x32xf32> to vector<1x32xf32>
    %715 = vector.extract_strided_slice %712 {offsets = [0, 0], sizes = [8, 8], strides = [1, 1]} : vector<8x32xf32> to vector<8x8xf32>
    %716 = vector.extract_strided_slice %713 {offsets = [0, 0], sizes = [1, 8], strides = [1, 1]} : vector<1x32xf32> to vector<1x8xf32>
    %717 = vector.extract_strided_slice %714 {offsets = [0, 0], sizes = [1, 8], strides = [1, 1]} : vector<1x32xf32> to vector<1x8xf32>
    %718 = tpu.transpose %716, [1, 0] : vector<1x8xf32> -> vector<8x1xf32>
    %cst_260 = arith.constant dense<0.000000e+00> : vector<8x1xf32>
    %719 = tpu.matmul %715, %718, %cst_260 {dimension_numbers = #tpu.dot_dimension_numbers<[1], [0], [0], [1], [0, 0, 1, 1], [], []>} : vector<8x8xf32>, vector<8x1xf32>, vector<8x1xf32> -> vector<8x1xf32>
    %cst_261 = arith.constant 0.176776692 : f32
    %720 = vector.broadcast %cst_261 : f32 to vector<8x1xf32>
    %721 = arith.mulf %719, %720 : vector<8x1xf32>
    %cst_262 = arith.constant dense<0xFF800000> : vector<8xf32>
    %722 = vector.multi_reduction <maximumf>, %721, %cst_262 [1] : vector<8x1xf32> to vector<8xf32>
    %723 = vector.shape_cast %722 : vector<8xf32> to vector<8x1xf32>
    %724 = arith.subf %721, %723 : vector<8x1xf32>
    %725 = math.exp %724 : vector<8x1xf32>
    %cst_263 = arith.constant dense<0.000000e+00> : vector<8xf32>
    %726 = vector.multi_reduction <add>, %725, %cst_263 [1] : vector<8x1xf32> to vector<8xf32>
    %727 = vector.shape_cast %726 : vector<8xf32> to vector<8x1xf32>
    %728 = tpu.reciprocal %727 {approx = true} : vector<8x1xf32> -> vector<8x1xf32>
    %729 = arith.mulf %725, %728 : vector<8x1xf32>
    %cst_264 = arith.constant dense<0.000000e+00> : vector<8x8xf32>
    %730 = tpu.matmul %729, %717, %cst_264 {dimension_numbers = #tpu.dot_dimension_numbers<[1], [0], [0], [1], [0, 0, 1, 1], [], []>} : vector<8x1xf32>, vector<1x8xf32>, vector<8x8xf32> -> vector<8x8xf32>
    %731 = arith.addf %715, %730 : vector<8x8xf32>
    %732 = vector.extract_strided_slice %712 {offsets = [0, 8], sizes = [8, 8], strides = [1, 1]} : vector<8x32xf32> to vector<8x8xf32>
    %733 = vector.extract_strided_slice %713 {offsets = [0, 8], sizes = [1, 8], strides = [1, 1]} : vector<1x32xf32> to vector<1x8xf32>
    %734 = vector.extract_strided_slice %714 {offsets = [0, 8], sizes = [1, 8], strides = [1, 1]} : vector<1x32xf32> to vector<1x8xf32>
    %735 = tpu.transpose %733, [1, 0] : vector<1x8xf32> -> vector<8x1xf32>
    %cst_265 = arith.constant dense<0.000000e+00> : vector<8x1xf32>
    %736 = tpu.matmul %732, %735, %cst_265 {dimension_numbers = #tpu.dot_dimension_numbers<[1], [0], [0], [1], [0, 0, 1, 1], [], []>} : vector<8x8xf32>, vector<8x1xf32>, vector<8x1xf32> -> vector<8x1xf32>
    %cst_266 = arith.constant 0.176776692 : f32
    %737 = vector.broadcast %cst_266 : f32 to vector<8x1xf32>
    %738 = arith.mulf %736, %737 : vector<8x1xf32>
    %cst_267 = arith.constant dense<0xFF800000> : vector<8xf32>
    %739 = vector.multi_reduction <maximumf>, %738, %cst_267 [1] : vector<8x1xf32> to vector<8xf32>
    %740 = vector.shape_cast %739 : vector<8xf32> to vector<8x1xf32>
    %741 = arith.subf %738, %740 : vector<8x1xf32>
    %742 = math.exp %741 : vector<8x1xf32>
    %cst_268 = arith.constant dense<0.000000e+00> : vector<8xf32>
    %743 = vector.multi_reduction <add>, %742, %cst_268 [1] : vector<8x1xf32> to vector<8xf32>
    %744 = vector.shape_cast %743 : vector<8xf32> to vector<8x1xf32>
    %745 = tpu.reciprocal %744 {approx = true} : vector<8x1xf32> -> vector<8x1xf32>
    %746 = arith.mulf %742, %745 : vector<8x1xf32>
    %cst_269 = arith.constant dense<0.000000e+00> : vector<8x8xf32>
    %747 = tpu.matmul %746, %734, %cst_269 {dimension_numbers = #tpu.dot_dimension_numbers<[1], [0], [0], [1], [0, 0, 1, 1], [], []>} : vector<8x1xf32>, vector<1x8xf32>, vector<8x8xf32> -> vector<8x8xf32>
    %748 = arith.addf %732, %747 : vector<8x8xf32>
    %749 = vector.extract_strided_slice %712 {offsets = [0, 16], sizes = [8, 8], strides = [1, 1]} : vector<8x32xf32> to vector<8x8xf32>
    %750 = vector.extract_strided_slice %713 {offsets = [0, 16], sizes = [1, 8], strides = [1, 1]} : vector<1x32xf32> to vector<1x8xf32>
    %751 = vector.extract_strided_slice %714 {offsets = [0, 16], sizes = [1, 8], strides = [1, 1]} : vector<1x32xf32> to vector<1x8xf32>
    %752 = tpu.transpose %750, [1, 0] : vector<1x8xf32> -> vector<8x1xf32>
    %cst_270 = arith.constant dense<0.000000e+00> : vector<8x1xf32>
    %753 = tpu.matmul %749, %752, %cst_270 {dimension_numbers = #tpu.dot_dimension_numbers<[1], [0], [0], [1], [0, 0, 1, 1], [], []>} : vector<8x8xf32>, vector<8x1xf32>, vector<8x1xf32> -> vector<8x1xf32>
    %cst_271 = arith.constant 0.176776692 : f32
    %754 = vector.broadcast %cst_271 : f32 to vector<8x1xf32>
    %755 = arith.mulf %753, %754 : vector<8x1xf32>
    %cst_272 = arith.constant dense<0xFF800000> : vector<8xf32>
    %756 = vector.multi_reduction <maximumf>, %755, %cst_272 [1] : vector<8x1xf32> to vector<8xf32>
    %757 = vector.shape_cast %756 : vector<8xf32> to vector<8x1xf32>
    %758 = arith.subf %755, %757 : vector<8x1xf32>
    %759 = math.exp %758 : vector<8x1xf32>
    %cst_273 = arith.constant dense<0.000000e+00> : vector<8xf32>
    %760 = vector.multi_reduction <add>, %759, %cst_273 [1] : vector<8x1xf32> to vector<8xf32>
    %761 = vector.shape_cast %760 : vector<8xf32> to vector<8x1xf32>
    %762 = tpu.reciprocal %761 {approx = true} : vector<8x1xf32> -> vector<8x1xf32>
    %763 = arith.mulf %759, %762 : vector<8x1xf32>
    %cst_274 = arith.constant dense<0.000000e+00> : vector<8x8xf32>
    %764 = tpu.matmul %763, %751, %cst_274 {dimension_numbers = #tpu.dot_dimension_numbers<[1], [0], [0], [1], [0, 0, 1, 1], [], []>} : vector<8x1xf32>, vector<1x8xf32>, vector<8x8xf32> -> vector<8x8xf32>
    %765 = arith.addf %749, %764 : vector<8x8xf32>
    %766 = vector.extract_strided_slice %712 {offsets = [0, 24], sizes = [8, 8], strides = [1, 1]} : vector<8x32xf32> to vector<8x8xf32>
    %767 = vector.extract_strided_slice %713 {offsets = [0, 24], sizes = [1, 8], strides = [1, 1]} : vector<1x32xf32> to vector<1x8xf32>
    %768 = vector.extract_strided_slice %714 {offsets = [0, 24], sizes = [1, 8], strides = [1, 1]} : vector<1x32xf32> to vector<1x8xf32>
    %769 = tpu.transpose %767, [1, 0] : vector<1x8xf32> -> vector<8x1xf32>
    %cst_275 = arith.constant dense<0.000000e+00> : vector<8x1xf32>
    %770 = tpu.matmul %766, %769, %cst_275 {dimension_numbers = #tpu.dot_dimension_numbers<[1], [0], [0], [1], [0, 0, 1, 1], [], []>} : vector<8x8xf32>, vector<8x1xf32>, vector<8x1xf32> -> vector<8x1xf32>
    %cst_276 = arith.constant 0.176776692 : f32
    %771 = vector.broadcast %cst_276 : f32 to vector<8x1xf32>
    %772 = arith.mulf %770, %771 : vector<8x1xf32>
    %cst_277 = arith.constant dense<0xFF800000> : vector<8xf32>
    %773 = vector.multi_reduction <maximumf>, %772, %cst_277 [1] : vector<8x1xf32> to vector<8xf32>
    %774 = vector.shape_cast %773 : vector<8xf32> to vector<8x1xf32>
    %775 = arith.subf %772, %774 : vector<8x1xf32>
    %776 = math.exp %775 : vector<8x1xf32>
    %cst_278 = arith.constant dense<0.000000e+00> : vector<8xf32>
    %777 = vector.multi_reduction <add>, %776, %cst_278 [1] : vector<8x1xf32> to vector<8xf32>
    %778 = vector.shape_cast %777 : vector<8xf32> to vector<8x1xf32>
    %779 = tpu.reciprocal %778 {approx = true} : vector<8x1xf32> -> vector<8x1xf32>
    %780 = arith.mulf %776, %779 : vector<8x1xf32>
    %cst_279 = arith.constant dense<0.000000e+00> : vector<8x8xf32>
    %781 = tpu.matmul %780, %768, %cst_279 {dimension_numbers = #tpu.dot_dimension_numbers<[1], [0], [0], [1], [0, 0, 1, 1], [], []>} : vector<8x1xf32>, vector<1x8xf32>, vector<8x8xf32> -> vector<8x8xf32>
    %782 = arith.addf %766, %781 : vector<8x8xf32>
    %783 = tpu.concatenate %731, %748, %765, %782 in 1 : vector<8x8xf32>, vector<8x8xf32>, vector<8x8xf32>, vector<8x8xf32> -> vector<8x32xf32>
    %784 = tpu.concatenate %711, %783 in 0 : vector<8x32xf32>, vector<8x32xf32> -> vector<16x32xf32>
    %cst_280 = arith.constant dense<0.000000e+00> : vector<16x32xf32>
    %785 = tpu.matmul %784, %629, %cst_280 {dimension_numbers = #tpu.dot_dimension_numbers<[1], [0], [0], [1], [0, 0, 1, 1], [], []>} : vector<16x32xf32>, vector<32x32xf32>, vector<16x32xf32> -> vector<16x32xf32>
    %786 = vector.broadcast %631 : vector<1x32xf32> to vector<16x32xf32>
    %787 = arith.addf %785, %786 : vector<16x32xf32>
    %cst_281 = arith.constant 0.000000e+00 : f32
    %788 = vector.broadcast %cst_281 : f32 to vector<16x32xf32>
    %789 = arith.maximumf %787, %788 : vector<16x32xf32>
    %790 = arith.addf %784, %789 : vector<16x32xf32>
    %c0_282 = arith.constant 0 : index
    %c0_283 = arith.constant 0 : index
    %791 = vector.load %arg21[%c0_282, %c0_283] : memref<1x32xf32, #tpu.memory_space<vmem>>, vector<1x32xf32>
    %792 = tpu.concatenate %791, %791 in 0 : vector<1x32xf32>, vector<1x32xf32> -> vector<2x32xf32>
    %c0_284 = arith.constant 0 : index
    %c0_285 = arith.constant 0 : index
    %793 = vector.load %arg22[%c0_284, %c0_285] : memref<32x32xf32, #tpu.memory_space<vmem>>, vector<32x32xf32>
    %c0_286 = arith.constant 0 : index
    %c0_287 = arith.constant 0 : index
    %794 = vector.load %arg23[%c0_286, %c0_287] : memref<1x32xf32, #tpu.memory_space<vmem>>, vector<1x32xf32>
    %c0_288 = arith.constant 0 : index
    %c0_289 = arith.constant 0 : index
    %795 = vector.load %arg24[%c0_288, %c0_289] : memref<32x64xf32, #tpu.memory_space<vmem>>, vector<32x64xf32>
    %c0_290 = arith.constant 0 : index
    %c0_291 = arith.constant 0 : index
    %796 = vector.load %arg25[%c0_290, %c0_291] : memref<1x64xf32, #tpu.memory_space<vmem>>, vector<1x64xf32>
    %c0_292 = arith.constant 0 : index
    %c0_293 = arith.constant 0 : index
    %797 = vector.load %arg26[%c0_292, %c0_293] : memref<32x32xf32, #tpu.memory_space<vmem>>, vector<32x32xf32>
    %c0_294 = arith.constant 0 : index
    %c0_295 = arith.constant 0 : index
    %798 = vector.load %arg27[%c0_294, %c0_295] : memref<1x32xf32, #tpu.memory_space<vmem>>, vector<1x32xf32>
    %cst_296 = arith.constant dense<0.000000e+00> : vector<2x32xf32>
    %799 = tpu.matmul %792, %793, %cst_296 {dimension_numbers = #tpu.dot_dimension_numbers<[1], [0], [0], [1], [0, 0, 1, 1], [], []>} : vector<2x32xf32>, vector<32x32xf32>, vector<2x32xf32> -> vector<2x32xf32>
    %800 = vector.broadcast %794 : vector<1x32xf32> to vector<2x32xf32>
    %801 = arith.addf %799, %800 : vector<2x32xf32>
    %cst_297 = arith.constant dense<0.000000e+00> : vector<16x64xf32>
    %802 = tpu.matmul %790, %795, %cst_297 {dimension_numbers = #tpu.dot_dimension_numbers<[1], [0], [0], [1], [0, 0, 1, 1], [], []>} : vector<16x32xf32>, vector<32x64xf32>, vector<16x64xf32> -> vector<16x64xf32>
    %803 = vector.broadcast %796 : vector<1x64xf32> to vector<16x64xf32>
    %804 = arith.addf %802, %803 : vector<16x64xf32>
    %805 = vector.extract_strided_slice %804 {offsets = [0, 0], sizes = [16, 32], strides = [1, 1]} : vector<16x64xf32> to vector<16x32xf32>
    %806 = vector.extract_strided_slice %804 {offsets = [0, 32], sizes = [16, 32], strides = [1, 1]} : vector<16x64xf32> to vector<16x32xf32>
    %807 = vector.extract_strided_slice %801 {offsets = [0, 0], sizes = [1, 32], strides = [1, 1]} : vector<2x32xf32> to vector<1x32xf32>
    %808 = vector.extract_strided_slice %805 {offsets = [0, 0], sizes = [8, 32], strides = [1, 1]} : vector<16x32xf32> to vector<8x32xf32>
    %809 = vector.extract_strided_slice %806 {offsets = [0, 0], sizes = [8, 32], strides = [1, 1]} : vector<16x32xf32> to vector<8x32xf32>
    %810 = vector.extract_strided_slice %807 {offsets = [0, 0], sizes = [1, 8], strides = [1, 1]} : vector<1x32xf32> to vector<1x8xf32>
    %811 = vector.extract_strided_slice %808 {offsets = [0, 0], sizes = [8, 8], strides = [1, 1]} : vector<8x32xf32> to vector<8x8xf32>
    %812 = vector.extract_strided_slice %809 {offsets = [0, 0], sizes = [8, 8], strides = [1, 1]} : vector<8x32xf32> to vector<8x8xf32>
    %813 = tpu.transpose %811, [1, 0] : vector<8x8xf32> -> vector<8x8xf32>
    %cst_298 = arith.constant dense<0.000000e+00> : vector<1x8xf32>
    %814 = tpu.matmul %810, %813, %cst_298 {dimension_numbers = #tpu.dot_dimension_numbers<[1], [0], [0], [1], [0, 0, 1, 1], [], []>} : vector<1x8xf32>, vector<8x8xf32>, vector<1x8xf32> -> vector<1x8xf32>
    %cst_299 = arith.constant 0.176776692 : f32
    %815 = vector.broadcast %cst_299 : f32 to vector<1x8xf32>
    %816 = arith.mulf %814, %815 : vector<1x8xf32>
    %cst_300 = arith.constant dense<0xFF800000> : vector<1xf32>
    %817 = vector.multi_reduction <maximumf>, %816, %cst_300 [1] : vector<1x8xf32> to vector<1xf32>
    %818 = vector.shape_cast %817 : vector<1xf32> to vector<1x1xf32>
    %819 = vector.broadcast %818 : vector<1x1xf32> to vector<1x8xf32>
    %820 = arith.subf %816, %819 : vector<1x8xf32>
    %821 = math.exp %820 : vector<1x8xf32>
    %cst_301 = arith.constant dense<0.000000e+00> : vector<1xf32>
    %822 = vector.multi_reduction <add>, %821, %cst_301 [1] : vector<1x8xf32> to vector<1xf32>
    %823 = vector.shape_cast %822 : vector<1xf32> to vector<1x1xf32>
    %824 = tpu.reciprocal %823 {approx = true} : vector<1x1xf32> -> vector<1x1xf32>
    %825 = vector.broadcast %824 : vector<1x1xf32> to vector<1x8xf32>
    %826 = arith.mulf %821, %825 : vector<1x8xf32>
    %cst_302 = arith.constant dense<0.000000e+00> : vector<1x8xf32>
    %827 = tpu.matmul %826, %812, %cst_302 {dimension_numbers = #tpu.dot_dimension_numbers<[1], [0], [0], [1], [0, 0, 1, 1], [], []>} : vector<1x8xf32>, vector<8x8xf32>, vector<1x8xf32> -> vector<1x8xf32>
    %828 = arith.addf %810, %827 : vector<1x8xf32>
    %829 = vector.extract_strided_slice %807 {offsets = [0, 8], sizes = [1, 8], strides = [1, 1]} : vector<1x32xf32> to vector<1x8xf32>
    %830 = vector.extract_strided_slice %808 {offsets = [0, 8], sizes = [8, 8], strides = [1, 1]} : vector<8x32xf32> to vector<8x8xf32>
    %831 = vector.extract_strided_slice %809 {offsets = [0, 8], sizes = [8, 8], strides = [1, 1]} : vector<8x32xf32> to vector<8x8xf32>
    %832 = tpu.transpose %830, [1, 0] : vector<8x8xf32> -> vector<8x8xf32>
    %cst_303 = arith.constant dense<0.000000e+00> : vector<1x8xf32>
    %833 = tpu.matmul %829, %832, %cst_303 {dimension_numbers = #tpu.dot_dimension_numbers<[1], [0], [0], [1], [0, 0, 1, 1], [], []>} : vector<1x8xf32>, vector<8x8xf32>, vector<1x8xf32> -> vector<1x8xf32>
    %cst_304 = arith.constant 0.176776692 : f32
    %834 = vector.broadcast %cst_304 : f32 to vector<1x8xf32>
    %835 = arith.mulf %833, %834 : vector<1x8xf32>
    %cst_305 = arith.constant dense<0xFF800000> : vector<1xf32>
    %836 = vector.multi_reduction <maximumf>, %835, %cst_305 [1] : vector<1x8xf32> to vector<1xf32>
    %837 = vector.shape_cast %836 : vector<1xf32> to vector<1x1xf32>
    %838 = vector.broadcast %837 : vector<1x1xf32> to vector<1x8xf32>
    %839 = arith.subf %835, %838 : vector<1x8xf32>
    %840 = math.exp %839 : vector<1x8xf32>
    %cst_306 = arith.constant dense<0.000000e+00> : vector<1xf32>
    %841 = vector.multi_reduction <add>, %840, %cst_306 [1] : vector<1x8xf32> to vector<1xf32>
    %842 = vector.shape_cast %841 : vector<1xf32> to vector<1x1xf32>
    %843 = tpu.reciprocal %842 {approx = true} : vector<1x1xf32> -> vector<1x1xf32>
    %844 = vector.broadcast %843 : vector<1x1xf32> to vector<1x8xf32>
    %845 = arith.mulf %840, %844 : vector<1x8xf32>
    %cst_307 = arith.constant dense<0.000000e+00> : vector<1x8xf32>
    %846 = tpu.matmul %845, %831, %cst_307 {dimension_numbers = #tpu.dot_dimension_numbers<[1], [0], [0], [1], [0, 0, 1, 1], [], []>} : vector<1x8xf32>, vector<8x8xf32>, vector<1x8xf32> -> vector<1x8xf32>
    %847 = arith.addf %829, %846 : vector<1x8xf32>
    %848 = vector.extract_strided_slice %807 {offsets = [0, 16], sizes = [1, 8], strides = [1, 1]} : vector<1x32xf32> to vector<1x8xf32>
    %849 = vector.extract_strided_slice %808 {offsets = [0, 16], sizes = [8, 8], strides = [1, 1]} : vector<8x32xf32> to vector<8x8xf32>
    %850 = vector.extract_strided_slice %809 {offsets = [0, 16], sizes = [8, 8], strides = [1, 1]} : vector<8x32xf32> to vector<8x8xf32>
    %851 = tpu.transpose %849, [1, 0] : vector<8x8xf32> -> vector<8x8xf32>
    %cst_308 = arith.constant dense<0.000000e+00> : vector<1x8xf32>
    %852 = tpu.matmul %848, %851, %cst_308 {dimension_numbers = #tpu.dot_dimension_numbers<[1], [0], [0], [1], [0, 0, 1, 1], [], []>} : vector<1x8xf32>, vector<8x8xf32>, vector<1x8xf32> -> vector<1x8xf32>
    %cst_309 = arith.constant 0.176776692 : f32
    %853 = vector.broadcast %cst_309 : f32 to vector<1x8xf32>
    %854 = arith.mulf %852, %853 : vector<1x8xf32>
    %cst_310 = arith.constant dense<0xFF800000> : vector<1xf32>
    %855 = vector.multi_reduction <maximumf>, %854, %cst_310 [1] : vector<1x8xf32> to vector<1xf32>
    %856 = vector.shape_cast %855 : vector<1xf32> to vector<1x1xf32>
    %857 = vector.broadcast %856 : vector<1x1xf32> to vector<1x8xf32>
    %858 = arith.subf %854, %857 : vector<1x8xf32>
    %859 = math.exp %858 : vector<1x8xf32>
    %cst_311 = arith.constant dense<0.000000e+00> : vector<1xf32>
    %860 = vector.multi_reduction <add>, %859, %cst_311 [1] : vector<1x8xf32> to vector<1xf32>
    %861 = vector.shape_cast %860 : vector<1xf32> to vector<1x1xf32>
    %862 = tpu.reciprocal %861 {approx = true} : vector<1x1xf32> -> vector<1x1xf32>
    %863 = vector.broadcast %862 : vector<1x1xf32> to vector<1x8xf32>
    %864 = arith.mulf %859, %863 : vector<1x8xf32>
    %cst_312 = arith.constant dense<0.000000e+00> : vector<1x8xf32>
    %865 = tpu.matmul %864, %850, %cst_312 {dimension_numbers = #tpu.dot_dimension_numbers<[1], [0], [0], [1], [0, 0, 1, 1], [], []>} : vector<1x8xf32>, vector<8x8xf32>, vector<1x8xf32> -> vector<1x8xf32>
    %866 = arith.addf %848, %865 : vector<1x8xf32>
    %867 = vector.extract_strided_slice %807 {offsets = [0, 24], sizes = [1, 8], strides = [1, 1]} : vector<1x32xf32> to vector<1x8xf32>
    %868 = vector.extract_strided_slice %808 {offsets = [0, 24], sizes = [8, 8], strides = [1, 1]} : vector<8x32xf32> to vector<8x8xf32>
    %869 = vector.extract_strided_slice %809 {offsets = [0, 24], sizes = [8, 8], strides = [1, 1]} : vector<8x32xf32> to vector<8x8xf32>
    %870 = tpu.transpose %868, [1, 0] : vector<8x8xf32> -> vector<8x8xf32>
    %cst_313 = arith.constant dense<0.000000e+00> : vector<1x8xf32>
    %871 = tpu.matmul %867, %870, %cst_313 {dimension_numbers = #tpu.dot_dimension_numbers<[1], [0], [0], [1], [0, 0, 1, 1], [], []>} : vector<1x8xf32>, vector<8x8xf32>, vector<1x8xf32> -> vector<1x8xf32>
    %cst_314 = arith.constant 0.176776692 : f32
    %872 = vector.broadcast %cst_314 : f32 to vector<1x8xf32>
    %873 = arith.mulf %871, %872 : vector<1x8xf32>
    %cst_315 = arith.constant dense<0xFF800000> : vector<1xf32>
    %874 = vector.multi_reduction <maximumf>, %873, %cst_315 [1] : vector<1x8xf32> to vector<1xf32>
    %875 = vector.shape_cast %874 : vector<1xf32> to vector<1x1xf32>
    %876 = vector.broadcast %875 : vector<1x1xf32> to vector<1x8xf32>
    %877 = arith.subf %873, %876 : vector<1x8xf32>
    %878 = math.exp %877 : vector<1x8xf32>
    %cst_316 = arith.constant dense<0.000000e+00> : vector<1xf32>
    %879 = vector.multi_reduction <add>, %878, %cst_316 [1] : vector<1x8xf32> to vector<1xf32>
    %880 = vector.shape_cast %879 : vector<1xf32> to vector<1x1xf32>
    %881 = tpu.reciprocal %880 {approx = true} : vector<1x1xf32> -> vector<1x1xf32>
    %882 = vector.broadcast %881 : vector<1x1xf32> to vector<1x8xf32>
    %883 = arith.mulf %878, %882 : vector<1x8xf32>
    %cst_317 = arith.constant dense<0.000000e+00> : vector<1x8xf32>
    %884 = tpu.matmul %883, %869, %cst_317 {dimension_numbers = #tpu.dot_dimension_numbers<[1], [0], [0], [1], [0, 0, 1, 1], [], []>} : vector<1x8xf32>, vector<8x8xf32>, vector<1x8xf32> -> vector<1x8xf32>
    %885 = arith.addf %867, %884 : vector<1x8xf32>
    %886 = tpu.concatenate %828, %847, %866, %885 in 1 : vector<1x8xf32>, vector<1x8xf32>, vector<1x8xf32>, vector<1x8xf32> -> vector<1x32xf32>
    %887 = vector.extract_strided_slice %801 {offsets = [1, 0], sizes = [1, 32], strides = [1, 1]} : vector<2x32xf32> to vector<1x32xf32>
    %888 = vector.extract_strided_slice %805 {offsets = [8, 0], sizes = [8, 32], strides = [1, 1]} : vector<16x32xf32> to vector<8x32xf32>
    %889 = vector.extract_strided_slice %806 {offsets = [8, 0], sizes = [8, 32], strides = [1, 1]} : vector<16x32xf32> to vector<8x32xf32>
    %890 = vector.extract_strided_slice %887 {offsets = [0, 0], sizes = [1, 8], strides = [1, 1]} : vector<1x32xf32> to vector<1x8xf32>
    %891 = vector.extract_strided_slice %888 {offsets = [0, 0], sizes = [8, 8], strides = [1, 1]} : vector<8x32xf32> to vector<8x8xf32>
    %892 = vector.extract_strided_slice %889 {offsets = [0, 0], sizes = [8, 8], strides = [1, 1]} : vector<8x32xf32> to vector<8x8xf32>
    %893 = tpu.transpose %891, [1, 0] : vector<8x8xf32> -> vector<8x8xf32>
    %cst_318 = arith.constant dense<0.000000e+00> : vector<1x8xf32>
    %894 = tpu.matmul %890, %893, %cst_318 {dimension_numbers = #tpu.dot_dimension_numbers<[1], [0], [0], [1], [0, 0, 1, 1], [], []>} : vector<1x8xf32>, vector<8x8xf32>, vector<1x8xf32> -> vector<1x8xf32>
    %cst_319 = arith.constant 0.176776692 : f32
    %895 = vector.broadcast %cst_319 : f32 to vector<1x8xf32>
    %896 = arith.mulf %894, %895 : vector<1x8xf32>
    %cst_320 = arith.constant dense<0xFF800000> : vector<1xf32>
    %897 = vector.multi_reduction <maximumf>, %896, %cst_320 [1] : vector<1x8xf32> to vector<1xf32>
    %898 = vector.shape_cast %897 : vector<1xf32> to vector<1x1xf32>
    %899 = vector.broadcast %898 : vector<1x1xf32> to vector<1x8xf32>
    %900 = arith.subf %896, %899 : vector<1x8xf32>
    %901 = math.exp %900 : vector<1x8xf32>
    %cst_321 = arith.constant dense<0.000000e+00> : vector<1xf32>
    %902 = vector.multi_reduction <add>, %901, %cst_321 [1] : vector<1x8xf32> to vector<1xf32>
    %903 = vector.shape_cast %902 : vector<1xf32> to vector<1x1xf32>
    %904 = tpu.reciprocal %903 {approx = true} : vector<1x1xf32> -> vector<1x1xf32>
    %905 = vector.broadcast %904 : vector<1x1xf32> to vector<1x8xf32>
    %906 = arith.mulf %901, %905 : vector<1x8xf32>
    %cst_322 = arith.constant dense<0.000000e+00> : vector<1x8xf32>
    %907 = tpu.matmul %906, %892, %cst_322 {dimension_numbers = #tpu.dot_dimension_numbers<[1], [0], [0], [1], [0, 0, 1, 1], [], []>} : vector<1x8xf32>, vector<8x8xf32>, vector<1x8xf32> -> vector<1x8xf32>
    %908 = arith.addf %890, %907 : vector<1x8xf32>
    %909 = vector.extract_strided_slice %887 {offsets = [0, 8], sizes = [1, 8], strides = [1, 1]} : vector<1x32xf32> to vector<1x8xf32>
    %910 = vector.extract_strided_slice %888 {offsets = [0, 8], sizes = [8, 8], strides = [1, 1]} : vector<8x32xf32> to vector<8x8xf32>
    %911 = vector.extract_strided_slice %889 {offsets = [0, 8], sizes = [8, 8], strides = [1, 1]} : vector<8x32xf32> to vector<8x8xf32>
    %912 = tpu.transpose %910, [1, 0] : vector<8x8xf32> -> vector<8x8xf32>
    %cst_323 = arith.constant dense<0.000000e+00> : vector<1x8xf32>
    %913 = tpu.matmul %909, %912, %cst_323 {dimension_numbers = #tpu.dot_dimension_numbers<[1], [0], [0], [1], [0, 0, 1, 1], [], []>} : vector<1x8xf32>, vector<8x8xf32>, vector<1x8xf32> -> vector<1x8xf32>
    %cst_324 = arith.constant 0.176776692 : f32
    %914 = vector.broadcast %cst_324 : f32 to vector<1x8xf32>
    %915 = arith.mulf %913, %914 : vector<1x8xf32>
    %cst_325 = arith.constant dense<0xFF800000> : vector<1xf32>
    %916 = vector.multi_reduction <maximumf>, %915, %cst_325 [1] : vector<1x8xf32> to vector<1xf32>
    %917 = vector.shape_cast %916 : vector<1xf32> to vector<1x1xf32>
    %918 = vector.broadcast %917 : vector<1x1xf32> to vector<1x8xf32>
    %919 = arith.subf %915, %918 : vector<1x8xf32>
    %920 = math.exp %919 : vector<1x8xf32>
    %cst_326 = arith.constant dense<0.000000e+00> : vector<1xf32>
    %921 = vector.multi_reduction <add>, %920, %cst_326 [1] : vector<1x8xf32> to vector<1xf32>
    %922 = vector.shape_cast %921 : vector<1xf32> to vector<1x1xf32>
    %923 = tpu.reciprocal %922 {approx = true} : vector<1x1xf32> -> vector<1x1xf32>
    %924 = vector.broadcast %923 : vector<1x1xf32> to vector<1x8xf32>
    %925 = arith.mulf %920, %924 : vector<1x8xf32>
    %cst_327 = arith.constant dense<0.000000e+00> : vector<1x8xf32>
    %926 = tpu.matmul %925, %911, %cst_327 {dimension_numbers = #tpu.dot_dimension_numbers<[1], [0], [0], [1], [0, 0, 1, 1], [], []>} : vector<1x8xf32>, vector<8x8xf32>, vector<1x8xf32> -> vector<1x8xf32>
    %927 = arith.addf %909, %926 : vector<1x8xf32>
    %928 = vector.extract_strided_slice %887 {offsets = [0, 16], sizes = [1, 8], strides = [1, 1]} : vector<1x32xf32> to vector<1x8xf32>
    %929 = vector.extract_strided_slice %888 {offsets = [0, 16], sizes = [8, 8], strides = [1, 1]} : vector<8x32xf32> to vector<8x8xf32>
    %930 = vector.extract_strided_slice %889 {offsets = [0, 16], sizes = [8, 8], strides = [1, 1]} : vector<8x32xf32> to vector<8x8xf32>
    %931 = tpu.transpose %929, [1, 0] : vector<8x8xf32> -> vector<8x8xf32>
    %cst_328 = arith.constant dense<0.000000e+00> : vector<1x8xf32>
    %932 = tpu.matmul %928, %931, %cst_328 {dimension_numbers = #tpu.dot_dimension_numbers<[1], [0], [0], [1], [0, 0, 1, 1], [], []>} : vector<1x8xf32>, vector<8x8xf32>, vector<1x8xf32> -> vector<1x8xf32>
    %cst_329 = arith.constant 0.176776692 : f32
    %933 = vector.broadcast %cst_329 : f32 to vector<1x8xf32>
    %934 = arith.mulf %932, %933 : vector<1x8xf32>
    %cst_330 = arith.constant dense<0xFF800000> : vector<1xf32>
    %935 = vector.multi_reduction <maximumf>, %934, %cst_330 [1] : vector<1x8xf32> to vector<1xf32>
    %936 = vector.shape_cast %935 : vector<1xf32> to vector<1x1xf32>
    %937 = vector.broadcast %936 : vector<1x1xf32> to vector<1x8xf32>
    %938 = arith.subf %934, %937 : vector<1x8xf32>
    %939 = math.exp %938 : vector<1x8xf32>
    %cst_331 = arith.constant dense<0.000000e+00> : vector<1xf32>
    %940 = vector.multi_reduction <add>, %939, %cst_331 [1] : vector<1x8xf32> to vector<1xf32>
    %941 = vector.shape_cast %940 : vector<1xf32> to vector<1x1xf32>
    %942 = tpu.reciprocal %941 {approx = true} : vector<1x1xf32> -> vector<1x1xf32>
    %943 = vector.broadcast %942 : vector<1x1xf32> to vector<1x8xf32>
    %944 = arith.mulf %939, %943 : vector<1x8xf32>
    %cst_332 = arith.constant dense<0.000000e+00> : vector<1x8xf32>
    %945 = tpu.matmul %944, %930, %cst_332 {dimension_numbers = #tpu.dot_dimension_numbers<[1], [0], [0], [1], [0, 0, 1, 1], [], []>} : vector<1x8xf32>, vector<8x8xf32>, vector<1x8xf32> -> vector<1x8xf32>
    %946 = arith.addf %928, %945 : vector<1x8xf32>
    %947 = vector.extract_strided_slice %887 {offsets = [0, 24], sizes = [1, 8], strides = [1, 1]} : vector<1x32xf32> to vector<1x8xf32>
    %948 = vector.extract_strided_slice %888 {offsets = [0, 24], sizes = [8, 8], strides = [1, 1]} : vector<8x32xf32> to vector<8x8xf32>
    %949 = vector.extract_strided_slice %889 {offsets = [0, 24], sizes = [8, 8], strides = [1, 1]} : vector<8x32xf32> to vector<8x8xf32>
    %950 = tpu.transpose %948, [1, 0] : vector<8x8xf32> -> vector<8x8xf32>
    %cst_333 = arith.constant dense<0.000000e+00> : vector<1x8xf32>
    %951 = tpu.matmul %947, %950, %cst_333 {dimension_numbers = #tpu.dot_dimension_numbers<[1], [0], [0], [1], [0, 0, 1, 1], [], []>} : vector<1x8xf32>, vector<8x8xf32>, vector<1x8xf32> -> vector<1x8xf32>
    %cst_334 = arith.constant 0.176776692 : f32
    %952 = vector.broadcast %cst_334 : f32 to vector<1x8xf32>
    %953 = arith.mulf %951, %952 : vector<1x8xf32>
    %cst_335 = arith.constant dense<0xFF800000> : vector<1xf32>
    %954 = vector.multi_reduction <maximumf>, %953, %cst_335 [1] : vector<1x8xf32> to vector<1xf32>
    %955 = vector.shape_cast %954 : vector<1xf32> to vector<1x1xf32>
    %956 = vector.broadcast %955 : vector<1x1xf32> to vector<1x8xf32>
    %957 = arith.subf %953, %956 : vector<1x8xf32>
    %958 = math.exp %957 : vector<1x8xf32>
    %cst_336 = arith.constant dense<0.000000e+00> : vector<1xf32>
    %959 = vector.multi_reduction <add>, %958, %cst_336 [1] : vector<1x8xf32> to vector<1xf32>
    %960 = vector.shape_cast %959 : vector<1xf32> to vector<1x1xf32>
    %961 = tpu.reciprocal %960 {approx = true} : vector<1x1xf32> -> vector<1x1xf32>
    %962 = vector.broadcast %961 : vector<1x1xf32> to vector<1x8xf32>
    %963 = arith.mulf %958, %962 : vector<1x8xf32>
    %cst_337 = arith.constant dense<0.000000e+00> : vector<1x8xf32>
    %964 = tpu.matmul %963, %949, %cst_337 {dimension_numbers = #tpu.dot_dimension_numbers<[1], [0], [0], [1], [0, 0, 1, 1], [], []>} : vector<1x8xf32>, vector<8x8xf32>, vector<1x8xf32> -> vector<1x8xf32>
    %965 = arith.addf %947, %964 : vector<1x8xf32>
    %966 = tpu.concatenate %908, %927, %946, %965 in 1 : vector<1x8xf32>, vector<1x8xf32>, vector<1x8xf32>, vector<1x8xf32> -> vector<1x32xf32>
    %967 = tpu.concatenate %886, %966 in 0 : vector<1x32xf32>, vector<1x32xf32> -> vector<2x32xf32>
    %cst_338 = arith.constant dense<0.000000e+00> : vector<2x32xf32>
    %968 = tpu.matmul %967, %797, %cst_338 {dimension_numbers = #tpu.dot_dimension_numbers<[1], [0], [0], [1], [0, 0, 1, 1], [], []>} : vector<2x32xf32>, vector<32x32xf32>, vector<2x32xf32> -> vector<2x32xf32>
    %969 = vector.broadcast %798 : vector<1x32xf32> to vector<2x32xf32>
    %970 = arith.addf %968, %969 : vector<2x32xf32>
    %cst_339 = arith.constant 0.000000e+00 : f32
    %971 = vector.broadcast %cst_339 : f32 to vector<2x32xf32>
    %972 = arith.maximumf %970, %971 : vector<2x32xf32>
    %973 = arith.addf %967, %972 : vector<2x32xf32>
    %c0_340 = arith.constant 0 : index
    %c0_341 = arith.constant 0 : index
    %c0_342 = arith.constant 0 : index
    %974 = vector.load %arg28[%c0_340, %c0_341, %c0_342] : memref<2x32x32xf32, #tpu.memory_space<vmem>>, vector<1x32x32xf32>
    %975 = vector.shape_cast %974 : vector<1x32x32xf32> to vector<32x32xf32>
    %c0_343 = arith.constant 0 : index
    %c0_344 = arith.constant 0 : index
    %c0_345 = arith.constant 0 : index
    %976 = vector.load %arg29[%c0_343, %c0_344, %c0_345] : memref<2x1x32xf32, #tpu.memory_space<vmem>>, vector<1x1x32xf32>
    %977 = vector.shape_cast %976 : vector<1x1x32xf32> to vector<1x32xf32>
    %c0_346 = arith.constant 0 : index
    %c0_347 = arith.constant 0 : index
    %c0_348 = arith.constant 0 : index
    %978 = vector.load %arg30[%c0_346, %c0_347, %c0_348] : memref<2x32x64xf32, #tpu.memory_space<vmem>>, vector<1x32x64xf32>
    %979 = vector.shape_cast %978 : vector<1x32x64xf32> to vector<32x64xf32>
    %c0_349 = arith.constant 0 : index
    %c0_350 = arith.constant 0 : index
    %c0_351 = arith.constant 0 : index
    %980 = vector.load %arg31[%c0_349, %c0_350, %c0_351] : memref<2x1x64xf32, #tpu.memory_space<vmem>>, vector<1x1x64xf32>
    %981 = vector.shape_cast %980 : vector<1x1x64xf32> to vector<1x64xf32>
    %c0_352 = arith.constant 0 : index
    %c0_353 = arith.constant 0 : index
    %c0_354 = arith.constant 0 : index
    %982 = vector.load %arg32[%c0_352, %c0_353, %c0_354] : memref<2x32x32xf32, #tpu.memory_space<vmem>>, vector<1x32x32xf32>
    %983 = vector.shape_cast %982 : vector<1x32x32xf32> to vector<32x32xf32>
    %c0_355 = arith.constant 0 : index
    %c0_356 = arith.constant 0 : index
    %c0_357 = arith.constant 0 : index
    %984 = vector.load %arg33[%c0_355, %c0_356, %c0_357] : memref<2x1x32xf32, #tpu.memory_space<vmem>>, vector<1x1x32xf32>
    %985 = vector.shape_cast %984 : vector<1x1x32xf32> to vector<1x32xf32>
    %cst_358 = arith.constant dense<0.000000e+00> : vector<2x32xf32>
    %986 = tpu.matmul %973, %975, %cst_358 {dimension_numbers = #tpu.dot_dimension_numbers<[1], [0], [0], [1], [0, 0, 1, 1], [], []>} : vector<2x32xf32>, vector<32x32xf32>, vector<2x32xf32> -> vector<2x32xf32>
    %987 = vector.broadcast %977 : vector<1x32xf32> to vector<2x32xf32>
    %988 = arith.addf %986, %987 : vector<2x32xf32>
    %cst_359 = arith.constant dense<0.000000e+00> : vector<2x64xf32>
    %989 = tpu.matmul %973, %979, %cst_359 {dimension_numbers = #tpu.dot_dimension_numbers<[1], [0], [0], [1], [0, 0, 1, 1], [], []>} : vector<2x32xf32>, vector<32x64xf32>, vector<2x64xf32> -> vector<2x64xf32>
    %990 = vector.broadcast %981 : vector<1x64xf32> to vector<2x64xf32>
    %991 = arith.addf %989, %990 : vector<2x64xf32>
    %992 = vector.extract_strided_slice %991 {offsets = [0, 0], sizes = [2, 32], strides = [1, 1]} : vector<2x64xf32> to vector<2x32xf32>
    %993 = vector.extract_strided_slice %991 {offsets = [0, 32], sizes = [2, 32], strides = [1, 1]} : vector<2x64xf32> to vector<2x32xf32>
    %994 = vector.extract_strided_slice %988 {offsets = [0, 0], sizes = [1, 32], strides = [1, 1]} : vector<2x32xf32> to vector<1x32xf32>
    %995 = vector.extract_strided_slice %992 {offsets = [0, 0], sizes = [1, 32], strides = [1, 1]} : vector<2x32xf32> to vector<1x32xf32>
    %996 = vector.extract_strided_slice %993 {offsets = [0, 0], sizes = [1, 32], strides = [1, 1]} : vector<2x32xf32> to vector<1x32xf32>
    %997 = vector.extract_strided_slice %994 {offsets = [0, 0], sizes = [1, 8], strides = [1, 1]} : vector<1x32xf32> to vector<1x8xf32>
    %998 = vector.extract_strided_slice %995 {offsets = [0, 0], sizes = [1, 8], strides = [1, 1]} : vector<1x32xf32> to vector<1x8xf32>
    %999 = vector.extract_strided_slice %996 {offsets = [0, 0], sizes = [1, 8], strides = [1, 1]} : vector<1x32xf32> to vector<1x8xf32>
    %1000 = tpu.transpose %998, [1, 0] : vector<1x8xf32> -> vector<8x1xf32>
    %cst_360 = arith.constant dense<0.000000e+00> : vector<1x1xf32>
    %1001 = tpu.matmul %997, %1000, %cst_360 {dimension_numbers = #tpu.dot_dimension_numbers<[1], [0], [0], [1], [0, 0, 1, 1], [], []>} : vector<1x8xf32>, vector<8x1xf32>, vector<1x1xf32> -> vector<1x1xf32>
    %cst_361 = arith.constant 0.176776692 : f32
    %1002 = vector.broadcast %cst_361 : f32 to vector<1x1xf32>
    %1003 = arith.mulf %1001, %1002 : vector<1x1xf32>
    %cst_362 = arith.constant dense<0xFF800000> : vector<1xf32>
    %1004 = vector.multi_reduction <maximumf>, %1003, %cst_362 [1] : vector<1x1xf32> to vector<1xf32>
    %1005 = vector.shape_cast %1004 : vector<1xf32> to vector<1x1xf32>
    %1006 = arith.subf %1003, %1005 : vector<1x1xf32>
    %1007 = math.exp %1006 : vector<1x1xf32>
    %cst_363 = arith.constant dense<0.000000e+00> : vector<1xf32>
    %1008 = vector.multi_reduction <add>, %1007, %cst_363 [1] : vector<1x1xf32> to vector<1xf32>
    %1009 = vector.shape_cast %1008 : vector<1xf32> to vector<1x1xf32>
    %1010 = tpu.reciprocal %1009 {approx = true} : vector<1x1xf32> -> vector<1x1xf32>
    %1011 = arith.mulf %1007, %1010 : vector<1x1xf32>
    %cst_364 = arith.constant dense<0.000000e+00> : vector<1x8xf32>
    %1012 = tpu.matmul %1011, %999, %cst_364 {dimension_numbers = #tpu.dot_dimension_numbers<[1], [0], [0], [1], [0, 0, 1, 1], [], []>} : vector<1x1xf32>, vector<1x8xf32>, vector<1x8xf32> -> vector<1x8xf32>
    %1013 = arith.addf %997, %1012 : vector<1x8xf32>
    %1014 = vector.extract_strided_slice %994 {offsets = [0, 8], sizes = [1, 8], strides = [1, 1]} : vector<1x32xf32> to vector<1x8xf32>
    %1015 = vector.extract_strided_slice %995 {offsets = [0, 8], sizes = [1, 8], strides = [1, 1]} : vector<1x32xf32> to vector<1x8xf32>
    %1016 = vector.extract_strided_slice %996 {offsets = [0, 8], sizes = [1, 8], strides = [1, 1]} : vector<1x32xf32> to vector<1x8xf32>
    %1017 = tpu.transpose %1015, [1, 0] : vector<1x8xf32> -> vector<8x1xf32>
    %cst_365 = arith.constant dense<0.000000e+00> : vector<1x1xf32>
    %1018 = tpu.matmul %1014, %1017, %cst_365 {dimension_numbers = #tpu.dot_dimension_numbers<[1], [0], [0], [1], [0, 0, 1, 1], [], []>} : vector<1x8xf32>, vector<8x1xf32>, vector<1x1xf32> -> vector<1x1xf32>
    %cst_366 = arith.constant 0.176776692 : f32
    %1019 = vector.broadcast %cst_366 : f32 to vector<1x1xf32>
    %1020 = arith.mulf %1018, %1019 : vector<1x1xf32>
    %cst_367 = arith.constant dense<0xFF800000> : vector<1xf32>
    %1021 = vector.multi_reduction <maximumf>, %1020, %cst_367 [1] : vector<1x1xf32> to vector<1xf32>
    %1022 = vector.shape_cast %1021 : vector<1xf32> to vector<1x1xf32>
    %1023 = arith.subf %1020, %1022 : vector<1x1xf32>
    %1024 = math.exp %1023 : vector<1x1xf32>
    %cst_368 = arith.constant dense<0.000000e+00> : vector<1xf32>
    %1025 = vector.multi_reduction <add>, %1024, %cst_368 [1] : vector<1x1xf32> to vector<1xf32>
    %1026 = vector.shape_cast %1025 : vector<1xf32> to vector<1x1xf32>
    %1027 = tpu.reciprocal %1026 {approx = true} : vector<1x1xf32> -> vector<1x1xf32>
    %1028 = arith.mulf %1024, %1027 : vector<1x1xf32>
    %cst_369 = arith.constant dense<0.000000e+00> : vector<1x8xf32>
    %1029 = tpu.matmul %1028, %1016, %cst_369 {dimension_numbers = #tpu.dot_dimension_numbers<[1], [0], [0], [1], [0, 0, 1, 1], [], []>} : vector<1x1xf32>, vector<1x8xf32>, vector<1x8xf32> -> vector<1x8xf32>
    %1030 = arith.addf %1014, %1029 : vector<1x8xf32>
    %1031 = vector.extract_strided_slice %994 {offsets = [0, 16], sizes = [1, 8], strides = [1, 1]} : vector<1x32xf32> to vector<1x8xf32>
    %1032 = vector.extract_strided_slice %995 {offsets = [0, 16], sizes = [1, 8], strides = [1, 1]} : vector<1x32xf32> to vector<1x8xf32>
    %1033 = vector.extract_strided_slice %996 {offsets = [0, 16], sizes = [1, 8], strides = [1, 1]} : vector<1x32xf32> to vector<1x8xf32>
    %1034 = tpu.transpose %1032, [1, 0] : vector<1x8xf32> -> vector<8x1xf32>
    %cst_370 = arith.constant dense<0.000000e+00> : vector<1x1xf32>
    %1035 = tpu.matmul %1031, %1034, %cst_370 {dimension_numbers = #tpu.dot_dimension_numbers<[1], [0], [0], [1], [0, 0, 1, 1], [], []>} : vector<1x8xf32>, vector<8x1xf32>, vector<1x1xf32> -> vector<1x1xf32>
    %cst_371 = arith.constant 0.176776692 : f32
    %1036 = vector.broadcast %cst_371 : f32 to vector<1x1xf32>
    %1037 = arith.mulf %1035, %1036 : vector<1x1xf32>
    %cst_372 = arith.constant dense<0xFF800000> : vector<1xf32>
    %1038 = vector.multi_reduction <maximumf>, %1037, %cst_372 [1] : vector<1x1xf32> to vector<1xf32>
    %1039 = vector.shape_cast %1038 : vector<1xf32> to vector<1x1xf32>
    %1040 = arith.subf %1037, %1039 : vector<1x1xf32>
    %1041 = math.exp %1040 : vector<1x1xf32>
    %cst_373 = arith.constant dense<0.000000e+00> : vector<1xf32>
    %1042 = vector.multi_reduction <add>, %1041, %cst_373 [1] : vector<1x1xf32> to vector<1xf32>
    %1043 = vector.shape_cast %1042 : vector<1xf32> to vector<1x1xf32>
    %1044 = tpu.reciprocal %1043 {approx = true} : vector<1x1xf32> -> vector<1x1xf32>
    %1045 = arith.mulf %1041, %1044 : vector<1x1xf32>
    %cst_374 = arith.constant dense<0.000000e+00> : vector<1x8xf32>
    %1046 = tpu.matmul %1045, %1033, %cst_374 {dimension_numbers = #tpu.dot_dimension_numbers<[1], [0], [0], [1], [0, 0, 1, 1], [], []>} : vector<1x1xf32>, vector<1x8xf32>, vector<1x8xf32> -> vector<1x8xf32>
    %1047 = arith.addf %1031, %1046 : vector<1x8xf32>
    %1048 = vector.extract_strided_slice %994 {offsets = [0, 24], sizes = [1, 8], strides = [1, 1]} : vector<1x32xf32> to vector<1x8xf32>
    %1049 = vector.extract_strided_slice %995 {offsets = [0, 24], sizes = [1, 8], strides = [1, 1]} : vector<1x32xf32> to vector<1x8xf32>
    %1050 = vector.extract_strided_slice %996 {offsets = [0, 24], sizes = [1, 8], strides = [1, 1]} : vector<1x32xf32> to vector<1x8xf32>
    %1051 = tpu.transpose %1049, [1, 0] : vector<1x8xf32> -> vector<8x1xf32>
    %cst_375 = arith.constant dense<0.000000e+00> : vector<1x1xf32>
    %1052 = tpu.matmul %1048, %1051, %cst_375 {dimension_numbers = #tpu.dot_dimension_numbers<[1], [0], [0], [1], [0, 0, 1, 1], [], []>} : vector<1x8xf32>, vector<8x1xf32>, vector<1x1xf32> -> vector<1x1xf32>
    %cst_376 = arith.constant 0.176776692 : f32
    %1053 = vector.broadcast %cst_376 : f32 to vector<1x1xf32>
    %1054 = arith.mulf %1052, %1053 : vector<1x1xf32>
    %cst_377 = arith.constant dense<0xFF800000> : vector<1xf32>
    %1055 = vector.multi_reduction <maximumf>, %1054, %cst_377 [1] : vector<1x1xf32> to vector<1xf32>
    %1056 = vector.shape_cast %1055 : vector<1xf32> to vector<1x1xf32>
    %1057 = arith.subf %1054, %1056 : vector<1x1xf32>
    %1058 = math.exp %1057 : vector<1x1xf32>
    %cst_378 = arith.constant dense<0.000000e+00> : vector<1xf32>
    %1059 = vector.multi_reduction <add>, %1058, %cst_378 [1] : vector<1x1xf32> to vector<1xf32>
    %1060 = vector.shape_cast %1059 : vector<1xf32> to vector<1x1xf32>
    %1061 = tpu.reciprocal %1060 {approx = true} : vector<1x1xf32> -> vector<1x1xf32>
    %1062 = arith.mulf %1058, %1061 : vector<1x1xf32>
    %cst_379 = arith.constant dense<0.000000e+00> : vector<1x8xf32>
    %1063 = tpu.matmul %1062, %1050, %cst_379 {dimension_numbers = #tpu.dot_dimension_numbers<[1], [0], [0], [1], [0, 0, 1, 1], [], []>} : vector<1x1xf32>, vector<1x8xf32>, vector<1x8xf32> -> vector<1x8xf32>
    %1064 = arith.addf %1048, %1063 : vector<1x8xf32>
    %1065 = tpu.concatenate %1013, %1030, %1047, %1064 in 1 : vector<1x8xf32>, vector<1x8xf32>, vector<1x8xf32>, vector<1x8xf32> -> vector<1x32xf32>
    %1066 = vector.extract_strided_slice %988 {offsets = [1, 0], sizes = [1, 32], strides = [1, 1]} : vector<2x32xf32> to vector<1x32xf32>
    %1067 = vector.extract_strided_slice %992 {offsets = [1, 0], sizes = [1, 32], strides = [1, 1]} : vector<2x32xf32> to vector<1x32xf32>
    %1068 = vector.extract_strided_slice %993 {offsets = [1, 0], sizes = [1, 32], strides = [1, 1]} : vector<2x32xf32> to vector<1x32xf32>
    %1069 = vector.extract_strided_slice %1066 {offsets = [0, 0], sizes = [1, 8], strides = [1, 1]} : vector<1x32xf32> to vector<1x8xf32>
    %1070 = vector.extract_strided_slice %1067 {offsets = [0, 0], sizes = [1, 8], strides = [1, 1]} : vector<1x32xf32> to vector<1x8xf32>
    %1071 = vector.extract_strided_slice %1068 {offsets = [0, 0], sizes = [1, 8], strides = [1, 1]} : vector<1x32xf32> to vector<1x8xf32>
    %1072 = tpu.transpose %1070, [1, 0] : vector<1x8xf32> -> vector<8x1xf32>
    %cst_380 = arith.constant dense<0.000000e+00> : vector<1x1xf32>
    %1073 = tpu.matmul %1069, %1072, %cst_380 {dimension_numbers = #tpu.dot_dimension_numbers<[1], [0], [0], [1], [0, 0, 1, 1], [], []>} : vector<1x8xf32>, vector<8x1xf32>, vector<1x1xf32> -> vector<1x1xf32>
    %cst_381 = arith.constant 0.176776692 : f32
    %1074 = vector.broadcast %cst_381 : f32 to vector<1x1xf32>
    %1075 = arith.mulf %1073, %1074 : vector<1x1xf32>
    %cst_382 = arith.constant dense<0xFF800000> : vector<1xf32>
    %1076 = vector.multi_reduction <maximumf>, %1075, %cst_382 [1] : vector<1x1xf32> to vector<1xf32>
    %1077 = vector.shape_cast %1076 : vector<1xf32> to vector<1x1xf32>
    %1078 = arith.subf %1075, %1077 : vector<1x1xf32>
    %1079 = math.exp %1078 : vector<1x1xf32>
    %cst_383 = arith.constant dense<0.000000e+00> : vector<1xf32>
    %1080 = vector.multi_reduction <add>, %1079, %cst_383 [1] : vector<1x1xf32> to vector<1xf32>
    %1081 = vector.shape_cast %1080 : vector<1xf32> to vector<1x1xf32>
    %1082 = tpu.reciprocal %1081 {approx = true} : vector<1x1xf32> -> vector<1x1xf32>
    %1083 = arith.mulf %1079, %1082 : vector<1x1xf32>
    %cst_384 = arith.constant dense<0.000000e+00> : vector<1x8xf32>
    %1084 = tpu.matmul %1083, %1071, %cst_384 {dimension_numbers = #tpu.dot_dimension_numbers<[1], [0], [0], [1], [0, 0, 1, 1], [], []>} : vector<1x1xf32>, vector<1x8xf32>, vector<1x8xf32> -> vector<1x8xf32>
    %1085 = arith.addf %1069, %1084 : vector<1x8xf32>
    %1086 = vector.extract_strided_slice %1066 {offsets = [0, 8], sizes = [1, 8], strides = [1, 1]} : vector<1x32xf32> to vector<1x8xf32>
    %1087 = vector.extract_strided_slice %1067 {offsets = [0, 8], sizes = [1, 8], strides = [1, 1]} : vector<1x32xf32> to vector<1x8xf32>
    %1088 = vector.extract_strided_slice %1068 {offsets = [0, 8], sizes = [1, 8], strides = [1, 1]} : vector<1x32xf32> to vector<1x8xf32>
    %1089 = tpu.transpose %1087, [1, 0] : vector<1x8xf32> -> vector<8x1xf32>
    %cst_385 = arith.constant dense<0.000000e+00> : vector<1x1xf32>
    %1090 = tpu.matmul %1086, %1089, %cst_385 {dimension_numbers = #tpu.dot_dimension_numbers<[1], [0], [0], [1], [0, 0, 1, 1], [], []>} : vector<1x8xf32>, vector<8x1xf32>, vector<1x1xf32> -> vector<1x1xf32>
    %cst_386 = arith.constant 0.176776692 : f32
    %1091 = vector.broadcast %cst_386 : f32 to vector<1x1xf32>
    %1092 = arith.mulf %1090, %1091 : vector<1x1xf32>
    %cst_387 = arith.constant dense<0xFF800000> : vector<1xf32>
    %1093 = vector.multi_reduction <maximumf>, %1092, %cst_387 [1] : vector<1x1xf32> to vector<1xf32>
    %1094 = vector.shape_cast %1093 : vector<1xf32> to vector<1x1xf32>
    %1095 = arith.subf %1092, %1094 : vector<1x1xf32>
    %1096 = math.exp %1095 : vector<1x1xf32>
    %cst_388 = arith.constant dense<0.000000e+00> : vector<1xf32>
    %1097 = vector.multi_reduction <add>, %1096, %cst_388 [1] : vector<1x1xf32> to vector<1xf32>
    %1098 = vector.shape_cast %1097 : vector<1xf32> to vector<1x1xf32>
    %1099 = tpu.reciprocal %1098 {approx = true} : vector<1x1xf32> -> vector<1x1xf32>
    %1100 = arith.mulf %1096, %1099 : vector<1x1xf32>
    %cst_389 = arith.constant dense<0.000000e+00> : vector<1x8xf32>
    %1101 = tpu.matmul %1100, %1088, %cst_389 {dimension_numbers = #tpu.dot_dimension_numbers<[1], [0], [0], [1], [0, 0, 1, 1], [], []>} : vector<1x1xf32>, vector<1x8xf32>, vector<1x8xf32> -> vector<1x8xf32>
    %1102 = arith.addf %1086, %1101 : vector<1x8xf32>
    %1103 = vector.extract_strided_slice %1066 {offsets = [0, 16], sizes = [1, 8], strides = [1, 1]} : vector<1x32xf32> to vector<1x8xf32>
    %1104 = vector.extract_strided_slice %1067 {offsets = [0, 16], sizes = [1, 8], strides = [1, 1]} : vector<1x32xf32> to vector<1x8xf32>
    %1105 = vector.extract_strided_slice %1068 {offsets = [0, 16], sizes = [1, 8], strides = [1, 1]} : vector<1x32xf32> to vector<1x8xf32>
    %1106 = tpu.transpose %1104, [1, 0] : vector<1x8xf32> -> vector<8x1xf32>
    %cst_390 = arith.constant dense<0.000000e+00> : vector<1x1xf32>
    %1107 = tpu.matmul %1103, %1106, %cst_390 {dimension_numbers = #tpu.dot_dimension_numbers<[1], [0], [0], [1], [0, 0, 1, 1], [], []>} : vector<1x8xf32>, vector<8x1xf32>, vector<1x1xf32> -> vector<1x1xf32>
    %cst_391 = arith.constant 0.176776692 : f32
    %1108 = vector.broadcast %cst_391 : f32 to vector<1x1xf32>
    %1109 = arith.mulf %1107, %1108 : vector<1x1xf32>
    %cst_392 = arith.constant dense<0xFF800000> : vector<1xf32>
    %1110 = vector.multi_reduction <maximumf>, %1109, %cst_392 [1] : vector<1x1xf32> to vector<1xf32>
    %1111 = vector.shape_cast %1110 : vector<1xf32> to vector<1x1xf32>
    %1112 = arith.subf %1109, %1111 : vector<1x1xf32>
    %1113 = math.exp %1112 : vector<1x1xf32>
    %cst_393 = arith.constant dense<0.000000e+00> : vector<1xf32>
    %1114 = vector.multi_reduction <add>, %1113, %cst_393 [1] : vector<1x1xf32> to vector<1xf32>
    %1115 = vector.shape_cast %1114 : vector<1xf32> to vector<1x1xf32>
    %1116 = tpu.reciprocal %1115 {approx = true} : vector<1x1xf32> -> vector<1x1xf32>
    %1117 = arith.mulf %1113, %1116 : vector<1x1xf32>
    %cst_394 = arith.constant dense<0.000000e+00> : vector<1x8xf32>
    %1118 = tpu.matmul %1117, %1105, %cst_394 {dimension_numbers = #tpu.dot_dimension_numbers<[1], [0], [0], [1], [0, 0, 1, 1], [], []>} : vector<1x1xf32>, vector<1x8xf32>, vector<1x8xf32> -> vector<1x8xf32>
    %1119 = arith.addf %1103, %1118 : vector<1x8xf32>
    %1120 = vector.extract_strided_slice %1066 {offsets = [0, 24], sizes = [1, 8], strides = [1, 1]} : vector<1x32xf32> to vector<1x8xf32>
    %1121 = vector.extract_strided_slice %1067 {offsets = [0, 24], sizes = [1, 8], strides = [1, 1]} : vector<1x32xf32> to vector<1x8xf32>
    %1122 = vector.extract_strided_slice %1068 {offsets = [0, 24], sizes = [1, 8], strides = [1, 1]} : vector<1x32xf32> to vector<1x8xf32>
    %1123 = tpu.transpose %1121, [1, 0] : vector<1x8xf32> -> vector<8x1xf32>
    %cst_395 = arith.constant dense<0.000000e+00> : vector<1x1xf32>
    %1124 = tpu.matmul %1120, %1123, %cst_395 {dimension_numbers = #tpu.dot_dimension_numbers<[1], [0], [0], [1], [0, 0, 1, 1], [], []>} : vector<1x8xf32>, vector<8x1xf32>, vector<1x1xf32> -> vector<1x1xf32>
    %cst_396 = arith.constant 0.176776692 : f32
    %1125 = vector.broadcast %cst_396 : f32 to vector<1x1xf32>
    %1126 = arith.mulf %1124, %1125 : vector<1x1xf32>
    %cst_397 = arith.constant dense<0xFF800000> : vector<1xf32>
    %1127 = vector.multi_reduction <maximumf>, %1126, %cst_397 [1] : vector<1x1xf32> to vector<1xf32>
    %1128 = vector.shape_cast %1127 : vector<1xf32> to vector<1x1xf32>
    %1129 = arith.subf %1126, %1128 : vector<1x1xf32>
    %1130 = math.exp %1129 : vector<1x1xf32>
    %cst_398 = arith.constant dense<0.000000e+00> : vector<1xf32>
    %1131 = vector.multi_reduction <add>, %1130, %cst_398 [1] : vector<1x1xf32> to vector<1xf32>
    %1132 = vector.shape_cast %1131 : vector<1xf32> to vector<1x1xf32>
    %1133 = tpu.reciprocal %1132 {approx = true} : vector<1x1xf32> -> vector<1x1xf32>
    %1134 = arith.mulf %1130, %1133 : vector<1x1xf32>
    %cst_399 = arith.constant dense<0.000000e+00> : vector<1x8xf32>
    %1135 = tpu.matmul %1134, %1122, %cst_399 {dimension_numbers = #tpu.dot_dimension_numbers<[1], [0], [0], [1], [0, 0, 1, 1], [], []>} : vector<1x1xf32>, vector<1x8xf32>, vector<1x8xf32> -> vector<1x8xf32>
    %1136 = arith.addf %1120, %1135 : vector<1x8xf32>
    %1137 = tpu.concatenate %1085, %1102, %1119, %1136 in 1 : vector<1x8xf32>, vector<1x8xf32>, vector<1x8xf32>, vector<1x8xf32> -> vector<1x32xf32>
    %1138 = tpu.concatenate %1065, %1137 in 0 : vector<1x32xf32>, vector<1x32xf32> -> vector<2x32xf32>
    %cst_400 = arith.constant dense<0.000000e+00> : vector<2x32xf32>
    %1139 = tpu.matmul %1138, %983, %cst_400 {dimension_numbers = #tpu.dot_dimension_numbers<[1], [0], [0], [1], [0, 0, 1, 1], [], []>} : vector<2x32xf32>, vector<32x32xf32>, vector<2x32xf32> -> vector<2x32xf32>
    %1140 = vector.broadcast %985 : vector<1x32xf32> to vector<2x32xf32>
    %1141 = arith.addf %1139, %1140 : vector<2x32xf32>
    %cst_401 = arith.constant 0.000000e+00 : f32
    %1142 = vector.broadcast %cst_401 : f32 to vector<2x32xf32>
    %1143 = arith.maximumf %1141, %1142 : vector<2x32xf32>
    %1144 = arith.addf %1138, %1143 : vector<2x32xf32>
    %c1_402 = arith.constant 1 : index
    %c0_403 = arith.constant 0 : index
    %c0_404 = arith.constant 0 : index
    %1145 = vector.load %arg28[%c1_402, %c0_403, %c0_404] : memref<2x32x32xf32, #tpu.memory_space<vmem>>, vector<1x32x32xf32>
    %1146 = vector.shape_cast %1145 : vector<1x32x32xf32> to vector<32x32xf32>
    %c1_405 = arith.constant 1 : index
    %c0_406 = arith.constant 0 : index
    %c0_407 = arith.constant 0 : index
    %1147 = vector.load %arg29[%c1_405, %c0_406, %c0_407] : memref<2x1x32xf32, #tpu.memory_space<vmem>>, vector<1x1x32xf32>
    %1148 = vector.shape_cast %1147 : vector<1x1x32xf32> to vector<1x32xf32>
    %c1_408 = arith.constant 1 : index
    %c0_409 = arith.constant 0 : index
    %c0_410 = arith.constant 0 : index
    %1149 = vector.load %arg30[%c1_408, %c0_409, %c0_410] : memref<2x32x64xf32, #tpu.memory_space<vmem>>, vector<1x32x64xf32>
    %1150 = vector.shape_cast %1149 : vector<1x32x64xf32> to vector<32x64xf32>
    %c1_411 = arith.constant 1 : index
    %c0_412 = arith.constant 0 : index
    %c0_413 = arith.constant 0 : index
    %1151 = vector.load %arg31[%c1_411, %c0_412, %c0_413] : memref<2x1x64xf32, #tpu.memory_space<vmem>>, vector<1x1x64xf32>
    %1152 = vector.shape_cast %1151 : vector<1x1x64xf32> to vector<1x64xf32>
    %c1_414 = arith.constant 1 : index
    %c0_415 = arith.constant 0 : index
    %c0_416 = arith.constant 0 : index
    %1153 = vector.load %arg32[%c1_414, %c0_415, %c0_416] : memref<2x32x32xf32, #tpu.memory_space<vmem>>, vector<1x32x32xf32>
    %1154 = vector.shape_cast %1153 : vector<1x32x32xf32> to vector<32x32xf32>
    %c1_417 = arith.constant 1 : index
    %c0_418 = arith.constant 0 : index
    %c0_419 = arith.constant 0 : index
    %1155 = vector.load %arg33[%c1_417, %c0_418, %c0_419] : memref<2x1x32xf32, #tpu.memory_space<vmem>>, vector<1x1x32xf32>
    %1156 = vector.shape_cast %1155 : vector<1x1x32xf32> to vector<1x32xf32>
    %cst_420 = arith.constant dense<0.000000e+00> : vector<2x32xf32>
    %1157 = tpu.matmul %1144, %1146, %cst_420 {dimension_numbers = #tpu.dot_dimension_numbers<[1], [0], [0], [1], [0, 0, 1, 1], [], []>} : vector<2x32xf32>, vector<32x32xf32>, vector<2x32xf32> -> vector<2x32xf32>
    %1158 = vector.broadcast %1148 : vector<1x32xf32> to vector<2x32xf32>
    %1159 = arith.addf %1157, %1158 : vector<2x32xf32>
    %cst_421 = arith.constant dense<0.000000e+00> : vector<2x64xf32>
    %1160 = tpu.matmul %1144, %1150, %cst_421 {dimension_numbers = #tpu.dot_dimension_numbers<[1], [0], [0], [1], [0, 0, 1, 1], [], []>} : vector<2x32xf32>, vector<32x64xf32>, vector<2x64xf32> -> vector<2x64xf32>
    %1161 = vector.broadcast %1152 : vector<1x64xf32> to vector<2x64xf32>
    %1162 = arith.addf %1160, %1161 : vector<2x64xf32>
    %1163 = vector.extract_strided_slice %1162 {offsets = [0, 0], sizes = [2, 32], strides = [1, 1]} : vector<2x64xf32> to vector<2x32xf32>
    %1164 = vector.extract_strided_slice %1162 {offsets = [0, 32], sizes = [2, 32], strides = [1, 1]} : vector<2x64xf32> to vector<2x32xf32>
    %1165 = vector.extract_strided_slice %1159 {offsets = [0, 0], sizes = [1, 32], strides = [1, 1]} : vector<2x32xf32> to vector<1x32xf32>
    %1166 = vector.extract_strided_slice %1163 {offsets = [0, 0], sizes = [1, 32], strides = [1, 1]} : vector<2x32xf32> to vector<1x32xf32>
    %1167 = vector.extract_strided_slice %1164 {offsets = [0, 0], sizes = [1, 32], strides = [1, 1]} : vector<2x32xf32> to vector<1x32xf32>
    %1168 = vector.extract_strided_slice %1165 {offsets = [0, 0], sizes = [1, 8], strides = [1, 1]} : vector<1x32xf32> to vector<1x8xf32>
    %1169 = vector.extract_strided_slice %1166 {offsets = [0, 0], sizes = [1, 8], strides = [1, 1]} : vector<1x32xf32> to vector<1x8xf32>
    %1170 = vector.extract_strided_slice %1167 {offsets = [0, 0], sizes = [1, 8], strides = [1, 1]} : vector<1x32xf32> to vector<1x8xf32>
    %1171 = tpu.transpose %1169, [1, 0] : vector<1x8xf32> -> vector<8x1xf32>
    %cst_422 = arith.constant dense<0.000000e+00> : vector<1x1xf32>
    %1172 = tpu.matmul %1168, %1171, %cst_422 {dimension_numbers = #tpu.dot_dimension_numbers<[1], [0], [0], [1], [0, 0, 1, 1], [], []>} : vector<1x8xf32>, vector<8x1xf32>, vector<1x1xf32> -> vector<1x1xf32>
    %cst_423 = arith.constant 0.176776692 : f32
    %1173 = vector.broadcast %cst_423 : f32 to vector<1x1xf32>
    %1174 = arith.mulf %1172, %1173 : vector<1x1xf32>
    %cst_424 = arith.constant dense<0xFF800000> : vector<1xf32>
    %1175 = vector.multi_reduction <maximumf>, %1174, %cst_424 [1] : vector<1x1xf32> to vector<1xf32>
    %1176 = vector.shape_cast %1175 : vector<1xf32> to vector<1x1xf32>
    %1177 = arith.subf %1174, %1176 : vector<1x1xf32>
    %1178 = math.exp %1177 : vector<1x1xf32>
    %cst_425 = arith.constant dense<0.000000e+00> : vector<1xf32>
    %1179 = vector.multi_reduction <add>, %1178, %cst_425 [1] : vector<1x1xf32> to vector<1xf32>
    %1180 = vector.shape_cast %1179 : vector<1xf32> to vector<1x1xf32>
    %1181 = tpu.reciprocal %1180 {approx = true} : vector<1x1xf32> -> vector<1x1xf32>
    %1182 = arith.mulf %1178, %1181 : vector<1x1xf32>
    %cst_426 = arith.constant dense<0.000000e+00> : vector<1x8xf32>
    %1183 = tpu.matmul %1182, %1170, %cst_426 {dimension_numbers = #tpu.dot_dimension_numbers<[1], [0], [0], [1], [0, 0, 1, 1], [], []>} : vector<1x1xf32>, vector<1x8xf32>, vector<1x8xf32> -> vector<1x8xf32>
    %1184 = arith.addf %1168, %1183 : vector<1x8xf32>
    %1185 = vector.extract_strided_slice %1165 {offsets = [0, 8], sizes = [1, 8], strides = [1, 1]} : vector<1x32xf32> to vector<1x8xf32>
    %1186 = vector.extract_strided_slice %1166 {offsets = [0, 8], sizes = [1, 8], strides = [1, 1]} : vector<1x32xf32> to vector<1x8xf32>
    %1187 = vector.extract_strided_slice %1167 {offsets = [0, 8], sizes = [1, 8], strides = [1, 1]} : vector<1x32xf32> to vector<1x8xf32>
    %1188 = tpu.transpose %1186, [1, 0] : vector<1x8xf32> -> vector<8x1xf32>
    %cst_427 = arith.constant dense<0.000000e+00> : vector<1x1xf32>
    %1189 = tpu.matmul %1185, %1188, %cst_427 {dimension_numbers = #tpu.dot_dimension_numbers<[1], [0], [0], [1], [0, 0, 1, 1], [], []>} : vector<1x8xf32>, vector<8x1xf32>, vector<1x1xf32> -> vector<1x1xf32>
    %cst_428 = arith.constant 0.176776692 : f32
    %1190 = vector.broadcast %cst_428 : f32 to vector<1x1xf32>
    %1191 = arith.mulf %1189, %1190 : vector<1x1xf32>
    %cst_429 = arith.constant dense<0xFF800000> : vector<1xf32>
    %1192 = vector.multi_reduction <maximumf>, %1191, %cst_429 [1] : vector<1x1xf32> to vector<1xf32>
    %1193 = vector.shape_cast %1192 : vector<1xf32> to vector<1x1xf32>
    %1194 = arith.subf %1191, %1193 : vector<1x1xf32>
    %1195 = math.exp %1194 : vector<1x1xf32>
    %cst_430 = arith.constant dense<0.000000e+00> : vector<1xf32>
    %1196 = vector.multi_reduction <add>, %1195, %cst_430 [1] : vector<1x1xf32> to vector<1xf32>
    %1197 = vector.shape_cast %1196 : vector<1xf32> to vector<1x1xf32>
    %1198 = tpu.reciprocal %1197 {approx = true} : vector<1x1xf32> -> vector<1x1xf32>
    %1199 = arith.mulf %1195, %1198 : vector<1x1xf32>
    %cst_431 = arith.constant dense<0.000000e+00> : vector<1x8xf32>
    %1200 = tpu.matmul %1199, %1187, %cst_431 {dimension_numbers = #tpu.dot_dimension_numbers<[1], [0], [0], [1], [0, 0, 1, 1], [], []>} : vector<1x1xf32>, vector<1x8xf32>, vector<1x8xf32> -> vector<1x8xf32>
    %1201 = arith.addf %1185, %1200 : vector<1x8xf32>
    %1202 = vector.extract_strided_slice %1165 {offsets = [0, 16], sizes = [1, 8], strides = [1, 1]} : vector<1x32xf32> to vector<1x8xf32>
    %1203 = vector.extract_strided_slice %1166 {offsets = [0, 16], sizes = [1, 8], strides = [1, 1]} : vector<1x32xf32> to vector<1x8xf32>
    %1204 = vector.extract_strided_slice %1167 {offsets = [0, 16], sizes = [1, 8], strides = [1, 1]} : vector<1x32xf32> to vector<1x8xf32>
    %1205 = tpu.transpose %1203, [1, 0] : vector<1x8xf32> -> vector<8x1xf32>
    %cst_432 = arith.constant dense<0.000000e+00> : vector<1x1xf32>
    %1206 = tpu.matmul %1202, %1205, %cst_432 {dimension_numbers = #tpu.dot_dimension_numbers<[1], [0], [0], [1], [0, 0, 1, 1], [], []>} : vector<1x8xf32>, vector<8x1xf32>, vector<1x1xf32> -> vector<1x1xf32>
    %cst_433 = arith.constant 0.176776692 : f32
    %1207 = vector.broadcast %cst_433 : f32 to vector<1x1xf32>
    %1208 = arith.mulf %1206, %1207 : vector<1x1xf32>
    %cst_434 = arith.constant dense<0xFF800000> : vector<1xf32>
    %1209 = vector.multi_reduction <maximumf>, %1208, %cst_434 [1] : vector<1x1xf32> to vector<1xf32>
    %1210 = vector.shape_cast %1209 : vector<1xf32> to vector<1x1xf32>
    %1211 = arith.subf %1208, %1210 : vector<1x1xf32>
    %1212 = math.exp %1211 : vector<1x1xf32>
    %cst_435 = arith.constant dense<0.000000e+00> : vector<1xf32>
    %1213 = vector.multi_reduction <add>, %1212, %cst_435 [1] : vector<1x1xf32> to vector<1xf32>
    %1214 = vector.shape_cast %1213 : vector<1xf32> to vector<1x1xf32>
    %1215 = tpu.reciprocal %1214 {approx = true} : vector<1x1xf32> -> vector<1x1xf32>
    %1216 = arith.mulf %1212, %1215 : vector<1x1xf32>
    %cst_436 = arith.constant dense<0.000000e+00> : vector<1x8xf32>
    %1217 = tpu.matmul %1216, %1204, %cst_436 {dimension_numbers = #tpu.dot_dimension_numbers<[1], [0], [0], [1], [0, 0, 1, 1], [], []>} : vector<1x1xf32>, vector<1x8xf32>, vector<1x8xf32> -> vector<1x8xf32>
    %1218 = arith.addf %1202, %1217 : vector<1x8xf32>
    %1219 = vector.extract_strided_slice %1165 {offsets = [0, 24], sizes = [1, 8], strides = [1, 1]} : vector<1x32xf32> to vector<1x8xf32>
    %1220 = vector.extract_strided_slice %1166 {offsets = [0, 24], sizes = [1, 8], strides = [1, 1]} : vector<1x32xf32> to vector<1x8xf32>
    %1221 = vector.extract_strided_slice %1167 {offsets = [0, 24], sizes = [1, 8], strides = [1, 1]} : vector<1x32xf32> to vector<1x8xf32>
    %1222 = tpu.transpose %1220, [1, 0] : vector<1x8xf32> -> vector<8x1xf32>
    %cst_437 = arith.constant dense<0.000000e+00> : vector<1x1xf32>
    %1223 = tpu.matmul %1219, %1222, %cst_437 {dimension_numbers = #tpu.dot_dimension_numbers<[1], [0], [0], [1], [0, 0, 1, 1], [], []>} : vector<1x8xf32>, vector<8x1xf32>, vector<1x1xf32> -> vector<1x1xf32>
    %cst_438 = arith.constant 0.176776692 : f32
    %1224 = vector.broadcast %cst_438 : f32 to vector<1x1xf32>
    %1225 = arith.mulf %1223, %1224 : vector<1x1xf32>
    %cst_439 = arith.constant dense<0xFF800000> : vector<1xf32>
    %1226 = vector.multi_reduction <maximumf>, %1225, %cst_439 [1] : vector<1x1xf32> to vector<1xf32>
    %1227 = vector.shape_cast %1226 : vector<1xf32> to vector<1x1xf32>
    %1228 = arith.subf %1225, %1227 : vector<1x1xf32>
    %1229 = math.exp %1228 : vector<1x1xf32>
    %cst_440 = arith.constant dense<0.000000e+00> : vector<1xf32>
    %1230 = vector.multi_reduction <add>, %1229, %cst_440 [1] : vector<1x1xf32> to vector<1xf32>
    %1231 = vector.shape_cast %1230 : vector<1xf32> to vector<1x1xf32>
    %1232 = tpu.reciprocal %1231 {approx = true} : vector<1x1xf32> -> vector<1x1xf32>
    %1233 = arith.mulf %1229, %1232 : vector<1x1xf32>
    %cst_441 = arith.constant dense<0.000000e+00> : vector<1x8xf32>
    %1234 = tpu.matmul %1233, %1221, %cst_441 {dimension_numbers = #tpu.dot_dimension_numbers<[1], [0], [0], [1], [0, 0, 1, 1], [], []>} : vector<1x1xf32>, vector<1x8xf32>, vector<1x8xf32> -> vector<1x8xf32>
    %1235 = arith.addf %1219, %1234 : vector<1x8xf32>
    %1236 = tpu.concatenate %1184, %1201, %1218, %1235 in 1 : vector<1x8xf32>, vector<1x8xf32>, vector<1x8xf32>, vector<1x8xf32> -> vector<1x32xf32>
    %1237 = vector.extract_strided_slice %1159 {offsets = [1, 0], sizes = [1, 32], strides = [1, 1]} : vector<2x32xf32> to vector<1x32xf32>
    %1238 = vector.extract_strided_slice %1163 {offsets = [1, 0], sizes = [1, 32], strides = [1, 1]} : vector<2x32xf32> to vector<1x32xf32>
    %1239 = vector.extract_strided_slice %1164 {offsets = [1, 0], sizes = [1, 32], strides = [1, 1]} : vector<2x32xf32> to vector<1x32xf32>
    %1240 = vector.extract_strided_slice %1237 {offsets = [0, 0], sizes = [1, 8], strides = [1, 1]} : vector<1x32xf32> to vector<1x8xf32>
    %1241 = vector.extract_strided_slice %1238 {offsets = [0, 0], sizes = [1, 8], strides = [1, 1]} : vector<1x32xf32> to vector<1x8xf32>
    %1242 = vector.extract_strided_slice %1239 {offsets = [0, 0], sizes = [1, 8], strides = [1, 1]} : vector<1x32xf32> to vector<1x8xf32>
    %1243 = tpu.transpose %1241, [1, 0] : vector<1x8xf32> -> vector<8x1xf32>
    %cst_442 = arith.constant dense<0.000000e+00> : vector<1x1xf32>
    %1244 = tpu.matmul %1240, %1243, %cst_442 {dimension_numbers = #tpu.dot_dimension_numbers<[1], [0], [0], [1], [0, 0, 1, 1], [], []>} : vector<1x8xf32>, vector<8x1xf32>, vector<1x1xf32> -> vector<1x1xf32>
    %cst_443 = arith.constant 0.176776692 : f32
    %1245 = vector.broadcast %cst_443 : f32 to vector<1x1xf32>
    %1246 = arith.mulf %1244, %1245 : vector<1x1xf32>
    %cst_444 = arith.constant dense<0xFF800000> : vector<1xf32>
    %1247 = vector.multi_reduction <maximumf>, %1246, %cst_444 [1] : vector<1x1xf32> to vector<1xf32>
    %1248 = vector.shape_cast %1247 : vector<1xf32> to vector<1x1xf32>
    %1249 = arith.subf %1246, %1248 : vector<1x1xf32>
    %1250 = math.exp %1249 : vector<1x1xf32>
    %cst_445 = arith.constant dense<0.000000e+00> : vector<1xf32>
    %1251 = vector.multi_reduction <add>, %1250, %cst_445 [1] : vector<1x1xf32> to vector<1xf32>
    %1252 = vector.shape_cast %1251 : vector<1xf32> to vector<1x1xf32>
    %1253 = tpu.reciprocal %1252 {approx = true} : vector<1x1xf32> -> vector<1x1xf32>
    %1254 = arith.mulf %1250, %1253 : vector<1x1xf32>
    %cst_446 = arith.constant dense<0.000000e+00> : vector<1x8xf32>
    %1255 = tpu.matmul %1254, %1242, %cst_446 {dimension_numbers = #tpu.dot_dimension_numbers<[1], [0], [0], [1], [0, 0, 1, 1], [], []>} : vector<1x1xf32>, vector<1x8xf32>, vector<1x8xf32> -> vector<1x8xf32>
    %1256 = arith.addf %1240, %1255 : vector<1x8xf32>
    %1257 = vector.extract_strided_slice %1237 {offsets = [0, 8], sizes = [1, 8], strides = [1, 1]} : vector<1x32xf32> to vector<1x8xf32>
    %1258 = vector.extract_strided_slice %1238 {offsets = [0, 8], sizes = [1, 8], strides = [1, 1]} : vector<1x32xf32> to vector<1x8xf32>
    %1259 = vector.extract_strided_slice %1239 {offsets = [0, 8], sizes = [1, 8], strides = [1, 1]} : vector<1x32xf32> to vector<1x8xf32>
    %1260 = tpu.transpose %1258, [1, 0] : vector<1x8xf32> -> vector<8x1xf32>
    %cst_447 = arith.constant dense<0.000000e+00> : vector<1x1xf32>
    %1261 = tpu.matmul %1257, %1260, %cst_447 {dimension_numbers = #tpu.dot_dimension_numbers<[1], [0], [0], [1], [0, 0, 1, 1], [], []>} : vector<1x8xf32>, vector<8x1xf32>, vector<1x1xf32> -> vector<1x1xf32>
    %cst_448 = arith.constant 0.176776692 : f32
    %1262 = vector.broadcast %cst_448 : f32 to vector<1x1xf32>
    %1263 = arith.mulf %1261, %1262 : vector<1x1xf32>
    %cst_449 = arith.constant dense<0xFF800000> : vector<1xf32>
    %1264 = vector.multi_reduction <maximumf>, %1263, %cst_449 [1] : vector<1x1xf32> to vector<1xf32>
    %1265 = vector.shape_cast %1264 : vector<1xf32> to vector<1x1xf32>
    %1266 = arith.subf %1263, %1265 : vector<1x1xf32>
    %1267 = math.exp %1266 : vector<1x1xf32>
    %cst_450 = arith.constant dense<0.000000e+00> : vector<1xf32>
    %1268 = vector.multi_reduction <add>, %1267, %cst_450 [1] : vector<1x1xf32> to vector<1xf32>
    %1269 = vector.shape_cast %1268 : vector<1xf32> to vector<1x1xf32>
    %1270 = tpu.reciprocal %1269 {approx = true} : vector<1x1xf32> -> vector<1x1xf32>
    %1271 = arith.mulf %1267, %1270 : vector<1x1xf32>
    %cst_451 = arith.constant dense<0.000000e+00> : vector<1x8xf32>
    %1272 = tpu.matmul %1271, %1259, %cst_451 {dimension_numbers = #tpu.dot_dimension_numbers<[1], [0], [0], [1], [0, 0, 1, 1], [], []>} : vector<1x1xf32>, vector<1x8xf32>, vector<1x8xf32> -> vector<1x8xf32>
    %1273 = arith.addf %1257, %1272 : vector<1x8xf32>
    %1274 = vector.extract_strided_slice %1237 {offsets = [0, 16], sizes = [1, 8], strides = [1, 1]} : vector<1x32xf32> to vector<1x8xf32>
    %1275 = vector.extract_strided_slice %1238 {offsets = [0, 16], sizes = [1, 8], strides = [1, 1]} : vector<1x32xf32> to vector<1x8xf32>
    %1276 = vector.extract_strided_slice %1239 {offsets = [0, 16], sizes = [1, 8], strides = [1, 1]} : vector<1x32xf32> to vector<1x8xf32>
    %1277 = tpu.transpose %1275, [1, 0] : vector<1x8xf32> -> vector<8x1xf32>
    %cst_452 = arith.constant dense<0.000000e+00> : vector<1x1xf32>
    %1278 = tpu.matmul %1274, %1277, %cst_452 {dimension_numbers = #tpu.dot_dimension_numbers<[1], [0], [0], [1], [0, 0, 1, 1], [], []>} : vector<1x8xf32>, vector<8x1xf32>, vector<1x1xf32> -> vector<1x1xf32>
    %cst_453 = arith.constant 0.176776692 : f32
    %1279 = vector.broadcast %cst_453 : f32 to vector<1x1xf32>
    %1280 = arith.mulf %1278, %1279 : vector<1x1xf32>
    %cst_454 = arith.constant dense<0xFF800000> : vector<1xf32>
    %1281 = vector.multi_reduction <maximumf>, %1280, %cst_454 [1] : vector<1x1xf32> to vector<1xf32>
    %1282 = vector.shape_cast %1281 : vector<1xf32> to vector<1x1xf32>
    %1283 = arith.subf %1280, %1282 : vector<1x1xf32>
    %1284 = math.exp %1283 : vector<1x1xf32>
    %cst_455 = arith.constant dense<0.000000e+00> : vector<1xf32>
    %1285 = vector.multi_reduction <add>, %1284, %cst_455 [1] : vector<1x1xf32> to vector<1xf32>
    %1286 = vector.shape_cast %1285 : vector<1xf32> to vector<1x1xf32>
    %1287 = tpu.reciprocal %1286 {approx = true} : vector<1x1xf32> -> vector<1x1xf32>
    %1288 = arith.mulf %1284, %1287 : vector<1x1xf32>
    %cst_456 = arith.constant dense<0.000000e+00> : vector<1x8xf32>
    %1289 = tpu.matmul %1288, %1276, %cst_456 {dimension_numbers = #tpu.dot_dimension_numbers<[1], [0], [0], [1], [0, 0, 1, 1], [], []>} : vector<1x1xf32>, vector<1x8xf32>, vector<1x8xf32> -> vector<1x8xf32>
    %1290 = arith.addf %1274, %1289 : vector<1x8xf32>
    %1291 = vector.extract_strided_slice %1237 {offsets = [0, 24], sizes = [1, 8], strides = [1, 1]} : vector<1x32xf32> to vector<1x8xf32>
    %1292 = vector.extract_strided_slice %1238 {offsets = [0, 24], sizes = [1, 8], strides = [1, 1]} : vector<1x32xf32> to vector<1x8xf32>
    %1293 = vector.extract_strided_slice %1239 {offsets = [0, 24], sizes = [1, 8], strides = [1, 1]} : vector<1x32xf32> to vector<1x8xf32>
    %1294 = tpu.transpose %1292, [1, 0] : vector<1x8xf32> -> vector<8x1xf32>
    %cst_457 = arith.constant dense<0.000000e+00> : vector<1x1xf32>
    %1295 = tpu.matmul %1291, %1294, %cst_457 {dimension_numbers = #tpu.dot_dimension_numbers<[1], [0], [0], [1], [0, 0, 1, 1], [], []>} : vector<1x8xf32>, vector<8x1xf32>, vector<1x1xf32> -> vector<1x1xf32>
    %cst_458 = arith.constant 0.176776692 : f32
    %1296 = vector.broadcast %cst_458 : f32 to vector<1x1xf32>
    %1297 = arith.mulf %1295, %1296 : vector<1x1xf32>
    %cst_459 = arith.constant dense<0xFF800000> : vector<1xf32>
    %1298 = vector.multi_reduction <maximumf>, %1297, %cst_459 [1] : vector<1x1xf32> to vector<1xf32>
    %1299 = vector.shape_cast %1298 : vector<1xf32> to vector<1x1xf32>
    %1300 = arith.subf %1297, %1299 : vector<1x1xf32>
    %1301 = math.exp %1300 : vector<1x1xf32>
    %cst_460 = arith.constant dense<0.000000e+00> : vector<1xf32>
    %1302 = vector.multi_reduction <add>, %1301, %cst_460 [1] : vector<1x1xf32> to vector<1xf32>
    %1303 = vector.shape_cast %1302 : vector<1xf32> to vector<1x1xf32>
    %1304 = tpu.reciprocal %1303 {approx = true} : vector<1x1xf32> -> vector<1x1xf32>
    %1305 = arith.mulf %1301, %1304 : vector<1x1xf32>
    %cst_461 = arith.constant dense<0.000000e+00> : vector<1x8xf32>
    %1306 = tpu.matmul %1305, %1293, %cst_461 {dimension_numbers = #tpu.dot_dimension_numbers<[1], [0], [0], [1], [0, 0, 1, 1], [], []>} : vector<1x1xf32>, vector<1x8xf32>, vector<1x8xf32> -> vector<1x8xf32>
    %1307 = arith.addf %1291, %1306 : vector<1x8xf32>
    %1308 = tpu.concatenate %1256, %1273, %1290, %1307 in 1 : vector<1x8xf32>, vector<1x8xf32>, vector<1x8xf32>, vector<1x8xf32> -> vector<1x32xf32>
    %1309 = tpu.concatenate %1236, %1308 in 0 : vector<1x32xf32>, vector<1x32xf32> -> vector<2x32xf32>
    %cst_462 = arith.constant dense<0.000000e+00> : vector<2x32xf32>
    %1310 = tpu.matmul %1309, %1154, %cst_462 {dimension_numbers = #tpu.dot_dimension_numbers<[1], [0], [0], [1], [0, 0, 1, 1], [], []>} : vector<2x32xf32>, vector<32x32xf32>, vector<2x32xf32> -> vector<2x32xf32>
    %1311 = vector.broadcast %1156 : vector<1x32xf32> to vector<2x32xf32>
    %1312 = arith.addf %1310, %1311 : vector<2x32xf32>
    %cst_463 = arith.constant 0.000000e+00 : f32
    %1313 = vector.broadcast %cst_463 : f32 to vector<2x32xf32>
    %1314 = arith.maximumf %1312, %1313 : vector<2x32xf32>
    %1315 = arith.addf %1309, %1314 : vector<2x32xf32>
    %c0_464 = arith.constant 0 : index
    %c0_465 = arith.constant 0 : index
    %1316 = vector.load %arg34[%c0_464, %c0_465] : memref<32x16xf32, #tpu.memory_space<vmem>>, vector<32x16xf32>
    %cst_466 = arith.constant dense<0.000000e+00> : vector<2x16xf32>
    %1317 = tpu.matmul %1315, %1316, %cst_466 {dimension_numbers = #tpu.dot_dimension_numbers<[1], [0], [0], [1], [0, 0, 1, 1], [], []>} : vector<2x32xf32>, vector<32x16xf32>, vector<2x16xf32> -> vector<2x16xf32>
    %c0_467 = arith.constant 0 : index
    %c0_468 = arith.constant 0 : index
    %1318 = vector.load %arg35[%c0_467, %c0_468] : memref<1x16xf32, #tpu.memory_space<vmem>>, vector<1x16xf32>
    %1319 = vector.broadcast %1318 : vector<1x16xf32> to vector<2x16xf32>
    %1320 = arith.addf %1317, %1319 : vector<2x16xf32>
    %c0_469 = arith.constant 0 : index
    %c0_470 = arith.constant 0 : index
    %1321 = vector.load %arg36[%c0_469, %c0_470] : memref<5x16xf32, #tpu.memory_space<vmem>>, vector<5x16xf32>
    %1322 = vector.extract_strided_slice %1320 {offsets = [0, 0], sizes = [1, 16], strides = [1, 1]} : vector<2x16xf32> to vector<1x16xf32>
    %1323 = vector.extract_strided_slice %1320 {offsets = [1, 0], sizes = [1, 16], strides = [1, 1]} : vector<2x16xf32> to vector<1x16xf32>
    %1324 = tpu.concatenate %1322, %1321, %1323, %1321 in 0 : vector<1x16xf32>, vector<5x16xf32>, vector<1x16xf32>, vector<5x16xf32> -> vector<12x16xf32>
    %c0_471 = arith.constant 0 : index
    %c0_472 = arith.constant 0 : index
    %1325 = vector.load %arg37[%c0_471, %c0_472] : memref<12x16xf32, #tpu.memory_space<vmem>>, vector<12x16xf32>
    tpu.vector_store %arg37[%c0_471, %c0_472], %1324 {strides = array<i32>} : memref<12x16xf32, #tpu.memory_space<vmem>>, vector<12x16xf32>,
    return
  }
}

</mosaic_0001>

<llo_original>
// kernel: our_model_forward.1
$region0: #{our_model_forward.1}
  #allocation0 [shape = 'u32[]', space=smem, size = 0x4, offset = 0x4, fixed_abs, tag = 'smem constant byte address 0x4 - core index']
  #allocation1 [shape = 'u32[72,128]{1,0:T(1,128)}', space=vmem, size = 0x9000, scoped, tag = 'internal scratch']
  %s0 = inlined_call_operand.smem [shape: u32[38], index: -1, kind: input, shape index: {}]
  %s1 = sld [smem:[%s0]]
  %s2 = scalar_lea.smem %s0, 1
  %s3 = sld [smem:[%s2]]
  %s4 = scalar_lea.smem %s0, 2
  %s5 = sld [smem:[%s4]]
  %s6 = scalar_lea.smem %s0, 3
  %s7 = sld [smem:[%s6]]
  %s8 = scalar_lea.smem %s0, 4
  %s9 = sld [smem:[%s8]]
  %s10 = scalar_lea.smem %s0, 5
  %s11 = sld [smem:[%s10]]
  %s12 = scalar_lea.smem %s0, 6
  %s13 = sld [smem:[%s12]]
  %s14 = scalar_lea.smem %s0, 7
  %s15 = sld [smem:[%s14]]
  %s16 = scalar_lea.smem %s0, 8
  %s17 = sld [smem:[%s16]]
  %s18 = scalar_lea.smem %s0, 9
  %s19 = sld [smem:[%s18]]
  %s20 = scalar_lea.smem %s0, 10
  %s21 = sld [smem:[%s20]]
  %s22 = scalar_lea.smem %s0, 11
  %s23 = sld [smem:[%s22]]
  %s24 = scalar_lea.smem %s0, 12
  %s25 = sld [smem:[%s24]]
  %s26 = scalar_lea.smem %s0, 13
  %s27 = sld [smem:[%s26]]
  %s28 = scalar_lea.smem %s0, 14
  %s29 = sld [smem:[%s28]]
  %s30 = scalar_lea.smem %s0, 15
  %s31 = sld [smem:[%s30]]
  %s32 = scalar_lea.smem %s0, 16
  %s33 = sld [smem:[%s32]]
  %s34 = scalar_lea.smem %s0, 17
  %s35 = sld [smem:[%s34]]
  %s36 = scalar_lea.smem %s0, 18
  %s37 = sld [smem:[%s36]]
  %s38 = scalar_lea.smem %s0, 19
  %s39 = sld [smem:[%s38]]
  %s40 = scalar_lea.smem %s0, 20
  %s41 = sld [smem:[%s40]]
  %s42 = scalar_lea.smem %s0, 21
  %s43 = sld [smem:[%s42]]
  %s44 = scalar_lea.smem %s0, 22
  %s45 = sld [smem:[%s44]]
  %s46 = scalar_lea.smem %s0, 23
  %s47 = sld [smem:[%s46]]
  %s48 = scalar_lea.smem %s0, 24
  %s49 = sld [smem:[%s48]]
  %s50 = scalar_lea.smem %s0, 25
  %s51 = sld [smem:[%s50]]
  %s52 = scalar_lea.smem %s0, 26
  %s53 = sld [smem:[%s52]]
  %s54 = scalar_lea.smem %s0, 27
  %s55 = sld [smem:[%s54]]
  %s56 = scalar_lea.smem %s0, 28
  %s57 = sld [smem:[%s56]]
  %s58 = scalar_lea.smem %s0, 29
  %s59 = sld [smem:[%s58]]
  %s60 = scalar_lea.smem %s0, 30
  %s61 = sld [smem:[%s60]]
  %s62 = scalar_lea.smem %s0, 31
  %s63 = sld [smem:[%s62]]
  %s64 = scalar_lea.smem %s0, 32
  %s65 = sld [smem:[%s64]]
  %s66 = scalar_lea.smem %s0, 33
  %s67 = sld [smem:[%s66]]
  %s68 = scalar_lea.smem %s0, 34
  %s69 = sld [smem:[%s68]]
  %s70 = scalar_lea.smem %s0, 35
  %s71 = sld [smem:[%s70]]
  %s72 = scalar_lea.smem %s0, 36
  %s73 = sld [smem:[%s72]]
  %s74 = scalar_lea.smem %s0, 37
  %s75 = sld [smem:[%s74]]
  %s76 = sld [smem:[#allocation0]]
  $region234: #{our_model_forward.1} parent=0
    _
  %s78 = ssub.s32 1, %s76
  %s79 = scalar_select 0, %s78, %s76
  $region1: #{our_model_forward.1} parent=0
    #allocation2 [shape = 'u8[32768]{0}', space=vmem, size = 0x8000, scoped, tag = 'input window, operand 11, single buffered']
    #allocation3 [shape = 's32[1]{0}', space=sflag, size = 0x4, scoped, tag = 'scoped memory for our_model_forward.1']
    #allocation4 [shape = 'u8[32768]{0}', space=vmem, size = 0x8000, scoped, tag = 'input window, operand 13, single buffered']
    #allocation5 [shape = 's32[1]{0}', space=sflag, size = 0x4, scoped, tag = 'scoped memory for our_model_forward.1']
    #allocation6 [shape = 'u8[32768]{0}', space=vmem, size = 0x8000, scoped, tag = 'input window, operand 15, single buffered']
    #allocation7 [shape = 'u8[32768]{0}', space=vmem, size = 0x8000, scoped, tag = 'input window, operand 17, single buffered']
    #allocation8 [shape = 's32[1]{0}', space=sflag, size = 0x4, scoped, tag = 'scoped memory for our_model_forward.1']
    #allocation9 [shape = 'u8[32768]{0}', space=vmem, size = 0x8000, scoped, tag = 'input window, operand 19, single buffered']
    #allocation10 [shape = 'u8[512]{0}', space=vmem, size = 0x400, scoped, tag = 'input window, operand 21, single buffered']
    #allocation11 [shape = 's32[1]{0}', space=sflag, size = 0x4, scoped, tag = 'scoped memory for our_model_forward.1']
    #allocation12 [shape = 'u8[16384]{0}', space=vmem, size = 0x4000, scoped, tag = 'input window, operand 22, single buffered']
    #allocation13 [shape = 'u8[512]{0}', space=vmem, size = 0x400, scoped, tag = 'input window, operand 23, single buffered']
    #allocation14 [shape = 's32[1]{0}', space=sflag, size = 0x4, scoped, tag = 'scoped memory for our_model_forward.1']
    #allocation15 [shape = 'u8[16384]{0}', space=vmem, size = 0x4000, scoped, tag = 'input window, operand 24, single buffered']
    #allocation16 [shape = 'u8[512]{0}', space=vmem, size = 0x400, scoped, tag = 'input window, operand 25, single buffered']
    #allocation17 [shape = 's32[1]{0}', space=sflag, size = 0x4, scoped, tag = 'scoped memory for our_model_forward.1']
    #allocation18 [shape = 'u8[16384]{0}', space=vmem, size = 0x4000, scoped, tag = 'input window, operand 26, single buffered']
    #allocation19 [shape = 'u8[512]{0}', space=vmem, size = 0x400, scoped, tag = 'input window, operand 27, single buffered']
    #allocation20 [shape = 's32[1]{0}', space=sflag, size = 0x4, scoped, tag = 'scoped memory for our_model_forward.1']
    #allocation21 [shape = 'u8[32768]{0}', space=vmem, size = 0x8000, scoped, tag = 'input window, operand 28, single buffered']
    #allocation22 [shape = 'u8[1024]{0}', space=vmem, size = 0x400, scoped, tag = 'input window, operand 29, single buffered']
    #allocation23 [shape = 's32[1]{0}', space=sflag, size = 0x4, scoped, tag = 'scoped memory for our_model_forward.1']
    #allocation24 [shape = 'u8[32768]{0}', space=vmem, size = 0x8000, scoped, tag = 'input window, operand 30, single buffered']
    #allocation25 [shape = 'u8[1024]{0}', space=vmem, size = 0x400, scoped, tag = 'input window, operand 31, single buffered']
    #allocation26 [shape = 's32[1]{0}', space=sflag, size = 0x4, scoped, tag = 'scoped memory for our_model_forward.1']
    #allocation27 [shape = 'u8[32768]{0}', space=vmem, size = 0x8000, scoped, tag = 'input window, operand 32, single buffered']
    #allocation28 [shape = 'u8[1024]{0}', space=vmem, size = 0x400, scoped, tag = 'input window, operand 33, single buffered']
    #allocation29 [shape = 's32[1]{0}', space=sflag, size = 0x4, scoped, tag = 'scoped memory for our_model_forward.1']
    #allocation30 [shape = 'u8[512]{0}', space=vmem, size = 0x400, scoped, tag = 'input window, operand 35, single buffered']
    %80 = vsyncpa [#allocation3], 0
    %81 = vsyncpa [#allocation5], 0
    %82 = vsyncpa [#allocation8], 0
    %83 = vsyncpa [#allocation11], 0
    %84 = vsyncpa [#allocation14], 0
    %85 = vsyncpa [#allocation17], 0
    %86 = vsyncpa [#allocation20], 0
    %87 = vsyncpa [#allocation23], 0
    %88 = vsyncpa [#allocation26], 0
    %89 = vsyncpa [#allocation29], 0
    // Predicated region
    $region2: #{our_model_forward.1} parent=1 // pred_check
      _
    $region3: #{our_model_forward.1} parent=1 // pred_check_branch
      %91 = sbr.rel (0) target = $region5
    $region4: #{our_model_forward.1} parent=1 // pred_region
      _
    $region5: #{our_model_forward.1} parent=1 // pred_fallthru
      _
    // Predicated region
    $region6: #{our_model_forward.1} parent=1 // pred_check
      _
    $region7: #{our_model_forward.1} parent=1 // pred_check_branch
      %93 = sbr.rel (0) target = $region9
    $region8: #{our_model_forward.1} parent=1 // pred_region
      _
    $region9: #{our_model_forward.1} parent=1 // pred_fallthru
      _
    // Predicated region
    $region10: #{our_model_forward.1} parent=1 // pred_check
      _
    $region11: #{our_model_forward.1} parent=1 // pred_check_branch
      %95 = sbr.rel (0) target = $region13
    $region12: #{our_model_forward.1} parent=1 // pred_region
      _
    $region13: #{our_model_forward.1} parent=1 // pred_fallthru
      _
    // Predicated region
    $region14: #{our_model_forward.1} parent=1 // pred_check
      _
    $region15: #{our_model_forward.1} parent=1 // pred_check_branch
      %97 = sbr.rel (0) target = $region17
    $region16: #{our_model_forward.1} parent=1 // pred_region
      _
    $region17: #{our_model_forward.1} parent=1 // pred_fallthru
      _
    // Predicated region
    $region18: #{our_model_forward.1} parent=1 // pred_check
      _
    $region19: #{our_model_forward.1} parent=1 // pred_check_branch
      %99 = sbr.rel (0) target = $region21
    $region20: #{our_model_forward.1} parent=1 // pred_region
      _
    $region21: #{our_model_forward.1} parent=1 // pred_fallthru
      _
    // Predicated region
    $region22: #{our_model_forward.1} parent=1 // pred_check
      _
    $region23: #{our_model_forward.1} parent=1 // pred_check_branch
      %101 = sbr.rel (0) target = $region25
    $region24: #{our_model_forward.1} parent=1 // pred_region
      _
    $region25: #{our_model_forward.1} parent=1 // pred_fallthru
      _
    // Predicated region
    $region26: #{our_model_forward.1} parent=1 // pred_check
      _
    $region27: #{our_model_forward.1} parent=1 // pred_check_branch
      %103 = sbr.rel (0) target = $region29
    $region28: #{our_model_forward.1} parent=1 // pred_region
      _
    $region29: #{our_model_forward.1} parent=1 // pred_fallthru
      _
    // Predicated region
    $region30: #{our_model_forward.1} parent=1 // pred_check
      _
    $region31: #{our_model_forward.1} parent=1 // pred_check_branch
      %105 = sbr.rel (0) target = $region33
    $region32: #{our_model_forward.1} parent=1 // pred_region
      _
    $region33: #{our_model_forward.1} parent=1 // pred_fallthru
      _
    // Predicated region
    $region34: #{our_model_forward.1} parent=1 // pred_check
      _
    $region35: #{our_model_forward.1} parent=1 // pred_check_branch
      %107 = sbr.rel (0) target = $region37
    $region36: #{our_model_forward.1} parent=1 // pred_region
      _
    $region37: #{our_model_forward.1} parent=1 // pred_fallthru
      _
    // Predicated region
    $region38: #{our_model_forward.1} parent=1 // pred_check
      _
    $region39: #{our_model_forward.1} parent=1 // pred_check_branch
      %109 = sbr.rel (0) target = $region41
    $region40: #{our_model_forward.1} parent=1 // pred_region
      _
    $region41: #{our_model_forward.1} parent=1 // pred_fallthru
      _
    // Predicated region
    $region42: #{our_model_forward.1} parent=1 // pred_check
      _
    $region43: #{our_model_forward.1} parent=1 // pred_check_branch
      %111 = sbr.rel (0) target = $region45
    $region44: #{our_model_forward.1} parent=1 // pred_region
      _
    $region45: #{our_model_forward.1} parent=1 // pred_fallthru
      _
    // Predicated region
    $region46: #{our_model_forward.1} parent=1 // pred_check
      _
    $region47: #{our_model_forward.1} parent=1 // pred_check_branch
      %113 = sbr.rel (0) target = $region49
    $region48: #{our_model_forward.1} parent=1 // pred_region
      %115 = vsyncadd [#allocation3], 0
      %s116 = sshll.u32 %s23, 4
      %s117 = int_to_ptr.hbm [resolvable:$true] %s116
      %s118 = sshll.u32 [#allocation2], 4
      %s119 = int_to_ptr.vmem [resolvable:$true] %s118
      %124 = dma.hbm_to_vmem [thread:$0]  %s117, 1024, %s119, [#allocation3], 128, 128, 8
    $region49: #{our_model_forward.1} parent=1 // pred_fallthru
      _
    // Predicated region
    $region50: #{our_model_forward.1} parent=1 // pred_check
      _
    $region51: #{our_model_forward.1} parent=1 // pred_check_branch
      %126 = sbr.rel (0) target = $region53
    $region52: #{our_model_forward.1} parent=1 // pred_region
      _
    $region53: #{our_model_forward.1} parent=1 // pred_fallthru
      _
    // Predicated region
    $region54: #{our_model_forward.1} parent=1 // pred_check
      _
    $region55: #{our_model_forward.1} parent=1 // pred_check_branch
      %128 = sbr.rel (0) target = $region57
    $region56: #{our_model_forward.1} parent=1 // pred_region
      %130 = vsyncadd [#allocation5], 0
      %s131 = sshll.u32 %s27, 4
      %s132 = int_to_ptr.hbm [resolvable:$true] %s131
      %s133 = sshll.u32 [#allocation4], 4
      %s134 = int_to_ptr.vmem [resolvable:$true] %s133
      %139 = dma.hbm_to_vmem [thread:$0]  %s132, 1024, %s134, [#allocation5], 128, 128, 8
    $region57: #{our_model_forward.1} parent=1 // pred_fallthru
      _
    // Predicated region
    $region58: #{our_model_forward.1} parent=1 // pred_check
      _
    $region59: #{our_model_forward.1} parent=1 // pred_check_branch
      %141 = sbr.rel (0) target = $region61
    $region60: #{our_model_forward.1} parent=1 // pred_region
      _
    $region61: #{our_model_forward.1} parent=1 // pred_fallthru
      _
    // Predicated region
    $region62: #{our_model_forward.1} parent=1 // pred_check
      _
    $region63: #{our_model_forward.1} parent=1 // pred_check_branch
      %143 = sbr.rel (0) target = $region65
    $region64: #{our_model_forward.1} parent=1 // pred_region
      %145 = vsyncadd [#allocation5], 0
      %s146 = sshll.u32 %s31, 4
      %s147 = int_to_ptr.hbm [resolvable:$true] %s146
      %s148 = sshll.u32 [#allocation6], 4
      %s149 = int_to_ptr.vmem [resolvable:$true] %s148
      %154 = dma.hbm_to_vmem [thread:$0]  %s147, 1024, %s149, [#allocation5], 128, 128, 8
    $region65: #{our_model_forward.1} parent=1 // pred_fallthru
      _
    // Predicated region
    $region66: #{our_model_forward.1} parent=1 // pred_check
      _
    $region67: #{our_model_forward.1} parent=1 // pred_check_branch
      %156 = sbr.rel (0) target = $region69
    $region68: #{our_model_forward.1} parent=1 // pred_region
      _
    $region69: #{our_model_forward.1} parent=1 // pred_fallthru
      _
    // Predicated region
    $region70: #{our_model_forward.1} parent=1 // pred_check
      _
    $region71: #{our_model_forward.1} parent=1 // pred_check_branch
      %158 = sbr.rel (0) target = $region73
    $region72: #{our_model_forward.1} parent=1 // pred_region
      %160 = vsyncadd [#allocation8], 0
      %s161 = sshll.u32 %s35, 4
      %s162 = int_to_ptr.hbm [resolvable:$true] %s161
      %s163 = sshll.u32 [#allocation7], 4
      %s164 = int_to_ptr.vmem [resolvable:$true] %s163
      %169 = dma.hbm_to_vmem [thread:$0]  %s162, 1024, %s164, [#allocation8], 128, 128, 8
    $region73: #{our_model_forward.1} parent=1 // pred_fallthru
      _
    // Predicated region
    $region74: #{our_model_forward.1} parent=1 // pred_check
      _
    $region75: #{our_model_forward.1} parent=1 // pred_check_branch
      %171 = sbr.rel (0) target = $region77
    $region76: #{our_model_forward.1} parent=1 // pred_region
      _
    $region77: #{our_model_forward.1} parent=1 // pred_fallthru
      _
    // Predicated region
    $region78: #{our_model_forward.1} parent=1 // pred_check
      _
    $region79: #{our_model_forward.1} parent=1 // pred_check_branch
      %173 = sbr.rel (0) target = $region81
    $region80: #{our_model_forward.1} parent=1 // pred_region
      %175 = vsyncadd [#allocation8], 0
      %s176 = sshll.u32 %s39, 4
      %s177 = int_to_ptr.hbm [resolvable:$true] %s176
      %s178 = sshll.u32 [#allocation9], 4
      %s179 = int_to_ptr.vmem [resolvable:$true] %s178
      %184 = dma.hbm_to_vmem [thread:$0]  %s177, 1024, %s179, [#allocation8], 128, 128, 8
    $region81: #{our_model_forward.1} parent=1 // pred_fallthru
      _
    // Predicated region
    $region82: #{our_model_forward.1} parent=1 // pred_check
      _
    $region83: #{our_model_forward.1} parent=1 // pred_check_branch
      %186 = sbr.rel (0) target = $region85
    $region84: #{our_model_forward.1} parent=1 // pred_region
      _
    $region85: #{our_model_forward.1} parent=1 // pred_fallthru
      _
    // Predicated region
    $region86: #{our_model_forward.1} parent=1 // pred_check
      _
    $region87: #{our_model_forward.1} parent=1 // pred_check_branch
      %188 = sbr.rel (0) target = $region89
    $region88: #{our_model_forward.1} parent=1 // pred_region
      %190 = vsyncadd [#allocation11], 0
      %s192 = sshll.u32 %s43, 4
      %s193 = int_to_ptr.hbm [resolvable:$true] %s192
      %s194 = sshll.u32 [#allocation10], 4
      %s195 = int_to_ptr.vmem [resolvable:$true] %s194
      %197 = dma.hbm_to_vmem [thread:$0]  %s193, 16, %s195, [#allocation11]
    $region89: #{our_model_forward.1} parent=1 // pred_fallthru
      _
    // Predicated region
    $region90: #{our_model_forward.1} parent=1 // pred_check
      _
    $region91: #{our_model_forward.1} parent=1 // pred_check_branch
      %199 = sbr.rel (0) target = $region93
    $region92: #{our_model_forward.1} parent=1 // pred_region
      %201 = vsyncadd [#allocation11], 0
      %s202 = sshll.u32 %s45, 4
      %s203 = int_to_ptr.hbm [resolvable:$true] %s202
      %s204 = sshll.u32 [#allocation12], 4
      %s205 = int_to_ptr.vmem [resolvable:$true] %s204
      %210 = dma.hbm_to_vmem [thread:$0]  %s203, 512, %s205, [#allocation11], 128, 128, 8
    $region93: #{our_model_forward.1} parent=1 // pred_fallthru
      _
    // Predicated region
    $region94: #{our_model_forward.1} parent=1 // pred_check
      _
    $region95: #{our_model_forward.1} parent=1 // pred_check_branch
      %212 = sbr.rel (0) target = $region97
    $region96: #{our_model_forward.1} parent=1 // pred_region
      %214 = vsyncadd [#allocation14], 0
      %s216 = sshll.u32 %s47, 4
      %s217 = int_to_ptr.hbm [resolvable:$true] %s216
      %s218 = sshll.u32 [#allocation13], 4
      %s219 = int_to_ptr.vmem [resolvable:$true] %s218
      %221 = dma.hbm_to_vmem [thread:$0]  %s217, 16, %s219, [#allocation14]
    $region97: #{our_model_forward.1} parent=1 // pred_fallthru
      _
    // Predicated region
    $region98: #{our_model_forward.1} parent=1 // pred_check
      _
    $region99: #{our_model_forward.1} parent=1 // pred_check_branch
      %223 = sbr.rel (0) target = $region101
    $region100: #{our_model_forward.1} parent=1 // pred_region
      %225 = vsyncadd [#allocation14], 0
      %s226 = sshll.u32 %s49, 4
      %s227 = int_to_ptr.hbm [resolvable:$true] %s226
      %s228 = sshll.u32 [#allocation15], 4
      %s229 = int_to_ptr.vmem [resolvable:$true] %s228
      %234 = dma.hbm_to_vmem [thread:$0]  %s227, 512, %s229, [#allocation14], 128, 128, 8
    $region101: #{our_model_forward.1} parent=1 // pred_fallthru
      _
    // Predicated region
    $region102: #{our_model_forward.1} parent=1 // pred_check
      _
    $region103: #{our_model_forward.1} parent=1 // pred_check_branch
      %236 = sbr.rel (0) target = $region105
    $region104: #{our_model_forward.1} parent=1 // pred_region
      %238 = vsyncadd [#allocation17], 0
      %s240 = sshll.u32 %s51, 4
      %s241 = int_to_ptr.hbm [resolvable:$true] %s240
      %s242 = sshll.u32 [#allocation16], 4
      %s243 = int_to_ptr.vmem [resolvable:$true] %s242
      %245 = dma.hbm_to_vmem [thread:$0]  %s241, 16, %s243, [#allocation17]
    $region105: #{our_model_forward.1} parent=1 // pred_fallthru
      _
    // Predicated region
    $region106: #{our_model_forward.1} parent=1 // pred_check
      _
    $region107: #{our_model_forward.1} parent=1 // pred_check_branch
      %247 = sbr.rel (0) target = $region109
    $region108: #{our_model_forward.1} parent=1 // pred_region
      %249 = vsyncadd [#allocation17], 0
      %s250 = sshll.u32 %s53, 4
      %s251 = int_to_ptr.hbm [resolvable:$true] %s250
      %s252 = sshll.u32 [#allocation18], 4
      %s253 = int_to_ptr.vmem [resolvable:$true] %s252
      %258 = dma.hbm_to_vmem [thread:$0]  %s251, 512, %s253, [#allocation17], 128, 128, 8
    $region109: #{our_model_forward.1} parent=1 // pred_fallthru
      _
    // Predicated region
    $region110: #{our_model_forward.1} parent=1 // pred_check
      _
    $region111: #{our_model_forward.1} parent=1 // pred_check_branch
      %260 = sbr.rel (0) target = $region113
    $region112: #{our_model_forward.1} parent=1 // pred_region
      %262 = vsyncadd [#allocation20], 0
      %s264 = sshll.u32 %s55, 4
      %s265 = int_to_ptr.hbm [resolvable:$true] %s264
      %s266 = sshll.u32 [#allocation19], 4
      %s267 = int_to_ptr.vmem [resolvable:$true] %s266
      %269 = dma.hbm_to_vmem [thread:$0]  %s265, 16, %s267, [#allocation20]
    $region113: #{our_model_forward.1} parent=1 // pred_fallthru
      _
    // Predicated region
    $region114: #{our_model_forward.1} parent=1 // pred_check
      _
    $region115: #{our_model_forward.1} parent=1 // pred_check_branch
      %271 = sbr.rel (0) target = $region117
    $region116: #{our_model_forward.1} parent=1 // pred_region
      %273 = vsyncadd [#allocation20], 0
      %s274 = sshll.u32 %s57, 4
      %s275 = int_to_ptr.hbm [resolvable:$true] %s274
      %s276 = sshll.u32 [#allocation21], 4
      %s277 = int_to_ptr.vmem [resolvable:$true] %s276
      %282 = dma.hbm_to_vmem [thread:$0]  %s275, 1024, %s277, [#allocation20], 128, 128, 8
    $region117: #{our_model_forward.1} parent=1 // pred_fallthru
      _
    // Predicated region
    $region118: #{our_model_forward.1} parent=1 // pred_check
      _
    $region119: #{our_model_forward.1} parent=1 // pred_check_branch
      %284 = sbr.rel (0) target = $region121
    $region120: #{our_model_forward.1} parent=1 // pred_region
      %286 = vsyncadd [#allocation23], 0
      %s287 = sshll.u32 %s59, 4
      %s288 = int_to_ptr.hbm [resolvable:$true] %s287
      %s289 = sshll.u32 [#allocation22], 4
      %s290 = int_to_ptr.vmem [resolvable:$true] %s289
      %295 = dma.hbm_to_vmem [thread:$0]  %s288, 32, %s290, [#allocation23], 16, 16, 1
    $region121: #{our_model_forward.1} parent=1 // pred_fallthru
      _
    // Predicated region
    $region122: #{our_model_forward.1} parent=1 // pred_check
      _
    $region123: #{our_model_forward.1} parent=1 // pred_check_branch
      %297 = sbr.rel (0) target = $region125
    $region124: #{our_model_forward.1} parent=1 // pred_region
      %299 = vsyncadd [#allocation23], 0
      %s300 = sshll.u32 %s61, 4
      %s301 = int_to_ptr.hbm [resolvable:$true] %s300
      %s302 = sshll.u32 [#allocation24], 4
      %s303 = int_to_ptr.vmem [resolvable:$true] %s302
      %308 = dma.hbm_to_vmem [thread:$0]  %s301, 1024, %s303, [#allocation23], 128, 128, 8
    $region125: #{our_model_forward.1} parent=1 // pred_fallthru
      _
    // Predicated region
    $region126: #{our_model_forward.1} parent=1 // pred_check
      _
    $region127: #{our_model_forward.1} parent=1 // pred_check_branch
      %310 = sbr.rel (0) target = $region129
    $region128: #{our_model_forward.1} parent=1 // pred_region
      %312 = vsyncadd [#allocation26], 0
      %s313 = sshll.u32 %s63, 4
      %s314 = int_to_ptr.hbm [resolvable:$true] %s313
      %s315 = sshll.u32 [#allocation25], 4
      %s316 = int_to_ptr.vmem [resolvable:$true] %s315
      %321 = dma.hbm_to_vmem [thread:$0]  %s314, 32, %s316, [#allocation26], 16, 16, 1
    $region129: #{our_model_forward.1} parent=1 // pred_fallthru
      _
    // Predicated region
    $region130: #{our_model_forward.1} parent=1 // pred_check
      _
    $region131: #{our_model_forward.1} parent=1 // pred_check_branch
      %323 = sbr.rel (0) target = $region133
    $region132: #{our_model_forward.1} parent=1 // pred_region
      %325 = vsyncadd [#allocation26], 0
      %s326 = sshll.u32 %s65, 4
      %s327 = int_to_ptr.hbm [resolvable:$true] %s326
      %s328 = sshll.u32 [#allocation27], 4
      %s329 = int_to_ptr.vmem [resolvable:$true] %s328
      %334 = dma.hbm_to_vmem [thread:$0]  %s327, 1024, %s329, [#allocation26], 128, 128, 8
    $region133: #{our_model_forward.1} parent=1 // pred_fallthru
      _
    // Predicated region
    $region134: #{our_model_forward.1} parent=1 // pred_check
      _
    $region135: #{our_model_forward.1} parent=1 // pred_check_branch
      %336 = sbr.rel (0) target = $region137
    $region136: #{our_model_forward.1} parent=1 // pred_region
      %338 = vsyncadd [#allocation29], 0
      %s339 = sshll.u32 %s67, 4
      %s340 = int_to_ptr.hbm [resolvable:$true] %s339
      %s341 = sshll.u32 [#allocation28], 4
      %s342 = int_to_ptr.vmem [resolvable:$true] %s341
      %347 = dma.hbm_to_vmem [thread:$0]  %s340, 32, %s342, [#allocation29], 16, 16, 1
    $region137: #{our_model_forward.1} parent=1 // pred_fallthru
      _
    // Predicated region
    $region138: #{our_model_forward.1} parent=1 // pred_check
      _
    $region139: #{our_model_forward.1} parent=1 // pred_check_branch
      %349 = sbr.rel (0) target = $region141
    $region140: #{our_model_forward.1} parent=1 // pred_region
      _
    $region141: #{our_model_forward.1} parent=1 // pred_fallthru
      _
    // Predicated region
    $region142: #{our_model_forward.1} parent=1 // pred_check
      _
    $region143: #{our_model_forward.1} parent=1 // pred_check_branch
      %351 = sbr.rel (0) target = $region145
    $region144: #{our_model_forward.1} parent=1 // pred_region
      %353 = vsyncadd [#allocation29], 0
      %s355 = sshll.u32 %s71, 4
      %s356 = int_to_ptr.hbm [resolvable:$true] %s355
      %s357 = sshll.u32 [#allocation30], 4
      %s358 = int_to_ptr.vmem [resolvable:$true] %s357
      %360 = dma.hbm_to_vmem [thread:$0]  %s356, 16, %s358, [#allocation29]
    $region145: #{our_model_forward.1} parent=1 // pred_fallthru
      _
    // Predicated region
    $region146: #{our_model_forward.1} parent=1 // pred_check
      _
    $region147: #{our_model_forward.1} parent=1 // pred_check_branch
      %362 = sbr.rel (0) target = $region149
    $region148: #{our_model_forward.1} parent=1 // pred_region
      _
    $region149: #{our_model_forward.1} parent=1 // pred_fallthru
      _
    // Predicated region
    $region150: #{our_model_forward.1} parent=1 // pred_check
      _
    $region151: #{our_model_forward.1} parent=1 // pred_check_branch
      %364 = sbr.rel (0) target = $region153
    $region152: #{our_model_forward.1} parent=1 // pred_region
      %366 = dma.done [#allocation3], 1024
    $region153: #{our_model_forward.1} parent=1 // pred_fallthru
      _
    // Predicated region
    $region154: #{our_model_forward.1} parent=1 // pred_check
      _
    $region155: #{our_model_forward.1} parent=1 // pred_check_branch
      %368 = sbr.rel (0) target = $region157
    $region156: #{our_model_forward.1} parent=1 // pred_region
      %370 = dma.done [#allocation5], 1024
    $region157: #{our_model_forward.1} parent=1 // pred_fallthru
      _
    // Predicated region
    $region158: #{our_model_forward.1} parent=1 // pred_check
      _
    $region159: #{our_model_forward.1} parent=1 // pred_check_branch
      %372 = sbr.rel (0) target = $region161
    $region160: #{our_model_forward.1} parent=1 // pred_region
      %374 = dma.done [#allocation5], 1024
    $region161: #{our_model_forward.1} parent=1 // pred_fallthru
      _
    // Predicated region
    $region162: #{our_model_forward.1} parent=1 // pred_check
      _
    $region163: #{our_model_forward.1} parent=1 // pred_check_branch
      %376 = sbr.rel (0) target = $region165
    $region164: #{our_model_forward.1} parent=1 // pred_region
      %378 = dma.done [#allocation8], 1024
    $region165: #{our_model_forward.1} parent=1 // pred_fallthru
      _
    // Predicated region
    $region166: #{our_model_forward.1} parent=1 // pred_check
      _
    $region167: #{our_model_forward.1} parent=1 // pred_check_branch
      %380 = sbr.rel (0) target = $region169
    $region168: #{our_model_forward.1} parent=1 // pred_region
      %382 = dma.done [#allocation8], 1024
    $region169: #{our_model_forward.1} parent=1 // pred_fallthru
      _
    // Predicated region
    $region170: #{our_model_forward.1} parent=1 // pred_check
      _
    $region171: #{our_model_forward.1} parent=1 // pred_check_branch
      %384 = sbr.rel (0) target = $region173
    $region172: #{our_model_forward.1} parent=1 // pred_region
      %386 = dma.done [#allocation11], 16
    $region173: #{our_model_forward.1} parent=1 // pred_fallthru
      _
    // Predicated region
    $region174: #{our_model_forward.1} parent=1 // pred_check
      _
    $region175: #{our_model_forward.1} parent=1 // pred_check_branch
      %388 = sbr.rel (0) target = $region177
    $region176: #{our_model_forward.1} parent=1 // pred_region
      %390 = dma.done [#allocation11], 512
    $region177: #{our_model_forward.1} parent=1 // pred_fallthru
      _
    // Predicated region
    $region178: #{our_model_forward.1} parent=1 // pred_check
      _
    $region179: #{our_model_forward.1} parent=1 // pred_check_branch
      %392 = sbr.rel (0) target = $region181
    $region180: #{our_model_forward.1} parent=1 // pred_region
      %394 = dma.done [#allocation14], 16
    $region181: #{our_model_forward.1} parent=1 // pred_fallthru
      _
    // Predicated region
    $region182: #{our_model_forward.1} parent=1 // pred_check
      _
    $region183: #{our_model_forward.1} parent=1 // pred_check_branch
      %396 = sbr.rel (0) target = $region185
    $region184: #{our_model_forward.1} parent=1 // pred_region
      %398 = dma.done [#allocation14], 512
    $region185: #{our_model_forward.1} parent=1 // pred_fallthru
      _
    // Predicated region
    $region186: #{our_model_forward.1} parent=1 // pred_check
      _
    $region187: #{our_model_forward.1} parent=1 // pred_check_branch
      %400 = sbr.rel (0) target = $region189
    $region188: #{our_model_forward.1} parent=1 // pred_region
      %402 = dma.done [#allocation17], 16
    $region189: #{our_model_forward.1} parent=1 // pred_fallthru
      _
    // Predicated region
    $region190: #{our_model_forward.1} parent=1 // pred_check
      _
    $region191: #{our_model_forward.1} parent=1 // pred_check_branch
      %404 = sbr.rel (0) target = $region193
    $region192: #{our_model_forward.1} parent=1 // pred_region
      %406 = dma.done [#allocation17], 512
    $region193: #{our_model_forward.1} parent=1 // pred_fallthru
      _
    // Predicated region
    $region194: #{our_model_forward.1} parent=1 // pred_check
      _
    $region195: #{our_model_forward.1} parent=1 // pred_check_branch
      %408 = sbr.rel (0) target = $region197
    $region196: #{our_model_forward.1} parent=1 // pred_region
      %410 = dma.done [#allocation20], 16
    $region197: #{our_model_forward.1} parent=1 // pred_fallthru
      _
    // Predicated region
    $region198: #{our_model_forward.1} parent=1 // pred_check
      _
    $region199: #{our_model_forward.1} parent=1 // pred_check_branch
      %412 = sbr.rel (0) target = $region201
    $region200: #{our_model_forward.1} parent=1 // pred_region
      %414 = dma.done [#allocation20], 1024
    $region201: #{our_model_forward.1} parent=1 // pred_fallthru
      _
    // Predicated region
    $region202: #{our_model_forward.1} parent=1 // pred_check
      _
    $region203: #{our_model_forward.1} parent=1 // pred_check_branch
      %416 = sbr.rel (0) target = $region205
    $region204: #{our_model_forward.1} parent=1 // pred_region
      %418 = dma.done [#allocation23], 32
    $region205: #{our_model_forward.1} parent=1 // pred_fallthru
      _
    // Predicated region
    $region206: #{our_model_forward.1} parent=1 // pred_check
      _
    $region207: #{our_model_forward.1} parent=1 // pred_check_branch
      %420 = sbr.rel (0) target = $region209
    $region208: #{our_model_forward.1} parent=1 // pred_region
      %422 = dma.done [#allocation23], 1024
    $region209: #{our_model_forward.1} parent=1 // pred_fallthru
      _
    // Predicated region
    $region210: #{our_model_forward.1} parent=1 // pred_check
      _
    $region211: #{our_model_forward.1} parent=1 // pred_check_branch
      %424 = sbr.rel (0) target = $region213
    $region212: #{our_model_forward.1} parent=1 // pred_region
      %426 = dma.done [#allocation26], 32
    $region213: #{our_model_forward.1} parent=1 // pred_fallthru
      _
    // Predicated region
    $region214: #{our_model_forward.1} parent=1 // pred_check
      _
    $region215: #{our_model_forward.1} parent=1 // pred_check_branch
      %428 = sbr.rel (0) target = $region217
    $region216: #{our_model_forward.1} parent=1 // pred_region
      %430 = dma.done [#allocation26], 1024
    $region217: #{our_model_forward.1} parent=1 // pred_fallthru
      _
    // Predicated region
    $region218: #{our_model_forward.1} parent=1 // pred_check
      _
    $region219: #{our_model_forward.1} parent=1 // pred_check_branch
      %432 = sbr.rel (0) target = $region221
    $region220: #{our_model_forward.1} parent=1 // pred_region
      %434 = dma.done [#allocation29], 32
    $region221: #{our_model_forward.1} parent=1 // pred_fallthru
      _
    // Predicated region
    $region222: #{our_model_forward.1} parent=1 // pred_check
      _
    $region223: #{our_model_forward.1} parent=1 // pred_check_branch
      %436 = sbr.rel (0) target = $region225
    $region224: #{our_model_forward.1} parent=1 // pred_region
      %438 = dma.done [#allocation29], 16
    $region225: #{our_model_forward.1} parent=1 // pred_fallthru
      _
    %v439 = vld [vmem:[%s1] sm:$0xff]
    %v440 = vld [vmem:[%s1 + $0x8] sm:$0xff]
    %v441 = vld [vmem:[%s3] sm:$0xff]
    %v442 = vld [vmem:[%s5] sm:$0x1]
    %v444 = vperm.slane %v442, 0
    %vm446 = vcmask 64512
    %v448 = vsel %vm446, %v439, 0
    %v451 = vsel %vm446, %v440, 0
    %453 = vmatpush.msra.mxu0 0.0
    %454 = vmatpush.msra.mxu0 0.0
    %455 = vmatpush.msra.mxu0 0.0
    %456 = vmatpush.msra.mxu0 0.0
    %457 = vmatpush.msra.mxu0 0.0
    %458 = vmatpush.msra.mxu0 0.0
    %459 = vmatpush.msra.mxu0 0.0
    %460 = vmatpush.msra.mxu0 0.0
    %461 = vmatpush.msra.mxu0 0.0
    %462 = vmatpush.msra.mxu0 0.0
    %463 = vmatpush.msra.mxu0 0.0
    %464 = vmatpush.msra.mxu0 0.0
    %465 = vmatpush.msra.mxu0 0.0
    %466 = vmatpush.msra.mxu0 0.0
    %467 = vmatpush.msra.mxu0 0.0
    %468 = vmatpush.msra.mxu0 %v441
    %469 = vmatmul.f32.gmra.mxu0 %v448
    %v470 = vpop.f32.mrf.mxu0
    %v471 = vadd.f32 %v444, %v470
    %472 = vmatmul.f32.gmra.mxu0 %v451
    %v473 = vpop.f32.mrf.mxu0
    %v474 = vadd.f32 %v444, %v473
    %475 = vdwg.mxu0
    %v476 = vld [vmem:[%s7] sm:$0x3]
    %v477 = vlaneseq
    %v478 = vshrl.u32 %v477, 7
    %v479 = vadd.s32 %v478, 8
    %v480 = vperm.slane %v476, 1
    %vm481 = vcmp.eq.s32.totalorder %v478, %v480
    %vm482 = vcmp.eq.s32.totalorder %v479, %v480
    %v483 = vsel %vm481, 1, 0
    %v484 = vsel %vm482, 1, 0
    %v485 = vcvt.s32.f32 %v483
    %v486 = vcvt.s32.f32 %v484
    %v487 = vperm.slane %v476, 0
    %vm488 = vcmp.eq.s32.totalorder %v478, %v487
    %vm489 = vcmp.eq.s32.totalorder %v479, %v487
    %v490 = vsel %vm488, 1, 0
    %v491 = vsel %vm489, 1, 0
    %v492 = vcvt.s32.f32 %v490
    %v493 = vcvt.s32.f32 %v491
    %v494 = vlaneseq
    %v495 = vand.u32 %v494, 127
    %vm496 = vcmp.eq.s32.totalorder %v478, %v495
    %vm497 = vcmp.eq.s32.totalorder %v479, %v495
    %v498 = vsel %vm496, 1, 0
    %v499 = vsel %vm497, 1, 0
    %v500 = vcvt.s32.f32 %v498
    %v501 = vcvt.s32.f32 %v499
    %vm502 = vcmask 195584
    %v504 = vsel %vm502, %v485, 0
    %v507 = vsel %vm502, %v486, 0
    %v510 = vsel %vm502, %v492, 0
    %v513 = vsel %vm502, %v493, 0
    %515 = vmatpush.xpose.msra.mxu0 0.0
    %516 = vmatpush.xpose.msra.mxu0 0.0
    %517 = vmatpush.xpose.msra.mxu0 0.0
    %518 = vmatpush.xpose.msra.mxu0 0.0
    %519 = vmatpush.xpose.msra.mxu0 0.0
    %520 = vmatpush.xpose.msra.mxu0 0.0
    %521 = vmatpush.xpose.msra.mxu0 0.0
    %522 = vmatpush.xpose.msra.mxu0 0.0
    %523 = vmatpush.xpose.msra.mxu0 0.0
    %524 = vmatpush.xpose.msra.mxu0 0.0
    %525 = vmatpush.xpose.msra.mxu0 0.0
    %526 = vmatpush.xpose.msra.mxu0 0.0
    %527 = vmatpush.xpose.msra.mxu0 0.0
    %528 = vmatpush.xpose.msra.mxu0 0.0
    %529 = vmatpush.xpose.msra.mxu0 %v513
    %530 = vmatpush.xpose.msra.mxu0 %v510
    %531 = vmatmul.f32.gmra.mxu0 %v504
    %v532 = vpop.f32.mrf.mxu0
    %v533 = vadd.f32 %v500, %v532
    %534 = vmatmul.f32.gmra.mxu0 %v507
    %v535 = vpop.f32.mrf.mxu0
    %v536 = vadd.f32 %v501, %v535
    %537 = vdwg.mxu0
    %v538 = vld [vmem:[%s11] sm:$0xff]
    %v539 = vld [vmem:[%s11 + $0x8] sm:$0xff]
    %v540 = vld [vmem:[%s11 + $0x10] sm:$0xff]
    %v541 = vld [vmem:[%s11 + $0x18] sm:$0xff]
    %vm542 = vcmask 261120
    %v544 = vsel %vm542, %v471, 0
    %v547 = vsel %vm542, %v474, 0
    %549 = vmatpush.msra.mxu0 0.0
    %550 = vmatpush.msra.mxu0 0.0
    %551 = vmatpush.msra.mxu0 0.0
    %552 = vmatpush.msra.mxu0 0.0
    %553 = vmatpush.msra.mxu0 0.0
    %554 = vmatpush.msra.mxu0 0.0
    %555 = vmatpush.msra.mxu0 0.0
    %556 = vmatpush.msra.mxu0 0.0
    %557 = vmatpush.msra.mxu0 0.0
    %558 = vmatpush.msra.mxu0 0.0
    %559 = vmatpush.msra.mxu0 0.0
    %560 = vmatpush.msra.mxu0 0.0
    %561 = vmatpush.msra.mxu0 %v541
    %562 = vmatpush.msra.mxu0 %v540
    %563 = vmatpush.msra.mxu0 %v539
    %564 = vmatpush.msra.mxu0 %v538
    %565 = vmatmul.f32.gmra.mxu0 %v544
    %v566 = vpop.f32.mrf.mxu0
    %v567 = vadd.f32 0.0, %v566
    %568 = vmatmul.f32.gmra.mxu0 %v547
    %v569 = vpop.f32.mrf.mxu0
    %v570 = vadd.f32 0.0, %v569
    %571 = vdwg.mxu0
    %v572 = vld [vmem:[%s13] sm:$0xff]
    %v573 = vld [vmem:[%s13 + $0x8] sm:$0xff]
    %v574 = vld [vmem:[%s13 + $0x10] sm:$0xff]
    %v575 = vld [vmem:[%s13 + $0x18] sm:$0xff]
    %v577 = vsel %vm542, %v567, 0
    %v580 = vsel %vm542, %v570, 0
    %582 = vmatpush.msra.mxu0 0.0
    %583 = vmatpush.msra.mxu0 0.0
    %584 = vmatpush.msra.mxu0 0.0
    %585 = vmatpush.msra.mxu0 0.0
    %586 = vmatpush.msra.mxu0 0.0
    %587 = vmatpush.msra.mxu0 0.0
    %588 = vmatpush.msra.mxu0 0.0
    %589 = vmatpush.msra.mxu0 0.0
    %590 = vmatpush.msra.mxu0 0.0
    %591 = vmatpush.msra.mxu0 0.0
    %592 = vmatpush.msra.mxu0 0.0
    %593 = vmatpush.msra.mxu0 0.0
    %594 = vmatpush.msra.mxu0 %v575
    %595 = vmatpush.msra.mxu0 %v574
    %596 = vmatpush.msra.mxu0 %v573
    %597 = vmatpush.msra.mxu0 %v572
    %598 = vmatmul.f32.gmra.mxu0 %v577
    %v599 = vpop.f32.mrf.mxu0
    %v600 = vadd.f32 0.0, %v599
    %601 = vmatmul.f32.gmra.mxu0 %v580
    %v602 = vpop.f32.mrf.mxu0
    %v603 = vadd.f32 0.0, %v602
    %604 = vdwg.mxu0
    %605 = vxpose.xlu0.b32.start [1/16] %v600, 128
    %606 = vxpose.xlu0.b32.cont [2/16] %v603, 128
    %607 = vxpose.xlu0.b32.cont [3/16] 0.0, 128
    %608 = vxpose.xlu0.b32.cont [4/16] 0.0, 128
    %609 = vxpose.xlu0.b32.cont [5/16] 0.0, 128
    %610 = vxpose.xlu0.b32.cont [6/16] 0.0, 128
    %611 = vxpose.xlu0.b32.cont [7/16] 0.0, 128
    %612 = vxpose.xlu0.b32.cont [8/16] 0.0, 128
    %613 = vxpose.xlu0.b32.cont [9/16] 0.0, 128
    %614 = vxpose.xlu0.b32.cont [10/16] 0.0, 128
    %615 = vxpose.xlu0.b32.cont [11/16] 0.0, 128
    %616 = vxpose.xlu0.b32.cont [12/16] 0.0, 128
    %617 = vxpose.xlu0.b32.cont [13/16] 0.0, 128
    %618 = vxpose.xlu0.b32.cont [14/16] 0.0, 128
    %619 = vxpose.xlu0.b32.cont [15/16] 0.0, 128
    %620 = vxpose.xlu0.b32.end [16/16] 0.0, 128
    %v621 = vpop.trf.xlu0
    %v622 = vpop.trf.xlu0
    %v623 = vpop.trf.xlu0
    %v624 = vpop.trf.xlu0
    %v625 = vpop.trf.xlu0
    %v626 = vpop.trf.xlu0
    %v627 = vpop.trf.xlu0
    %v628 = vpop.trf.xlu0
    %v629 = vpop.trf.xlu0
    %v630 = vpop.trf.xlu0
    %v631 = vpop.trf.xlu0
    %v632 = vpop.trf.xlu0
    %v633 = vpop.trf.xlu0
    %v634 = vpop.trf.xlu0
    %v635 = vpop.trf.xlu0
    %v636 = vpop.trf.xlu0
    %638 = vset.pattern.permute.xlu0 1
    %639 = vperm.xlu0 %638, %v600
    %v640 = vpop.permute.xlu0 %639
    %643 = vset.pattern.permute.xlu0 1
    %644 = vperm.xlu0 %643, %v603
    %v645 = vpop.permute.xlu0 %644
    %v647 = vperm.slane %v621, 0
    %v648 = vadd.f32 %v640, %v647
    %v649 = vadd.f32 %v645, %v647
    %vm650 = vcmp.gt.f32.partialorder %v648, 0.0
    %vm651 = vcmp.gt.f32.partialorder %v649, 0.0
    %v652 = vmul.f32 %v648, 0.2
    %v653 = vmul.f32 %v649, 0.2
    %v654 = vsel %vm650, %v648, %v652
    %v655 = vsel %vm651, %v649, %v653
    %vm656 = vcmp.gt.f32.partialorder %v533, 0.0
    %vm657 = vcmp.gt.f32.partialorder %v536, 0.0
    %v658 = vsel %vm656, %v654, -1e+09
    %v659 = vsel %vm657, %v655, -1e+09
    %vm660 = vcmask 130048
    %v661 = vsel %vm660, %v658, -inf
    %662 = vmax.xlane.f32.xlu0 %v661
    %v663 = vpop.xlane.xlu0 %662
    %v664 = vsel %vm660, %v659, -inf
    %665 = vmax.xlane.f32.xlu0 %v664
    %v666 = vpop.xlane.xlu0 %665
    %v667 = vsub.f32 %v658, %v663
    %v668 = vsub.f32 %v659, %v666
    %v669 = vmul.f32 %v667, 1.442695
    %v670 = vpow.pop %v669
    %v671 = vmul.f32 %v668, 1.442695
    %v672 = vpow.pop %v671
    %v673 = vsel %vm660, %v670, 0.0
    %674 = vadd.xlane.f32.xlu0 %v673
    %v675 = vpop.xlane.xlu0 %674
    %v676 = vsel %vm660, %v672, 0.0
    %677 = vadd.xlane.f32.xlu0 %v676
    %v678 = vpop.xlane.xlu0 %677
    %v679 = vrcp.pop %v675
    %v680 = vrcp.pop %v678
    %v681 = vmul.f32 %v670, %v679
    %v682 = vmul.f32 %v672, %v680
    %v683 = vld [vmem:[%s15] sm:$0x1]
    %v685 = vperm.slane %v683, 0
    %v688 = vsel %vm660, %v681, 0
    %v691 = vsel %vm660, %v682, 0
    %693 = vmatpush.msra.mxu0 0.0
    %694 = vmatpush.msra.mxu0 0.0
    %695 = vmatpush.msra.mxu0 0.0
    %696 = vmatpush.msra.mxu0 0.0
    %697 = vmatpush.msra.mxu0 0.0
    %698 = vmatpush.msra.mxu0 0.0
    %699 = vmatpush.msra.mxu0 0.0
    %700 = vmatpush.msra.mxu0 0.0
    %701 = vmatpush.msra.mxu0 0.0
    %702 = vmatpush.msra.mxu0 0.0
    %703 = vmatpush.msra.mxu0 0.0
    %704 = vmatpush.msra.mxu0 0.0
    %705 = vmatpush.msra.mxu0 0.0
    %706 = vmatpush.msra.mxu0 0.0
    %707 = vmatpush.msra.mxu0 %v570
    %708 = vmatpush.msra.mxu0 %v567
    %709 = vmatmul.f32.gmra.mxu0 %v688
    %v710 = vpop.f32.mrf.mxu0
    %v711 = vadd.f32 %v685, %v710
    %712 = vmatmul.f32.gmra.mxu0 %v691
    %v713 = vpop.f32.mrf.mxu0
    %v714 = vadd.f32 %v685, %v713
    %715 = vdwg.mxu0
    %v716 = vld [vmem:[%s9] sm:$0xff]
    %v717 = vld [vmem:[%s9 + $0x8] sm:$0xff]
    %718 = vset.pattern.permute.xlu0 0
    %719 = vperm.xlu0 %718, %v716
    %v720 = vpop.permute.xlu0 %719
    %721 = vset.pattern.permute.xlu0 0
    %722 = vperm.xlu0 %721, %v717
    %v723 = vpop.permute.xlu0 %722
    %vm724 = vcmp.eq.s32.totalorder %v720, %v495
    %vm725 = vcmp.eq.s32.totalorder %v723, %v495
    %v726 = vsel %vm724, 1, 0
    %v727 = vsel %vm725, 1, 0
    %v728 = vcvt.s32.f32 %v726
    %v729 = vcvt.s32.f32 %v727
    %v731 = vsel %vm660, %v728, 0
    %v734 = vsel %vm660, %v729, 0
    %736 = vmatpush.msra.mxu0 0.0
    %737 = vmatpush.msra.mxu0 0.0
    %738 = vmatpush.msra.mxu0 0.0
    %739 = vmatpush.msra.mxu0 0.0
    %740 = vmatpush.msra.mxu0 0.0
    %741 = vmatpush.msra.mxu0 0.0
    %742 = vmatpush.msra.mxu0 0.0
    %743 = vmatpush.msra.mxu0 0.0
    %744 = vmatpush.msra.mxu0 0.0
    %745 = vmatpush.msra.mxu0 0.0
    %746 = vmatpush.msra.mxu0 0.0
    %747 = vmatpush.msra.mxu0 0.0
    %748 = vmatpush.msra.mxu0 0.0
    %749 = vmatpush.msra.mxu0 0.0
    %750 = vmatpush.msra.mxu0 %v714
    %751 = vmatpush.msra.mxu0 %v711
    %752 = vmatmul.f32.gmra.mxu0 %v731
    %v753 = vpop.f32.mrf.mxu0
    %v754 = vadd.f32 0.0, %v753
    %755 = vmatmul.f32.gmra.mxu0 %v734
    %v756 = vpop.f32.mrf.mxu0
    %v757 = vadd.f32 0.0, %v756
    %758 = vdwg.mxu0
    %v759 = vld [vmem:[%s17] sm:$0x1]
    %v761 = vperm.slane %v759, 0
    %vm763 = vcmask 1040384
    %v764 = vsel %vm763, %v759, %v761
    %v765 = vld [vmem:[%s19] sm:$0xff]
    %v766 = vld [vmem:[%s19 + $0x8] sm:$0xff]
    %v767 = vld [vmem:[%s19 + $0x10] sm:$0xff]
    %v768 = vld [vmem:[%s19 + $0x18] sm:$0xff]
    %v769 = vld [vmem:[%s21] sm:$0x1]
    %v770 = vld [vmem:[#allocation2] sm:$0xff]
    %v771 = vld [vmem:[#allocation2 + $0x8] sm:$0xff]
    %v772 = vld [vmem:[#allocation2 + $0x10] sm:$0xff]
    %v773 = vld [vmem:[#allocation2 + $0x18] sm:$0xff]
    %v774 = vld [vmem:[%s25] sm:$0x1]
    %v775 = vld [vmem:[#allocation4] sm:$0xff]
    %v776 = vld [vmem:[#allocation4 + $0x8] sm:$0xff]
    %v777 = vld [vmem:[#allocation4 + $0x10] sm:$0xff]
    %v778 = vld [vmem:[#allocation4 + $0x18] sm:$0xff]
    %v779 = vld [vmem:[%s29] sm:$0x1]
    %v781 = vperm.slane %v769, 0
    %v784 = vsel %vm542, %v764, 0
    %786 = vmatpush.msra.mxu0 0.0
    %787 = vmatpush.msra.mxu0 0.0
    %788 = vmatpush.msra.mxu0 0.0
    %789 = vmatpush.msra.mxu0 0.0
    %790 = vmatpush.msra.mxu0 0.0
    %791 = vmatpush.msra.mxu0 0.0
    %792 = vmatpush.msra.mxu0 0.0
    %793 = vmatpush.msra.mxu0 0.0
    %794 = vmatpush.msra.mxu0 0.0
    %795 = vmatpush.msra.mxu0 0.0
    %796 = vmatpush.msra.mxu0 0.0
    %797 = vmatpush.msra.mxu0 0.0
    %798 = vmatpush.msra.mxu0 %v768
    %799 = vmatpush.msra.mxu0 %v767
    %800 = vmatpush.msra.mxu0 %v766
    %801 = vmatpush.msra.mxu0 %v765
    %802 = vmatmul.f32.gmra.mxu0 %v784
    %v803 = vpop.f32.mrf.mxu0
    %v804 = vadd.f32 %v781, %v803
    %805 = vdwg.mxu0
    %v807 = vperm.slane %v774, 0
    %v810 = vsel %vm542, %v754, 0
    %v813 = vsel %vm542, %v757, 0
    %815 = vmatpush.msra.mxu0 0.0
    %816 = vmatpush.msra.mxu0 0.0
    %817 = vmatpush.msra.mxu0 0.0
    %818 = vmatpush.msra.mxu0 0.0
    %819 = vmatpush.msra.mxu0 0.0
    %820 = vmatpush.msra.mxu0 0.0
    %821 = vmatpush.msra.mxu0 0.0
    %822 = vmatpush.msra.mxu0 0.0
    %823 = vmatpush.msra.mxu0 0.0
    %824 = vmatpush.msra.mxu0 0.0
    %825 = vmatpush.msra.mxu0 0.0
    %826 = vmatpush.msra.mxu0 0.0
    %827 = vmatpush.msra.mxu0 %v773
    %828 = vmatpush.msra.mxu0 %v772
    %829 = vmatpush.msra.mxu0 %v771
    %830 = vmatpush.msra.mxu0 %v770
    %831 = vmatmul.f32.gmra.mxu0 %v810
    %v832 = vpop.f32.mrf.mxu0
    %v833 = vadd.f32 %v807, %v832
    %834 = vmatmul.f32.gmra.mxu0 %v813
    %v835 = vpop.f32.mrf.mxu0
    %v836 = vadd.f32 %v807, %v835
    %837 = vdwg.mxu0
    %v839 = vsel %vm446, %v804, 0
    %v842 = vsel %vm446, %v833, 0
    %844 = vmatpush.xpose.msra.mxu0 0.0
    %845 = vmatpush.xpose.msra.mxu0 0.0
    %846 = vmatpush.xpose.msra.mxu0 0.0
    %847 = vmatpush.xpose.msra.mxu0 0.0
    %848 = vmatpush.xpose.msra.mxu0 0.0
    %849 = vmatpush.xpose.msra.mxu0 0.0
    %850 = vmatpush.xpose.msra.mxu0 0.0
    %851 = vmatpush.xpose.msra.mxu0 0.0
    %852 = vmatpush.xpose.msra.mxu0 0.0
    %853 = vmatpush.xpose.msra.mxu0 0.0
    %854 = vmatpush.xpose.msra.mxu0 0.0
    %855 = vmatpush.xpose.msra.mxu0 0.0
    %856 = vmatpush.xpose.msra.mxu0 0.0
    %857 = vmatpush.xpose.msra.mxu0 0.0
    %858 = vmatpush.xpose.msra.mxu0 0.0
    %859 = vmatpush.xpose.msra.mxu0 %v842
    %860 = vmatmul.f32.gmra.mxu0 %v839
    %v861 = vpop.f32.mrf.mxu0
    %v862 = vadd.f32 0.0, %v861
    %863 = vdwg.mxu0
    %v864 = vmul.f32 %v862, 0.17677669
    %vm865 = vcmask 57344
    %v866 = vsel %vm865, %v864, -inf
    %867 = vmax.xlane.f32.xlu0 %v866
    %v868 = vpop.xlane.xlu0 %867
    %v869 = vsub.f32 %v864, %v868
    %v870 = vmul.f32 %v869, 1.442695
    %v871 = vpow.pop %v870
    %v872 = vsel %vm865, %v871, 0.0
    %873 = vadd.xlane.f32.xlu0 %v872
    %v874 = vpop.xlane.xlu0 %873
    %v875 = vrcp.pop %v874
    %v876 = vmul.f32 %v871, %v875
    %877 = vrot.lane.b32.xlu0 %v833, 96
    %v878 = vpop.permute.xlu0 %877
    %v881 = vsel %vm446, %v876, 0
    %883 = vmatpush.msra.mxu0 0.0
    %884 = vmatpush.msra.mxu0 0.0
    %885 = vmatpush.msra.mxu0 0.0
    %886 = vmatpush.msra.mxu0 0.0
    %887 = vmatpush.msra.mxu0 0.0
    %888 = vmatpush.msra.mxu0 0.0
    %889 = vmatpush.msra.mxu0 0.0
    %890 = vmatpush.msra.mxu0 0.0
    %891 = vmatpush.msra.mxu0 0.0
    %892 = vmatpush.msra.mxu0 0.0
    %893 = vmatpush.msra.mxu0 0.0
    %894 = vmatpush.msra.mxu0 0.0
    %895 = vmatpush.msra.mxu0 0.0
    %896 = vmatpush.msra.mxu0 0.0
    %897 = vmatpush.msra.mxu0 0.0
    %898 = vmatpush.msra.mxu0 %v878
    %899 = vmatmul.f32.gmra.mxu0 %v881
    %v900 = vpop.f32.mrf.mxu0
    %v901 = vadd.f32 0.0, %v900
    %902 = vdwg.mxu0
    %v903 = vadd.f32 %v804, %v901
    %904 = vrot.lane.b32.xlu0 %v804, 120
    %v905 = vpop.permute.xlu0 %904
    %906 = vrot.lane.b32.xlu0 %v833, 120
    %v907 = vpop.permute.xlu0 %906
    %v908 = vsel %vm446, %v905, 0
    %v910 = vsel %vm446, %v907, 0
    %912 = vmatpush.xpose.msra.mxu0 0.0
    %913 = vmatpush.xpose.msra.mxu0 0.0
    %914 = vmatpush.xpose.msra.mxu0 0.0
    %915 = vmatpush.xpose.msra.mxu0 0.0
    %916 = vmatpush.xpose.msra.mxu0 0.0
    %917 = vmatpush.xpose.msra.mxu0 0.0
    %918 = vmatpush.xpose.msra.mxu0 0.0
    %919 = vmatpush.xpose.msra.mxu0 0.0
    %920 = vmatpush.xpose.msra.mxu0 0.0
    %921 = vmatpush.xpose.msra.mxu0 0.0
    %922 = vmatpush.xpose.msra.mxu0 0.0
    %923 = vmatpush.xpose.msra.mxu0 0.0
    %924 = vmatpush.xpose.msra.mxu0 0.0
    %925 = vmatpush.xpose.msra.mxu0 0.0
    %926 = vmatpush.xpose.msra.mxu0 0.0
    %927 = vmatpush.xpose.msra.mxu0 %v910
    %928 = vmatmul.f32.gmra.mxu0 %v908
    %v929 = vpop.f32.mrf.mxu0
    %v930 = vadd.f32 0.0, %v929
    %931 = vdwg.mxu0
    %v932 = vmul.f32 %v930, 0.17677669
    %v933 = vsel %vm865, %v932, -inf
    %934 = vmax.xlane.f32.xlu0 %v933
    %v935 = vpop.xlane.xlu0 %934
    %v936 = vsub.f32 %v932, %v935
    %v937 = vmul.f32 %v936, 1.442695
    %v938 = vpow.pop %v937
    %v939 = vsel %vm865, %v938, 0.0
    %940 = vadd.xlane.f32.xlu0 %v939
    %v941 = vpop.xlane.xlu0 %940
    %v942 = vrcp.pop %v941
    %v943 = vmul.f32 %v938, %v942
    %944 = vrot.lane.b32.xlu0 %v833, 88
    %v945 = vpop.permute.xlu0 %944
    %v948 = vsel %vm446, %v943, 0
    %950 = vmatpush.msra.mxu0 0.0
    %951 = vmatpush.msra.mxu0 0.0
    %952 = vmatpush.msra.mxu0 0.0
    %953 = vmatpush.msra.mxu0 0.0
    %954 = vmatpush.msra.mxu0 0.0
    %955 = vmatpush.msra.mxu0 0.0
    %956 = vmatpush.msra.mxu0 0.0
    %957 = vmatpush.msra.mxu0 0.0
    %958 = vmatpush.msra.mxu0 0.0
    %959 = vmatpush.msra.mxu0 0.0
    %960 = vmatpush.msra.mxu0 0.0
    %961 = vmatpush.msra.mxu0 0.0
    %962 = vmatpush.msra.mxu0 0.0
    %963 = vmatpush.msra.mxu0 0.0
    %964 = vmatpush.msra.mxu0 0.0
    %965 = vmatpush.msra.mxu0 %v945
    %966 = vmatmul.f32.gmra.mxu0 %v948
    %v967 = vpop.f32.mrf.mxu0
    %v968 = vadd.f32 0.0, %v967
    %969 = vdwg.mxu0
    %971 = vrot.lane.b32.xlu0 %v968, 8
    %v972 = vpop.permute.xlu0 %971
    %v974 = vadd.f32 %v804, %v972
    %975 = vrot.lane.b32.xlu0 %v804, 112
    %v976 = vpop.permute.xlu0 %975
    %977 = vrot.lane.b32.xlu0 %v833, 112
    %v978 = vpop.permute.xlu0 %977
    %v979 = vsel %vm446, %v976, 0
    %v981 = vsel %vm446, %v978, 0
    %983 = vmatpush.xpose.msra.mxu0 0.0
    %984 = vmatpush.xpose.msra.mxu0 0.0
    %985 = vmatpush.xpose.msra.mxu0 0.0
    %986 = vmatpush.xpose.msra.mxu0 0.0
    %987 = vmatpush.xpose.msra.mxu0 0.0
    %988 = vmatpush.xpose.msra.mxu0 0.0
    %989 = vmatpush.xpose.msra.mxu0 0.0
    %990 = vmatpush.xpose.msra.mxu0 0.0
    %991 = vmatpush.xpose.msra.mxu0 0.0
    %992 = vmatpush.xpose.msra.mxu0 0.0
    %993 = vmatpush.xpose.msra.mxu0 0.0
    %994 = vmatpush.xpose.msra.mxu0 0.0
    %995 = vmatpush.xpose.msra.mxu0 0.0
    %996 = vmatpush.xpose.msra.mxu0 0.0
    %997 = vmatpush.xpose.msra.mxu0 0.0
    %998 = vmatpush.xpose.msra.mxu0 %v981
    %999 = vmatmul.f32.gmra.mxu0 %v979
    %v1000 = vpop.f32.mrf.mxu0
    %v1001 = vadd.f32 0.0, %v1000
    %1002 = vdwg.mxu0
    %v1003 = vmul.f32 %v1001, 0.17677669
    %v1004 = vsel %vm865, %v1003, -inf
    %1005 = vmax.xlane.f32.xlu0 %v1004
    %v1006 = vpop.xlane.xlu0 %1005
    %v1007 = vsub.f32 %v1003, %v1006
    %v1008 = vmul.f32 %v1007, 1.442695
    %v1009 = vpow.pop %v1008
    %v1010 = vsel %vm865, %v1009, 0.0
    %1011 = vadd.xlane.f32.xlu0 %v1010
    %v1012 = vpop.xlane.xlu0 %1011
    %v1013 = vrcp.pop %v1012
    %v1014 = vmul.f32 %v1009, %v1013
    %1015 = vrot.lane.b32.xlu0 %v833, 80
    %v1016 = vpop.permute.xlu0 %1015
    %v1019 = vsel %vm446, %v1014, 0
    %1021 = vmatpush.msra.mxu0 0.0
    %1022 = vmatpush.msra.mxu0 0.0
    %1023 = vmatpush.msra.mxu0 0.0
    %1024 = vmatpush.msra.mxu0 0.0
    %1025 = vmatpush.msra.mxu0 0.0
    %1026 = vmatpush.msra.mxu0 0.0
    %1027 = vmatpush.msra.mxu0 0.0
    %1028 = vmatpush.msra.mxu0 0.0
    %1029 = vmatpush.msra.mxu0 0.0
    %1030 = vmatpush.msra.mxu0 0.0
    %1031 = vmatpush.msra.mxu0 0.0
    %1032 = vmatpush.msra.mxu0 0.0
    %1033 = vmatpush.msra.mxu0 0.0
    %1034 = vmatpush.msra.mxu0 0.0
    %1035 = vmatpush.msra.mxu0 0.0
    %1036 = vmatpush.msra.mxu0 %v1016
    %1037 = vmatmul.f32.gmra.mxu0 %v1019
    %v1038 = vpop.f32.mrf.mxu0
    %v1039 = vadd.f32 0.0, %v1038
    %1040 = vdwg.mxu0
    %1042 = vrot.lane.b32.xlu0 %v1039, 16
    %v1043 = vpop.permute.xlu0 %1042
    %v1045 = vadd.f32 %v804, %v1043
    %1046 = vrot.lane.b32.xlu0 %v804, 104
    %v1047 = vpop.permute.xlu0 %1046
    %1048 = vrot.lane.b32.xlu0 %v833, 104
    %v1049 = vpop.permute.xlu0 %1048
    %v1050 = vsel %vm446, %v1047, 0
    %v1052 = vsel %vm446, %v1049, 0
    %1054 = vmatpush.xpose.msra.mxu0 0.0
    %1055 = vmatpush.xpose.msra.mxu0 0.0
    %1056 = vmatpush.xpose.msra.mxu0 0.0
    %1057 = vmatpush.xpose.msra.mxu0 0.0
    %1058 = vmatpush.xpose.msra.mxu0 0.0
    %1059 = vmatpush.xpose.msra.mxu0 0.0
    %1060 = vmatpush.xpose.msra.mxu0 0.0
    %1061 = vmatpush.xpose.msra.mxu0 0.0
    %1062 = vmatpush.xpose.msra.mxu0 0.0
    %1063 = vmatpush.xpose.msra.mxu0 0.0
    %1064 = vmatpush.xpose.msra.mxu0 0.0
    %1065 = vmatpush.xpose.msra.mxu0 0.0
    %1066 = vmatpush.xpose.msra.mxu0 0.0
    %1067 = vmatpush.xpose.msra.mxu0 0.0
    %1068 = vmatpush.xpose.msra.mxu0 0.0
    %1069 = vmatpush.xpose.msra.mxu0 %v1052
    %1070 = vmatmul.f32.gmra.mxu0 %v1050
    %v1071 = vpop.f32.mrf.mxu0
    %v1072 = vadd.f32 0.0, %v1071
    %1073 = vdwg.mxu0
    %v1074 = vmul.f32 %v1072, 0.17677669
    %v1075 = vsel %vm865, %v1074, -inf
    %1076 = vmax.xlane.f32.xlu0 %v1075
    %v1077 = vpop.xlane.xlu0 %1076
    %v1078 = vsub.f32 %v1074, %v1077
    %v1079 = vmul.f32 %v1078, 1.442695
    %v1080 = vpow.pop %v1079
    %v1081 = vsel %vm865, %v1080, 0.0
    %1082 = vadd.xlane.f32.xlu0 %v1081
    %v1083 = vpop.xlane.xlu0 %1082
    %v1084 = vrcp.pop %v1083
    %v1085 = vmul.f32 %v1080, %v1084
    %1086 = vrot.lane.b32.xlu0 %v833, 72
    %v1087 = vpop.permute.xlu0 %1086
    %v1090 = vsel %vm446, %v1085, 0
    %1092 = vmatpush.msra.mxu0 0.0
    %1093 = vmatpush.msra.mxu0 0.0
    %1094 = vmatpush.msra.mxu0 0.0
    %1095 = vmatpush.msra.mxu0 0.0
    %1096 = vmatpush.msra.mxu0 0.0
    %1097 = vmatpush.msra.mxu0 0.0
    %1098 = vmatpush.msra.mxu0 0.0
    %1099 = vmatpush.msra.mxu0 0.0
    %1100 = vmatpush.msra.mxu0 0.0
    %1101 = vmatpush.msra.mxu0 0.0
    %1102 = vmatpush.msra.mxu0 0.0
    %1103 = vmatpush.msra.mxu0 0.0
    %1104 = vmatpush.msra.mxu0 0.0
    %1105 = vmatpush.msra.mxu0 0.0
    %1106 = vmatpush.msra.mxu0 0.0
    %1107 = vmatpush.msra.mxu0 %v1087
    %1108 = vmatmul.f32.gmra.mxu0 %v1090
    %v1109 = vpop.f32.mrf.mxu0
    %v1110 = vadd.f32 0.0, %v1109
    %1111 = vdwg.mxu0
    %1113 = vrot.lane.b32.xlu0 %v1110, 24
    %v1114 = vpop.permute.xlu0 %1113
    %v1116 = vadd.f32 %v804, %v1114
    %v1117 = vsel %vm446, %v903, %v974
    %v1118 = vsel %vm660, %v1117, %v1045
    %v1119 = vsel %vm502, %v1118, %v1116
    %v1120 = vrot.slane %v804, 1
    %v1121 = vsel %vm446, %v1120, 0
    %v1124 = vsel %vm446, %v836, 0
    %1126 = vmatpush.xpose.msra.mxu0 0.0
    %1127 = vmatpush.xpose.msra.mxu0 0.0
    %1128 = vmatpush.xpose.msra.mxu0 0.0
    %1129 = vmatpush.xpose.msra.mxu0 0.0
    %1130 = vmatpush.xpose.msra.mxu0 0.0
    %1131 = vmatpush.xpose.msra.mxu0 0.0
    %1132 = vmatpush.xpose.msra.mxu0 0.0
    %1133 = vmatpush.xpose.msra.mxu0 0.0
    %1134 = vmatpush.xpose.msra.mxu0 0.0
    %1135 = vmatpush.xpose.msra.mxu0 0.0
    %1136 = vmatpush.xpose.msra.mxu0 0.0
    %1137 = vmatpush.xpose.msra.mxu0 0.0
    %1138 = vmatpush.xpose.msra.mxu0 0.0
    %1139 = vmatpush.xpose.msra.mxu0 0.0
    %1140 = vmatpush.xpose.msra.mxu0 0.0
    %1141 = vmatpush.xpose.msra.mxu0 %v1124
    %1142 = vmatmul.f32.gmra.mxu0 %v1121
    %v1143 = vpop.f32.mrf.mxu0
    %v1144 = vadd.f32 0.0, %v1143
    %1145 = vdwg.mxu0
    %v1146 = vmul.f32 %v1144, 0.17677669
    %v1147 = vsel %vm865, %v1146, -inf
    %1148 = vmax.xlane.f32.xlu0 %v1147
    %v1149 = vpop.xlane.xlu0 %1148
    %v1150 = vsub.f32 %v1146, %v1149
    %v1151 = vmul.f32 %v1150, 1.442695
    %v1152 = vpow.pop %v1151
    %v1153 = vsel %vm865, %v1152, 0.0
    %1154 = vadd.xlane.f32.xlu0 %v1153
    %v1155 = vpop.xlane.xlu0 %1154
    %v1156 = vrcp.pop %v1155
    %v1157 = vmul.f32 %v1152, %v1156
    %1158 = vrot.lane.b32.xlu0 %v836, 96
    %v1159 = vpop.permute.xlu0 %1158
    %v1162 = vsel %vm446, %v1157, 0
    %1164 = vmatpush.msra.mxu0 0.0
    %1165 = vmatpush.msra.mxu0 0.0
    %1166 = vmatpush.msra.mxu0 0.0
    %1167 = vmatpush.msra.mxu0 0.0
    %1168 = vmatpush.msra.mxu0 0.0
    %1169 = vmatpush.msra.mxu0 0.0
    %1170 = vmatpush.msra.mxu0 0.0
    %1171 = vmatpush.msra.mxu0 0.0
    %1172 = vmatpush.msra.mxu0 0.0
    %1173 = vmatpush.msra.mxu0 0.0
    %1174 = vmatpush.msra.mxu0 0.0
    %1175 = vmatpush.msra.mxu0 0.0
    %1176 = vmatpush.msra.mxu0 0.0
    %1177 = vmatpush.msra.mxu0 0.0
    %1178 = vmatpush.msra.mxu0 0.0
    %1179 = vmatpush.msra.mxu0 %v1159
    %1180 = vmatmul.f32.gmra.mxu0 %v1162
    %v1181 = vpop.f32.mrf.mxu0
    %v1182 = vadd.f32 0.0, %v1181
    %1183 = vdwg.mxu0
    %v1185 = vrot.slane %v1182, 7
    %v1187 = vadd.f32 %v804, %v1185
    %1188 = vrot.lane.b32.xlu0 %v1120, 120
    %v1189 = vpop.permute.xlu0 %1188
    %1190 = vrot.lane.b32.xlu0 %v836, 120
    %v1191 = vpop.permute.xlu0 %1190
    %v1192 = vsel %vm446, %v1189, 0
    %v1194 = vsel %vm446, %v1191, 0
    %1196 = vmatpush.xpose.msra.mxu0 0.0
    %1197 = vmatpush.xpose.msra.mxu0 0.0
    %1198 = vmatpush.xpose.msra.mxu0 0.0
    %1199 = vmatpush.xpose.msra.mxu0 0.0
    %1200 = vmatpush.xpose.msra.mxu0 0.0
    %1201 = vmatpush.xpose.msra.mxu0 0.0
    %1202 = vmatpush.xpose.msra.mxu0 0.0
    %1203 = vmatpush.xpose.msra.mxu0 0.0
    %1204 = vmatpush.xpose.msra.mxu0 0.0
    %1205 = vmatpush.xpose.msra.mxu0 0.0
    %1206 = vmatpush.xpose.msra.mxu0 0.0
    %1207 = vmatpush.xpose.msra.mxu0 0.0
    %1208 = vmatpush.xpose.msra.mxu0 0.0
    %1209 = vmatpush.xpose.msra.mxu0 0.0
    %1210 = vmatpush.xpose.msra.mxu0 0.0
    %1211 = vmatpush.xpose.msra.mxu0 %v1194
    %1212 = vmatmul.f32.gmra.mxu0 %v1192
    %v1213 = vpop.f32.mrf.mxu0
    %v1214 = vadd.f32 0.0, %v1213
    %1215 = vdwg.mxu0
    %v1216 = vmul.f32 %v1214, 0.17677669
    %v1217 = vsel %vm865, %v1216, -inf
    %1218 = vmax.xlane.f32.xlu0 %v1217
    %v1219 = vpop.xlane.xlu0 %1218
    %v1220 = vsub.f32 %v1216, %v1219
    %v1221 = vmul.f32 %v1220, 1.442695
    %v1222 = vpow.pop %v1221
    %v1223 = vsel %vm865, %v1222, 0.0
    %1224 = vadd.xlane.f32.xlu0 %v1223
    %v1225 = vpop.xlane.xlu0 %1224
    %v1226 = vrcp.pop %v1225
    %v1227 = vmul.f32 %v1222, %v1226
    %1228 = vrot.lane.b32.xlu0 %v836, 88
    %v1229 = vpop.permute.xlu0 %1228
    %v1232 = vsel %vm446, %v1227, 0
    %1234 = vmatpush.msra.mxu0 0.0
    %1235 = vmatpush.msra.mxu0 0.0
    %1236 = vmatpush.msra.mxu0 0.0
    %1237 = vmatpush.msra.mxu0 0.0
    %1238 = vmatpush.msra.mxu0 0.0
    %1239 = vmatpush.msra.mxu0 0.0
    %1240 = vmatpush.msra.mxu0 0.0
    %1241 = vmatpush.msra.mxu0 0.0
    %1242 = vmatpush.msra.mxu0 0.0
    %1243 = vmatpush.msra.mxu0 0.0
    %1244 = vmatpush.msra.mxu0 0.0
    %1245 = vmatpush.msra.mxu0 0.0
    %1246 = vmatpush.msra.mxu0 0.0
    %1247 = vmatpush.msra.mxu0 0.0
    %1248 = vmatpush.msra.mxu0 0.0
    %1249 = vmatpush.msra.mxu0 %v1229
    %1250 = vmatmul.f32.gmra.mxu0 %v1232
    %v1251 = vpop.f32.mrf.mxu0
    %v1252 = vadd.f32 0.0, %v1251
    %1253 = vdwg.mxu0
    %v1255 = vrot.slane %v1252, 7
    %1256 = vrot.lane.b32.xlu0 %v1255, 8
    %v1257 = vpop.permute.xlu0 %1256
    %v1259 = vadd.f32 %v804, %v1257
    %1260 = vrot.lane.b32.xlu0 %v1120, 112
    %v1261 = vpop.permute.xlu0 %1260
    %1262 = vrot.lane.b32.xlu0 %v836, 112
    %v1263 = vpop.permute.xlu0 %1262
    %v1264 = vsel %vm446, %v1261, 0
    %v1266 = vsel %vm446, %v1263, 0
    %1268 = vmatpush.xpose.msra.mxu0 0.0
    %1269 = vmatpush.xpose.msra.mxu0 0.0
    %1270 = vmatpush.xpose.msra.mxu0 0.0
    %1271 = vmatpush.xpose.msra.mxu0 0.0
    %1272 = vmatpush.xpose.msra.mxu0 0.0
    %1273 = vmatpush.xpose.msra.mxu0 0.0
    %1274 = vmatpush.xpose.msra.mxu0 0.0
    %1275 = vmatpush.xpose.msra.mxu0 0.0
    %1276 = vmatpush.xpose.msra.mxu0 0.0
    %1277 = vmatpush.xpose.msra.mxu0 0.0
    %1278 = vmatpush.xpose.msra.mxu0 0.0
    %1279 = vmatpush.xpose.msra.mxu0 0.0
    %1280 = vmatpush.xpose.msra.mxu0 0.0
    %1281 = vmatpush.xpose.msra.mxu0 0.0
    %1282 = vmatpush.xpose.msra.mxu0 0.0
    %1283 = vmatpush.xpose.msra.mxu0 %v1266
    %1284 = vmatmul.f32.gmra.mxu0 %v1264
    %v1285 = vpop.f32.mrf.mxu0
    %v1286 = vadd.f32 0.0, %v1285
    %1287 = vdwg.mxu0
    %v1288 = vmul.f32 %v1286, 0.17677669
    %v1289 = vsel %vm865, %v1288, -inf
    %1290 = vmax.xlane.f32.xlu0 %v1289
    %v1291 = vpop.xlane.xlu0 %1290
    %v1292 = vsub.f32 %v1288, %v1291
    %v1293 = vmul.f32 %v1292, 1.442695
    %v1294 = vpow.pop %v1293
    %v1295 = vsel %vm865, %v1294, 0.0
    %1296 = vadd.xlane.f32.xlu0 %v1295
    %v1297 = vpop.xlane.xlu0 %1296
    %v1298 = vrcp.pop %v1297
    %v1299 = vmul.f32 %v1294, %v1298
    %1300 = vrot.lane.b32.xlu0 %v836, 80
    %v1301 = vpop.permute.xlu0 %1300
    %v1304 = vsel %vm446, %v1299, 0
    %1306 = vmatpush.msra.mxu0 0.0
    %1307 = vmatpush.msra.mxu0 0.0
    %1308 = vmatpush.msra.mxu0 0.0
    %1309 = vmatpush.msra.mxu0 0.0
    %1310 = vmatpush.msra.mxu0 0.0
    %1311 = vmatpush.msra.mxu0 0.0
    %1312 = vmatpush.msra.mxu0 0.0
    %1313 = vmatpush.msra.mxu0 0.0
    %1314 = vmatpush.msra.mxu0 0.0
    %1315 = vmatpush.msra.mxu0 0.0
    %1316 = vmatpush.msra.mxu0 0.0
    %1317 = vmatpush.msra.mxu0 0.0
    %1318 = vmatpush.msra.mxu0 0.0
    %1319 = vmatpush.msra.mxu0 0.0
    %1320 = vmatpush.msra.mxu0 0.0
    %1321 = vmatpush.msra.mxu0 %v1301
    %1322 = vmatmul.f32.gmra.mxu0 %v1304
    %v1323 = vpop.f32.mrf.mxu0
    %v1324 = vadd.f32 0.0, %v1323
    %1325 = vdwg.mxu0
    %v1327 = vrot.slane %v1324, 7
    %1328 = vrot.lane.b32.xlu0 %v1327, 16
    %v1329 = vpop.permute.xlu0 %1328
    %v1331 = vadd.f32 %v804, %v1329
    %1332 = vrot.lane.b32.xlu0 %v1120, 104
    %v1333 = vpop.permute.xlu0 %1332
    %1334 = vrot.lane.b32.xlu0 %v836, 104
    %v1335 = vpop.permute.xlu0 %1334
    %v1336 = vsel %vm446, %v1333, 0
    %v1338 = vsel %vm446, %v1335, 0
    %1340 = vmatpush.xpose.msra.mxu0 0.0
    %1341 = vmatpush.xpose.msra.mxu0 0.0
    %1342 = vmatpush.xpose.msra.mxu0 0.0
    %1343 = vmatpush.xpose.msra.mxu0 0.0
    %1344 = vmatpush.xpose.msra.mxu0 0.0
    %1345 = vmatpush.xpose.msra.mxu0 0.0
    %1346 = vmatpush.xpose.msra.mxu0 0.0
    %1347 = vmatpush.xpose.msra.mxu0 0.0
    %1348 = vmatpush.xpose.msra.mxu0 0.0
    %1349 = vmatpush.xpose.msra.mxu0 0.0
    %1350 = vmatpush.xpose.msra.mxu0 0.0
    %1351 = vmatpush.xpose.msra.mxu0 0.0
    %1352 = vmatpush.xpose.msra.mxu0 0.0
    %1353 = vmatpush.xpose.msra.mxu0 0.0
    %1354 = vmatpush.xpose.msra.mxu0 0.0
    %1355 = vmatpush.xpose.msra.mxu0 %v1338
    %1356 = vmatmul.f32.gmra.mxu0 %v1336
    %v1357 = vpop.f32.mrf.mxu0
    %v1358 = vadd.f32 0.0, %v1357
    %1359 = vdwg.mxu0
    %v1360 = vmul.f32 %v1358, 0.17677669
    %v1361 = vsel %vm865, %v1360, -inf
    %1362 = vmax.xlane.f32.xlu0 %v1361
    %v1363 = vpop.xlane.xlu0 %1362
    %v1364 = vsub.f32 %v1360, %v1363
    %v1365 = vmul.f32 %v1364, 1.442695
    %v1366 = vpow.pop %v1365
    %v1367 = vsel %vm865, %v1366, 0.0
    %1368 = vadd.xlane.f32.xlu0 %v1367
    %v1369 = vpop.xlane.xlu0 %1368
    %v1370 = vrcp.pop %v1369
    %v1371 = vmul.f32 %v1366, %v1370
    %1372 = vrot.lane.b32.xlu0 %v836, 72
    %v1373 = vpop.permute.xlu0 %1372
    %v1376 = vsel %vm446, %v1371, 0
    %1378 = vmatpush.msra.mxu0 0.0
    %1379 = vmatpush.msra.mxu0 0.0
    %1380 = vmatpush.msra.mxu0 0.0
    %1381 = vmatpush.msra.mxu0 0.0
    %1382 = vmatpush.msra.mxu0 0.0
    %1383 = vmatpush.msra.mxu0 0.0
    %1384 = vmatpush.msra.mxu0 0.0
    %1385 = vmatpush.msra.mxu0 0.0
    %1386 = vmatpush.msra.mxu0 0.0
    %1387 = vmatpush.msra.mxu0 0.0
    %1388 = vmatpush.msra.mxu0 0.0
    %1389 = vmatpush.msra.mxu0 0.0
    %1390 = vmatpush.msra.mxu0 0.0
    %1391 = vmatpush.msra.mxu0 0.0
    %1392 = vmatpush.msra.mxu0 0.0
    %1393 = vmatpush.msra.mxu0 %v1373
    %1394 = vmatmul.f32.gmra.mxu0 %v1376
    %v1395 = vpop.f32.mrf.mxu0
    %v1396 = vadd.f32 0.0, %v1395
    %1397 = vdwg.mxu0
    %v1399 = vrot.slane %v1396, 7
    %1400 = vrot.lane.b32.xlu0 %v1399, 24
    %v1401 = vpop.permute.xlu0 %1400
    %v1403 = vadd.f32 %v804, %v1401
    %v1404 = vsel %vm446, %v1187, %v1259
    %v1405 = vsel %vm660, %v1404, %v1331
    %v1406 = vsel %vm502, %v1405, %v1403
    %v1407 = vsel %vm763, %v1119, %v1406
    %v1409 = vperm.slane %v779, 0
    %v1412 = vsel %vm542, %v1407, 0
    %1414 = vmatpush.msra.mxu0 0.0
    %1415 = vmatpush.msra.mxu0 0.0
    %1416 = vmatpush.msra.mxu0 0.0
    %1417 = vmatpush.msra.mxu0 0.0
    %1418 = vmatpush.msra.mxu0 0.0
    %1419 = vmatpush.msra.mxu0 0.0
    %1420 = vmatpush.msra.mxu0 0.0
    %1421 = vmatpush.msra.mxu0 0.0
    %1422 = vmatpush.msra.mxu0 0.0
    %1423 = vmatpush.msra.mxu0 0.0
    %1424 = vmatpush.msra.mxu0 0.0
    %1425 = vmatpush.msra.mxu0 0.0
    %1426 = vmatpush.msra.mxu0 %v778
    %1427 = vmatpush.msra.mxu0 %v777
    %1428 = vmatpush.msra.mxu0 %v776
    %1429 = vmatpush.msra.mxu0 %v775
    %1430 = vmatmul.f32.gmra.mxu0 %v1412
    %v1431 = vpop.f32.mrf.mxu0
    %v1432 = vadd.f32 %v1409, %v1431
    %1433 = vdwg.mxu0
    %v1434 = vmax.f32 %v1432, 0.0
    %v1435 = vadd.f32 %v1407, %v1434
    %v1436 = vld [vmem:[#allocation6] sm:$0xff]
    %v1437 = vld [vmem:[#allocation6 + $0x8] sm:$0xff]
    %v1438 = vld [vmem:[#allocation6 + $0x10] sm:$0xff]
    %v1439 = vld [vmem:[#allocation6 + $0x18] sm:$0xff]
    %v1440 = vld [vmem:[%s33] sm:$0x1]
    %v1441 = vld [vmem:[#allocation7] sm:$0xff]
    %v1442 = vld [vmem:[#allocation7 + $0x8] sm:$0xff]
    %v1443 = vld [vmem:[#allocation7 + $0x10] sm:$0xff]
    %v1444 = vld [vmem:[#allocation7 + $0x18] sm:$0xff]
    %v1445 = vld [vmem:[%s37] sm:$0x1]
    %v1446 = vld [vmem:[#allocation9] sm:$0xff]
    %v1447 = vld [vmem:[#allocation9 + $0x8] sm:$0xff]
    %v1448 = vld [vmem:[#allocation9 + $0x10] sm:$0xff]
    %v1449 = vld [vmem:[#allocation9 + $0x18] sm:$0xff]
    %v1450 = vld [vmem:[%s41] sm:$0x1]
    %v1452 = vperm.slane %v1440, 0
    %1454 = vmatpush.msra.mxu0 0.0
    %1455 = vmatpush.msra.mxu0 0.0
    %1456 = vmatpush.msra.mxu0 0.0
    %1457 = vmatpush.msra.mxu0 0.0
    %1458 = vmatpush.msra.mxu0 0.0
    %1459 = vmatpush.msra.mxu0 0.0
    %1460 = vmatpush.msra.mxu0 0.0
    %1461 = vmatpush.msra.mxu0 0.0
    %1462 = vmatpush.msra.mxu0 0.0
    %1463 = vmatpush.msra.mxu0 0.0
    %1464 = vmatpush.msra.mxu0 0.0
    %1465 = vmatpush.msra.mxu0 0.0
    %1466 = vmatpush.msra.mxu0 %v1439
    %1467 = vmatpush.msra.mxu0 %v1438
    %1468 = vmatpush.msra.mxu0 %v1437
    %1469 = vmatpush.msra.mxu0 %v1436
    %1470 = vmatmul.f32.gmra.mxu0 %v810
    %v1471 = vpop.f32.mrf.mxu0
    %v1472 = vadd.f32 %v1452, %v1471
    %1473 = vmatmul.f32.gmra.mxu0 %v813
    %v1474 = vpop.f32.mrf.mxu0
    %v1475 = vadd.f32 %v1452, %v1474
    %1476 = vdwg.mxu0
    %v1478 = vperm.slane %v1445, 0
    %v1481 = vsel %vm542, %v1435, 0
    %1483 = vmatpush.msra.mxu0 0.0
    %1484 = vmatpush.msra.mxu0 0.0
    %1485 = vmatpush.msra.mxu0 0.0
    %1486 = vmatpush.msra.mxu0 0.0
    %1487 = vmatpush.msra.mxu0 0.0
    %1488 = vmatpush.msra.mxu0 0.0
    %1489 = vmatpush.msra.mxu0 0.0
    %1490 = vmatpush.msra.mxu0 0.0
    %1491 = vmatpush.msra.mxu0 0.0
    %1492 = vmatpush.msra.mxu0 0.0
    %1493 = vmatpush.msra.mxu0 0.0
    %1494 = vmatpush.msra.mxu0 0.0
    %1495 = vmatpush.msra.mxu0 %v1444
    %1496 = vmatpush.msra.mxu0 %v1443
    %1497 = vmatpush.msra.mxu0 %v1442
    %1498 = vmatpush.msra.mxu0 %v1441
    %1499 = vmatmul.f32.gmra.mxu0 %v1481
    %v1500 = vpop.f32.mrf.mxu0
    %v1501 = vadd.f32 %v1478, %v1500
    %1502 = vdwg.mxu0
    %v1503 = vperm.slane %v1501, 0
    %v1504 = vmul.f32 %v1472, %v1503
    %v1505 = vsel %vm446, %v1504, 0.0
    %1506 = vadd.xlane.f32.xlu0 %v1505
    %v1507 = vpop.xlane.xlu0 %1506
    %v1508 = vmul.f32 %v1507, 0.17677669
    %v1509 = vsub.f32 %v1508, %v1508
    %v1510 = vmul.f32 %v1509, 1.442695
    %v1511 = vpow.pop %v1510
    %v1512 = vadd.f32 %v1511, 0.0
    %v1513 = vrcp.pop %v1512
    %v1514 = vmul.f32 %v1511, %v1513
    %1516 = vrot.lane.b32.xlu0 %v1501, 96
    %v1517 = vpop.permute.xlu0 %1516
    %vm1518 = vcmask 7168
    %v1520 = vsel %vm1518, %v1514, 0
    %v1522 = vsel %vm763, %v1517, 0
    %1524 = vmatpush.msra.mxu0 0.0
    %1525 = vmatpush.msra.mxu0 0.0
    %1526 = vmatpush.msra.mxu0 0.0
    %1527 = vmatpush.msra.mxu0 0.0
    %1528 = vmatpush.msra.mxu0 0.0
    %1529 = vmatpush.msra.mxu0 0.0
    %1530 = vmatpush.msra.mxu0 0.0
    %1531 = vmatpush.msra.mxu0 0.0
    %1532 = vmatpush.msra.mxu0 0.0
    %1533 = vmatpush.msra.mxu0 0.0
    %1534 = vmatpush.msra.mxu0 0.0
    %1535 = vmatpush.msra.mxu0 0.0
    %1536 = vmatpush.msra.mxu0 0.0
    %1537 = vmatpush.msra.mxu0 0.0
    %1538 = vmatpush.msra.mxu0 0.0
    %1539 = vmatpush.msra.mxu0 %v1522
    %1540 = vmatmul.f32.gmra.mxu0 %v1520
    %v1541 = vpop.f32.mrf.mxu0
    %v1542 = vadd.f32 0.0, %v1541
    %1543 = vdwg.mxu0
    %v1544 = vadd.f32 %v1472, %v1542
    %1546 = vrot.lane.b32.xlu0 %v1504, 120
    %v1547 = vpop.permute.xlu0 %1546
    %v1549 = vsel %vm446, %v1547, 0.0
    %1550 = vadd.xlane.f32.xlu0 %v1549
    %v1551 = vpop.xlane.xlu0 %1550
    %v1552 = vmul.f32 %v1551, 0.17677669
    %v1553 = vsub.f32 %v1552, %v1552
    %v1554 = vmul.f32 %v1553, 1.442695
    %v1555 = vpow.pop %v1554
    %v1556 = vadd.f32 %v1555, 0.0
    %v1557 = vrcp.pop %v1556
    %v1558 = vmul.f32 %v1555, %v1557
    %1559 = vrot.lane.b32.xlu0 %v1501, 88
    %v1560 = vpop.permute.xlu0 %1559
    %v1562 = vsel %vm1518, %v1558, 0
    %v1564 = vsel %vm763, %v1560, 0
    %1566 = vmatpush.msra.mxu0 0.0
    %1567 = vmatpush.msra.mxu0 0.0
    %1568 = vmatpush.msra.mxu0 0.0
    %1569 = vmatpush.msra.mxu0 0.0
    %1570 = vmatpush.msra.mxu0 0.0
    %1571 = vmatpush.msra.mxu0 0.0
    %1572 = vmatpush.msra.mxu0 0.0
    %1573 = vmatpush.msra.mxu0 0.0
    %1574 = vmatpush.msra.mxu0 0.0
    %1575 = vmatpush.msra.mxu0 0.0
    %1576 = vmatpush.msra.mxu0 0.0
    %1577 = vmatpush.msra.mxu0 0.0
    %1578 = vmatpush.msra.mxu0 0.0
    %1579 = vmatpush.msra.mxu0 0.0
    %1580 = vmatpush.msra.mxu0 0.0
    %1581 = vmatpush.msra.mxu0 %v1564
    %1582 = vmatmul.f32.gmra.mxu0 %v1562
    %v1583 = vpop.f32.mrf.mxu0
    %v1584 = vadd.f32 0.0, %v1583
    %1585 = vdwg.mxu0
    %1587 = vrot.lane.b32.xlu0 %v1584, 8
    %v1588 = vpop.permute.xlu0 %1587
    %v1590 = vadd.f32 %v1472, %v1588
    %1591 = vrot.lane.b32.xlu0 %v1504, 112
    %v1592 = vpop.permute.xlu0 %1591
    %v1594 = vsel %vm446, %v1592, 0.0
    %1595 = vadd.xlane.f32.xlu0 %v1594
    %v1596 = vpop.xlane.xlu0 %1595
    %v1597 = vmul.f32 %v1596, 0.17677669
    %v1598 = vsub.f32 %v1597, %v1597
    %v1599 = vmul.f32 %v1598, 1.442695
    %v1600 = vpow.pop %v1599
    %v1601 = vadd.f32 %v1600, 0.0
    %v1602 = vrcp.pop %v1601
    %v1603 = vmul.f32 %v1600, %v1602
    %1604 = vrot.lane.b32.xlu0 %v1501, 80
    %v1605 = vpop.permute.xlu0 %1604
    %v1607 = vsel %vm1518, %v1603, 0
    %v1609 = vsel %vm763, %v1605, 0
    %1611 = vmatpush.msra.mxu0 0.0
    %1612 = vmatpush.msra.mxu0 0.0
    %1613 = vmatpush.msra.mxu0 0.0
    %1614 = vmatpush.msra.mxu0 0.0
    %1615 = vmatpush.msra.mxu0 0.0
    %1616 = vmatpush.msra.mxu0 0.0
    %1617 = vmatpush.msra.mxu0 0.0
    %1618 = vmatpush.msra.mxu0 0.0
    %1619 = vmatpush.msra.mxu0 0.0
    %1620 = vmatpush.msra.mxu0 0.0
    %1621 = vmatpush.msra.mxu0 0.0
    %1622 = vmatpush.msra.mxu0 0.0
    %1623 = vmatpush.msra.mxu0 0.0
    %1624 = vmatpush.msra.mxu0 0.0
    %1625 = vmatpush.msra.mxu0 0.0
    %1626 = vmatpush.msra.mxu0 %v1609
    %1627 = vmatmul.f32.gmra.mxu0 %v1607
    %v1628 = vpop.f32.mrf.mxu0
    %v1629 = vadd.f32 0.0, %v1628
    %1630 = vdwg.mxu0
    %1632 = vrot.lane.b32.xlu0 %v1629, 16
    %v1633 = vpop.permute.xlu0 %1632
    %v1635 = vadd.f32 %v1472, %v1633
    %1636 = vrot.lane.b32.xlu0 %v1504, 104
    %v1637 = vpop.permute.xlu0 %1636
    %v1639 = vsel %vm446, %v1637, 0.0
    %1640 = vadd.xlane.f32.xlu0 %v1639
    %v1641 = vpop.xlane.xlu0 %1640
    %v1642 = vmul.f32 %v1641, 0.17677669
    %v1643 = vsub.f32 %v1642, %v1642
    %v1644 = vmul.f32 %v1643, 1.442695
    %v1645 = vpow.pop %v1644
    %v1646 = vadd.f32 %v1645, 0.0
    %v1647 = vrcp.pop %v1646
    %v1648 = vmul.f32 %v1645, %v1647
    %1649 = vrot.lane.b32.xlu0 %v1501, 72
    %v1650 = vpop.permute.xlu0 %1649
    %v1652 = vsel %vm1518, %v1648, 0
    %v1654 = vsel %vm763, %v1650, 0
    %1656 = vmatpush.msra.mxu0 0.0
    %1657 = vmatpush.msra.mxu0 0.0
    %1658 = vmatpush.msra.mxu0 0.0
    %1659 = vmatpush.msra.mxu0 0.0
    %1660 = vmatpush.msra.mxu0 0.0
    %1661 = vmatpush.msra.mxu0 0.0
    %1662 = vmatpush.msra.mxu0 0.0
    %1663 = vmatpush.msra.mxu0 0.0
    %1664 = vmatpush.msra.mxu0 0.0
    %1665 = vmatpush.msra.mxu0 0.0
    %1666 = vmatpush.msra.mxu0 0.0
    %1667 = vmatpush.msra.mxu0 0.0
    %1668 = vmatpush.msra.mxu0 0.0
    %1669 = vmatpush.msra.mxu0 0.0
    %1670 = vmatpush.msra.mxu0 0.0
    %1671 = vmatpush.msra.mxu0 %v1654
    %1672 = vmatmul.f32.gmra.mxu0 %v1652
    %v1673 = vpop.f32.mrf.mxu0
    %v1674 = vadd.f32 0.0, %v1673
    %1675 = vdwg.mxu0
    %1677 = vrot.lane.b32.xlu0 %v1674, 24
    %v1678 = vpop.permute.xlu0 %1677
    %v1680 = vadd.f32 %v1472, %v1678
    %v1681 = vsel %vm446, %v1544, %v1590
    %v1682 = vsel %vm660, %v1681, %v1635
    %v1683 = vsel %vm502, %v1682, %v1680
    %v1684 = vperm.slane %v1501, 1
    %v1685 = vmul.f32 %v1475, %v1684
    %v1686 = vsel %vm446, %v1685, 0.0
    %1687 = vadd.xlane.f32.xlu0 %v1686
    %v1688 = vpop.xlane.xlu0 %1687
    %v1689 = vmul.f32 %v1688, 0.17677669
    %v1690 = vsub.f32 %v1689, %v1689
    %v1691 = vmul.f32 %v1690, 1.442695
    %v1692 = vpow.pop %v1691
    %v1693 = vadd.f32 %v1692, 0.0
    %v1694 = vrcp.pop %v1693
    %v1695 = vmul.f32 %v1692, %v1694
    %v1696 = vrot.slane %v1501, 1
    %1697 = vrot.lane.b32.xlu0 %v1696, 96
    %v1698 = vpop.permute.xlu0 %1697
    %v1700 = vsel %vm1518, %v1695, 0
    %v1702 = vsel %vm763, %v1698, 0
    %1704 = vmatpush.msra.mxu0 0.0
    %1705 = vmatpush.msra.mxu0 0.0
    %1706 = vmatpush.msra.mxu0 0.0
    %1707 = vmatpush.msra.mxu0 0.0
    %1708 = vmatpush.msra.mxu0 0.0
    %1709 = vmatpush.msra.mxu0 0.0
    %1710 = vmatpush.msra.mxu0 0.0
    %1711 = vmatpush.msra.mxu0 0.0
    %1712 = vmatpush.msra.mxu0 0.0
    %1713 = vmatpush.msra.mxu0 0.0
    %1714 = vmatpush.msra.mxu0 0.0
    %1715 = vmatpush.msra.mxu0 0.0
    %1716 = vmatpush.msra.mxu0 0.0
    %1717 = vmatpush.msra.mxu0 0.0
    %1718 = vmatpush.msra.mxu0 0.0
    %1719 = vmatpush.msra.mxu0 %v1702
    %1720 = vmatmul.f32.gmra.mxu0 %v1700
    %v1721 = vpop.f32.mrf.mxu0
    %v1722 = vadd.f32 0.0, %v1721
    %1723 = vdwg.mxu0
    %v1724 = vadd.f32 %v1475, %v1722
    %1726 = vrot.lane.b32.xlu0 %v1685, 120
    %v1727 = vpop.permute.xlu0 %1726
    %v1729 = vsel %vm446, %v1727, 0.0
    %1730 = vadd.xlane.f32.xlu0 %v1729
    %v1731 = vpop.xlane.xlu0 %1730
    %v1732 = vmul.f32 %v1731, 0.17677669
    %v1733 = vsub.f32 %v1732, %v1732
    %v1734 = vmul.f32 %v1733, 1.442695
    %v1735 = vpow.pop %v1734
    %v1736 = vadd.f32 %v1735, 0.0
    %v1737 = vrcp.pop %v1736
    %v1738 = vmul.f32 %v1735, %v1737
    %1739 = vrot.lane.b32.xlu0 %v1696, 88
    %v1740 = vpop.permute.xlu0 %1739
    %v1742 = vsel %vm1518, %v1738, 0
    %v1744 = vsel %vm763, %v1740, 0
    %1746 = vmatpush.msra.mxu0 0.0
    %1747 = vmatpush.msra.mxu0 0.0
    %1748 = vmatpush.msra.mxu0 0.0
    %1749 = vmatpush.msra.mxu0 0.0
    %1750 = vmatpush.msra.mxu0 0.0
    %1751 = vmatpush.msra.mxu0 0.0
    %1752 = vmatpush.msra.mxu0 0.0
    %1753 = vmatpush.msra.mxu0 0.0
    %1754 = vmatpush.msra.mxu0 0.0
    %1755 = vmatpush.msra.mxu0 0.0
    %1756 = vmatpush.msra.mxu0 0.0
    %1757 = vmatpush.msra.mxu0 0.0
    %1758 = vmatpush.msra.mxu0 0.0
    %1759 = vmatpush.msra.mxu0 0.0
    %1760 = vmatpush.msra.mxu0 0.0
    %1761 = vmatpush.msra.mxu0 %v1744
    %1762 = vmatmul.f32.gmra.mxu0 %v1742
    %v1763 = vpop.f32.mrf.mxu0
    %v1764 = vadd.f32 0.0, %v1763
    %1765 = vdwg.mxu0
    %1767 = vrot.lane.b32.xlu0 %v1764, 8
    %v1768 = vpop.permute.xlu0 %1767
    %v1770 = vadd.f32 %v1475, %v1768
    %1771 = vrot.lane.b32.xlu0 %v1685, 112
    %v1772 = vpop.permute.xlu0 %1771
    %v1774 = vsel %vm446, %v1772, 0.0
    %1775 = vadd.xlane.f32.xlu0 %v1774
    %v1776 = vpop.xlane.xlu0 %1775
    %v1777 = vmul.f32 %v1776, 0.17677669
    %v1778 = vsub.f32 %v1777, %v1777
    %v1779 = vmul.f32 %v1778, 1.442695
    %v1780 = vpow.pop %v1779
    %v1781 = vadd.f32 %v1780, 0.0
    %v1782 = vrcp.pop %v1781
    %v1783 = vmul.f32 %v1780, %v1782
    %1784 = vrot.lane.b32.xlu0 %v1696, 80
    %v1785 = vpop.permute.xlu0 %1784
    %v1787 = vsel %vm1518, %v1783, 0
    %v1789 = vsel %vm763, %v1785, 0
    %1791 = vmatpush.msra.mxu0 0.0
    %1792 = vmatpush.msra.mxu0 0.0
    %1793 = vmatpush.msra.mxu0 0.0
    %1794 = vmatpush.msra.mxu0 0.0
    %1795 = vmatpush.msra.mxu0 0.0
    %1796 = vmatpush.msra.mxu0 0.0
    %1797 = vmatpush.msra.mxu0 0.0
    %1798 = vmatpush.msra.mxu0 0.0
    %1799 = vmatpush.msra.mxu0 0.0
    %1800 = vmatpush.msra.mxu0 0.0
    %1801 = vmatpush.msra.mxu0 0.0
    %1802 = vmatpush.msra.mxu0 0.0
    %1803 = vmatpush.msra.mxu0 0.0
    %1804 = vmatpush.msra.mxu0 0.0
    %1805 = vmatpush.msra.mxu0 0.0
    %1806 = vmatpush.msra.mxu0 %v1789
    %1807 = vmatmul.f32.gmra.mxu0 %v1787
    %v1808 = vpop.f32.mrf.mxu0
    %v1809 = vadd.f32 0.0, %v1808
    %1810 = vdwg.mxu0
    %1812 = vrot.lane.b32.xlu0 %v1809, 16
    %v1813 = vpop.permute.xlu0 %1812
    %v1815 = vadd.f32 %v1475, %v1813
    %1816 = vrot.lane.b32.xlu0 %v1685, 104
    %v1817 = vpop.permute.xlu0 %1816
    %v1819 = vsel %vm446, %v1817, 0.0
    %1820 = vadd.xlane.f32.xlu0 %v1819
    %v1821 = vpop.xlane.xlu0 %1820
    %v1822 = vmul.f32 %v1821, 0.17677669
    %v1823 = vsub.f32 %v1822, %v1822
    %v1824 = vmul.f32 %v1823, 1.442695
    %v1825 = vpow.pop %v1824
    %v1826 = vadd.f32 %v1825, 0.0
    %v1827 = vrcp.pop %v1826
    %v1828 = vmul.f32 %v1825, %v1827
    %1829 = vrot.lane.b32.xlu0 %v1696, 72
    %v1830 = vpop.permute.xlu0 %1829
    %v1832 = vsel %vm1518, %v1828, 0
    %v1834 = vsel %vm763, %v1830, 0
    %1836 = vmatpush.msra.mxu0 0.0
    %1837 = vmatpush.msra.mxu0 0.0
    %1838 = vmatpush.msra.mxu0 0.0
    %1839 = vmatpush.msra.mxu0 0.0
    %1840 = vmatpush.msra.mxu0 0.0
    %1841 = vmatpush.msra.mxu0 0.0
    %1842 = vmatpush.msra.mxu0 0.0
    %1843 = vmatpush.msra.mxu0 0.0
    %1844 = vmatpush.msra.mxu0 0.0
    %1845 = vmatpush.msra.mxu0 0.0
    %1846 = vmatpush.msra.mxu0 0.0
    %1847 = vmatpush.msra.mxu0 0.0
    %1848 = vmatpush.msra.mxu0 0.0
    %1849 = vmatpush.msra.mxu0 0.0
    %1850 = vmatpush.msra.mxu0 0.0
    %1851 = vmatpush.msra.mxu0 %v1834
    %1852 = vmatmul.f32.gmra.mxu0 %v1832
    %v1853 = vpop.f32.mrf.mxu0
    %v1854 = vadd.f32 0.0, %v1853
    %1855 = vdwg.mxu0
    %1857 = vrot.lane.b32.xlu0 %v1854, 24
    %v1858 = vpop.permute.xlu0 %1857
    %v1860 = vadd.f32 %v1475, %v1858
    %v1861 = vsel %vm446, %v1724, %v1770
    %v1862 = vsel %vm660, %v1861, %v1815
    %v1863 = vsel %vm502, %v1862, %v1860
    %v1865 = vperm.slane %v1450, 0
    %v1868 = vsel %vm542, %v1683, 0
    %v1871 = vsel %vm542, %v1863, 0
    %1873 = vmatpush.msra.mxu0 0.0
    %1874 = vmatpush.msra.mxu0 0.0
    %1875 = vmatpush.msra.mxu0 0.0
    %1876 = vmatpush.msra.mxu0 0.0
    %1877 = vmatpush.msra.mxu0 0.0
    %1878 = vmatpush.msra.mxu0 0.0
    %1879 = vmatpush.msra.mxu0 0.0
    %1880 = vmatpush.msra.mxu0 0.0
    %1881 = vmatpush.msra.mxu0 0.0
    %1882 = vmatpush.msra.mxu0 0.0
    %1883 = vmatpush.msra.mxu0 0.0
    %1884 = vmatpush.msra.mxu0 0.0
    %1885 = vmatpush.msra.mxu0 %v1449
    %1886 = vmatpush.msra.mxu0 %v1448
    %1887 = vmatpush.msra.mxu0 %v1447
    %1888 = vmatpush.msra.mxu0 %v1446
    %1889 = vmatmul.f32.gmra.mxu0 %v1868
    %v1890 = vpop.f32.mrf.mxu0
    %v1891 = vadd.f32 %v1865, %v1890
    %1892 = vmatmul.f32.gmra.mxu0 %v1871
    %v1893 = vpop.f32.mrf.mxu0
    %v1894 = vadd.f32 %v1865, %v1893
    %1895 = vdwg.mxu0
    %v1896 = vmax.f32 %v1891, 0.0
    %v1897 = vmax.f32 %v1894, 0.0
    %v1898 = vadd.f32 %v1683, %v1896
    %v1899 = vadd.f32 %v1863, %v1897
    %s1900 = scalar_lea.vmem %s17, 1
    %v1901 = vld [vmem:[%s1900] sm:$0x1]
    %v1903 = vperm.slane %v1901, 0
    %v1905 = vsel %vm763, %v1901, %v1903
    %s1906 = scalar_lea.vmem %s19, 32
    %v1907 = vld [vmem:[%s1906] sm:$0xff]
    %v1908 = vld [vmem:[%s1906 + $0x8] sm:$0xff]
    %v1909 = vld [vmem:[%s1906 + $0x10] sm:$0xff]
    %v1910 = vld [vmem:[%s1906 + $0x18] sm:$0xff]
    %s1911 = scalar_lea.vmem %s21, 1
    %v1912 = vld [vmem:[%s1911] sm:$0x1]
    %s1913 = scalar_lea.vmem [#allocation2], 32
    %v1914 = vld [vmem:[%s1913] sm:$0xff]
    %v1915 = vld [vmem:[%s1913 + $0x8] sm:$0xff]
    %v1916 = vld [vmem:[%s1913 + $0x10] sm:$0xff]
    %v1917 = vld [vmem:[%s1913 + $0x18] sm:$0xff]
    %s1918 = scalar_lea.vmem %s25, 1
    %v1919 = vld [vmem:[%s1918] sm:$0x1]
    %s1920 = scalar_lea.vmem [#allocation4], 32
    %v1921 = vld [vmem:[%s1920] sm:$0xff]
    %v1922 = vld [vmem:[%s1920 + $0x8] sm:$0xff]
    %v1923 = vld [vmem:[%s1920 + $0x10] sm:$0xff]
    %v1924 = vld [vmem:[%s1920 + $0x18] sm:$0xff]
    %s1925 = scalar_lea.vmem %s29, 1
    %v1926 = vld [vmem:[%s1925] sm:$0x1]
    %v1928 = vperm.slane %v1912, 0
    %v1931 = vsel %vm542, %v1905, 0
    %1933 = vmatpush.msra.mxu0 0.0
    %1934 = vmatpush.msra.mxu0 0.0
    %1935 = vmatpush.msra.mxu0 0.0
    %1936 = vmatpush.msra.mxu0 0.0
    %1937 = vmatpush.msra.mxu0 0.0
    %1938 = vmatpush.msra.mxu0 0.0
    %1939 = vmatpush.msra.mxu0 0.0
    %1940 = vmatpush.msra.mxu0 0.0
    %1941 = vmatpush.msra.mxu0 0.0
    %1942 = vmatpush.msra.mxu0 0.0
    %1943 = vmatpush.msra.mxu0 0.0
    %1944 = vmatpush.msra.mxu0 0.0
    %1945 = vmatpush.msra.mxu0 %v1910
    %1946 = vmatpush.msra.mxu0 %v1909
    %1947 = vmatpush.msra.mxu0 %v1908
    %1948 = vmatpush.msra.mxu0 %v1907
    %1949 = vmatmul.f32.gmra.mxu0 %v1931
    %v1950 = vpop.f32.mrf.mxu0
    %v1951 = vadd.f32 %v1928, %v1950
    %1952 = vdwg.mxu0
    %v1954 = vperm.slane %v1919, 0
    %v1957 = vsel %vm542, %v1898, 0
    %v1960 = vsel %vm542, %v1899, 0
    %1962 = vmatpush.msra.mxu0 0.0
    %1963 = vmatpush.msra.mxu0 0.0
    %1964 = vmatpush.msra.mxu0 0.0
    %1965 = vmatpush.msra.mxu0 0.0
    %1966 = vmatpush.msra.mxu0 0.0
    %1967 = vmatpush.msra.mxu0 0.0
    %1968 = vmatpush.msra.mxu0 0.0
    %1969 = vmatpush.msra.mxu0 0.0
    %1970 = vmatpush.msra.mxu0 0.0
    %1971 = vmatpush.msra.mxu0 0.0
    %1972 = vmatpush.msra.mxu0 0.0
    %1973 = vmatpush.msra.mxu0 0.0
    %1974 = vmatpush.msra.mxu0 %v1917
    %1975 = vmatpush.msra.mxu0 %v1916
    %1976 = vmatpush.msra.mxu0 %v1915
    %1977 = vmatpush.msra.mxu0 %v1914
    %1978 = vmatmul.f32.gmra.mxu0 %v1957
    %v1979 = vpop.f32.mrf.mxu0
    %v1980 = vadd.f32 %v1954, %v1979
    %1981 = vmatmul.f32.gmra.mxu0 %v1960
    %v1982 = vpop.f32.mrf.mxu0
    %v1983 = vadd.f32 %v1954, %v1982
    %1984 = vdwg.mxu0
    %v1986 = vsel %vm446, %v1951, 0
    %v1989 = vsel %vm446, %v1980, 0
    %1991 = vmatpush.xpose.msra.mxu0 0.0
    %1992 = vmatpush.xpose.msra.mxu0 0.0
    %1993 = vmatpush.xpose.msra.mxu0 0.0
    %1994 = vmatpush.xpose.msra.mxu0 0.0
    %1995 = vmatpush.xpose.msra.mxu0 0.0
    %1996 = vmatpush.xpose.msra.mxu0 0.0
    %1997 = vmatpush.xpose.msra.mxu0 0.0
    %1998 = vmatpush.xpose.msra.mxu0 0.0
    %1999 = vmatpush.xpose.msra.mxu0 0.0
    %2000 = vmatpush.xpose.msra.mxu0 0.0
    %2001 = vmatpush.xpose.msra.mxu0 0.0
    %2002 = vmatpush.xpose.msra.mxu0 0.0
    %2003 = vmatpush.xpose.msra.mxu0 0.0
    %2004 = vmatpush.xpose.msra.mxu0 0.0
    %2005 = vmatpush.xpose.msra.mxu0 0.0
    %2006 = vmatpush.xpose.msra.mxu0 %v1989
    %2007 = vmatmul.f32.gmra.mxu0 %v1986
    %v2008 = vpop.f32.mrf.mxu0
    %v2009 = vadd.f32 0.0, %v2008
    %2010 = vdwg.mxu0
    %v2011 = vmul.f32 %v2009, 0.17677669
    %v2012 = vsel %vm865, %v2011, -inf
    %2013 = vmax.xlane.f32.xlu0 %v2012
    %v2014 = vpop.xlane.xlu0 %2013
    %v2015 = vsub.f32 %v2011, %v2014
    %v2016 = vmul.f32 %v2015, 1.442695
    %v2017 = vpow.pop %v2016
    %v2018 = vsel %vm865, %v2017, 0.0
    %2019 = vadd.xlane.f32.xlu0 %v2018
    %v2020 = vpop.xlane.xlu0 %2019
    %v2021 = vrcp.pop %v2020
    %v2022 = vmul.f32 %v2017, %v2021
    %2023 = vrot.lane.b32.xlu0 %v1980, 96
    %v2024 = vpop.permute.xlu0 %2023
    %v2027 = vsel %vm446, %v2022, 0
    %2029 = vmatpush.msra.mxu0 0.0
    %2030 = vmatpush.msra.mxu0 0.0
    %2031 = vmatpush.msra.mxu0 0.0
    %2032 = vmatpush.msra.mxu0 0.0
    %2033 = vmatpush.msra.mxu0 0.0
    %2034 = vmatpush.msra.mxu0 0.0
    %2035 = vmatpush.msra.mxu0 0.0
    %2036 = vmatpush.msra.mxu0 0.0
    %2037 = vmatpush.msra.mxu0 0.0
    %2038 = vmatpush.msra.mxu0 0.0
    %2039 = vmatpush.msra.mxu0 0.0
    %2040 = vmatpush.msra.mxu0 0.0
    %2041 = vmatpush.msra.mxu0 0.0
    %2042 = vmatpush.msra.mxu0 0.0
    %2043 = vmatpush.msra.mxu0 0.0
    %2044 = vmatpush.msra.mxu0 %v2024
    %2045 = vmatmul.f32.gmra.mxu0 %v2027
    %v2046 = vpop.f32.mrf.mxu0
    %v2047 = vadd.f32 0.0, %v2046
    %2048 = vdwg.mxu0
    %v2049 = vadd.f32 %v1951, %v2047
    %2050 = vrot.lane.b32.xlu0 %v1951, 120
    %v2051 = vpop.permute.xlu0 %2050
    %2052 = vrot.lane.b32.xlu0 %v1980, 120
    %v2053 = vpop.permute.xlu0 %2052
    %v2054 = vsel %vm446, %v2051, 0
    %v2056 = vsel %vm446, %v2053, 0
    %2058 = vmatpush.xpose.msra.mxu0 0.0
    %2059 = vmatpush.xpose.msra.mxu0 0.0
    %2060 = vmatpush.xpose.msra.mxu0 0.0
    %2061 = vmatpush.xpose.msra.mxu0 0.0
    %2062 = vmatpush.xpose.msra.mxu0 0.0
    %2063 = vmatpush.xpose.msra.mxu0 0.0
    %2064 = vmatpush.xpose.msra.mxu0 0.0
    %2065 = vmatpush.xpose.msra.mxu0 0.0
    %2066 = vmatpush.xpose.msra.mxu0 0.0
    %2067 = vmatpush.xpose.msra.mxu0 0.0
    %2068 = vmatpush.xpose.msra.mxu0 0.0
    %2069 = vmatpush.xpose.msra.mxu0 0.0
    %2070 = vmatpush.xpose.msra.mxu0 0.0
    %2071 = vmatpush.xpose.msra.mxu0 0.0
    %2072 = vmatpush.xpose.msra.mxu0 0.0
    %2073 = vmatpush.xpose.msra.mxu0 %v2056
    %2074 = vmatmul.f32.gmra.mxu0 %v2054
    %v2075 = vpop.f32.mrf.mxu0
    %v2076 = vadd.f32 0.0, %v2075
    %2077 = vdwg.mxu0
    %v2078 = vmul.f32 %v2076, 0.17677669
    %v2079 = vsel %vm865, %v2078, -inf
    %2080 = vmax.xlane.f32.xlu0 %v2079
    %v2081 = vpop.xlane.xlu0 %2080
    %v2082 = vsub.f32 %v2078, %v2081
    %v2083 = vmul.f32 %v2082, 1.442695
    %v2084 = vpow.pop %v2083
    %v2085 = vsel %vm865, %v2084, 0.0
    %2086 = vadd.xlane.f32.xlu0 %v2085
    %v2087 = vpop.xlane.xlu0 %2086
    %v2088 = vrcp.pop %v2087
    %v2089 = vmul.f32 %v2084, %v2088
    %2090 = vrot.lane.b32.xlu0 %v1980, 88
    %v2091 = vpop.permute.xlu0 %2090
    %v2094 = vsel %vm446, %v2089, 0
    %2096 = vmatpush.msra.mxu0 0.0
    %2097 = vmatpush.msra.mxu0 0.0
    %2098 = vmatpush.msra.mxu0 0.0
    %2099 = vmatpush.msra.mxu0 0.0
    %2100 = vmatpush.msra.mxu0 0.0
    %2101 = vmatpush.msra.mxu0 0.0
    %2102 = vmatpush.msra.mxu0 0.0
    %2103 = vmatpush.msra.mxu0 0.0
    %2104 = vmatpush.msra.mxu0 0.0
    %2105 = vmatpush.msra.mxu0 0.0
    %2106 = vmatpush.msra.mxu0 0.0
    %2107 = vmatpush.msra.mxu0 0.0
    %2108 = vmatpush.msra.mxu0 0.0
    %2109 = vmatpush.msra.mxu0 0.0
    %2110 = vmatpush.msra.mxu0 0.0
    %2111 = vmatpush.msra.mxu0 %v2091
    %2112 = vmatmul.f32.gmra.mxu0 %v2094
    %v2113 = vpop.f32.mrf.mxu0
    %v2114 = vadd.f32 0.0, %v2113
    %2115 = vdwg.mxu0
    %2117 = vrot.lane.b32.xlu0 %v2114, 8
    %v2118 = vpop.permute.xlu0 %2117
    %v2120 = vadd.f32 %v1951, %v2118
    %2121 = vrot.lane.b32.xlu0 %v1951, 112
    %v2122 = vpop.permute.xlu0 %2121
    %2123 = vrot.lane.b32.xlu0 %v1980, 112
    %v2124 = vpop.permute.xlu0 %2123
    %v2125 = vsel %vm446, %v2122, 0
    %v2127 = vsel %vm446, %v2124, 0
    %2129 = vmatpush.xpose.msra.mxu0 0.0
    %2130 = vmatpush.xpose.msra.mxu0 0.0
    %2131 = vmatpush.xpose.msra.mxu0 0.0
    %2132 = vmatpush.xpose.msra.mxu0 0.0
    %2133 = vmatpush.xpose.msra.mxu0 0.0
    %2134 = vmatpush.xpose.msra.mxu0 0.0
    %2135 = vmatpush.xpose.msra.mxu0 0.0
    %2136 = vmatpush.xpose.msra.mxu0 0.0
    %2137 = vmatpush.xpose.msra.mxu0 0.0
    %2138 = vmatpush.xpose.msra.mxu0 0.0
    %2139 = vmatpush.xpose.msra.mxu0 0.0
    %2140 = vmatpush.xpose.msra.mxu0 0.0
    %2141 = vmatpush.xpose.msra.mxu0 0.0
    %2142 = vmatpush.xpose.msra.mxu0 0.0
    %2143 = vmatpush.xpose.msra.mxu0 0.0
    %2144 = vmatpush.xpose.msra.mxu0 %v2127
    %2145 = vmatmul.f32.gmra.mxu0 %v2125
    %v2146 = vpop.f32.mrf.mxu0
    %v2147 = vadd.f32 0.0, %v2146
    %2148 = vdwg.mxu0
    %v2149 = vmul.f32 %v2147, 0.17677669
    %v2150 = vsel %vm865, %v2149, -inf
    %2151 = vmax.xlane.f32.xlu0 %v2150
    %v2152 = vpop.xlane.xlu0 %2151
    %v2153 = vsub.f32 %v2149, %v2152
    %v2154 = vmul.f32 %v2153, 1.442695
    %v2155 = vpow.pop %v2154
    %v2156 = vsel %vm865, %v2155, 0.0
    %2157 = vadd.xlane.f32.xlu0 %v2156
    %v2158 = vpop.xlane.xlu0 %2157
    %v2159 = vrcp.pop %v2158
    %v2160 = vmul.f32 %v2155, %v2159
    %2161 = vrot.lane.b32.xlu0 %v1980, 80
    %v2162 = vpop.permute.xlu0 %2161
    %v2165 = vsel %vm446, %v2160, 0
    %2167 = vmatpush.msra.mxu0 0.0
    %2168 = vmatpush.msra.mxu0 0.0
    %2169 = vmatpush.msra.mxu0 0.0
    %2170 = vmatpush.msra.mxu0 0.0
    %2171 = vmatpush.msra.mxu0 0.0
    %2172 = vmatpush.msra.mxu0 0.0
    %2173 = vmatpush.msra.mxu0 0.0
    %2174 = vmatpush.msra.mxu0 0.0
    %2175 = vmatpush.msra.mxu0 0.0
    %2176 = vmatpush.msra.mxu0 0.0
    %2177 = vmatpush.msra.mxu0 0.0
    %2178 = vmatpush.msra.mxu0 0.0
    %2179 = vmatpush.msra.mxu0 0.0
    %2180 = vmatpush.msra.mxu0 0.0
    %2181 = vmatpush.msra.mxu0 0.0
    %2182 = vmatpush.msra.mxu0 %v2162
    %2183 = vmatmul.f32.gmra.mxu0 %v2165
    %v2184 = vpop.f32.mrf.mxu0
    %v2185 = vadd.f32 0.0, %v2184
    %2186 = vdwg.mxu0
    %2188 = vrot.lane.b32.xlu0 %v2185, 16
    %v2189 = vpop.permute.xlu0 %2188
    %v2191 = vadd.f32 %v1951, %v2189
    %2192 = vrot.lane.b32.xlu0 %v1951, 104
    %v2193 = vpop.permute.xlu0 %2192
    %2194 = vrot.lane.b32.xlu0 %v1980, 104
    %v2195 = vpop.permute.xlu0 %2194
    %v2196 = vsel %vm446, %v2193, 0
    %v2198 = vsel %vm446, %v2195, 0
    %2200 = vmatpush.xpose.msra.mxu0 0.0
    %2201 = vmatpush.xpose.msra.mxu0 0.0
    %2202 = vmatpush.xpose.msra.mxu0 0.0
    %2203 = vmatpush.xpose.msra.mxu0 0.0
    %2204 = vmatpush.xpose.msra.mxu0 0.0
    %2205 = vmatpush.xpose.msra.mxu0 0.0
    %2206 = vmatpush.xpose.msra.mxu0 0.0
    %2207 = vmatpush.xpose.msra.mxu0 0.0
    %2208 = vmatpush.xpose.msra.mxu0 0.0
    %2209 = vmatpush.xpose.msra.mxu0 0.0
    %2210 = vmatpush.xpose.msra.mxu0 0.0
    %2211 = vmatpush.xpose.msra.mxu0 0.0
    %2212 = vmatpush.xpose.msra.mxu0 0.0
    %2213 = vmatpush.xpose.msra.mxu0 0.0
    %2214 = vmatpush.xpose.msra.mxu0 0.0
    %2215 = vmatpush.xpose.msra.mxu0 %v2198
    %2216 = vmatmul.f32.gmra.mxu0 %v2196
    %v2217 = vpop.f32.mrf.mxu0
    %v2218 = vadd.f32 0.0, %v2217
    %2219 = vdwg.mxu0
    %v2220 = vmul.f32 %v2218, 0.17677669
    %v2221 = vsel %vm865, %v2220, -inf
    %2222 = vmax.xlane.f32.xlu0 %v2221
    %v2223 = vpop.xlane.xlu0 %2222
    %v2224 = vsub.f32 %v2220, %v2223
    %v2225 = vmul.f32 %v2224, 1.442695
    %v2226 = vpow.pop %v2225
    %v2227 = vsel %vm865, %v2226, 0.0
    %2228 = vadd.xlane.f32.xlu0 %v2227
    %v2229 = vpop.xlane.xlu0 %2228
    %v2230 = vrcp.pop %v2229
    %v2231 = vmul.f32 %v2226, %v2230
    %2232 = vrot.lane.b32.xlu0 %v1980, 72
    %v2233 = vpop.permute.xlu0 %2232
    %v2236 = vsel %vm446, %v2231, 0
    %2238 = vmatpush.msra.mxu0 0.0
    %2239 = vmatpush.msra.mxu0 0.0
    %2240 = vmatpush.msra.mxu0 0.0
    %2241 = vmatpush.msra.mxu0 0.0
    %2242 = vmatpush.msra.mxu0 0.0
    %2243 = vmatpush.msra.mxu0 0.0
    %2244 = vmatpush.msra.mxu0 0.0
    %2245 = vmatpush.msra.mxu0 0.0
    %2246 = vmatpush.msra.mxu0 0.0
    %2247 = vmatpush.msra.mxu0 0.0
    %2248 = vmatpush.msra.mxu0 0.0
    %2249 = vmatpush.msra.mxu0 0.0
    %2250 = vmatpush.msra.mxu0 0.0
    %2251 = vmatpush.msra.mxu0 0.0
    %2252 = vmatpush.msra.mxu0 0.0
    %2253 = vmatpush.msra.mxu0 %v2233
    %2254 = vmatmul.f32.gmra.mxu0 %v2236
    %v2255 = vpop.f32.mrf.mxu0
    %v2256 = vadd.f32 0.0, %v2255
    %2257 = vdwg.mxu0
    %2259 = vrot.lane.b32.xlu0 %v2256, 24
    %v2260 = vpop.permute.xlu0 %2259
    %v2262 = vadd.f32 %v1951, %v2260
    %v2263 = vsel %vm446, %v2049, %v2120
    %v2264 = vsel %vm660, %v2263, %v2191
    %v2265 = vsel %vm502, %v2264, %v2262
    %v2266 = vrot.slane %v1951, 1
    %v2267 = vsel %vm446, %v2266, 0
    %v2270 = vsel %vm446, %v1983, 0
    %2272 = vmatpush.xpose.msra.mxu0 0.0
    %2273 = vmatpush.xpose.msra.mxu0 0.0
    %2274 = vmatpush.xpose.msra.mxu0 0.0
    %2275 = vmatpush.xpose.msra.mxu0 0.0
    %2276 = vmatpush.xpose.msra.mxu0 0.0
    %2277 = vmatpush.xpose.msra.mxu0 0.0
    %2278 = vmatpush.xpose.msra.mxu0 0.0
    %2279 = vmatpush.xpose.msra.mxu0 0.0
    %2280 = vmatpush.xpose.msra.mxu0 0.0
    %2281 = vmatpush.xpose.msra.mxu0 0.0
    %2282 = vmatpush.xpose.msra.mxu0 0.0
    %2283 = vmatpush.xpose.msra.mxu0 0.0
    %2284 = vmatpush.xpose.msra.mxu0 0.0
    %2285 = vmatpush.xpose.msra.mxu0 0.0
    %2286 = vmatpush.xpose.msra.mxu0 0.0
    %2287 = vmatpush.xpose.msra.mxu0 %v2270
    %2288 = vmatmul.f32.gmra.mxu0 %v2267
    %v2289 = vpop.f32.mrf.mxu0
    %v2290 = vadd.f32 0.0, %v2289
    %2291 = vdwg.mxu0
    %v2292 = vmul.f32 %v2290, 0.17677669
    %v2293 = vsel %vm865, %v2292, -inf
    %2294 = vmax.xlane.f32.xlu0 %v2293
    %v2295 = vpop.xlane.xlu0 %2294
    %v2296 = vsub.f32 %v2292, %v2295
    %v2297 = vmul.f32 %v2296, 1.442695
    %v2298 = vpow.pop %v2297
    %v2299 = vsel %vm865, %v2298, 0.0
    %2300 = vadd.xlane.f32.xlu0 %v2299
    %v2301 = vpop.xlane.xlu0 %2300
    %v2302 = vrcp.pop %v2301
    %v2303 = vmul.f32 %v2298, %v2302
    %2304 = vrot.lane.b32.xlu0 %v1983, 96
    %v2305 = vpop.permute.xlu0 %2304
    %v2308 = vsel %vm446, %v2303, 0
    %2310 = vmatpush.msra.mxu0 0.0
    %2311 = vmatpush.msra.mxu0 0.0
    %2312 = vmatpush.msra.mxu0 0.0
    %2313 = vmatpush.msra.mxu0 0.0
    %2314 = vmatpush.msra.mxu0 0.0
    %2315 = vmatpush.msra.mxu0 0.0
    %2316 = vmatpush.msra.mxu0 0.0
    %2317 = vmatpush.msra.mxu0 0.0
    %2318 = vmatpush.msra.mxu0 0.0
    %2319 = vmatpush.msra.mxu0 0.0
    %2320 = vmatpush.msra.mxu0 0.0
    %2321 = vmatpush.msra.mxu0 0.0
    %2322 = vmatpush.msra.mxu0 0.0
    %2323 = vmatpush.msra.mxu0 0.0
    %2324 = vmatpush.msra.mxu0 0.0
    %2325 = vmatpush.msra.mxu0 %v2305
    %2326 = vmatmul.f32.gmra.mxu0 %v2308
    %v2327 = vpop.f32.mrf.mxu0
    %v2328 = vadd.f32 0.0, %v2327
    %2329 = vdwg.mxu0
    %v2331 = vrot.slane %v2328, 7
    %v2333 = vadd.f32 %v1951, %v2331
    %2334 = vrot.lane.b32.xlu0 %v2266, 120
    %v2335 = vpop.permute.xlu0 %2334
    %2336 = vrot.lane.b32.xlu0 %v1983, 120
    %v2337 = vpop.permute.xlu0 %2336
    %v2338 = vsel %vm446, %v2335, 0
    %v2340 = vsel %vm446, %v2337, 0
    %2342 = vmatpush.xpose.msra.mxu0 0.0
    %2343 = vmatpush.xpose.msra.mxu0 0.0
    %2344 = vmatpush.xpose.msra.mxu0 0.0
    %2345 = vmatpush.xpose.msra.mxu0 0.0
    %2346 = vmatpush.xpose.msra.mxu0 0.0
    %2347 = vmatpush.xpose.msra.mxu0 0.0
    %2348 = vmatpush.xpose.msra.mxu0 0.0
    %2349 = vmatpush.xpose.msra.mxu0 0.0
    %2350 = vmatpush.xpose.msra.mxu0 0.0
    %2351 = vmatpush.xpose.msra.mxu0 0.0
    %2352 = vmatpush.xpose.msra.mxu0 0.0
    %2353 = vmatpush.xpose.msra.mxu0 0.0
    %2354 = vmatpush.xpose.msra.mxu0 0.0
    %2355 = vmatpush.xpose.msra.mxu0 0.0
    %2356 = vmatpush.xpose.msra.mxu0 0.0
    %2357 = vmatpush.xpose.msra.mxu0 %v2340
    %2358 = vmatmul.f32.gmra.mxu0 %v2338
    %v2359 = vpop.f32.mrf.mxu0
    %v2360 = vadd.f32 0.0, %v2359
    %2361 = vdwg.mxu0
    %v2362 = vmul.f32 %v2360, 0.17677669
    %v2363 = vsel %vm865, %v2362, -inf
    %2364 = vmax.xlane.f32.xlu0 %v2363
    %v2365 = vpop.xlane.xlu0 %2364
    %v2366 = vsub.f32 %v2362, %v2365
    %v2367 = vmul.f32 %v2366, 1.442695
    %v2368 = vpow.pop %v2367
    %v2369 = vsel %vm865, %v2368, 0.0
    %2370 = vadd.xlane.f32.xlu0 %v2369
    %v2371 = vpop.xlane.xlu0 %2370
    %v2372 = vrcp.pop %v2371
    %v2373 = vmul.f32 %v2368, %v2372
    %2374 = vrot.lane.b32.xlu0 %v1983, 88
    %v2375 = vpop.permute.xlu0 %2374
    %v2378 = vsel %vm446, %v2373, 0
    %2380 = vmatpush.msra.mxu0 0.0
    %2381 = vmatpush.msra.mxu0 0.0
    %2382 = vmatpush.msra.mxu0 0.0
    %2383 = vmatpush.msra.mxu0 0.0
    %2384 = vmatpush.msra.mxu0 0.0
    %2385 = vmatpush.msra.mxu0 0.0
    %2386 = vmatpush.msra.mxu0 0.0
    %2387 = vmatpush.msra.mxu0 0.0
    %2388 = vmatpush.msra.mxu0 0.0
    %2389 = vmatpush.msra.mxu0 0.0
    %2390 = vmatpush.msra.mxu0 0.0
    %2391 = vmatpush.msra.mxu0 0.0
    %2392 = vmatpush.msra.mxu0 0.0
    %2393 = vmatpush.msra.mxu0 0.0
    %2394 = vmatpush.msra.mxu0 0.0
    %2395 = vmatpush.msra.mxu0 %v2375
    %2396 = vmatmul.f32.gmra.mxu0 %v2378
    %v2397 = vpop.f32.mrf.mxu0
    %v2398 = vadd.f32 0.0, %v2397
    %2399 = vdwg.mxu0
    %v2401 = vrot.slane %v2398, 7
    %2402 = vrot.lane.b32.xlu0 %v2401, 8
    %v2403 = vpop.permute.xlu0 %2402
    %v2405 = vadd.f32 %v1951, %v2403
    %2406 = vrot.lane.b32.xlu0 %v2266, 112
    %v2407 = vpop.permute.xlu0 %2406
    %2408 = vrot.lane.b32.xlu0 %v1983, 112
    %v2409 = vpop.permute.xlu0 %2408
    %v2410 = vsel %vm446, %v2407, 0
    %v2412 = vsel %vm446, %v2409, 0
    %2414 = vmatpush.xpose.msra.mxu0 0.0
    %2415 = vmatpush.xpose.msra.mxu0 0.0
    %2416 = vmatpush.xpose.msra.mxu0 0.0
    %2417 = vmatpush.xpose.msra.mxu0 0.0
    %2418 = vmatpush.xpose.msra.mxu0 0.0
    %2419 = vmatpush.xpose.msra.mxu0 0.0
    %2420 = vmatpush.xpose.msra.mxu0 0.0
    %2421 = vmatpush.xpose.msra.mxu0 0.0
    %2422 = vmatpush.xpose.msra.mxu0 0.0
    %2423 = vmatpush.xpose.msra.mxu0 0.0
    %2424 = vmatpush.xpose.msra.mxu0 0.0
    %2425 = vmatpush.xpose.msra.mxu0 0.0
    %2426 = vmatpush.xpose.msra.mxu0 0.0
    %2427 = vmatpush.xpose.msra.mxu0 0.0
    %2428 = vmatpush.xpose.msra.mxu0 0.0
    %2429 = vmatpush.xpose.msra.mxu0 %v2412
    %2430 = vmatmul.f32.gmra.mxu0 %v2410
    %v2431 = vpop.f32.mrf.mxu0
    %v2432 = vadd.f32 0.0, %v2431
    %2433 = vdwg.mxu0
    %v2434 = vmul.f32 %v2432, 0.17677669
    %v2435 = vsel %vm865, %v2434, -inf
    %2436 = vmax.xlane.f32.xlu0 %v2435
    %v2437 = vpop.xlane.xlu0 %2436
    %v2438 = vsub.f32 %v2434, %v2437
    %v2439 = vmul.f32 %v2438, 1.442695
    %v2440 = vpow.pop %v2439
    %v2441 = vsel %vm865, %v2440, 0.0
    %2442 = vadd.xlane.f32.xlu0 %v2441
    %v2443 = vpop.xlane.xlu0 %2442
    %v2444 = vrcp.pop %v2443
    %v2445 = vmul.f32 %v2440, %v2444
    %2446 = vrot.lane.b32.xlu0 %v1983, 80
    %v2447 = vpop.permute.xlu0 %2446
    %v2450 = vsel %vm446, %v2445, 0
    %2452 = vmatpush.msra.mxu0 0.0
    %2453 = vmatpush.msra.mxu0 0.0
    %2454 = vmatpush.msra.mxu0 0.0
    %2455 = vmatpush.msra.mxu0 0.0
    %2456 = vmatpush.msra.mxu0 0.0
    %2457 = vmatpush.msra.mxu0 0.0
    %2458 = vmatpush.msra.mxu0 0.0
    %2459 = vmatpush.msra.mxu0 0.0
    %2460 = vmatpush.msra.mxu0 0.0
    %2461 = vmatpush.msra.mxu0 0.0
    %2462 = vmatpush.msra.mxu0 0.0
    %2463 = vmatpush.msra.mxu0 0.0
    %2464 = vmatpush.msra.mxu0 0.0
    %2465 = vmatpush.msra.mxu0 0.0
    %2466 = vmatpush.msra.mxu0 0.0
    %2467 = vmatpush.msra.mxu0 %v2447
    %2468 = vmatmul.f32.gmra.mxu0 %v2450
    %v2469 = vpop.f32.mrf.mxu0
    %v2470 = vadd.f32 0.0, %v2469
    %2471 = vdwg.mxu0
    %v2473 = vrot.slane %v2470, 7
    %2474 = vrot.lane.b32.xlu0 %v2473, 16
    %v2475 = vpop.permute.xlu0 %2474
    %v2477 = vadd.f32 %v1951, %v2475
    %2478 = vrot.lane.b32.xlu0 %v2266, 104
    %v2479 = vpop.permute.xlu0 %2478
    %2480 = vrot.lane.b32.xlu0 %v1983, 104
    %v2481 = vpop.permute.xlu0 %2480
    %v2482 = vsel %vm446, %v2479, 0
    %v2484 = vsel %vm446, %v2481, 0
    %2486 = vmatpush.xpose.msra.mxu0 0.0
    %2487 = vmatpush.xpose.msra.mxu0 0.0
    %2488 = vmatpush.xpose.msra.mxu0 0.0
    %2489 = vmatpush.xpose.msra.mxu0 0.0
    %2490 = vmatpush.xpose.msra.mxu0 0.0
    %2491 = vmatpush.xpose.msra.mxu0 0.0
    %2492 = vmatpush.xpose.msra.mxu0 0.0
    %2493 = vmatpush.xpose.msra.mxu0 0.0
    %2494 = vmatpush.xpose.msra.mxu0 0.0
    %2495 = vmatpush.xpose.msra.mxu0 0.0
    %2496 = vmatpush.xpose.msra.mxu0 0.0
    %2497 = vmatpush.xpose.msra.mxu0 0.0
    %2498 = vmatpush.xpose.msra.mxu0 0.0
    %2499 = vmatpush.xpose.msra.mxu0 0.0
    %2500 = vmatpush.xpose.msra.mxu0 0.0
    %2501 = vmatpush.xpose.msra.mxu0 %v2484
    %2502 = vmatmul.f32.gmra.mxu0 %v2482
    %v2503 = vpop.f32.mrf.mxu0
    %v2504 = vadd.f32 0.0, %v2503
    %2505 = vdwg.mxu0
    %v2506 = vmul.f32 %v2504, 0.17677669
    %v2507 = vsel %vm865, %v2506, -inf
    %2508 = vmax.xlane.f32.xlu0 %v2507
    %v2509 = vpop.xlane.xlu0 %2508
    %v2510 = vsub.f32 %v2506, %v2509
    %v2511 = vmul.f32 %v2510, 1.442695
    %v2512 = vpow.pop %v2511
    %v2513 = vsel %vm865, %v2512, 0.0
    %2514 = vadd.xlane.f32.xlu0 %v2513
    %v2515 = vpop.xlane.xlu0 %2514
    %v2516 = vrcp.pop %v2515
    %v2517 = vmul.f32 %v2512, %v2516
    %2518 = vrot.lane.b32.xlu0 %v1983, 72
    %v2519 = vpop.permute.xlu0 %2518
    %v2522 = vsel %vm446, %v2517, 0
    %2524 = vmatpush.msra.mxu0 0.0
    %2525 = vmatpush.msra.mxu0 0.0
    %2526 = vmatpush.msra.mxu0 0.0
    %2527 = vmatpush.msra.mxu0 0.0
    %2528 = vmatpush.msra.mxu0 0.0
    %2529 = vmatpush.msra.mxu0 0.0
    %2530 = vmatpush.msra.mxu0 0.0
    %2531 = vmatpush.msra.mxu0 0.0
    %2532 = vmatpush.msra.mxu0 0.0
    %2533 = vmatpush.msra.mxu0 0.0
    %2534 = vmatpush.msra.mxu0 0.0
    %2535 = vmatpush.msra.mxu0 0.0
    %2536 = vmatpush.msra.mxu0 0.0
    %2537 = vmatpush.msra.mxu0 0.0
    %2538 = vmatpush.msra.mxu0 0.0
    %2539 = vmatpush.msra.mxu0 %v2519
    %2540 = vmatmul.f32.gmra.mxu0 %v2522
    %v2541 = vpop.f32.mrf.mxu0
    %v2542 = vadd.f32 0.0, %v2541
    %2543 = vdwg.mxu0
    %v2545 = vrot.slane %v2542, 7
    %2546 = vrot.lane.b32.xlu0 %v2545, 24
    %v2547 = vpop.permute.xlu0 %2546
    %v2549 = vadd.f32 %v1951, %v2547
    %v2550 = vsel %vm446, %v2333, %v2405
    %v2551 = vsel %vm660, %v2550, %v2477
    %v2552 = vsel %vm502, %v2551, %v2549
    %v2553 = vsel %vm763, %v2265, %v2552
    %v2555 = vperm.slane %v1926, 0
    %v2558 = vsel %vm542, %v2553, 0
    %2560 = vmatpush.msra.mxu0 0.0
    %2561 = vmatpush.msra.mxu0 0.0
    %2562 = vmatpush.msra.mxu0 0.0
    %2563 = vmatpush.msra.mxu0 0.0
    %2564 = vmatpush.msra.mxu0 0.0
    %2565 = vmatpush.msra.mxu0 0.0
    %2566 = vmatpush.msra.mxu0 0.0
    %2567 = vmatpush.msra.mxu0 0.0
    %2568 = vmatpush.msra.mxu0 0.0
    %2569 = vmatpush.msra.mxu0 0.0
    %2570 = vmatpush.msra.mxu0 0.0
    %2571 = vmatpush.msra.mxu0 0.0
    %2572 = vmatpush.msra.mxu0 %v1924
    %2573 = vmatpush.msra.mxu0 %v1923
    %2574 = vmatpush.msra.mxu0 %v1922
    %2575 = vmatpush.msra.mxu0 %v1921
    %2576 = vmatmul.f32.gmra.mxu0 %v2558
    %v2577 = vpop.f32.mrf.mxu0
    %v2578 = vadd.f32 %v2555, %v2577
    %2579 = vdwg.mxu0
    %v2580 = vmax.f32 %v2578, 0.0
    %v2581 = vadd.f32 %v2553, %v2580
    %s2582 = scalar_lea.vmem [#allocation6], 32
    %v2583 = vld [vmem:[%s2582] sm:$0xff]
    %v2584 = vld [vmem:[%s2582 + $0x8] sm:$0xff]
    %v2585 = vld [vmem:[%s2582 + $0x10] sm:$0xff]
    %v2586 = vld [vmem:[%s2582 + $0x18] sm:$0xff]
    %s2587 = scalar_lea.vmem %s33, 1
    %v2588 = vld [vmem:[%s2587] sm:$0x1]
    %s2589 = scalar_lea.vmem [#allocation7], 32
    %v2590 = vld [vmem:[%s2589] sm:$0xff]
    %v2591 = vld [vmem:[%s2589 + $0x8] sm:$0xff]
    %v2592 = vld [vmem:[%s2589 + $0x10] sm:$0xff]
    %v2593 = vld [vmem:[%s2589 + $0x18] sm:$0xff]
    %s2594 = scalar_lea.vmem %s37, 1
    %v2595 = vld [vmem:[%s2594] sm:$0x1]
    %s2596 = scalar_lea.vmem [#allocation9], 32
    %v2597 = vld [vmem:[%s2596] sm:$0xff]
    %v2598 = vld [vmem:[%s2596 + $0x8] sm:$0xff]
    %v2599 = vld [vmem:[%s2596 + $0x10] sm:$0xff]
    %v2600 = vld [vmem:[%s2596 + $0x18] sm:$0xff]
    %s2601 = scalar_lea.vmem %s41, 1
    %v2602 = vld [vmem:[%s2601] sm:$0x1]
    %v2604 = vperm.slane %v2588, 0
    %2606 = vmatpush.msra.mxu0 0.0
    %2607 = vmatpush.msra.mxu0 0.0
    %2608 = vmatpush.msra.mxu0 0.0
    %2609 = vmatpush.msra.mxu0 0.0
    %2610 = vmatpush.msra.mxu0 0.0
    %2611 = vmatpush.msra.mxu0 0.0
    %2612 = vmatpush.msra.mxu0 0.0
    %2613 = vmatpush.msra.mxu0 0.0
    %2614 = vmatpush.msra.mxu0 0.0
    %2615 = vmatpush.msra.mxu0 0.0
    %2616 = vmatpush.msra.mxu0 0.0
    %2617 = vmatpush.msra.mxu0 0.0
    %2618 = vmatpush.msra.mxu0 %v2586
    %2619 = vmatpush.msra.mxu0 %v2585
    %2620 = vmatpush.msra.mxu0 %v2584
    %2621 = vmatpush.msra.mxu0 %v2583
    %2622 = vmatmul.f32.gmra.mxu0 %v1957
    %v2623 = vpop.f32.mrf.mxu0
    %v2624 = vadd.f32 %v2604, %v2623
    %2625 = vmatmul.f32.gmra.mxu0 %v1960
    %v2626 = vpop.f32.mrf.mxu0
    %v2627 = vadd.f32 %v2604, %v2626
    %2628 = vdwg.mxu0
    %v2630 = vperm.slane %v2595, 0
    %v2633 = vsel %vm542, %v2581, 0
    %2635 = vmatpush.msra.mxu0 0.0
    %2636 = vmatpush.msra.mxu0 0.0
    %2637 = vmatpush.msra.mxu0 0.0
    %2638 = vmatpush.msra.mxu0 0.0
    %2639 = vmatpush.msra.mxu0 0.0
    %2640 = vmatpush.msra.mxu0 0.0
    %2641 = vmatpush.msra.mxu0 0.0
    %2642 = vmatpush.msra.mxu0 0.0
    %2643 = vmatpush.msra.mxu0 0.0
    %2644 = vmatpush.msra.mxu0 0.0
    %2645 = vmatpush.msra.mxu0 0.0
    %2646 = vmatpush.msra.mxu0 0.0
    %2647 = vmatpush.msra.mxu0 %v2593
    %2648 = vmatpush.msra.mxu0 %v2592
    %2649 = vmatpush.msra.mxu0 %v2591
    %2650 = vmatpush.msra.mxu0 %v2590
    %2651 = vmatmul.f32.gmra.mxu0 %v2633
    %v2652 = vpop.f32.mrf.mxu0
    %v2653 = vadd.f32 %v2630, %v2652
    %2654 = vdwg.mxu0
    %v2655 = vperm.slane %v2653, 0
    %v2656 = vmul.f32 %v2624, %v2655
    %v2657 = vsel %vm446, %v2656, 0.0
    %2658 = vadd.xlane.f32.xlu0 %v2657
    %v2659 = vpop.xlane.xlu0 %2658
    %v2660 = vmul.f32 %v2659, 0.17677669
    %v2661 = vsub.f32 %v2660, %v2660
    %v2662 = vmul.f32 %v2661, 1.442695
    %v2663 = vpow.pop %v2662
    %v2664 = vadd.f32 %v2663, 0.0
    %v2665 = vrcp.pop %v2664
    %v2666 = vmul.f32 %v2663, %v2665
    %2668 = vrot.lane.b32.xlu0 %v2653, 96
    %v2669 = vpop.permute.xlu0 %2668
    %v2671 = vsel %vm1518, %v2666, 0
    %v2673 = vsel %vm763, %v2669, 0
    %2675 = vmatpush.msra.mxu0 0.0
    %2676 = vmatpush.msra.mxu0 0.0
    %2677 = vmatpush.msra.mxu0 0.0
    %2678 = vmatpush.msra.mxu0 0.0
    %2679 = vmatpush.msra.mxu0 0.0
    %2680 = vmatpush.msra.mxu0 0.0
    %2681 = vmatpush.msra.mxu0 0.0
    %2682 = vmatpush.msra.mxu0 0.0
    %2683 = vmatpush.msra.mxu0 0.0
    %2684 = vmatpush.msra.mxu0 0.0
    %2685 = vmatpush.msra.mxu0 0.0
    %2686 = vmatpush.msra.mxu0 0.0
    %2687 = vmatpush.msra.mxu0 0.0
    %2688 = vmatpush.msra.mxu0 0.0
    %2689 = vmatpush.msra.mxu0 0.0
    %2690 = vmatpush.msra.mxu0 %v2673
    %2691 = vmatmul.f32.gmra.mxu0 %v2671
    %v2692 = vpop.f32.mrf.mxu0
    %v2693 = vadd.f32 0.0, %v2692
    %2694 = vdwg.mxu0
    %v2695 = vadd.f32 %v2624, %v2693
    %2697 = vrot.lane.b32.xlu0 %v2656, 120
    %v2698 = vpop.permute.xlu0 %2697
    %v2700 = vsel %vm446, %v2698, 0.0
    %2701 = vadd.xlane.f32.xlu0 %v2700
    %v2702 = vpop.xlane.xlu0 %2701
    %v2703 = vmul.f32 %v2702, 0.17677669
    %v2704 = vsub.f32 %v2703, %v2703
    %v2705 = vmul.f32 %v2704, 1.442695
    %v2706 = vpow.pop %v2705
    %v2707 = vadd.f32 %v2706, 0.0
    %v2708 = vrcp.pop %v2707
    %v2709 = vmul.f32 %v2706, %v2708
    %2710 = vrot.lane.b32.xlu0 %v2653, 88
    %v2711 = vpop.permute.xlu0 %2710
    %v2713 = vsel %vm1518, %v2709, 0
    %v2715 = vsel %vm763, %v2711, 0
    %2717 = vmatpush.msra.mxu0 0.0
    %2718 = vmatpush.msra.mxu0 0.0
    %2719 = vmatpush.msra.mxu0 0.0
    %2720 = vmatpush.msra.mxu0 0.0
    %2721 = vmatpush.msra.mxu0 0.0
    %2722 = vmatpush.msra.mxu0 0.0
    %2723 = vmatpush.msra.mxu0 0.0
    %2724 = vmatpush.msra.mxu0 0.0
    %2725 = vmatpush.msra.mxu0 0.0
    %2726 = vmatpush.msra.mxu0 0.0
    %2727 = vmatpush.msra.mxu0 0.0
    %2728 = vmatpush.msra.mxu0 0.0
    %2729 = vmatpush.msra.mxu0 0.0
    %2730 = vmatpush.msra.mxu0 0.0
    %2731 = vmatpush.msra.mxu0 0.0
    %2732 = vmatpush.msra.mxu0 %v2715
    %2733 = vmatmul.f32.gmra.mxu0 %v2713
    %v2734 = vpop.f32.mrf.mxu0
    %v2735 = vadd.f32 0.0, %v2734
    %2736 = vdwg.mxu0
    %2738 = vrot.lane.b32.xlu0 %v2735, 8
    %v2739 = vpop.permute.xlu0 %2738
    %v2741 = vadd.f32 %v2624, %v2739
    %2742 = vrot.lane.b32.xlu0 %v2656, 112
    %v2743 = vpop.permute.xlu0 %2742
    %v2745 = vsel %vm446, %v2743, 0.0
    %2746 = vadd.xlane.f32.xlu0 %v2745
    %v2747 = vpop.xlane.xlu0 %2746
    %v2748 = vmul.f32 %v2747, 0.17677669
    %v2749 = vsub.f32 %v2748, %v2748
    %v2750 = vmul.f32 %v2749, 1.442695
    %v2751 = vpow.pop %v2750
    %v2752 = vadd.f32 %v2751, 0.0
    %v2753 = vrcp.pop %v2752
    %v2754 = vmul.f32 %v2751, %v2753
    %2755 = vrot.lane.b32.xlu0 %v2653, 80
    %v2756 = vpop.permute.xlu0 %2755
    %v2758 = vsel %vm1518, %v2754, 0
    %v2760 = vsel %vm763, %v2756, 0
    %2762 = vmatpush.msra.mxu0 0.0
    %2763 = vmatpush.msra.mxu0 0.0
    %2764 = vmatpush.msra.mxu0 0.0
    %2765 = vmatpush.msra.mxu0 0.0
    %2766 = vmatpush.msra.mxu0 0.0
    %2767 = vmatpush.msra.mxu0 0.0
    %2768 = vmatpush.msra.mxu0 0.0
    %2769 = vmatpush.msra.mxu0 0.0
    %2770 = vmatpush.msra.mxu0 0.0
    %2771 = vmatpush.msra.mxu0 0.0
    %2772 = vmatpush.msra.mxu0 0.0
    %2773 = vmatpush.msra.mxu0 0.0
    %2774 = vmatpush.msra.mxu0 0.0
    %2775 = vmatpush.msra.mxu0 0.0
    %2776 = vmatpush.msra.mxu0 0.0
    %2777 = vmatpush.msra.mxu0 %v2760
    %2778 = vmatmul.f32.gmra.mxu0 %v2758
    %v2779 = vpop.f32.mrf.mxu0
    %v2780 = vadd.f32 0.0, %v2779
    %2781 = vdwg.mxu0
    %2783 = vrot.lane.b32.xlu0 %v2780, 16
    %v2784 = vpop.permute.xlu0 %2783
    %v2786 = vadd.f32 %v2624, %v2784
    %2787 = vrot.lane.b32.xlu0 %v2656, 104
    %v2788 = vpop.permute.xlu0 %2787
    %v2790 = vsel %vm446, %v2788, 0.0
    %2791 = vadd.xlane.f32.xlu0 %v2790
    %v2792 = vpop.xlane.xlu0 %2791
    %v2793 = vmul.f32 %v2792, 0.17677669
    %v2794 = vsub.f32 %v2793, %v2793
    %v2795 = vmul.f32 %v2794, 1.442695
    %v2796 = vpow.pop %v2795
    %v2797 = vadd.f32 %v2796, 0.0
    %v2798 = vrcp.pop %v2797
    %v2799 = vmul.f32 %v2796, %v2798
    %2800 = vrot.lane.b32.xlu0 %v2653, 72
    %v2801 = vpop.permute.xlu0 %2800
    %v2803 = vsel %vm1518, %v2799, 0
    %v2805 = vsel %vm763, %v2801, 0
    %2807 = vmatpush.msra.mxu0 0.0
    %2808 = vmatpush.msra.mxu0 0.0
    %2809 = vmatpush.msra.mxu0 0.0
    %2810 = vmatpush.msra.mxu0 0.0
    %2811 = vmatpush.msra.mxu0 0.0
    %2812 = vmatpush.msra.mxu0 0.0
    %2813 = vmatpush.msra.mxu0 0.0
    %2814 = vmatpush.msra.mxu0 0.0
    %2815 = vmatpush.msra.mxu0 0.0
    %2816 = vmatpush.msra.mxu0 0.0
    %2817 = vmatpush.msra.mxu0 0.0
    %2818 = vmatpush.msra.mxu0 0.0
    %2819 = vmatpush.msra.mxu0 0.0
    %2820 = vmatpush.msra.mxu0 0.0
    %2821 = vmatpush.msra.mxu0 0.0
    %2822 = vmatpush.msra.mxu0 %v2805
    %2823 = vmatmul.f32.gmra.mxu0 %v2803
    %v2824 = vpop.f32.mrf.mxu0
    %v2825 = vadd.f32 0.0, %v2824
    %2826 = vdwg.mxu0
    %2828 = vrot.lane.b32.xlu0 %v2825, 24
    %v2829 = vpop.permute.xlu0 %2828
    %v2831 = vadd.f32 %v2624, %v2829
    %v2832 = vsel %vm446, %v2695, %v2741
    %v2833 = vsel %vm660, %v2832, %v2786
    %v2834 = vsel %vm502, %v2833, %v2831
    %v2835 = vperm.slane %v2653, 1
    %v2836 = vmul.f32 %v2627, %v2835
    %v2837 = vsel %vm446, %v2836, 0.0
    %2838 = vadd.xlane.f32.xlu0 %v2837
    %v2839 = vpop.xlane.xlu0 %2838
    %v2840 = vmul.f32 %v2839, 0.17677669
    %v2841 = vsub.f32 %v2840, %v2840
    %v2842 = vmul.f32 %v2841, 1.442695
    %v2843 = vpow.pop %v2842
    %v2844 = vadd.f32 %v2843, 0.0
    %v2845 = vrcp.pop %v2844
    %v2846 = vmul.f32 %v2843, %v2845
    %v2847 = vrot.slane %v2653, 1
    %2848 = vrot.lane.b32.xlu0 %v2847, 96
    %v2849 = vpop.permute.xlu0 %2848
    %v2851 = vsel %vm1518, %v2846, 0
    %v2853 = vsel %vm763, %v2849, 0
    %2855 = vmatpush.msra.mxu0 0.0
    %2856 = vmatpush.msra.mxu0 0.0
    %2857 = vmatpush.msra.mxu0 0.0
    %2858 = vmatpush.msra.mxu0 0.0
    %2859 = vmatpush.msra.mxu0 0.0
    %2860 = vmatpush.msra.mxu0 0.0
    %2861 = vmatpush.msra.mxu0 0.0
    %2862 = vmatpush.msra.mxu0 0.0
    %2863 = vmatpush.msra.mxu0 0.0
    %2864 = vmatpush.msra.mxu0 0.0
    %2865 = vmatpush.msra.mxu0 0.0
    %2866 = vmatpush.msra.mxu0 0.0
    %2867 = vmatpush.msra.mxu0 0.0
    %2868 = vmatpush.msra.mxu0 0.0
    %2869 = vmatpush.msra.mxu0 0.0
    %2870 = vmatpush.msra.mxu0 %v2853
    %2871 = vmatmul.f32.gmra.mxu0 %v2851
    %v2872 = vpop.f32.mrf.mxu0
    %v2873 = vadd.f32 0.0, %v2872
    %2874 = vdwg.mxu0
    %v2875 = vadd.f32 %v2627, %v2873
    %2877 = vrot.lane.b32.xlu0 %v2836, 120
    %v2878 = vpop.permute.xlu0 %2877
    %v2880 = vsel %vm446, %v2878, 0.0
    %2881 = vadd.xlane.f32.xlu0 %v2880
    %v2882 = vpop.xlane.xlu0 %2881
    %v2883 = vmul.f32 %v2882, 0.17677669
    %v2884 = vsub.f32 %v2883, %v2883
    %v2885 = vmul.f32 %v2884, 1.442695
    %v2886 = vpow.pop %v2885
    %v2887 = vadd.f32 %v2886, 0.0
    %v2888 = vrcp.pop %v2887
    %v2889 = vmul.f32 %v2886, %v2888
    %2890 = vrot.lane.b32.xlu0 %v2847, 88
    %v2891 = vpop.permute.xlu0 %2890
    %v2893 = vsel %vm1518, %v2889, 0
    %v2895 = vsel %vm763, %v2891, 0
    %2897 = vmatpush.msra.mxu0 0.0
    %2898 = vmatpush.msra.mxu0 0.0
    %2899 = vmatpush.msra.mxu0 0.0
    %2900 = vmatpush.msra.mxu0 0.0
    %2901 = vmatpush.msra.mxu0 0.0
    %2902 = vmatpush.msra.mxu0 0.0
    %2903 = vmatpush.msra.mxu0 0.0
    %2904 = vmatpush.msra.mxu0 0.0
    %2905 = vmatpush.msra.mxu0 0.0
    %2906 = vmatpush.msra.mxu0 0.0
    %2907 = vmatpush.msra.mxu0 0.0
    %2908 = vmatpush.msra.mxu0 0.0
    %2909 = vmatpush.msra.mxu0 0.0
    %2910 = vmatpush.msra.mxu0 0.0
    %2911 = vmatpush.msra.mxu0 0.0
    %2912 = vmatpush.msra.mxu0 %v2895
    %2913 = vmatmul.f32.gmra.mxu0 %v2893
    %v2914 = vpop.f32.mrf.mxu0
    %v2915 = vadd.f32 0.0, %v2914
    %2916 = vdwg.mxu0
    %2918 = vrot.lane.b32.xlu0 %v2915, 8
    %v2919 = vpop.permute.xlu0 %2918
    %v2921 = vadd.f32 %v2627, %v2919
    %2922 = vrot.lane.b32.xlu0 %v2836, 112
    %v2923 = vpop.permute.xlu0 %2922
    %v2925 = vsel %vm446, %v2923, 0.0
    %2926 = vadd.xlane.f32.xlu0 %v2925
    %v2927 = vpop.xlane.xlu0 %2926
    %v2928 = vmul.f32 %v2927, 0.17677669
    %v2929 = vsub.f32 %v2928, %v2928
    %v2930 = vmul.f32 %v2929, 1.442695
    %v2931 = vpow.pop %v2930
    %v2932 = vadd.f32 %v2931, 0.0
    %v2933 = vrcp.pop %v2932
    %v2934 = vmul.f32 %v2931, %v2933
    %2935 = vrot.lane.b32.xlu0 %v2847, 80
    %v2936 = vpop.permute.xlu0 %2935
    %v2938 = vsel %vm1518, %v2934, 0
    %v2940 = vsel %vm763, %v2936, 0
    %2942 = vmatpush.msra.mxu0 0.0
    %2943 = vmatpush.msra.mxu0 0.0
    %2944 = vmatpush.msra.mxu0 0.0
    %2945 = vmatpush.msra.mxu0 0.0
    %2946 = vmatpush.msra.mxu0 0.0
    %2947 = vmatpush.msra.mxu0 0.0
    %2948 = vmatpush.msra.mxu0 0.0
    %2949 = vmatpush.msra.mxu0 0.0
    %2950 = vmatpush.msra.mxu0 0.0
    %2951 = vmatpush.msra.mxu0 0.0
    %2952 = vmatpush.msra.mxu0 0.0
    %2953 = vmatpush.msra.mxu0 0.0
    %2954 = vmatpush.msra.mxu0 0.0
    %2955 = vmatpush.msra.mxu0 0.0
    %2956 = vmatpush.msra.mxu0 0.0
    %2957 = vmatpush.msra.mxu0 %v2940
    %2958 = vmatmul.f32.gmra.mxu0 %v2938
    %v2959 = vpop.f32.mrf.mxu0
    %v2960 = vadd.f32 0.0, %v2959
    %2961 = vdwg.mxu0
    %2963 = vrot.lane.b32.xlu0 %v2960, 16
    %v2964 = vpop.permute.xlu0 %2963
    %v2966 = vadd.f32 %v2627, %v2964
    %2967 = vrot.lane.b32.xlu0 %v2836, 104
    %v2968 = vpop.permute.xlu0 %2967
    %v2970 = vsel %vm446, %v2968, 0.0
    %2971 = vadd.xlane.f32.xlu0 %v2970
    %v2972 = vpop.xlane.xlu0 %2971
    %v2973 = vmul.f32 %v2972, 0.17677669
    %v2974 = vsub.f32 %v2973, %v2973
    %v2975 = vmul.f32 %v2974, 1.442695
    %v2976 = vpow.pop %v2975
    %v2977 = vadd.f32 %v2976, 0.0
    %v2978 = vrcp.pop %v2977
    %v2979 = vmul.f32 %v2976, %v2978
    %2980 = vrot.lane.b32.xlu0 %v2847, 72
    %v2981 = vpop.permute.xlu0 %2980
    %v2983 = vsel %vm1518, %v2979, 0
    %v2985 = vsel %vm763, %v2981, 0
    %2987 = vmatpush.msra.mxu0 0.0
    %2988 = vmatpush.msra.mxu0 0.0
    %2989 = vmatpush.msra.mxu0 0.0
    %2990 = vmatpush.msra.mxu0 0.0
    %2991 = vmatpush.msra.mxu0 0.0
    %2992 = vmatpush.msra.mxu0 0.0
    %2993 = vmatpush.msra.mxu0 0.0
    %2994 = vmatpush.msra.mxu0 0.0
    %2995 = vmatpush.msra.mxu0 0.0
    %2996 = vmatpush.msra.mxu0 0.0
    %2997 = vmatpush.msra.mxu0 0.0
    %2998 = vmatpush.msra.mxu0 0.0
    %2999 = vmatpush.msra.mxu0 0.0
    %3000 = vmatpush.msra.mxu0 0.0
    %3001 = vmatpush.msra.mxu0 0.0
    %3002 = vmatpush.msra.mxu0 %v2985
    %3003 = vmatmul.f32.gmra.mxu0 %v2983
    %v3004 = vpop.f32.mrf.mxu0
    %v3005 = vadd.f32 0.0, %v3004
    %3006 = vdwg.mxu0
    %3008 = vrot.lane.b32.xlu0 %v3005, 24
    %v3009 = vpop.permute.xlu0 %3008
    %v3011 = vadd.f32 %v2627, %v3009
    %v3012 = vsel %vm446, %v2875, %v2921
    %v3013 = vsel %vm660, %v3012, %v2966
    %v3014 = vsel %vm502, %v3013, %v3011
    %v3016 = vperm.slane %v2602, 0
    %v3019 = vsel %vm542, %v2834, 0
    %v3022 = vsel %vm542, %v3014, 0
    %3024 = vmatpush.msra.mxu0 0.0
    %3025 = vmatpush.msra.mxu0 0.0
    %3026 = vmatpush.msra.mxu0 0.0
    %3027 = vmatpush.msra.mxu0 0.0
    %3028 = vmatpush.msra.mxu0 0.0
    %3029 = vmatpush.msra.mxu0 0.0
    %3030 = vmatpush.msra.mxu0 0.0
    %3031 = vmatpush.msra.mxu0 0.0
    %3032 = vmatpush.msra.mxu0 0.0
    %3033 = vmatpush.msra.mxu0 0.0
    %3034 = vmatpush.msra.mxu0 0.0
    %3035 = vmatpush.msra.mxu0 0.0
    %3036 = vmatpush.msra.mxu0 %v2600
    %3037 = vmatpush.msra.mxu0 %v2599
    %3038 = vmatpush.msra.mxu0 %v2598
    %3039 = vmatpush.msra.mxu0 %v2597
    %3040 = vmatmul.f32.gmra.mxu0 %v3019
    %v3041 = vpop.f32.mrf.mxu0
    %v3042 = vadd.f32 %v3016, %v3041
    %3043 = vmatmul.f32.gmra.mxu0 %v3022
    %v3044 = vpop.f32.mrf.mxu0
    %v3045 = vadd.f32 %v3016, %v3044
    %3046 = vdwg.mxu0
    %v3047 = vmax.f32 %v3042, 0.0
    %v3048 = vmax.f32 %v3045, 0.0
    %v3049 = vadd.f32 %v2834, %v3047
    %v3050 = vadd.f32 %v3014, %v3048
    %v3051 = vld [vmem:[#allocation10] sm:$0x1]
    %v3053 = vperm.slane %v3051, 0
    %v3055 = vsel %vm763, %v3051, %v3053
    %v3056 = vld [vmem:[#allocation12] sm:$0xff]
    %v3057 = vld [vmem:[#allocation12 + $0x8] sm:$0xff]
    %v3058 = vld [vmem:[#allocation12 + $0x10] sm:$0xff]
    %v3059 = vld [vmem:[#allocation12 + $0x18] sm:$0xff]
    %v3060 = vld [vmem:[#allocation13] sm:$0x1]
    %v3061 = vld [vmem:[#allocation15] sm:$0xff]
    %v3062 = vld [vmem:[#allocation15 + $0x8] sm:$0xff]
    %v3063 = vld [vmem:[#allocation15 + $0x10] sm:$0xff]
    %v3064 = vld [vmem:[#allocation15 + $0x18] sm:$0xff]
    %v3065 = vld [vmem:[#allocation16] sm:$0x1]
    %v3066 = vld [vmem:[#allocation18] sm:$0xff]
    %v3067 = vld [vmem:[#allocation18 + $0x8] sm:$0xff]
    %v3068 = vld [vmem:[#allocation18 + $0x10] sm:$0xff]
    %v3069 = vld [vmem:[#allocation18 + $0x18] sm:$0xff]
    %v3070 = vld [vmem:[#allocation19] sm:$0x1]
    %v3072 = vperm.slane %v3060, 0
    %v3075 = vsel %vm542, %v3055, 0
    %3077 = vmatpush.msra.mxu0 0.0
    %3078 = vmatpush.msra.mxu0 0.0
    %3079 = vmatpush.msra.mxu0 0.0
    %3080 = vmatpush.msra.mxu0 0.0
    %3081 = vmatpush.msra.mxu0 0.0
    %3082 = vmatpush.msra.mxu0 0.0
    %3083 = vmatpush.msra.mxu0 0.0
    %3084 = vmatpush.msra.mxu0 0.0
    %3085 = vmatpush.msra.mxu0 0.0
    %3086 = vmatpush.msra.mxu0 0.0
    %3087 = vmatpush.msra.mxu0 0.0
    %3088 = vmatpush.msra.mxu0 0.0
    %3089 = vmatpush.msra.mxu0 %v3059
    %3090 = vmatpush.msra.mxu0 %v3058
    %3091 = vmatpush.msra.mxu0 %v3057
    %3092 = vmatpush.msra.mxu0 %v3056
    %3093 = vmatmul.f32.gmra.mxu0 %v3075
    %v3094 = vpop.f32.mrf.mxu0
    %v3095 = vadd.f32 %v3072, %v3094
    %3096 = vdwg.mxu0
    %v3098 = vperm.slane %v3065, 0
    %v3101 = vsel %vm542, %v3049, 0
    %v3104 = vsel %vm542, %v3050, 0
    %3106 = vmatpush.msra.mxu0 0.0
    %3107 = vmatpush.msra.mxu0 0.0
    %3108 = vmatpush.msra.mxu0 0.0
    %3109 = vmatpush.msra.mxu0 0.0
    %3110 = vmatpush.msra.mxu0 0.0
    %3111 = vmatpush.msra.mxu0 0.0
    %3112 = vmatpush.msra.mxu0 0.0
    %3113 = vmatpush.msra.mxu0 0.0
    %3114 = vmatpush.msra.mxu0 0.0
    %3115 = vmatpush.msra.mxu0 0.0
    %3116 = vmatpush.msra.mxu0 0.0
    %3117 = vmatpush.msra.mxu0 0.0
    %3118 = vmatpush.msra.mxu0 %v3064
    %3119 = vmatpush.msra.mxu0 %v3063
    %3120 = vmatpush.msra.mxu0 %v3062
    %3121 = vmatpush.msra.mxu0 %v3061
    %3122 = vmatmul.f32.gmra.mxu0 %v3101
    %v3123 = vpop.f32.mrf.mxu0
    %v3124 = vadd.f32 %v3098, %v3123
    %3125 = vmatmul.f32.gmra.mxu0 %v3104
    %v3126 = vpop.f32.mrf.mxu0
    %v3127 = vadd.f32 %v3098, %v3126
    %3128 = vdwg.mxu0
    %v3130 = vsel %vm446, %v3095, 0
    %v3133 = vsel %vm446, %v3124, 0
    %3135 = vmatpush.xpose.msra.mxu0 0.0
    %3136 = vmatpush.xpose.msra.mxu0 0.0
    %3137 = vmatpush.xpose.msra.mxu0 0.0
    %3138 = vmatpush.xpose.msra.mxu0 0.0
    %3139 = vmatpush.xpose.msra.mxu0 0.0
    %3140 = vmatpush.xpose.msra.mxu0 0.0
    %3141 = vmatpush.xpose.msra.mxu0 0.0
    %3142 = vmatpush.xpose.msra.mxu0 0.0
    %3143 = vmatpush.xpose.msra.mxu0 0.0
    %3144 = vmatpush.xpose.msra.mxu0 0.0
    %3145 = vmatpush.xpose.msra.mxu0 0.0
    %3146 = vmatpush.xpose.msra.mxu0 0.0
    %3147 = vmatpush.xpose.msra.mxu0 0.0
    %3148 = vmatpush.xpose.msra.mxu0 0.0
    %3149 = vmatpush.xpose.msra.mxu0 0.0
    %3150 = vmatpush.xpose.msra.mxu0 %v3133
    %3151 = vmatmul.f32.gmra.mxu0 %v3130
    %v3152 = vpop.f32.mrf.mxu0
    %v3153 = vadd.f32 0.0, %v3152
    %3154 = vdwg.mxu0
    %v3155 = vmul.f32 %v3153, 0.17677669
    %v3156 = vsel %vm865, %v3155, -inf
    %3157 = vmax.xlane.f32.xlu0 %v3156
    %v3158 = vpop.xlane.xlu0 %3157
    %v3159 = vsub.f32 %v3155, %v3158
    %v3160 = vmul.f32 %v3159, 1.442695
    %v3161 = vpow.pop %v3160
    %v3162 = vsel %vm865, %v3161, 0.0
    %3163 = vadd.xlane.f32.xlu0 %v3162
    %v3164 = vpop.xlane.xlu0 %3163
    %v3165 = vrcp.pop %v3164
    %v3166 = vmul.f32 %v3161, %v3165
    %3167 = vrot.lane.b32.xlu0 %v3124, 96
    %v3168 = vpop.permute.xlu0 %3167
    %v3171 = vsel %vm446, %v3166, 0
    %3173 = vmatpush.msra.mxu0 0.0
    %3174 = vmatpush.msra.mxu0 0.0
    %3175 = vmatpush.msra.mxu0 0.0
    %3176 = vmatpush.msra.mxu0 0.0
    %3177 = vmatpush.msra.mxu0 0.0
    %3178 = vmatpush.msra.mxu0 0.0
    %3179 = vmatpush.msra.mxu0 0.0
    %3180 = vmatpush.msra.mxu0 0.0
    %3181 = vmatpush.msra.mxu0 0.0
    %3182 = vmatpush.msra.mxu0 0.0
    %3183 = vmatpush.msra.mxu0 0.0
    %3184 = vmatpush.msra.mxu0 0.0
    %3185 = vmatpush.msra.mxu0 0.0
    %3186 = vmatpush.msra.mxu0 0.0
    %3187 = vmatpush.msra.mxu0 0.0
    %3188 = vmatpush.msra.mxu0 %v3168
    %3189 = vmatmul.f32.gmra.mxu0 %v3171
    %v3190 = vpop.f32.mrf.mxu0
    %v3191 = vadd.f32 0.0, %v3190
    %3192 = vdwg.mxu0
    %v3193 = vadd.f32 %v3095, %v3191
    %3194 = vrot.lane.b32.xlu0 %v3095, 120
    %v3195 = vpop.permute.xlu0 %3194
    %3196 = vrot.lane.b32.xlu0 %v3124, 120
    %v3197 = vpop.permute.xlu0 %3196
    %v3198 = vsel %vm446, %v3195, 0
    %v3200 = vsel %vm446, %v3197, 0
    %3202 = vmatpush.xpose.msra.mxu0 0.0
    %3203 = vmatpush.xpose.msra.mxu0 0.0
    %3204 = vmatpush.xpose.msra.mxu0 0.0
    %3205 = vmatpush.xpose.msra.mxu0 0.0
    %3206 = vmatpush.xpose.msra.mxu0 0.0
    %3207 = vmatpush.xpose.msra.mxu0 0.0
    %3208 = vmatpush.xpose.msra.mxu0 0.0
    %3209 = vmatpush.xpose.msra.mxu0 0.0
    %3210 = vmatpush.xpose.msra.mxu0 0.0
    %3211 = vmatpush.xpose.msra.mxu0 0.0
    %3212 = vmatpush.xpose.msra.mxu0 0.0
    %3213 = vmatpush.xpose.msra.mxu0 0.0
    %3214 = vmatpush.xpose.msra.mxu0 0.0
    %3215 = vmatpush.xpose.msra.mxu0 0.0
    %3216 = vmatpush.xpose.msra.mxu0 0.0
    %3217 = vmatpush.xpose.msra.mxu0 %v3200
    %3218 = vmatmul.f32.gmra.mxu0 %v3198
    %v3219 = vpop.f32.mrf.mxu0
    %v3220 = vadd.f32 0.0, %v3219
    %3221 = vdwg.mxu0
    %v3222 = vmul.f32 %v3220, 0.17677669
    %v3223 = vsel %vm865, %v3222, -inf
    %3224 = vmax.xlane.f32.xlu0 %v3223
    %v3225 = vpop.xlane.xlu0 %3224
    %v3226 = vsub.f32 %v3222, %v3225
    %v3227 = vmul.f32 %v3226, 1.442695
    %v3228 = vpow.pop %v3227
    %v3229 = vsel %vm865, %v3228, 0.0
    %3230 = vadd.xlane.f32.xlu0 %v3229
    %v3231 = vpop.xlane.xlu0 %3230
    %v3232 = vrcp.pop %v3231
    %v3233 = vmul.f32 %v3228, %v3232
    %3234 = vrot.lane.b32.xlu0 %v3124, 88
    %v3235 = vpop.permute.xlu0 %3234
    %v3238 = vsel %vm446, %v3233, 0
    %3240 = vmatpush.msra.mxu0 0.0
    %3241 = vmatpush.msra.mxu0 0.0
    %3242 = vmatpush.msra.mxu0 0.0
    %3243 = vmatpush.msra.mxu0 0.0
    %3244 = vmatpush.msra.mxu0 0.0
    %3245 = vmatpush.msra.mxu0 0.0
    %3246 = vmatpush.msra.mxu0 0.0
    %3247 = vmatpush.msra.mxu0 0.0
    %3248 = vmatpush.msra.mxu0 0.0
    %3249 = vmatpush.msra.mxu0 0.0
    %3250 = vmatpush.msra.mxu0 0.0
    %3251 = vmatpush.msra.mxu0 0.0
    %3252 = vmatpush.msra.mxu0 0.0
    %3253 = vmatpush.msra.mxu0 0.0
    %3254 = vmatpush.msra.mxu0 0.0
    %3255 = vmatpush.msra.mxu0 %v3235
    %3256 = vmatmul.f32.gmra.mxu0 %v3238
    %v3257 = vpop.f32.mrf.mxu0
    %v3258 = vadd.f32 0.0, %v3257
    %3259 = vdwg.mxu0
    %3261 = vrot.lane.b32.xlu0 %v3258, 8
    %v3262 = vpop.permute.xlu0 %3261
    %v3264 = vadd.f32 %v3095, %v3262
    %3265 = vrot.lane.b32.xlu0 %v3095, 112
    %v3266 = vpop.permute.xlu0 %3265
    %3267 = vrot.lane.b32.xlu0 %v3124, 112
    %v3268 = vpop.permute.xlu0 %3267
    %v3269 = vsel %vm446, %v3266, 0
    %v3271 = vsel %vm446, %v3268, 0
    %3273 = vmatpush.xpose.msra.mxu0 0.0
    %3274 = vmatpush.xpose.msra.mxu0 0.0
    %3275 = vmatpush.xpose.msra.mxu0 0.0
    %3276 = vmatpush.xpose.msra.mxu0 0.0
    %3277 = vmatpush.xpose.msra.mxu0 0.0
    %3278 = vmatpush.xpose.msra.mxu0 0.0
    %3279 = vmatpush.xpose.msra.mxu0 0.0
    %3280 = vmatpush.xpose.msra.mxu0 0.0
    %3281 = vmatpush.xpose.msra.mxu0 0.0
    %3282 = vmatpush.xpose.msra.mxu0 0.0
    %3283 = vmatpush.xpose.msra.mxu0 0.0
    %3284 = vmatpush.xpose.msra.mxu0 0.0
    %3285 = vmatpush.xpose.msra.mxu0 0.0
    %3286 = vmatpush.xpose.msra.mxu0 0.0
    %3287 = vmatpush.xpose.msra.mxu0 0.0
    %3288 = vmatpush.xpose.msra.mxu0 %v3271
    %3289 = vmatmul.f32.gmra.mxu0 %v3269
    %v3290 = vpop.f32.mrf.mxu0
    %v3291 = vadd.f32 0.0, %v3290
    %3292 = vdwg.mxu0
    %v3293 = vmul.f32 %v3291, 0.17677669
    %v3294 = vsel %vm865, %v3293, -inf
    %3295 = vmax.xlane.f32.xlu0 %v3294
    %v3296 = vpop.xlane.xlu0 %3295
    %v3297 = vsub.f32 %v3293, %v3296
    %v3298 = vmul.f32 %v3297, 1.442695
    %v3299 = vpow.pop %v3298
    %v3300 = vsel %vm865, %v3299, 0.0
    %3301 = vadd.xlane.f32.xlu0 %v3300
    %v3302 = vpop.xlane.xlu0 %3301
    %v3303 = vrcp.pop %v3302
    %v3304 = vmul.f32 %v3299, %v3303
    %3305 = vrot.lane.b32.xlu0 %v3124, 80
    %v3306 = vpop.permute.xlu0 %3305
    %v3309 = vsel %vm446, %v3304, 0
    %3311 = vmatpush.msra.mxu0 0.0
    %3312 = vmatpush.msra.mxu0 0.0
    %3313 = vmatpush.msra.mxu0 0.0
    %3314 = vmatpush.msra.mxu0 0.0
    %3315 = vmatpush.msra.mxu0 0.0
    %3316 = vmatpush.msra.mxu0 0.0
    %3317 = vmatpush.msra.mxu0 0.0
    %3318 = vmatpush.msra.mxu0 0.0
    %3319 = vmatpush.msra.mxu0 0.0
    %3320 = vmatpush.msra.mxu0 0.0
    %3321 = vmatpush.msra.mxu0 0.0
    %3322 = vmatpush.msra.mxu0 0.0
    %3323 = vmatpush.msra.mxu0 0.0
    %3324 = vmatpush.msra.mxu0 0.0
    %3325 = vmatpush.msra.mxu0 0.0
    %3326 = vmatpush.msra.mxu0 %v3306
    %3327 = vmatmul.f32.gmra.mxu0 %v3309
    %v3328 = vpop.f32.mrf.mxu0
    %v3329 = vadd.f32 0.0, %v3328
    %3330 = vdwg.mxu0
    %3332 = vrot.lane.b32.xlu0 %v3329, 16
    %v3333 = vpop.permute.xlu0 %3332
    %v3335 = vadd.f32 %v3095, %v3333
    %3336 = vrot.lane.b32.xlu0 %v3095, 104
    %v3337 = vpop.permute.xlu0 %3336
    %3338 = vrot.lane.b32.xlu0 %v3124, 104
    %v3339 = vpop.permute.xlu0 %3338
    %v3340 = vsel %vm446, %v3337, 0
    %v3342 = vsel %vm446, %v3339, 0
    %3344 = vmatpush.xpose.msra.mxu0 0.0
    %3345 = vmatpush.xpose.msra.mxu0 0.0
    %3346 = vmatpush.xpose.msra.mxu0 0.0
    %3347 = vmatpush.xpose.msra.mxu0 0.0
    %3348 = vmatpush.xpose.msra.mxu0 0.0
    %3349 = vmatpush.xpose.msra.mxu0 0.0
    %3350 = vmatpush.xpose.msra.mxu0 0.0
    %3351 = vmatpush.xpose.msra.mxu0 0.0
    %3352 = vmatpush.xpose.msra.mxu0 0.0
    %3353 = vmatpush.xpose.msra.mxu0 0.0
    %3354 = vmatpush.xpose.msra.mxu0 0.0
    %3355 = vmatpush.xpose.msra.mxu0 0.0
    %3356 = vmatpush.xpose.msra.mxu0 0.0
    %3357 = vmatpush.xpose.msra.mxu0 0.0
    %3358 = vmatpush.xpose.msra.mxu0 0.0
    %3359 = vmatpush.xpose.msra.mxu0 %v3342
    %3360 = vmatmul.f32.gmra.mxu0 %v3340
    %v3361 = vpop.f32.mrf.mxu0
    %v3362 = vadd.f32 0.0, %v3361
    %3363 = vdwg.mxu0
    %v3364 = vmul.f32 %v3362, 0.17677669
    %v3365 = vsel %vm865, %v3364, -inf
    %3366 = vmax.xlane.f32.xlu0 %v3365
    %v3367 = vpop.xlane.xlu0 %3366
    %v3368 = vsub.f32 %v3364, %v3367
    %v3369 = vmul.f32 %v3368, 1.442695
    %v3370 = vpow.pop %v3369
    %v3371 = vsel %vm865, %v3370, 0.0
    %3372 = vadd.xlane.f32.xlu0 %v3371
    %v3373 = vpop.xlane.xlu0 %3372
    %v3374 = vrcp.pop %v3373
    %v3375 = vmul.f32 %v3370, %v3374
    %3376 = vrot.lane.b32.xlu0 %v3124, 72
    %v3377 = vpop.permute.xlu0 %3376
    %v3380 = vsel %vm446, %v3375, 0
    %3382 = vmatpush.msra.mxu0 0.0
    %3383 = vmatpush.msra.mxu0 0.0
    %3384 = vmatpush.msra.mxu0 0.0
    %3385 = vmatpush.msra.mxu0 0.0
    %3386 = vmatpush.msra.mxu0 0.0
    %3387 = vmatpush.msra.mxu0 0.0
    %3388 = vmatpush.msra.mxu0 0.0
    %3389 = vmatpush.msra.mxu0 0.0
    %3390 = vmatpush.msra.mxu0 0.0
    %3391 = vmatpush.msra.mxu0 0.0
    %3392 = vmatpush.msra.mxu0 0.0
    %3393 = vmatpush.msra.mxu0 0.0
    %3394 = vmatpush.msra.mxu0 0.0
    %3395 = vmatpush.msra.mxu0 0.0
    %3396 = vmatpush.msra.mxu0 0.0
    %3397 = vmatpush.msra.mxu0 %v3377
    %3398 = vmatmul.f32.gmra.mxu0 %v3380
    %v3399 = vpop.f32.mrf.mxu0
    %v3400 = vadd.f32 0.0, %v3399
    %3401 = vdwg.mxu0
    %3403 = vrot.lane.b32.xlu0 %v3400, 24
    %v3404 = vpop.permute.xlu0 %3403
    %v3406 = vadd.f32 %v3095, %v3404
    %v3407 = vsel %vm446, %v3193, %v3264
    %v3408 = vsel %vm660, %v3407, %v3335
    %v3409 = vsel %vm502, %v3408, %v3406
    %v3410 = vrot.slane %v3095, 1
    %v3411 = vsel %vm446, %v3410, 0
    %v3414 = vsel %vm446, %v3127, 0
    %3416 = vmatpush.xpose.msra.mxu0 0.0
    %3417 = vmatpush.xpose.msra.mxu0 0.0
    %3418 = vmatpush.xpose.msra.mxu0 0.0
    %3419 = vmatpush.xpose.msra.mxu0 0.0
    %3420 = vmatpush.xpose.msra.mxu0 0.0
    %3421 = vmatpush.xpose.msra.mxu0 0.0
    %3422 = vmatpush.xpose.msra.mxu0 0.0
    %3423 = vmatpush.xpose.msra.mxu0 0.0
    %3424 = vmatpush.xpose.msra.mxu0 0.0
    %3425 = vmatpush.xpose.msra.mxu0 0.0
    %3426 = vmatpush.xpose.msra.mxu0 0.0
    %3427 = vmatpush.xpose.msra.mxu0 0.0
    %3428 = vmatpush.xpose.msra.mxu0 0.0
    %3429 = vmatpush.xpose.msra.mxu0 0.0
    %3430 = vmatpush.xpose.msra.mxu0 0.0
    %3431 = vmatpush.xpose.msra.mxu0 %v3414
    %3432 = vmatmul.f32.gmra.mxu0 %v3411
    %v3433 = vpop.f32.mrf.mxu0
    %v3434 = vadd.f32 0.0, %v3433
    %3435 = vdwg.mxu0
    %v3436 = vmul.f32 %v3434, 0.17677669
    %v3437 = vsel %vm865, %v3436, -inf
    %3438 = vmax.xlane.f32.xlu0 %v3437
    %v3439 = vpop.xlane.xlu0 %3438
    %v3440 = vsub.f32 %v3436, %v3439
    %v3441 = vmul.f32 %v3440, 1.442695
    %v3442 = vpow.pop %v3441
    %v3443 = vsel %vm865, %v3442, 0.0
    %3444 = vadd.xlane.f32.xlu0 %v3443
    %v3445 = vpop.xlane.xlu0 %3444
    %v3446 = vrcp.pop %v3445
    %v3447 = vmul.f32 %v3442, %v3446
    %3448 = vrot.lane.b32.xlu0 %v3127, 96
    %v3449 = vpop.permute.xlu0 %3448
    %v3452 = vsel %vm446, %v3447, 0
    %3454 = vmatpush.msra.mxu0 0.0
    %3455 = vmatpush.msra.mxu0 0.0
    %3456 = vmatpush.msra.mxu0 0.0
    %3457 = vmatpush.msra.mxu0 0.0
    %3458 = vmatpush.msra.mxu0 0.0
    %3459 = vmatpush.msra.mxu0 0.0
    %3460 = vmatpush.msra.mxu0 0.0
    %3461 = vmatpush.msra.mxu0 0.0
    %3462 = vmatpush.msra.mxu0 0.0
    %3463 = vmatpush.msra.mxu0 0.0
    %3464 = vmatpush.msra.mxu0 0.0
    %3465 = vmatpush.msra.mxu0 0.0
    %3466 = vmatpush.msra.mxu0 0.0
    %3467 = vmatpush.msra.mxu0 0.0
    %3468 = vmatpush.msra.mxu0 0.0
    %3469 = vmatpush.msra.mxu0 %v3449
    %3470 = vmatmul.f32.gmra.mxu0 %v3452
    %v3471 = vpop.f32.mrf.mxu0
    %v3472 = vadd.f32 0.0, %v3471
    %3473 = vdwg.mxu0
    %v3475 = vrot.slane %v3472, 7
    %v3477 = vadd.f32 %v3095, %v3475
    %3478 = vrot.lane.b32.xlu0 %v3410, 120
    %v3479 = vpop.permute.xlu0 %3478
    %3480 = vrot.lane.b32.xlu0 %v3127, 120
    %v3481 = vpop.permute.xlu0 %3480
    %v3482 = vsel %vm446, %v3479, 0
    %v3484 = vsel %vm446, %v3481, 0
    %3486 = vmatpush.xpose.msra.mxu0 0.0
    %3487 = vmatpush.xpose.msra.mxu0 0.0
    %3488 = vmatpush.xpose.msra.mxu0 0.0
    %3489 = vmatpush.xpose.msra.mxu0 0.0
    %3490 = vmatpush.xpose.msra.mxu0 0.0
    %3491 = vmatpush.xpose.msra.mxu0 0.0
    %3492 = vmatpush.xpose.msra.mxu0 0.0
    %3493 = vmatpush.xpose.msra.mxu0 0.0
    %3494 = vmatpush.xpose.msra.mxu0 0.0
    %3495 = vmatpush.xpose.msra.mxu0 0.0
    %3496 = vmatpush.xpose.msra.mxu0 0.0
    %3497 = vmatpush.xpose.msra.mxu0 0.0
    %3498 = vmatpush.xpose.msra.mxu0 0.0
    %3499 = vmatpush.xpose.msra.mxu0 0.0
    %3500 = vmatpush.xpose.msra.mxu0 0.0
    %3501 = vmatpush.xpose.msra.mxu0 %v3484
    %3502 = vmatmul.f32.gmra.mxu0 %v3482
    %v3503 = vpop.f32.mrf.mxu0
    %v3504 = vadd.f32 0.0, %v3503
    %3505 = vdwg.mxu0
    %v3506 = vmul.f32 %v3504, 0.17677669
    %v3507 = vsel %vm865, %v3506, -inf
    %3508 = vmax.xlane.f32.xlu0 %v3507
    %v3509 = vpop.xlane.xlu0 %3508
    %v3510 = vsub.f32 %v3506, %v3509
    %v3511 = vmul.f32 %v3510, 1.442695
    %v3512 = vpow.pop %v3511
    %v3513 = vsel %vm865, %v3512, 0.0
    %3514 = vadd.xlane.f32.xlu0 %v3513
    %v3515 = vpop.xlane.xlu0 %3514
    %v3516 = vrcp.pop %v3515
    %v3517 = vmul.f32 %v3512, %v3516
    %3518 = vrot.lane.b32.xlu0 %v3127, 88
    %v3519 = vpop.permute.xlu0 %3518
    %v3522 = vsel %vm446, %v3517, 0
    %3524 = vmatpush.msra.mxu0 0.0
    %3525 = vmatpush.msra.mxu0 0.0
    %3526 = vmatpush.msra.mxu0 0.0
    %3527 = vmatpush.msra.mxu0 0.0
    %3528 = vmatpush.msra.mxu0 0.0
    %3529 = vmatpush.msra.mxu0 0.0
    %3530 = vmatpush.msra.mxu0 0.0
    %3531 = vmatpush.msra.mxu0 0.0
    %3532 = vmatpush.msra.mxu0 0.0
    %3533 = vmatpush.msra.mxu0 0.0
    %3534 = vmatpush.msra.mxu0 0.0
    %3535 = vmatpush.msra.mxu0 0.0
    %3536 = vmatpush.msra.mxu0 0.0
    %3537 = vmatpush.msra.mxu0 0.0
    %3538 = vmatpush.msra.mxu0 0.0
    %3539 = vmatpush.msra.mxu0 %v3519
    %3540 = vmatmul.f32.gmra.mxu0 %v3522
    %v3541 = vpop.f32.mrf.mxu0
    %v3542 = vadd.f32 0.0, %v3541
    %3543 = vdwg.mxu0
    %v3545 = vrot.slane %v3542, 7
    %3546 = vrot.lane.b32.xlu0 %v3545, 8
    %v3547 = vpop.permute.xlu0 %3546
    %v3549 = vadd.f32 %v3095, %v3547
    %3550 = vrot.lane.b32.xlu0 %v3410, 112
    %v3551 = vpop.permute.xlu0 %3550
    %3552 = vrot.lane.b32.xlu0 %v3127, 112
    %v3553 = vpop.permute.xlu0 %3552
    %v3554 = vsel %vm446, %v3551, 0
    %v3556 = vsel %vm446, %v3553, 0
    %3558 = vmatpush.xpose.msra.mxu0 0.0
    %3559 = vmatpush.xpose.msra.mxu0 0.0
    %3560 = vmatpush.xpose.msra.mxu0 0.0
    %3561 = vmatpush.xpose.msra.mxu0 0.0
    %3562 = vmatpush.xpose.msra.mxu0 0.0
    %3563 = vmatpush.xpose.msra.mxu0 0.0
    %3564 = vmatpush.xpose.msra.mxu0 0.0
    %3565 = vmatpush.xpose.msra.mxu0 0.0
    %3566 = vmatpush.xpose.msra.mxu0 0.0
    %3567 = vmatpush.xpose.msra.mxu0 0.0
    %3568 = vmatpush.xpose.msra.mxu0 0.0
    %3569 = vmatpush.xpose.msra.mxu0 0.0
    %3570 = vmatpush.xpose.msra.mxu0 0.0
    %3571 = vmatpush.xpose.msra.mxu0 0.0
    %3572 = vmatpush.xpose.msra.mxu0 0.0
    %3573 = vmatpush.xpose.msra.mxu0 %v3556
    %3574 = vmatmul.f32.gmra.mxu0 %v3554
    %v3575 = vpop.f32.mrf.mxu0
    %v3576 = vadd.f32 0.0, %v3575
    %3577 = vdwg.mxu0
    %v3578 = vmul.f32 %v3576, 0.17677669
    %v3579 = vsel %vm865, %v3578, -inf
    %3580 = vmax.xlane.f32.xlu0 %v3579
    %v3581 = vpop.xlane.xlu0 %3580
    %v3582 = vsub.f32 %v3578, %v3581
    %v3583 = vmul.f32 %v3582, 1.442695
    %v3584 = vpow.pop %v3583
    %v3585 = vsel %vm865, %v3584, 0.0
    %3586 = vadd.xlane.f32.xlu0 %v3585
    %v3587 = vpop.xlane.xlu0 %3586
    %v3588 = vrcp.pop %v3587
    %v3589 = vmul.f32 %v3584, %v3588
    %3590 = vrot.lane.b32.xlu0 %v3127, 80
    %v3591 = vpop.permute.xlu0 %3590
    %v3594 = vsel %vm446, %v3589, 0
    %3596 = vmatpush.msra.mxu0 0.0
    %3597 = vmatpush.msra.mxu0 0.0
    %3598 = vmatpush.msra.mxu0 0.0
    %3599 = vmatpush.msra.mxu0 0.0
    %3600 = vmatpush.msra.mxu0 0.0
    %3601 = vmatpush.msra.mxu0 0.0
    %3602 = vmatpush.msra.mxu0 0.0
    %3603 = vmatpush.msra.mxu0 0.0
    %3604 = vmatpush.msra.mxu0 0.0
    %3605 = vmatpush.msra.mxu0 0.0
    %3606 = vmatpush.msra.mxu0 0.0
    %3607 = vmatpush.msra.mxu0 0.0
    %3608 = vmatpush.msra.mxu0 0.0
    %3609 = vmatpush.msra.mxu0 0.0
    %3610 = vmatpush.msra.mxu0 0.0
    %3611 = vmatpush.msra.mxu0 %v3591
    %3612 = vmatmul.f32.gmra.mxu0 %v3594
    %v3613 = vpop.f32.mrf.mxu0
    %v3614 = vadd.f32 0.0, %v3613
    %3615 = vdwg.mxu0
    %v3617 = vrot.slane %v3614, 7
    %3618 = vrot.lane.b32.xlu0 %v3617, 16
    %v3619 = vpop.permute.xlu0 %3618
    %v3621 = vadd.f32 %v3095, %v3619
    %3622 = vrot.lane.b32.xlu0 %v3410, 104
    %v3623 = vpop.permute.xlu0 %3622
    %3624 = vrot.lane.b32.xlu0 %v3127, 104
    %v3625 = vpop.permute.xlu0 %3624
    %v3626 = vsel %vm446, %v3623, 0
    %v3628 = vsel %vm446, %v3625, 0
    %3630 = vmatpush.xpose.msra.mxu0 0.0
    %3631 = vmatpush.xpose.msra.mxu0 0.0
    %3632 = vmatpush.xpose.msra.mxu0 0.0
    %3633 = vmatpush.xpose.msra.mxu0 0.0
    %3634 = vmatpush.xpose.msra.mxu0 0.0
    %3635 = vmatpush.xpose.msra.mxu0 0.0
    %3636 = vmatpush.xpose.msra.mxu0 0.0
    %3637 = vmatpush.xpose.msra.mxu0 0.0
    %3638 = vmatpush.xpose.msra.mxu0 0.0
    %3639 = vmatpush.xpose.msra.mxu0 0.0
    %3640 = vmatpush.xpose.msra.mxu0 0.0
    %3641 = vmatpush.xpose.msra.mxu0 0.0
    %3642 = vmatpush.xpose.msra.mxu0 0.0
    %3643 = vmatpush.xpose.msra.mxu0 0.0
    %3644 = vmatpush.xpose.msra.mxu0 0.0
    %3645 = vmatpush.xpose.msra.mxu0 %v3628
    %3646 = vmatmul.f32.gmra.mxu0 %v3626
    %v3647 = vpop.f32.mrf.mxu0
    %v3648 = vadd.f32 0.0, %v3647
    %3649 = vdwg.mxu0
    %v3650 = vmul.f32 %v3648, 0.17677669
    %v3651 = vsel %vm865, %v3650, -inf
    %3652 = vmax.xlane.f32.xlu0 %v3651
    %v3653 = vpop.xlane.xlu0 %3652
    %v3654 = vsub.f32 %v3650, %v3653
    %v3655 = vmul.f32 %v3654, 1.442695
    %v3656 = vpow.pop %v3655
    %v3657 = vsel %vm865, %v3656, 0.0
    %3658 = vadd.xlane.f32.xlu0 %v3657
    %v3659 = vpop.xlane.xlu0 %3658
    %v3660 = vrcp.pop %v3659
    %v3661 = vmul.f32 %v3656, %v3660
    %3662 = vrot.lane.b32.xlu0 %v3127, 72
    %v3663 = vpop.permute.xlu0 %3662
    %v3666 = vsel %vm446, %v3661, 0
    %3668 = vmatpush.msra.mxu0 0.0
    %3669 = vmatpush.msra.mxu0 0.0
    %3670 = vmatpush.msra.mxu0 0.0
    %3671 = vmatpush.msra.mxu0 0.0
    %3672 = vmatpush.msra.mxu0 0.0
    %3673 = vmatpush.msra.mxu0 0.0
    %3674 = vmatpush.msra.mxu0 0.0
    %3675 = vmatpush.msra.mxu0 0.0
    %3676 = vmatpush.msra.mxu0 0.0
    %3677 = vmatpush.msra.mxu0 0.0
    %3678 = vmatpush.msra.mxu0 0.0
    %3679 = vmatpush.msra.mxu0 0.0
    %3680 = vmatpush.msra.mxu0 0.0
    %3681 = vmatpush.msra.mxu0 0.0
    %3682 = vmatpush.msra.mxu0 0.0
    %3683 = vmatpush.msra.mxu0 %v3663
    %3684 = vmatmul.f32.gmra.mxu0 %v3666
    %v3685 = vpop.f32.mrf.mxu0
    %v3686 = vadd.f32 0.0, %v3685
    %3687 = vdwg.mxu0
    %v3689 = vrot.slane %v3686, 7
    %3690 = vrot.lane.b32.xlu0 %v3689, 24
    %v3691 = vpop.permute.xlu0 %3690
    %v3693 = vadd.f32 %v3095, %v3691
    %v3694 = vsel %vm446, %v3477, %v3549
    %v3695 = vsel %vm660, %v3694, %v3621
    %v3696 = vsel %vm502, %v3695, %v3693
    %v3697 = vsel %vm763, %v3409, %v3696
    %v3699 = vperm.slane %v3070, 0
    %v3702 = vsel %vm542, %v3697, 0
    %3704 = vmatpush.msra.mxu0 0.0
    %3705 = vmatpush.msra.mxu0 0.0
    %3706 = vmatpush.msra.mxu0 0.0
    %3707 = vmatpush.msra.mxu0 0.0
    %3708 = vmatpush.msra.mxu0 0.0
    %3709 = vmatpush.msra.mxu0 0.0
    %3710 = vmatpush.msra.mxu0 0.0
    %3711 = vmatpush.msra.mxu0 0.0
    %3712 = vmatpush.msra.mxu0 0.0
    %3713 = vmatpush.msra.mxu0 0.0
    %3714 = vmatpush.msra.mxu0 0.0
    %3715 = vmatpush.msra.mxu0 0.0
    %3716 = vmatpush.msra.mxu0 %v3069
    %3717 = vmatpush.msra.mxu0 %v3068
    %3718 = vmatpush.msra.mxu0 %v3067
    %3719 = vmatpush.msra.mxu0 %v3066
    %3720 = vmatmul.f32.gmra.mxu0 %v3702
    %v3721 = vpop.f32.mrf.mxu0
    %v3722 = vadd.f32 %v3699, %v3721
    %3723 = vdwg.mxu0
    %v3724 = vmax.f32 %v3722, 0.0
    %v3725 = vadd.f32 %v3697, %v3724
    %v3726 = vld [vmem:[#allocation21] sm:$0xff]
    %v3727 = vld [vmem:[#allocation21 + $0x8] sm:$0xff]
    %v3728 = vld [vmem:[#allocation21 + $0x10] sm:$0xff]
    %v3729 = vld [vmem:[#allocation21 + $0x18] sm:$0xff]
    %v3730 = vld [vmem:[#allocation22] sm:$0x1]
    %v3731 = vld [vmem:[#allocation24] sm:$0xff]
    %v3732 = vld [vmem:[#allocation24 + $0x8] sm:$0xff]
    %v3733 = vld [vmem:[#allocation24 + $0x10] sm:$0xff]
    %v3734 = vld [vmem:[#allocation24 + $0x18] sm:$0xff]
    %v3735 = vld [vmem:[#allocation25] sm:$0x1]
    %v3736 = vld [vmem:[#allocation27] sm:$0xff]
    %v3737 = vld [vmem:[#allocation27 + $0x8] sm:$0xff]
    %v3738 = vld [vmem:[#allocation27 + $0x10] sm:$0xff]
    %v3739 = vld [vmem:[#allocation27 + $0x18] sm:$0xff]
    %v3740 = vld [vmem:[#allocation28] sm:$0x1]
    %v3742 = vperm.slane %v3730, 0
    %v3745 = vsel %vm542, %v3725, 0
    %3747 = vmatpush.msra.mxu0 0.0
    %3748 = vmatpush.msra.mxu0 0.0
    %3749 = vmatpush.msra.mxu0 0.0
    %3750 = vmatpush.msra.mxu0 0.0
    %3751 = vmatpush.msra.mxu0 0.0
    %3752 = vmatpush.msra.mxu0 0.0
    %3753 = vmatpush.msra.mxu0 0.0
    %3754 = vmatpush.msra.mxu0 0.0
    %3755 = vmatpush.msra.mxu0 0.0
    %3756 = vmatpush.msra.mxu0 0.0
    %3757 = vmatpush.msra.mxu0 0.0
    %3758 = vmatpush.msra.mxu0 0.0
    %3759 = vmatpush.msra.mxu0 %v3729
    %3760 = vmatpush.msra.mxu0 %v3728
    %3761 = vmatpush.msra.mxu0 %v3727
    %3762 = vmatpush.msra.mxu0 %v3726
    %3763 = vmatmul.f32.gmra.mxu0 %v3745
    %v3764 = vpop.f32.mrf.mxu0
    %v3765 = vadd.f32 %v3742, %v3764
    %3766 = vdwg.mxu0
    %v3768 = vperm.slane %v3735, 0
    %3770 = vmatpush.msra.mxu0 0.0
    %3771 = vmatpush.msra.mxu0 0.0
    %3772 = vmatpush.msra.mxu0 0.0
    %3773 = vmatpush.msra.mxu0 0.0
    %3774 = vmatpush.msra.mxu0 0.0
    %3775 = vmatpush.msra.mxu0 0.0
    %3776 = vmatpush.msra.mxu0 0.0
    %3777 = vmatpush.msra.mxu0 0.0
    %3778 = vmatpush.msra.mxu0 0.0
    %3779 = vmatpush.msra.mxu0 0.0
    %3780 = vmatpush.msra.mxu0 0.0
    %3781 = vmatpush.msra.mxu0 0.0
    %3782 = vmatpush.msra.mxu0 %v3734
    %3783 = vmatpush.msra.mxu0 %v3733
    %3784 = vmatpush.msra.mxu0 %v3732
    %3785 = vmatpush.msra.mxu0 %v3731
    %3786 = vmatmul.f32.gmra.mxu0 %v3745
    %v3787 = vpop.f32.mrf.mxu0
    %v3788 = vadd.f32 %v3768, %v3787
    %3789 = vdwg.mxu0
    %v3790 = vmul.f32 %v3765, %v3788
    %v3791 = vsel %vm865, %v3790, 0.0
    %3792 = vadd.xlane.f32.xlu0 %v3791
    %v3793 = vpop.xlane.xlu0 %3792
    %v3794 = vmul.f32 %v3793, 0.17677669
    %v3795 = vsub.f32 %v3794, %v3794
    %v3796 = vmul.f32 %v3795, 1.442695
    %v3797 = vpow.pop %v3796
    %v3798 = vadd.f32 %v3797, 0.0
    %v3799 = vrcp.pop %v3798
    %v3800 = vmul.f32 %v3797, %v3799
    %3802 = vrot.lane.b32.xlu0 %v3788, 96
    %v3803 = vpop.permute.xlu0 %3802
    %v3805 = vsel %vm1518, %v3800, 0
    %v3807 = vsel %vm763, %v3803, 0
    %3809 = vmatpush.msra.mxu0 0.0
    %3810 = vmatpush.msra.mxu0 0.0
    %3811 = vmatpush.msra.mxu0 0.0
    %3812 = vmatpush.msra.mxu0 0.0
    %3813 = vmatpush.msra.mxu0 0.0
    %3814 = vmatpush.msra.mxu0 0.0
    %3815 = vmatpush.msra.mxu0 0.0
    %3816 = vmatpush.msra.mxu0 0.0
    %3817 = vmatpush.msra.mxu0 0.0
    %3818 = vmatpush.msra.mxu0 0.0
    %3819 = vmatpush.msra.mxu0 0.0
    %3820 = vmatpush.msra.mxu0 0.0
    %3821 = vmatpush.msra.mxu0 0.0
    %3822 = vmatpush.msra.mxu0 0.0
    %3823 = vmatpush.msra.mxu0 0.0
    %3824 = vmatpush.msra.mxu0 %v3807
    %3825 = vmatmul.f32.gmra.mxu0 %v3805
    %v3826 = vpop.f32.mrf.mxu0
    %v3827 = vadd.f32 0.0, %v3826
    %3828 = vdwg.mxu0
    %v3829 = vadd.f32 %v3765, %v3827
    %3831 = vrot.lane.b32.xlu0 %v3790, 120
    %v3832 = vpop.permute.xlu0 %3831
    %v3834 = vsel %vm865, %v3832, 0.0
    %3835 = vadd.xlane.f32.xlu0 %v3834
    %v3836 = vpop.xlane.xlu0 %3835
    %v3837 = vmul.f32 %v3836, 0.17677669
    %v3838 = vsub.f32 %v3837, %v3837
    %v3839 = vmul.f32 %v3838, 1.442695
    %v3840 = vpow.pop %v3839
    %v3841 = vadd.f32 %v3840, 0.0
    %v3842 = vrcp.pop %v3841
    %v3843 = vmul.f32 %v3840, %v3842
    %3844 = vrot.lane.b32.xlu0 %v3788, 88
    %v3845 = vpop.permute.xlu0 %3844
    %v3847 = vsel %vm1518, %v3843, 0
    %v3849 = vsel %vm763, %v3845, 0
    %3851 = vmatpush.msra.mxu0 0.0
    %3852 = vmatpush.msra.mxu0 0.0
    %3853 = vmatpush.msra.mxu0 0.0
    %3854 = vmatpush.msra.mxu0 0.0
    %3855 = vmatpush.msra.mxu0 0.0
    %3856 = vmatpush.msra.mxu0 0.0
    %3857 = vmatpush.msra.mxu0 0.0
    %3858 = vmatpush.msra.mxu0 0.0
    %3859 = vmatpush.msra.mxu0 0.0
    %3860 = vmatpush.msra.mxu0 0.0
    %3861 = vmatpush.msra.mxu0 0.0
    %3862 = vmatpush.msra.mxu0 0.0
    %3863 = vmatpush.msra.mxu0 0.0
    %3864 = vmatpush.msra.mxu0 0.0
    %3865 = vmatpush.msra.mxu0 0.0
    %3866 = vmatpush.msra.mxu0 %v3849
    %3867 = vmatmul.f32.gmra.mxu0 %v3847
    %v3868 = vpop.f32.mrf.mxu0
    %v3869 = vadd.f32 0.0, %v3868
    %3870 = vdwg.mxu0
    %3872 = vrot.lane.b32.xlu0 %v3869, 8
    %v3873 = vpop.permute.xlu0 %3872
    %v3875 = vadd.f32 %v3765, %v3873
    %3876 = vrot.lane.b32.xlu0 %v3790, 112
    %v3877 = vpop.permute.xlu0 %3876
    %v3879 = vsel %vm865, %v3877, 0.0
    %3880 = vadd.xlane.f32.xlu0 %v3879
    %v3881 = vpop.xlane.xlu0 %3880
    %v3882 = vmul.f32 %v3881, 0.17677669
    %v3883 = vsub.f32 %v3882, %v3882
    %v3884 = vmul.f32 %v3883, 1.442695
    %v3885 = vpow.pop %v3884
    %v3886 = vadd.f32 %v3885, 0.0
    %v3887 = vrcp.pop %v3886
    %v3888 = vmul.f32 %v3885, %v3887
    %3889 = vrot.lane.b32.xlu0 %v3788, 80
    %v3890 = vpop.permute.xlu0 %3889
    %v3892 = vsel %vm1518, %v3888, 0
    %v3894 = vsel %vm763, %v3890, 0
    %3896 = vmatpush.msra.mxu0 0.0
    %3897 = vmatpush.msra.mxu0 0.0
    %3898 = vmatpush.msra.mxu0 0.0
    %3899 = vmatpush.msra.mxu0 0.0
    %3900 = vmatpush.msra.mxu0 0.0
    %3901 = vmatpush.msra.mxu0 0.0
    %3902 = vmatpush.msra.mxu0 0.0
    %3903 = vmatpush.msra.mxu0 0.0
    %3904 = vmatpush.msra.mxu0 0.0
    %3905 = vmatpush.msra.mxu0 0.0
    %3906 = vmatpush.msra.mxu0 0.0
    %3907 = vmatpush.msra.mxu0 0.0
    %3908 = vmatpush.msra.mxu0 0.0
    %3909 = vmatpush.msra.mxu0 0.0
    %3910 = vmatpush.msra.mxu0 0.0
    %3911 = vmatpush.msra.mxu0 %v3894
    %3912 = vmatmul.f32.gmra.mxu0 %v3892
    %v3913 = vpop.f32.mrf.mxu0
    %v3914 = vadd.f32 0.0, %v3913
    %3915 = vdwg.mxu0
    %3917 = vrot.lane.b32.xlu0 %v3914, 16
    %v3918 = vpop.permute.xlu0 %3917
    %v3920 = vadd.f32 %v3765, %v3918
    %3921 = vrot.lane.b32.xlu0 %v3790, 104
    %v3922 = vpop.permute.xlu0 %3921
    %v3924 = vsel %vm865, %v3922, 0.0
    %3925 = vadd.xlane.f32.xlu0 %v3924
    %v3926 = vpop.xlane.xlu0 %3925
    %v3927 = vmul.f32 %v3926, 0.17677669
    %v3928 = vsub.f32 %v3927, %v3927
    %v3929 = vmul.f32 %v3928, 1.442695
    %v3930 = vpow.pop %v3929
    %v3931 = vadd.f32 %v3930, 0.0
    %v3932 = vrcp.pop %v3931
    %v3933 = vmul.f32 %v3930, %v3932
    %3934 = vrot.lane.b32.xlu0 %v3788, 72
    %v3935 = vpop.permute.xlu0 %3934
    %v3937 = vsel %vm1518, %v3933, 0
    %v3939 = vsel %vm763, %v3935, 0
    %3941 = vmatpush.msra.mxu0 0.0
    %3942 = vmatpush.msra.mxu0 0.0
    %3943 = vmatpush.msra.mxu0 0.0
    %3944 = vmatpush.msra.mxu0 0.0
    %3945 = vmatpush.msra.mxu0 0.0
    %3946 = vmatpush.msra.mxu0 0.0
    %3947 = vmatpush.msra.mxu0 0.0
    %3948 = vmatpush.msra.mxu0 0.0
    %3949 = vmatpush.msra.mxu0 0.0
    %3950 = vmatpush.msra.mxu0 0.0
    %3951 = vmatpush.msra.mxu0 0.0
    %3952 = vmatpush.msra.mxu0 0.0
    %3953 = vmatpush.msra.mxu0 0.0
    %3954 = vmatpush.msra.mxu0 0.0
    %3955 = vmatpush.msra.mxu0 0.0
    %3956 = vmatpush.msra.mxu0 %v3939
    %3957 = vmatmul.f32.gmra.mxu0 %v3937
    %v3958 = vpop.f32.mrf.mxu0
    %v3959 = vadd.f32 0.0, %v3958
    %3960 = vdwg.mxu0
    %3962 = vrot.lane.b32.xlu0 %v3959, 24
    %v3963 = vpop.permute.xlu0 %3962
    %v3965 = vadd.f32 %v3765, %v3963
    %v3966 = vsel %vm446, %v3829, %v3875
    %v3967 = vsel %vm660, %v3966, %v3920
    %v3968 = vsel %vm502, %v3967, %v3965
    %vm3969 = vcmask 58369
    %v3970 = vsel %vm3969, %v3790, 0.0
    %3971 = vadd.xlane.f32.xlu0 %v3970
    %v3972 = vpop.xlane.xlu0 %3971
    %v3973 = vmul.f32 %v3972, 0.17677669
    %v3974 = vsub.f32 %v3973, %v3973
    %v3975 = vmul.f32 %v3974, 1.442695
    %v3976 = vpow.pop %v3975
    %v3977 = vadd.f32 %v3976, 0.0
    %v3978 = vrcp.pop %v3977
    %v3979 = vmul.f32 %v3976, %v3978
    %v3981 = vrot.slane %v3979, 1
    %v3982 = vrot.slane %v3788, 1
    %3983 = vrot.lane.b32.xlu0 %v3982, 96
    %v3984 = vpop.permute.xlu0 %3983
    %v3985 = vsel %vm1518, %v3981, 0
    %v3987 = vsel %vm763, %v3984, 0
    %3989 = vmatpush.msra.mxu0 0.0
    %3990 = vmatpush.msra.mxu0 0.0
    %3991 = vmatpush.msra.mxu0 0.0
    %3992 = vmatpush.msra.mxu0 0.0
    %3993 = vmatpush.msra.mxu0 0.0
    %3994 = vmatpush.msra.mxu0 0.0
    %3995 = vmatpush.msra.mxu0 0.0
    %3996 = vmatpush.msra.mxu0 0.0
    %3997 = vmatpush.msra.mxu0 0.0
    %3998 = vmatpush.msra.mxu0 0.0
    %3999 = vmatpush.msra.mxu0 0.0
    %4000 = vmatpush.msra.mxu0 0.0
    %4001 = vmatpush.msra.mxu0 0.0
    %4002 = vmatpush.msra.mxu0 0.0
    %4003 = vmatpush.msra.mxu0 0.0
    %4004 = vmatpush.msra.mxu0 %v3987
    %4005 = vmatmul.f32.gmra.mxu0 %v3985
    %v4006 = vpop.f32.mrf.mxu0
    %v4007 = vadd.f32 0.0, %v4006
    %4008 = vdwg.mxu0
    %v4010 = vrot.slane %v4007, 7
    %v4012 = vadd.f32 %v3765, %v4010
    %v4013 = vsel %vm3969, %v3832, 0.0
    %4014 = vadd.xlane.f32.xlu0 %v4013
    %v4015 = vpop.xlane.xlu0 %4014
    %v4016 = vmul.f32 %v4015, 0.17677669
    %v4017 = vsub.f32 %v4016, %v4016
    %v4018 = vmul.f32 %v4017, 1.442695
    %v4019 = vpow.pop %v4018
    %v4020 = vadd.f32 %v4019, 0.0
    %v4021 = vrcp.pop %v4020
    %v4022 = vmul.f32 %v4019, %v4021
    %v4024 = vrot.slane %v4022, 1
    %4025 = vrot.lane.b32.xlu0 %v3982, 88
    %v4026 = vpop.permute.xlu0 %4025
    %v4027 = vsel %vm1518, %v4024, 0
    %v4029 = vsel %vm763, %v4026, 0
    %4031 = vmatpush.msra.mxu0 0.0
    %4032 = vmatpush.msra.mxu0 0.0
    %4033 = vmatpush.msra.mxu0 0.0
    %4034 = vmatpush.msra.mxu0 0.0
    %4035 = vmatpush.msra.mxu0 0.0
    %4036 = vmatpush.msra.mxu0 0.0
    %4037 = vmatpush.msra.mxu0 0.0
    %4038 = vmatpush.msra.mxu0 0.0
    %4039 = vmatpush.msra.mxu0 0.0
    %4040 = vmatpush.msra.mxu0 0.0
    %4041 = vmatpush.msra.mxu0 0.0
    %4042 = vmatpush.msra.mxu0 0.0
    %4043 = vmatpush.msra.mxu0 0.0
    %4044 = vmatpush.msra.mxu0 0.0
    %4045 = vmatpush.msra.mxu0 0.0
    %4046 = vmatpush.msra.mxu0 %v4029
    %4047 = vmatmul.f32.gmra.mxu0 %v4027
    %v4048 = vpop.f32.mrf.mxu0
    %v4049 = vadd.f32 0.0, %v4048
    %4050 = vdwg.mxu0
    %v4052 = vrot.slane %v4049, 7
    %4053 = vrot.lane.b32.xlu0 %v4052, 8
    %v4054 = vpop.permute.xlu0 %4053
    %v4056 = vadd.f32 %v3765, %v4054
    %v4057 = vsel %vm3969, %v3877, 0.0
    %4058 = vadd.xlane.f32.xlu0 %v4057
    %v4059 = vpop.xlane.xlu0 %4058
    %v4060 = vmul.f32 %v4059, 0.17677669
    %v4061 = vsub.f32 %v4060, %v4060
    %v4062 = vmul.f32 %v4061, 1.442695
    %v4063 = vpow.pop %v4062
    %v4064 = vadd.f32 %v4063, 0.0
    %v4065 = vrcp.pop %v4064
    %v4066 = vmul.f32 %v4063, %v4065
    %v4068 = vrot.slane %v4066, 1
    %4069 = vrot.lane.b32.xlu0 %v3982, 80
    %v4070 = vpop.permute.xlu0 %4069
    %v4071 = vsel %vm1518, %v4068, 0
    %v4073 = vsel %vm763, %v4070, 0
    %4075 = vmatpush.msra.mxu0 0.0
    %4076 = vmatpush.msra.mxu0 0.0
    %4077 = vmatpush.msra.mxu0 0.0
    %4078 = vmatpush.msra.mxu0 0.0
    %4079 = vmatpush.msra.mxu0 0.0
    %4080 = vmatpush.msra.mxu0 0.0
    %4081 = vmatpush.msra.mxu0 0.0
    %4082 = vmatpush.msra.mxu0 0.0
    %4083 = vmatpush.msra.mxu0 0.0
    %4084 = vmatpush.msra.mxu0 0.0
    %4085 = vmatpush.msra.mxu0 0.0
    %4086 = vmatpush.msra.mxu0 0.0
    %4087 = vmatpush.msra.mxu0 0.0
    %4088 = vmatpush.msra.mxu0 0.0
    %4089 = vmatpush.msra.mxu0 0.0
    %4090 = vmatpush.msra.mxu0 %v4073
    %4091 = vmatmul.f32.gmra.mxu0 %v4071
    %v4092 = vpop.f32.mrf.mxu0
    %v4093 = vadd.f32 0.0, %v4092
    %4094 = vdwg.mxu0
    %v4096 = vrot.slane %v4093, 7
    %4097 = vrot.lane.b32.xlu0 %v4096, 16
    %v4098 = vpop.permute.xlu0 %4097
    %v4100 = vadd.f32 %v3765, %v4098
    %v4101 = vsel %vm3969, %v3922, 0.0
    %4102 = vadd.xlane.f32.xlu0 %v4101
    %v4103 = vpop.xlane.xlu0 %4102
    %v4104 = vmul.f32 %v4103, 0.17677669
    %v4105 = vsub.f32 %v4104, %v4104
    %v4106 = vmul.f32 %v4105, 1.442695
    %v4107 = vpow.pop %v4106
    %v4108 = vadd.f32 %v4107, 0.0
    %v4109 = vrcp.pop %v4108
    %v4110 = vmul.f32 %v4107, %v4109
    %v4112 = vrot.slane %v4110, 1
    %4113 = vrot.lane.b32.xlu0 %v3982, 72
    %v4114 = vpop.permute.xlu0 %4113
    %v4115 = vsel %vm1518, %v4112, 0
    %v4117 = vsel %vm763, %v4114, 0
    %4119 = vmatpush.msra.mxu0 0.0
    %4120 = vmatpush.msra.mxu0 0.0
    %4121 = vmatpush.msra.mxu0 0.0
    %4122 = vmatpush.msra.mxu0 0.0
    %4123 = vmatpush.msra.mxu0 0.0
    %4124 = vmatpush.msra.mxu0 0.0
    %4125 = vmatpush.msra.mxu0 0.0
    %4126 = vmatpush.msra.mxu0 0.0
    %4127 = vmatpush.msra.mxu0 0.0
    %4128 = vmatpush.msra.mxu0 0.0
    %4129 = vmatpush.msra.mxu0 0.0
    %4130 = vmatpush.msra.mxu0 0.0
    %4131 = vmatpush.msra.mxu0 0.0
    %4132 = vmatpush.msra.mxu0 0.0
    %4133 = vmatpush.msra.mxu0 0.0
    %4134 = vmatpush.msra.mxu0 %v4117
    %4135 = vmatmul.f32.gmra.mxu0 %v4115
    %v4136 = vpop.f32.mrf.mxu0
    %v4137 = vadd.f32 0.0, %v4136
    %4138 = vdwg.mxu0
    %v4140 = vrot.slane %v4137, 7
    %4141 = vrot.lane.b32.xlu0 %v4140, 24
    %v4142 = vpop.permute.xlu0 %4141
    %v4144 = vadd.f32 %v3765, %v4142
    %v4145 = vsel %vm446, %v4012, %v4056
    %v4146 = vsel %vm660, %v4145, %v4100
    %v4147 = vsel %vm502, %v4146, %v4144
    %v4148 = vsel %vm763, %v3968, %v4147
    %v4150 = vperm.slane %v3740, 0
    %v4153 = vsel %vm542, %v4148, 0
    %4155 = vmatpush.msra.mxu0 0.0
    %4156 = vmatpush.msra.mxu0 0.0
    %4157 = vmatpush.msra.mxu0 0.0
    %4158 = vmatpush.msra.mxu0 0.0
    %4159 = vmatpush.msra.mxu0 0.0
    %4160 = vmatpush.msra.mxu0 0.0
    %4161 = vmatpush.msra.mxu0 0.0
    %4162 = vmatpush.msra.mxu0 0.0
    %4163 = vmatpush.msra.mxu0 0.0
    %4164 = vmatpush.msra.mxu0 0.0
    %4165 = vmatpush.msra.mxu0 0.0
    %4166 = vmatpush.msra.mxu0 0.0
    %4167 = vmatpush.msra.mxu0 %v3739
    %4168 = vmatpush.msra.mxu0 %v3738
    %4169 = vmatpush.msra.mxu0 %v3737
    %4170 = vmatpush.msra.mxu0 %v3736
    %4171 = vmatmul.f32.gmra.mxu0 %v4153
    %v4172 = vpop.f32.mrf.mxu0
    %v4173 = vadd.f32 %v4150, %v4172
    %4174 = vdwg.mxu0
    %v4175 = vmax.f32 %v4173, 0.0
    %v4176 = vadd.f32 %v4148, %v4175
    %s4177 = scalar_lea.vmem [#allocation21], 32
    %v4178 = vld [vmem:[%s4177] sm:$0xff]
    %v4179 = vld [vmem:[%s4177 + $0x8] sm:$0xff]
    %v4180 = vld [vmem:[%s4177 + $0x10] sm:$0xff]
    %v4181 = vld [vmem:[%s4177 + $0x18] sm:$0xff]
    %s4182 = scalar_lea.vmem [#allocation22], 1
    %v4183 = vld [vmem:[%s4182] sm:$0x1]
    %s4184 = scalar_lea.vmem [#allocation24], 32
    %v4185 = vld [vmem:[%s4184] sm:$0xff]
    %v4186 = vld [vmem:[%s4184 + $0x8] sm:$0xff]
    %v4187 = vld [vmem:[%s4184 + $0x10] sm:$0xff]
    %v4188 = vld [vmem:[%s4184 + $0x18] sm:$0xff]
    %s4189 = scalar_lea.vmem [#allocation25], 1
    %v4190 = vld [vmem:[%s4189] sm:$0x1]
    %s4191 = scalar_lea.vmem [#allocation27], 32
    %v4192 = vld [vmem:[%s4191] sm:$0xff]
    %v4193 = vld [vmem:[%s4191 + $0x8] sm:$0xff]
    %v4194 = vld [vmem:[%s4191 + $0x10] sm:$0xff]
    %v4195 = vld [vmem:[%s4191 + $0x18] sm:$0xff]
    %s4196 = scalar_lea.vmem [#allocation28], 1
    %v4197 = vld [vmem:[%s4196] sm:$0x1]
    %v4199 = vperm.slane %v4183, 0
    %v4202 = vsel %vm542, %v4176, 0
    %4204 = vmatpush.msra.mxu0 0.0
    %4205 = vmatpush.msra.mxu0 0.0
    %4206 = vmatpush.msra.mxu0 0.0
    %4207 = vmatpush.msra.mxu0 0.0
    %4208 = vmatpush.msra.mxu0 0.0
    %4209 = vmatpush.msra.mxu0 0.0
    %4210 = vmatpush.msra.mxu0 0.0
    %4211 = vmatpush.msra.mxu0 0.0
    %4212 = vmatpush.msra.mxu0 0.0
    %4213 = vmatpush.msra.mxu0 0.0
    %4214 = vmatpush.msra.mxu0 0.0
    %4215 = vmatpush.msra.mxu0 0.0
    %4216 = vmatpush.msra.mxu0 %v4181
    %4217 = vmatpush.msra.mxu0 %v4180
    %4218 = vmatpush.msra.mxu0 %v4179
    %4219 = vmatpush.msra.mxu0 %v4178
    %4220 = vmatmul.f32.gmra.mxu0 %v4202
    %v4221 = vpop.f32.mrf.mxu0
    %v4222 = vadd.f32 %v4199, %v4221
    %4223 = vdwg.mxu0
    %v4225 = vperm.slane %v4190, 0
    %4227 = vmatpush.msra.mxu0 0.0
    %4228 = vmatpush.msra.mxu0 0.0
    %4229 = vmatpush.msra.mxu0 0.0
    %4230 = vmatpush.msra.mxu0 0.0
    %4231 = vmatpush.msra.mxu0 0.0
    %4232 = vmatpush.msra.mxu0 0.0
    %4233 = vmatpush.msra.mxu0 0.0
    %4234 = vmatpush.msra.mxu0 0.0
    %4235 = vmatpush.msra.mxu0 0.0
    %4236 = vmatpush.msra.mxu0 0.0
    %4237 = vmatpush.msra.mxu0 0.0
    %4238 = vmatpush.msra.mxu0 0.0
    %4239 = vmatpush.msra.mxu0 %v4188
    %4240 = vmatpush.msra.mxu0 %v4187
    %4241 = vmatpush.msra.mxu0 %v4186
    %4242 = vmatpush.msra.mxu0 %v4185
    %4243 = vmatmul.f32.gmra.mxu0 %v4202
    %v4244 = vpop.f32.mrf.mxu0
    %v4245 = vadd.f32 %v4225, %v4244
    %4246 = vdwg.mxu0
    %v4247 = vmul.f32 %v4222, %v4245
    %v4248 = vsel %vm865, %v4247, 0.0
    %4249 = vadd.xlane.f32.xlu0 %v4248
    %v4250 = vpop.xlane.xlu0 %4249
    %v4251 = vmul.f32 %v4250, 0.17677669
    %v4252 = vsub.f32 %v4251, %v4251
    %v4253 = vmul.f32 %v4252, 1.442695
    %v4254 = vpow.pop %v4253
    %v4255 = vadd.f32 %v4254, 0.0
    %v4256 = vrcp.pop %v4255
    %v4257 = vmul.f32 %v4254, %v4256
    %4259 = vrot.lane.b32.xlu0 %v4245, 96
    %v4260 = vpop.permute.xlu0 %4259
    %v4262 = vsel %vm1518, %v4257, 0
    %v4264 = vsel %vm763, %v4260, 0
    %4266 = vmatpush.msra.mxu0 0.0
    %4267 = vmatpush.msra.mxu0 0.0
    %4268 = vmatpush.msra.mxu0 0.0
    %4269 = vmatpush.msra.mxu0 0.0
    %4270 = vmatpush.msra.mxu0 0.0
    %4271 = vmatpush.msra.mxu0 0.0
    %4272 = vmatpush.msra.mxu0 0.0
    %4273 = vmatpush.msra.mxu0 0.0
    %4274 = vmatpush.msra.mxu0 0.0
    %4275 = vmatpush.msra.mxu0 0.0
    %4276 = vmatpush.msra.mxu0 0.0
    %4277 = vmatpush.msra.mxu0 0.0
    %4278 = vmatpush.msra.mxu0 0.0
    %4279 = vmatpush.msra.mxu0 0.0
    %4280 = vmatpush.msra.mxu0 0.0
    %4281 = vmatpush.msra.mxu0 %v4264
    %4282 = vmatmul.f32.gmra.mxu0 %v4262
    %v4283 = vpop.f32.mrf.mxu0
    %v4284 = vadd.f32 0.0, %v4283
    %4285 = vdwg.mxu0
    %v4286 = vadd.f32 %v4222, %v4284
    %4288 = vrot.lane.b32.xlu0 %v4247, 120
    %v4289 = vpop.permute.xlu0 %4288
    %v4291 = vsel %vm865, %v4289, 0.0
    %4292 = vadd.xlane.f32.xlu0 %v4291
    %v4293 = vpop.xlane.xlu0 %4292
    %v4294 = vmul.f32 %v4293, 0.17677669
    %v4295 = vsub.f32 %v4294, %v4294
    %v4296 = vmul.f32 %v4295, 1.442695
    %v4297 = vpow.pop %v4296
    %v4298 = vadd.f32 %v4297, 0.0
    %v4299 = vrcp.pop %v4298
    %v4300 = vmul.f32 %v4297, %v4299
    %4301 = vrot.lane.b32.xlu0 %v4245, 88
    %v4302 = vpop.permute.xlu0 %4301
    %v4304 = vsel %vm1518, %v4300, 0
    %v4306 = vsel %vm763, %v4302, 0
    %4308 = vmatpush.msra.mxu0 0.0
    %4309 = vmatpush.msra.mxu0 0.0
    %4310 = vmatpush.msra.mxu0 0.0
    %4311 = vmatpush.msra.mxu0 0.0
    %4312 = vmatpush.msra.mxu0 0.0
    %4313 = vmatpush.msra.mxu0 0.0
    %4314 = vmatpush.msra.mxu0 0.0
    %4315 = vmatpush.msra.mxu0 0.0
    %4316 = vmatpush.msra.mxu0 0.0
    %4317 = vmatpush.msra.mxu0 0.0
    %4318 = vmatpush.msra.mxu0 0.0
    %4319 = vmatpush.msra.mxu0 0.0
    %4320 = vmatpush.msra.mxu0 0.0
    %4321 = vmatpush.msra.mxu0 0.0
    %4322 = vmatpush.msra.mxu0 0.0
    %4323 = vmatpush.msra.mxu0 %v4306
    %4324 = vmatmul.f32.gmra.mxu0 %v4304
    %v4325 = vpop.f32.mrf.mxu0
    %v4326 = vadd.f32 0.0, %v4325
    %4327 = vdwg.mxu0
    %4329 = vrot.lane.b32.xlu0 %v4326, 8
    %v4330 = vpop.permute.xlu0 %4329
    %v4332 = vadd.f32 %v4222, %v4330
    %4333 = vrot.lane.b32.xlu0 %v4247, 112
    %v4334 = vpop.permute.xlu0 %4333
    %v4336 = vsel %vm865, %v4334, 0.0
    %4337 = vadd.xlane.f32.xlu0 %v4336
    %v4338 = vpop.xlane.xlu0 %4337
    %v4339 = vmul.f32 %v4338, 0.17677669
    %v4340 = vsub.f32 %v4339, %v4339
    %v4341 = vmul.f32 %v4340, 1.442695
    %v4342 = vpow.pop %v4341
    %v4343 = vadd.f32 %v4342, 0.0
    %v4344 = vrcp.pop %v4343
    %v4345 = vmul.f32 %v4342, %v4344
    %4346 = vrot.lane.b32.xlu0 %v4245, 80
    %v4347 = vpop.permute.xlu0 %4346
    %v4349 = vsel %vm1518, %v4345, 0
    %v4351 = vsel %vm763, %v4347, 0
    %4353 = vmatpush.msra.mxu0 0.0
    %4354 = vmatpush.msra.mxu0 0.0
    %4355 = vmatpush.msra.mxu0 0.0
    %4356 = vmatpush.msra.mxu0 0.0
    %4357 = vmatpush.msra.mxu0 0.0
    %4358 = vmatpush.msra.mxu0 0.0
    %4359 = vmatpush.msra.mxu0 0.0
    %4360 = vmatpush.msra.mxu0 0.0
    %4361 = vmatpush.msra.mxu0 0.0
    %4362 = vmatpush.msra.mxu0 0.0
    %4363 = vmatpush.msra.mxu0 0.0
    %4364 = vmatpush.msra.mxu0 0.0
    %4365 = vmatpush.msra.mxu0 0.0
    %4366 = vmatpush.msra.mxu0 0.0
    %4367 = vmatpush.msra.mxu0 0.0
    %4368 = vmatpush.msra.mxu0 %v4351
    %4369 = vmatmul.f32.gmra.mxu0 %v4349
    %v4370 = vpop.f32.mrf.mxu0
    %v4371 = vadd.f32 0.0, %v4370
    %4372 = vdwg.mxu0
    %4374 = vrot.lane.b32.xlu0 %v4371, 16
    %v4375 = vpop.permute.xlu0 %4374
    %v4377 = vadd.f32 %v4222, %v4375
    %4378 = vrot.lane.b32.xlu0 %v4247, 104
    %v4379 = vpop.permute.xlu0 %4378
    %v4381 = vsel %vm865, %v4379, 0.0
    %4382 = vadd.xlane.f32.xlu0 %v4381
    %v4383 = vpop.xlane.xlu0 %4382
    %v4384 = vmul.f32 %v4383, 0.17677669
    %v4385 = vsub.f32 %v4384, %v4384
    %v4386 = vmul.f32 %v4385, 1.442695
    %v4387 = vpow.pop %v4386
    %v4388 = vadd.f32 %v4387, 0.0
    %v4389 = vrcp.pop %v4388
    %v4390 = vmul.f32 %v4387, %v4389
    %4391 = vrot.lane.b32.xlu0 %v4245, 72
    %v4392 = vpop.permute.xlu0 %4391
    %v4394 = vsel %vm1518, %v4390, 0
    %v4396 = vsel %vm763, %v4392, 0
    %4398 = vmatpush.msra.mxu0 0.0
    %4399 = vmatpush.msra.mxu0 0.0
    %4400 = vmatpush.msra.mxu0 0.0
    %4401 = vmatpush.msra.mxu0 0.0
    %4402 = vmatpush.msra.mxu0 0.0
    %4403 = vmatpush.msra.mxu0 0.0
    %4404 = vmatpush.msra.mxu0 0.0
    %4405 = vmatpush.msra.mxu0 0.0
    %4406 = vmatpush.msra.mxu0 0.0
    %4407 = vmatpush.msra.mxu0 0.0
    %4408 = vmatpush.msra.mxu0 0.0
    %4409 = vmatpush.msra.mxu0 0.0
    %4410 = vmatpush.msra.mxu0 0.0
    %4411 = vmatpush.msra.mxu0 0.0
    %4412 = vmatpush.msra.mxu0 0.0
    %4413 = vmatpush.msra.mxu0 %v4396
    %4414 = vmatmul.f32.gmra.mxu0 %v4394
    %v4415 = vpop.f32.mrf.mxu0
    %v4416 = vadd.f32 0.0, %v4415
    %4417 = vdwg.mxu0
    %4419 = vrot.lane.b32.xlu0 %v4416, 24
    %v4420 = vpop.permute.xlu0 %4419
    %v4422 = vadd.f32 %v4222, %v4420
    %v4423 = vsel %vm446, %v4286, %v4332
    %v4424 = vsel %vm660, %v4423, %v4377
    %v4425 = vsel %vm502, %v4424, %v4422
    %v4426 = vsel %vm3969, %v4247, 0.0
    %4427 = vadd.xlane.f32.xlu0 %v4426
    %v4428 = vpop.xlane.xlu0 %4427
    %v4429 = vmul.f32 %v4428, 0.17677669
    %v4430 = vsub.f32 %v4429, %v4429
    %v4431 = vmul.f32 %v4430, 1.442695
    %v4432 = vpow.pop %v4431
    %v4433 = vadd.f32 %v4432, 0.0
    %v4434 = vrcp.pop %v4433
    %v4435 = vmul.f32 %v4432, %v4434
    %v4437 = vrot.slane %v4435, 1
    %v4438 = vrot.slane %v4245, 1
    %4439 = vrot.lane.b32.xlu0 %v4438, 96
    %v4440 = vpop.permute.xlu0 %4439
    %v4441 = vsel %vm1518, %v4437, 0
    %v4443 = vsel %vm763, %v4440, 0
    %4445 = vmatpush.msra.mxu0 0.0
    %4446 = vmatpush.msra.mxu0 0.0
    %4447 = vmatpush.msra.mxu0 0.0
    %4448 = vmatpush.msra.mxu0 0.0
    %4449 = vmatpush.msra.mxu0 0.0
    %4450 = vmatpush.msra.mxu0 0.0
    %4451 = vmatpush.msra.mxu0 0.0
    %4452 = vmatpush.msra.mxu0 0.0
    %4453 = vmatpush.msra.mxu0 0.0
    %4454 = vmatpush.msra.mxu0 0.0
    %4455 = vmatpush.msra.mxu0 0.0
    %4456 = vmatpush.msra.mxu0 0.0
    %4457 = vmatpush.msra.mxu0 0.0
    %4458 = vmatpush.msra.mxu0 0.0
    %4459 = vmatpush.msra.mxu0 0.0
    %4460 = vmatpush.msra.mxu0 %v4443
    %4461 = vmatmul.f32.gmra.mxu0 %v4441
    %v4462 = vpop.f32.mrf.mxu0
    %v4463 = vadd.f32 0.0, %v4462
    %4464 = vdwg.mxu0
    %v4466 = vrot.slane %v4463, 7
    %v4468 = vadd.f32 %v4222, %v4466
    %v4469 = vsel %vm3969, %v4289, 0.0
    %4470 = vadd.xlane.f32.xlu0 %v4469
    %v4471 = vpop.xlane.xlu0 %4470
    %v4472 = vmul.f32 %v4471, 0.17677669
    %v4473 = vsub.f32 %v4472, %v4472
    %v4474 = vmul.f32 %v4473, 1.442695
    %v4475 = vpow.pop %v4474
    %v4476 = vadd.f32 %v4475, 0.0
    %v4477 = vrcp.pop %v4476
    %v4478 = vmul.f32 %v4475, %v4477
    %v4480 = vrot.slane %v4478, 1
    %4481 = vrot.lane.b32.xlu0 %v4438, 88
    %v4482 = vpop.permute.xlu0 %4481
    %v4483 = vsel %vm1518, %v4480, 0
    %v4485 = vsel %vm763, %v4482, 0
    %4487 = vmatpush.msra.mxu0 0.0
    %4488 = vmatpush.msra.mxu0 0.0
    %4489 = vmatpush.msra.mxu0 0.0
    %4490 = vmatpush.msra.mxu0 0.0
    %4491 = vmatpush.msra.mxu0 0.0
    %4492 = vmatpush.msra.mxu0 0.0
    %4493 = vmatpush.msra.mxu0 0.0
    %4494 = vmatpush.msra.mxu0 0.0
    %4495 = vmatpush.msra.mxu0 0.0
    %4496 = vmatpush.msra.mxu0 0.0
    %4497 = vmatpush.msra.mxu0 0.0
    %4498 = vmatpush.msra.mxu0 0.0
    %4499 = vmatpush.msra.mxu0 0.0
    %4500 = vmatpush.msra.mxu0 0.0
    %4501 = vmatpush.msra.mxu0 0.0
    %4502 = vmatpush.msra.mxu0 %v4485
    %4503 = vmatmul.f32.gmra.mxu0 %v4483
    %v4504 = vpop.f32.mrf.mxu0
    %v4505 = vadd.f32 0.0, %v4504
    %4506 = vdwg.mxu0
    %v4508 = vrot.slane %v4505, 7
    %4509 = vrot.lane.b32.xlu0 %v4508, 8
    %v4510 = vpop.permute.xlu0 %4509
    %v4512 = vadd.f32 %v4222, %v4510
    %v4513 = vsel %vm3969, %v4334, 0.0
    %4514 = vadd.xlane.f32.xlu0 %v4513
    %v4515 = vpop.xlane.xlu0 %4514
    %v4516 = vmul.f32 %v4515, 0.17677669
    %v4517 = vsub.f32 %v4516, %v4516
    %v4518 = vmul.f32 %v4517, 1.442695
    %v4519 = vpow.pop %v4518
    %v4520 = vadd.f32 %v4519, 0.0
    %v4521 = vrcp.pop %v4520
    %v4522 = vmul.f32 %v4519, %v4521
    %v4524 = vrot.slane %v4522, 1
    %4525 = vrot.lane.b32.xlu0 %v4438, 80
    %v4526 = vpop.permute.xlu0 %4525
    %v4527 = vsel %vm1518, %v4524, 0
    %v4529 = vsel %vm763, %v4526, 0
    %4531 = vmatpush.msra.mxu0 0.0
    %4532 = vmatpush.msra.mxu0 0.0
    %4533 = vmatpush.msra.mxu0 0.0
    %4534 = vmatpush.msra.mxu0 0.0
    %4535 = vmatpush.msra.mxu0 0.0
    %4536 = vmatpush.msra.mxu0 0.0
    %4537 = vmatpush.msra.mxu0 0.0
    %4538 = vmatpush.msra.mxu0 0.0
    %4539 = vmatpush.msra.mxu0 0.0
    %4540 = vmatpush.msra.mxu0 0.0
    %4541 = vmatpush.msra.mxu0 0.0
    %4542 = vmatpush.msra.mxu0 0.0
    %4543 = vmatpush.msra.mxu0 0.0
    %4544 = vmatpush.msra.mxu0 0.0
    %4545 = vmatpush.msra.mxu0 0.0
    %4546 = vmatpush.msra.mxu0 %v4529
    %4547 = vmatmul.f32.gmra.mxu0 %v4527
    %v4548 = vpop.f32.mrf.mxu0
    %v4549 = vadd.f32 0.0, %v4548
    %4550 = vdwg.mxu0
    %v4552 = vrot.slane %v4549, 7
    %4553 = vrot.lane.b32.xlu0 %v4552, 16
    %v4554 = vpop.permute.xlu0 %4553
    %v4556 = vadd.f32 %v4222, %v4554
    %v4557 = vsel %vm3969, %v4379, 0.0
    %4558 = vadd.xlane.f32.xlu0 %v4557
    %v4559 = vpop.xlane.xlu0 %4558
    %v4560 = vmul.f32 %v4559, 0.17677669
    %v4561 = vsub.f32 %v4560, %v4560
    %v4562 = vmul.f32 %v4561, 1.442695
    %v4563 = vpow.pop %v4562
    %v4564 = vadd.f32 %v4563, 0.0
    %v4565 = vrcp.pop %v4564
    %v4566 = vmul.f32 %v4563, %v4565
    %v4568 = vrot.slane %v4566, 1
    %4569 = vrot.lane.b32.xlu0 %v4438, 72
    %v4570 = vpop.permute.xlu0 %4569
    %v4571 = vsel %vm1518, %v4568, 0
    %v4573 = vsel %vm763, %v4570, 0
    %4575 = vmatpush.msra.mxu0 0.0
    %4576 = vmatpush.msra.mxu0 0.0
    %4577 = vmatpush.msra.mxu0 0.0
    %4578 = vmatpush.msra.mxu0 0.0
    %4579 = vmatpush.msra.mxu0 0.0
    %4580 = vmatpush.msra.mxu0 0.0
    %4581 = vmatpush.msra.mxu0 0.0
    %4582 = vmatpush.msra.mxu0 0.0
    %4583 = vmatpush.msra.mxu0 0.0
    %4584 = vmatpush.msra.mxu0 0.0
    %4585 = vmatpush.msra.mxu0 0.0
    %4586 = vmatpush.msra.mxu0 0.0
    %4587 = vmatpush.msra.mxu0 0.0
    %4588 = vmatpush.msra.mxu0 0.0
    %4589 = vmatpush.msra.mxu0 0.0
    %4590 = vmatpush.msra.mxu0 %v4573
    %4591 = vmatmul.f32.gmra.mxu0 %v4571
    %v4592 = vpop.f32.mrf.mxu0
    %v4593 = vadd.f32 0.0, %v4592
    %4594 = vdwg.mxu0
    %v4596 = vrot.slane %v4593, 7
    %4597 = vrot.lane.b32.xlu0 %v4596, 24
    %v4598 = vpop.permute.xlu0 %4597
    %v4600 = vadd.f32 %v4222, %v4598
    %v4601 = vsel %vm446, %v4468, %v4512
    %v4602 = vsel %vm660, %v4601, %v4556
    %v4603 = vsel %vm502, %v4602, %v4600
    %v4604 = vsel %vm763, %v4425, %v4603
    %v4606 = vperm.slane %v4197, 0
    %v4609 = vsel %vm542, %v4604, 0
    %4611 = vmatpush.msra.mxu0 0.0
    %4612 = vmatpush.msra.mxu0 0.0
    %4613 = vmatpush.msra.mxu0 0.0
    %4614 = vmatpush.msra.mxu0 0.0
    %4615 = vmatpush.msra.mxu0 0.0
    %4616 = vmatpush.msra.mxu0 0.0
    %4617 = vmatpush.msra.mxu0 0.0
    %4618 = vmatpush.msra.mxu0 0.0
    %4619 = vmatpush.msra.mxu0 0.0
    %4620 = vmatpush.msra.mxu0 0.0
    %4621 = vmatpush.msra.mxu0 0.0
    %4622 = vmatpush.msra.mxu0 0.0
    %4623 = vmatpush.msra.mxu0 %v4195
    %4624 = vmatpush.msra.mxu0 %v4194
    %4625 = vmatpush.msra.mxu0 %v4193
    %4626 = vmatpush.msra.mxu0 %v4192
    %4627 = vmatmul.f32.gmra.mxu0 %v4609
    %v4628 = vpop.f32.mrf.mxu0
    %v4629 = vadd.f32 %v4606, %v4628
    %4630 = vdwg.mxu0
    %v4631 = vmax.f32 %v4629, 0.0
    %v4632 = vadd.f32 %v4604, %v4631
    %v4633 = vld [vmem:[%s69] sm:$0xff]
    %v4634 = vld [vmem:[%s69 + $0x8] sm:$0xff]
    %v4635 = vld [vmem:[%s69 + $0x10] sm:$0xff]
    %v4636 = vld [vmem:[%s69 + $0x18] sm:$0xff]
    %v4637 = vld [vmem:[#allocation30] sm:$0x1]
    %v4639 = vperm.slane %v4637, 0
    %v4642 = vsel %vm542, %v4632, 0
    %4644 = vmatpush.msra.mxu0 0.0
    %4645 = vmatpush.msra.mxu0 0.0
    %4646 = vmatpush.msra.mxu0 0.0
    %4647 = vmatpush.msra.mxu0 0.0
    %4648 = vmatpush.msra.mxu0 0.0
    %4649 = vmatpush.msra.mxu0 0.0
    %4650 = vmatpush.msra.mxu0 0.0
    %4651 = vmatpush.msra.mxu0 0.0
    %4652 = vmatpush.msra.mxu0 0.0
    %4653 = vmatpush.msra.mxu0 0.0
    %4654 = vmatpush.msra.mxu0 0.0
    %4655 = vmatpush.msra.mxu0 0.0
    %4656 = vmatpush.msra.mxu0 %v4636
    %4657 = vmatpush.msra.mxu0 %v4635
    %4658 = vmatpush.msra.mxu0 %v4634
    %4659 = vmatpush.msra.mxu0 %v4633
    %4660 = vmatmul.f32.gmra.mxu0 %v4642
    %v4661 = vpop.f32.mrf.mxu0
    %v4662 = vadd.f32 %v4639, %v4661
    %4663 = vdwg.mxu0
    %v4664 = vld [vmem:[%s73] sm:$0x1f]
    %v4666 = vrot.slane %v4664, 7
    %v4669 = vrot.slane %v4662, 3
    %v4671 = vrot.slane %v4664, 1
    %v4673 = vsel %vm763, %v4662, %v4666
    %vm4674 = vcmask 1045504
    %v4675 = vsel %vm4674, %v4673, %v4669
    %vm4676 = vcmask 1046528
    %v4677 = vsel %vm4676, %v4675, %v4671
    %4678 = vst.msk [vmem:[%s75] sm:$0xff] %vm660, %v4677
    %vm4679 = vcmask 125952
    %4680 = vst.msk [vmem:[%s75 + $0x8] sm:$0xf] %vm4679, %v4671
    // Predicated region
    $region226: #{our_model_forward.1} parent=1 // pred_check
      _
    $region227: #{our_model_forward.1} parent=1 // pred_check_branch
      %4682 = sbr.rel (0) target = $region229
    $region228: #{our_model_forward.1} parent=1 // pred_region
      _
    $region229: #{our_model_forward.1} parent=1 // pred_fallthru
      _
    // Predicated region
    $region230: #{our_model_forward.1} parent=1 // pred_check
      _
    $region231: #{our_model_forward.1} parent=1 // pred_check_branch
      %4684 = sbr.rel (0) target = $region233
    $region232: #{our_model_forward.1} parent=1 // pred_region
      _
    $region233: #{our_model_forward.1} parent=1 // pred_fallthru
      _
    %4685 = vsyncpa [#allocation3], 1
    %4686 = vsyncpa [#allocation5], 1
    %4687 = vsyncpa [#allocation8], 1
    %4688 = vsyncpa [#allocation11], 1
    %4689 = vsyncpa [#allocation14], 1
    %4690 = vsyncpa [#allocation17], 1
    %4691 = vsyncpa [#allocation20], 1
    %4692 = vsyncpa [#allocation23], 1
    %4693 = vsyncpa [#allocation26], 1
    %4694 = vsyncpa [#allocation29], 1

</llo_original>
